<compile_context>
chip_gen: v6e
topology: v6e:2x2x1
jax: 0.10.0
libtpu: 0.0.40
codegen_flags: <defaults>
</compile_context>

<pallas_src>
import functools

import numpy as np

import jax
import jax.numpy as jnp
from jax.experimental import pallas as pl
from jax.experimental.pallas import tpu as pltpu


_TAPS = [(-1, -1), (-1, 0), (-1, 1),
         (0, -1), (0, 0), (0, 1),
         (1, -1), (1, 0), (1, 1)]


def _round_up(x, m):
    return (x + m - 1) // m * m


# ----------------------------------------------------------------------------
# Fused Pallas kernel: full CoSeg forward for Nb images per grid step.
# ----------------------------------------------------------------------------
def _coseg_kernel(pet_ref, ct_ref, inter_ref,
                  w1p_ref, b1p_ref, w2p_ref, b2p_ref,
                  w1c_ref, b1c_ref, w2c_ref, b2c_ref,
                  wf_ref, bf_ref, wh_ref, bh_ref,
                  out_ref, prob_ref, col_ref, *, Wp):
    f32 = jnp.float32
    L = pet_ref.shape[-1]                     # Nb * S lanes (multiple of 128)
    interior = inter_ref[...]                 # (1, L): 1 on real pixels, 0 on halo/pad

    def shifted(x, t):
        # x: (Cin, L).  Tap shift within each image's padded block; halo zeros
        # supply the "same" zero padding, so no per-tap masking is needed.
        dy, dx = _TAPS[t]
        off = dy * Wp + dx
        if off == 0:
            return x
        return pltpu.roll(x, (-off) % L, 1)    # XLU lane rotation

    def conv_in1(x, w_ref, b_ref):
        # First layer (Cin == 1): VPU shift-multiply-accumulate (skips a K=9
        # MXU push).  Kept f32 on all generations (v5e VPU has no bf16).
        w = w_ref[...]                          # (C, 9) f32
        acc = jnp.zeros((w.shape[0], L), f32) + b_ref[...]
        for t in range(9):
            acc = acc + w[:, t:t + 1] * shifted(x, t)
        # Re-zero the halo so the next layer's shifted reads see zero padding.
        return jnp.maximum(acc, 0.0) * interior

    def im2col_into(x, row0):
        # Write the 9 shifted copies of x (Cin, L) into col_ref rows
        # [row0, row0 + 9*Cin), tap-major, cast to the MXU operand dtype.
        cin = x.shape[0]
        for t in range(9):
            col_ref[row0 + t * cin:row0 + (t + 1) * cin, :] = (
                shifted(x, t).astype(col_ref.dtype))
        return row0 + 9 * cin

    def conv_mxu(w_ref, b_ref, rows, mask):
        y = jnp.dot(w_ref[...], col_ref[0:rows, :],
                    preferred_element_type=f32) + b_ref[...]
        y = jnp.maximum(y, 0.0)
        return y * interior if mask else y

    pet = pet_ref[0].astype(f32)               # (1, L)
    ct = ct_ref[0].astype(f32)                 # (1, L)

    # UNet branches: 1 -> C -> 2C channels.
    rows = im2col_into(conv_in1(pet, w1p_ref, b1p_ref), 0)
    pet_f = conv_mxu(w2p_ref, b2p_ref, rows, mask=True)       # (2C, L)
    rows = im2col_into(conv_in1(ct, w1c_ref, b1c_ref), 0)
    ct_f = conv_mxu(w2c_ref, b2c_ref, rows, mask=True)        # (2C, L)

    # FuseNet conv over channel-concat(pet_f, ct_f): the torch.cat is just the
    # row layout of the im2col scratch, consumed by ONE merged (2C, 9*4C) dot.
    rows = im2col_into(pet_f, 0)
    rows = im2col_into(ct_f, rows)
    fused = conv_mxu(wf_ref, bf_ref, rows, mask=False)        # (2C, L); halo values
                                                              # are never read again
    # 1x1 head (tiny, kept f32) + 2-class softmax as two EUP sigmoids.
    logits = jnp.dot(wh_ref[...], fused, preferred_element_type=f32) + bh_ref[...]
    l0, l1 = logits[0:1, :], logits[1:2, :]
    p0 = 1.0 / (1.0 + jnp.exp(l1 - l0))        # softmax[...,0]: direct, no 1-p
    p1 = 1.0 / (1.0 + jnp.exp(l0 - l1))        # softmax[...,1]

    out_ref[0] = logits.astype(out_ref.dtype)                          # one (2, L) store
    prob_ref[0] = jnp.concatenate([p0, p1], axis=0).astype(prob_ref.dtype)


# ----------------------------------------------------------------------------
# Wrapper: input packing, weight re-layout (trace time) + a single pallas_call.
# ----------------------------------------------------------------------------
def _choose_images_per_step(N, S, C, mxu_bytes, budget_bytes=24 << 20):
    # Heuristic per-image VMEM working set: im2col scratch (36C rows) + live
    # f32 activations (~12C rows) + pipelined I/O blocks, x2 for buffering.
    # Budget is conservative so the same tiling also fits v7x's smaller VMEM.
    per_image = S * (36 * C * mxu_bytes + 12 * C * 4 + 10 * 4) * 2
    cap = max(1, budget_bytes // per_image)
    best = 1
    for nb in range(1, N + 1):
        # keep >= 2 grid steps when possible so both v7x TensorCores get work
        if N % nb == 0 and nb <= cap and (N < 2 or N // nb >= 2):
            best = nb
    return best


def coseg_forward_pallas(params, pet_nchw, ct_nchw, *,
                         images_per_step=None, use_bf16=True):
    N, Cin, H, W = pet_nchw.shape
    if Cin != 1:
        raise ValueError("CoSeg branches expect single-channel PET/CT inputs")

    pb, cb, fb = params["pet_branch"], params["ct_branch"], params["fuse"]
    C = pb["w1"].shape[-1]

    Hp, Wp = H + 2, W + 2                     # zero-halo ring (replaces tap masks)
    HWp = Hp * Wp
    S = _round_up(HWp, 128)                   # per-image lane stride: keeps rolls,
                                              # dots and stores lane-aligned/dense
    mxu_dtype = jnp.bfloat16 if use_bf16 else jnp.float32
    mxu_bytes = 2 if use_bf16 else 4

    if images_per_step is None:
        Nb = _choose_images_per_step(N, S, C, mxu_bytes)
    else:
        Nb = int(images_per_step)
    if N % Nb != 0:
        raise ValueError(f"images_per_step={Nb} must divide batch size {N}")
    G = N // Nb                               # grid length ("parallel")
    L = Nb * S                                # lanes per grid step

    # -- pack inputs: zero halo + per-image lane-stride padding (cheap XLA pads)
    def pack(x):
        xp = jnp.pad(x, ((0, 0), (0, 0), (1, 1), (1, 1)))       # (N,1,Hp,Wp)
        xp = xp.reshape(N, 1, HWp)
        xp = jnp.pad(xp, ((0, 0), (0, 0), (0, S - HWp)))         # (N,1,S)
        return xp.reshape(G, 1, L)                               # free reshape

    pet_in, ct_in = pack(pet_nchw), pack(ct_nchw)

    # -- interior mask: 1 on real pixels, 0 on halo ring + alignment tail
    r = np.arange(HWp) // Wp
    c = np.arange(HWp) % Wp
    m = ((r >= 1) & (r <= H) & (c >= 1) & (c <= W)).astype(np.float32)
    m = np.concatenate([m, np.zeros(S - HWp, np.float32)])
    interior = jnp.asarray(np.tile(m, Nb)[None, :])              # (1, L)

    # -- weights: HWIO (3,3,Cin,Cout) -> (Cout, 9*Cin), K index = tap*Cin + cin
    def wmat(w, dtype):
        kh, kw, ci, co = w.shape
        return jnp.transpose(w.reshape(kh * kw * ci, co)).astype(dtype)

    def bcol(b):                               # (C,) -> (C,1): broadcasts over lanes
        return b.reshape(-1, 1).astype(jnp.float32)

    wf = fb["w1"]                              # (3,3,4C,2C): split per source branch,
    wf_merged = jnp.concatenate(               # re-merged so FuseNet is ONE K=9*4C dot
        [wmat(wf[:, :, :2 * C, :], mxu_dtype),
         wmat(wf[:, :, 2 * C:, :], mxu_dtype)], axis=1)          # (2C, 9*4C)

    flat_w = [
        wmat(pb["w1"], jnp.float32), bcol(pb["b1"]),   # VPU first layer stays f32
        wmat(pb["w2"], mxu_dtype), bcol(pb["b2"]),
        wmat(cb["w1"], jnp.float32), bcol(cb["b1"]),
        wmat(cb["w2"], mxu_dtype), bcol(cb["b2"]),
        wf_merged, bcol(fb["b1"]),
        jnp.transpose(fb["w_head"]).astype(jnp.float32), bcol(fb["b_head"]),
    ]

    kernel = functools.partial(_coseg_kernel, Wp=Wp)

    # Only raise the scoped-VMEM limit when the working set actually needs it
    # (keeps small configs inside every generation's default).
    est = (36 * C * mxu_bytes + 16 * C * 4) * L * 2
    cp_kwargs = dict(dimension_semantics=("parallel",))
    if est > 16 * 1024 * 1024:
        cp_kwargs["vmem_limit_bytes"] = int(min(100 * 1024 * 1024, 2 * est))

    out, prob = pl.pallas_call(
        kernel,
        out_shape=(jax.ShapeDtypeStruct((G, 2, L), jnp.float32),
                   jax.ShapeDtypeStruct((G, 2, L), jnp.float32)),
        grid=(G,),
        in_specs=[
            pl.BlockSpec((1, 1, L), lambda g: (g, 0, 0)),     # Nb pet images / step
            pl.BlockSpec((1, 1, L), lambda g: (g, 0, 0)),     # Nb ct images / step
            pl.BlockSpec((1, L), lambda g: (0, 0)),           # interior mask (const)
        ] + [pl.BlockSpec(w.shape, lambda g: (0, 0)) for w in flat_w],
        out_specs=(
            pl.BlockSpec((1, 2, L), lambda g: (g, 0, 0)),
            pl.BlockSpec((1, 2, L), lambda g: (g, 0, 0)),
        ),
        scratch_shapes=[pltpu.VMEM((36 * C, L), mxu_dtype)],   # shared im2col scratch
        compiler_params=pltpu.CompilerParams(**cp_kwargs),
    )(pet_in, ct_in, interior, *flat_w)

    # -- unpack: (G, 2, Nb*S) -> (N, 2, H, W); tiny XLA transpose/slice (2 channels)
    def unpack(y):
        y = y.reshape(G, 2, Nb, S).transpose(0, 2, 1, 3).reshape(N, 2, S)
        return y[:, :, :HWp].reshape(N, 2, Hp, Wp)[:, :, 1:-1, 1:-1]

    return unpack(out), unpack(prob)


coseg_forward = jax.jit(coseg_forward_pallas,
                        static_argnames=("images_per_step", "use_bf16"))


# ----------------------------------------------------------------------------
# Parameter init (HWIO conv weights, matching the layout contract above).
# ----------------------------------------------------------------------------
def init_unet_params(key, in_ch, C):
    k1, k2, k3, k4 = jax.random.split(key, 4)
    return {
        "w1": 0.1 * jax.random.normal(k1, (3, 3, in_ch, C), jnp.float32),
        "b1": 0.01 * jax.random.normal(k2, (C,), jnp.float32),
        "w2": 0.1 * jax.random.normal(k3, (3, 3, C, 2 * C), jnp.float32),
        "b2": 0.01 * jax.random.normal(k4, (2 * C,), jnp.float32),
    }


def init_fuse_params(key, C):
    k1, k2, k3, k4 = jax.random.split(key, 4)
    return {
        "w1": 0.1 * jax.random.normal(k1, (3, 3, 4 * C, 2 * C), jnp.float32),
        "b1": 0.01 * jax.random.normal(k2, (2 * C,), jnp.float32),
        "w_head": 0.1 * jax.random.normal(k3, (2 * C, 2), jnp.float32),
        "b_head": 0.01 * jax.random.normal(k4, (2,), jnp.float32),
    }


def init_coseg_params(key, in_ch=1, C=16):
    kp, kc, kf = jax.random.split(key, 3)
    return {
        "pet_branch": init_unet_params(kp, in_ch, C),
        "ct_branch": init_unet_params(kc, in_ch, C),
        "fuse": init_fuse_params(kf, C),
    }


# ----------------------------------------------------------------------------
# Pure-JAX (XLA) reference for correctness checking.
# ----------------------------------------------------------------------------
def _ref_forward(params, pet_nchw, ct_nchw):
    hi = jax.lax.Precision.HIGHEST

    def conv(x, w, b, relu=True):
        y = jax.lax.conv_general_dilated(
            x, w, (1, 1), "SAME",
            dimension_numbers=("NHWC", "HWIO", "NHWC"), precision=hi) + b
        return jnp.maximum(y, 0.0) if relu else y

    pet = jnp.transpose(pet_nchw, (0, 2, 3, 1))
    ct = jnp.transpose(ct_nchw, (0, 2, 3, 1))
    pb, cb, fb = params["pet_branch"], params["ct_branch"], params["fuse"]
    pf = conv(conv(pet, pb["w1"], pb["b1"]), pb["w2"], pb["b2"])
    cf = conv(conv(ct, cb["w1"], cb["b1"]), cb["w2"], cb["b2"])
    feat = jnp.concatenate((pf, cf), axis=-1)
    fused = conv(feat, fb["w1"], fb["b1"])
    logits = jnp.einsum("nhwc,cd->nhwd", fused, fb["w_head"], precision=hi) + fb["b_head"]
    prob = jax.nn.softmax(logits, axis=-1)
    return (jnp.transpose(logits, (0, 3, 1, 2)),
            jnp.transpose(prob, (0, 3, 1, 2)))


if __name__ == "__main__":
    key = jax.random.PRNGKey(0)
    kparams, kpet, kct = jax.random.split(key, 3)

    N, Cin, H, W = 4, 1, 16, 16
    C = 16  # matches the PyTorch default CoSeg(C=16)

    params = init_coseg_params(kparams, in_ch=Cin, C=C)
    pet = jax.random.normal(kpet, (N, Cin, H, W), jnp.float32)
    ct = jax.random.normal(kct, (N, Cin, H, W), jnp.float32)

    # Default (fast) path: bf16 MXU operands, Nb=2 images per grid step here.
    output, prob = coseg_forward(params, pet, ct)
    jax.block_until_ready((output, prob))

    assert output.shape == (N, 2, H, W)
    assert prob.shape == (N, 2, H, W)
    # softmax over the channel dim sums to 1
    assert bool(jnp.allclose(jnp.sum(prob, axis=1), 1.0, atol=1e-5))

    ref_out, ref_prob = _ref_forward(params, pet, ct)

    # bf16 MXU operands round each matmul operand (~2^-9 rel); f32 accumulation.
    # Loosened tolerance for this path; the f32 path below is the strict check.
    assert bool(jnp.allclose(output, ref_out, atol=5e-2, rtol=5e-2))
    assert bool(jnp.allclose(prob, ref_prob, atol=2e-2, rtol=2e-2))

    # Full-f32 MXU path: tight structural check (halo layout, merged FuseNet dot,
    # scratch im2col, lane-stacked batching) against the XLA reference.
    out32, prob32 = coseg_forward(params, pet, ct, use_bf16=False)
    jax.block_until_ready((out32, prob32))
    assert bool(jnp.allclose(out32, ref_out, atol=2e-3, rtol=2e-3))
    assert bool(jnp.allclose(prob32, ref_prob, atol=2e-3, rtol=2e-3))

    print("KERNEL_OK")
</pallas_src>

<mosaic_0001>
module attributes {stable_mosaic.version = 11 : i64} {
  func.func @_coseg_kernel(%arg0: i32, %arg1: memref<1x1x768xf32, #tpu.memory_space<vmem>>, %arg2: memref<1x1x768xf32, #tpu.memory_space<vmem>>, %arg3: memref<1x768xf32, #tpu.memory_space<vmem>>, %arg4: memref<16x9xf32, #tpu.memory_space<vmem>>, %arg5: memref<16x1xf32, #tpu.memory_space<vmem>>, %arg6: memref<32x144xbf16, #tpu.memory_space<vmem>>, %arg7: memref<32x1xf32, #tpu.memory_space<vmem>>, %arg8: memref<16x9xf32, #tpu.memory_space<vmem>>, %arg9: memref<16x1xf32, #tpu.memory_space<vmem>>, %arg10: memref<32x144xbf16, #tpu.memory_space<vmem>>, %arg11: memref<32x1xf32, #tpu.memory_space<vmem>>, %arg12: memref<32x576xbf16, #tpu.memory_space<vmem>>, %arg13: memref<32x1xf32, #tpu.memory_space<vmem>>, %arg14: memref<2x32xf32, #tpu.memory_space<vmem>>, %arg15: memref<2x1xf32, #tpu.memory_space<vmem>>, %arg16: memref<1x2x768xf32, #tpu.memory_space<vmem>>, %arg17: memref<1x2x768xf32, #tpu.memory_space<vmem>>, %arg18: memref<576x768xbf16, #tpu.memory_space<vmem>>) attributes {dimension_semantics = [#tpu.dimension_semantics<parallel>], iteration_bounds = array<i64: 2>, scalar_prefetch = 0 : i64, scratch_operands = 1 : i64, tpu.core_type = #tpu.core_type<tc>, window_params = [{transform_indices = @transform_0, window_bounds = array<i64: 1, 1, 768>}, {transform_indices = @transform_1, window_bounds = array<i64: 1, 1, 768>}, {pipeline_mode = #tpu.pipeline_mode<synchronous>, transform_indices = @transform_2, window_bounds = array<i64: 1, 768>}, {pipeline_mode = #tpu.pipeline_mode<synchronous>, transform_indices = @transform_3, window_bounds = array<i64: 16, 9>}, {pipeline_mode = #tpu.pipeline_mode<synchronous>, transform_indices = @transform_4, window_bounds = array<i64: 16, 1>}, {pipeline_mode = #tpu.pipeline_mode<synchronous>, transform_indices = @transform_5, window_bounds = array<i64: 32, 144>}, {pipeline_mode = #tpu.pipeline_mode<synchronous>, transform_indices = @transform_6, window_bounds = array<i64: 32, 1>}, {pipeline_mode = #tpu.pipeline_mode<synchronous>, transform_indices = @transform_7, window_bounds = array<i64: 16, 9>}, {pipeline_mode = #tpu.pipeline_mode<synchronous>, transform_indices = @transform_8, window_bounds = array<i64: 16, 1>}, {pipeline_mode = #tpu.pipeline_mode<synchronous>, transform_indices = @transform_9, window_bounds = array<i64: 32, 144>}, {pipeline_mode = #tpu.pipeline_mode<synchronous>, transform_indices = @transform_10, window_bounds = array<i64: 32, 1>}, {pipeline_mode = #tpu.pipeline_mode<synchronous>, transform_indices = @transform_11, window_bounds = array<i64: 32, 576>}, {pipeline_mode = #tpu.pipeline_mode<synchronous>, transform_indices = @transform_12, window_bounds = array<i64: 32, 1>}, {pipeline_mode = #tpu.pipeline_mode<synchronous>, transform_indices = @transform_13, window_bounds = array<i64: 2, 32>}, {pipeline_mode = #tpu.pipeline_mode<synchronous>, transform_indices = @transform_14, window_bounds = array<i64: 2, 1>}, {transform_indices = @transform_15, window_bounds = array<i64: 1, 2, 768>}, {transform_indices = @transform_16, window_bounds = array<i64: 1, 2, 768>}]} {
    %c0 = arith.constant 0 : index
    %c0_0 = arith.constant 0 : index
    %0 = vector.load %arg3[%c0, %c0_0] : memref<1x768xf32, #tpu.memory_space<vmem>>, vector<1x768xf32>
    %c0_1 = arith.constant 0 : index
    %c0_2 = arith.constant 0 : index
    %c0_3 = arith.constant 0 : index
    %1 = vector.load %arg1[%c0_1, %c0_2, %c0_3] : memref<1x1x768xf32, #tpu.memory_space<vmem>>, vector<1x1x768xf32>
    %2 = vector.shape_cast %1 : vector<1x1x768xf32> to vector<1x768xf32>
    %c0_4 = arith.constant 0 : index
    %c0_5 = arith.constant 0 : index
    %c0_6 = arith.constant 0 : index
    %3 = vector.load %arg2[%c0_4, %c0_5, %c0_6] : memref<1x1x768xf32, #tpu.memory_space<vmem>>, vector<1x1x768xf32>
    %4 = vector.shape_cast %3 : vector<1x1x768xf32> to vector<1x768xf32>
    %c0_7 = arith.constant 0 : index
    %c0_8 = arith.constant 0 : index
    %5 = vector.load %arg4[%c0_7, %c0_8] : memref<16x9xf32, #tpu.memory_space<vmem>>, vector<16x9xf32>
    %cst = arith.constant 0.000000e+00 : f32
    %6 = vector.broadcast %cst : f32 to vector<16x768xf32>
    %c0_9 = arith.constant 0 : index
    %c0_10 = arith.constant 0 : index
    %7 = vector.load %arg5[%c0_9, %c0_10] : memref<16x1xf32, #tpu.memory_space<vmem>>, vector<16x1xf32>
    %8 = vector.broadcast %7 : vector<16x1xf32> to vector<16x768xf32>
    %9 = arith.addf %6, %8 : vector<16x768xf32>
    %10 = vector.extract_strided_slice %5 {offsets = [0, 0], sizes = [16, 1], strides = [1, 1]} : vector<16x9xf32> to vector<16x1xf32>
    %c19_i32 = arith.constant 19 : i32
    %11 = tpu.dynamic_rotate %2 by %c19_i32 dim 1 : vector<1x768xf32>, i32 -> vector<1x768xf32>
    %12 = vector.broadcast %10 : vector<16x1xf32> to vector<16x768xf32>
    %13 = vector.broadcast %11 : vector<1x768xf32> to vector<16x768xf32>
    %14 = arith.mulf %12, %13 : vector<16x768xf32>
    %15 = arith.addf %9, %14 : vector<16x768xf32>
    %16 = vector.extract_strided_slice %5 {offsets = [0, 1], sizes = [16, 1], strides = [1, 1]} : vector<16x9xf32> to vector<16x1xf32>
    %c18_i32 = arith.constant 18 : i32
    %17 = tpu.dynamic_rotate %2 by %c18_i32 dim 1 : vector<1x768xf32>, i32 -> vector<1x768xf32>
    %18 = vector.broadcast %16 : vector<16x1xf32> to vector<16x768xf32>
    %19 = vector.broadcast %17 : vector<1x768xf32> to vector<16x768xf32>
    %20 = arith.mulf %18, %19 : vector<16x768xf32>
    %21 = arith.addf %15, %20 : vector<16x768xf32>
    %22 = vector.extract_strided_slice %5 {offsets = [0, 2], sizes = [16, 1], strides = [1, 1]} : vector<16x9xf32> to vector<16x1xf32>
    %c17_i32 = arith.constant 17 : i32
    %23 = tpu.dynamic_rotate %2 by %c17_i32 dim 1 : vector<1x768xf32>, i32 -> vector<1x768xf32>
    %24 = vector.broadcast %22 : vector<16x1xf32> to vector<16x768xf32>
    %25 = vector.broadcast %23 : vector<1x768xf32> to vector<16x768xf32>
    %26 = arith.mulf %24, %25 : vector<16x768xf32>
    %27 = arith.addf %21, %26 : vector<16x768xf32>
    %28 = vector.extract_strided_slice %5 {offsets = [0, 3], sizes = [16, 1], strides = [1, 1]} : vector<16x9xf32> to vector<16x1xf32>
    %c1_i32 = arith.constant 1 : i32
    %29 = tpu.dynamic_rotate %2 by %c1_i32 dim 1 : vector<1x768xf32>, i32 -> vector<1x768xf32>
    %30 = vector.broadcast %28 : vector<16x1xf32> to vector<16x768xf32>
    %31 = vector.broadcast %29 : vector<1x768xf32> to vector<16x768xf32>
    %32 = arith.mulf %30, %31 : vector<16x768xf32>
    %33 = arith.addf %27, %32 : vector<16x768xf32>
    %34 = vector.extract_strided_slice %5 {offsets = [0, 4], sizes = [16, 1], strides = [1, 1]} : vector<16x9xf32> to vector<16x1xf32>
    %35 = vector.broadcast %34 : vector<16x1xf32> to vector<16x768xf32>
    %36 = vector.broadcast %2 : vector<1x768xf32> to vector<16x768xf32>
    %37 = arith.mulf %35, %36 : vector<16x768xf32>
    %38 = arith.addf %33, %37 : vector<16x768xf32>
    %39 = vector.extract_strided_slice %5 {offsets = [0, 5], sizes = [16, 1], strides = [1, 1]} : vector<16x9xf32> to vector<16x1xf32>
    %c767_i32 = arith.constant 767 : i32
    %40 = tpu.dynamic_rotate %2 by %c767_i32 dim 1 : vector<1x768xf32>, i32 -> vector<1x768xf32>
    %41 = vector.broadcast %39 : vector<16x1xf32> to vector<16x768xf32>
    %42 = vector.broadcast %40 : vector<1x768xf32> to vector<16x768xf32>
    %43 = arith.mulf %41, %42 : vector<16x768xf32>
    %44 = arith.addf %38, %43 : vector<16x768xf32>
    %45 = vector.extract_strided_slice %5 {offsets = [0, 6], sizes = [16, 1], strides = [1, 1]} : vector<16x9xf32> to vector<16x1xf32>
    %c751_i32 = arith.constant 751 : i32
    %46 = tpu.dynamic_rotate %2 by %c751_i32 dim 1 : vector<1x768xf32>, i32 -> vector<1x768xf32>
    %47 = vector.broadcast %45 : vector<16x1xf32> to vector<16x768xf32>
    %48 = vector.broadcast %46 : vector<1x768xf32> to vector<16x768xf32>
    %49 = arith.mulf %47, %48 : vector<16x768xf32>
    %50 = arith.addf %44, %49 : vector<16x768xf32>
    %51 = vector.extract_strided_slice %5 {offsets = [0, 7], sizes = [16, 1], strides = [1, 1]} : vector<16x9xf32> to vector<16x1xf32>
    %c750_i32 = arith.constant 750 : i32
    %52 = tpu.dynamic_rotate %2 by %c750_i32 dim 1 : vector<1x768xf32>, i32 -> vector<1x768xf32>
    %53 = vector.broadcast %51 : vector<16x1xf32> to vector<16x768xf32>
    %54 = vector.broadcast %52 : vector<1x768xf32> to vector<16x768xf32>
    %55 = arith.mulf %53, %54 : vector<16x768xf32>
    %56 = arith.addf %50, %55 : vector<16x768xf32>
    %57 = vector.extract_strided_slice %5 {offsets = [0, 8], sizes = [16, 1], strides = [1, 1]} : vector<16x9xf32> to vector<16x1xf32>
    %c749_i32 = arith.constant 749 : i32
    %58 = tpu.dynamic_rotate %2 by %c749_i32 dim 1 : vector<1x768xf32>, i32 -> vector<1x768xf32>
    %59 = vector.broadcast %57 : vector<16x1xf32> to vector<16x768xf32>
    %60 = vector.broadcast %58 : vector<1x768xf32> to vector<16x768xf32>
    %61 = arith.mulf %59, %60 : vector<16x768xf32>
    %62 = arith.addf %56, %61 : vector<16x768xf32>
    %cst_11 = arith.constant 0.000000e+00 : f32
    %63 = vector.broadcast %cst_11 : f32 to vector<16x768xf32>
    %64 = arith.maximumf %62, %63 : vector<16x768xf32>
    %65 = vector.broadcast %0 : vector<1x768xf32> to vector<16x768xf32>
    %66 = arith.mulf %64, %65 : vector<16x768xf32>
    %c19_i32_12 = arith.constant 19 : i32
    %67 = tpu.dynamic_rotate %66 by %c19_i32_12 dim 1 : vector<16x768xf32>, i32 -> vector<16x768xf32>
    %68 = arith.truncf %67 : vector<16x768xf32> to vector<16x768xbf16>
    %c0_13 = arith.constant 0 : index
    %c0_14 = arith.constant 0 : index
    %69 = vector.load %arg18[%c0_13, %c0_14] : memref<576x768xbf16, #tpu.memory_space<vmem>>, vector<16x768xbf16>
    tpu.vector_store %arg18[%c0_13, %c0_14], %68 {strides = array<i32>} : memref<576x768xbf16, #tpu.memory_space<vmem>>, vector<16x768xbf16>,
    %c18_i32_15 = arith.constant 18 : i32
    %70 = tpu.dynamic_rotate %66 by %c18_i32_15 dim 1 : vector<16x768xf32>, i32 -> vector<16x768xf32>
    %71 = arith.truncf %70 : vector<16x768xf32> to vector<16x768xbf16>
    %c16 = arith.constant 16 : index
    %c0_16 = arith.constant 0 : index
    %72 = vector.load %arg18[%c16, %c0_16] : memref<576x768xbf16, #tpu.memory_space<vmem>>, vector<16x768xbf16>
    tpu.vector_store %arg18[%c16, %c0_16], %71 {strides = array<i32>} : memref<576x768xbf16, #tpu.memory_space<vmem>>, vector<16x768xbf16>,
    %c17_i32_17 = arith.constant 17 : i32
    %73 = tpu.dynamic_rotate %66 by %c17_i32_17 dim 1 : vector<16x768xf32>, i32 -> vector<16x768xf32>
    %74 = arith.truncf %73 : vector<16x768xf32> to vector<16x768xbf16>
    %c32 = arith.constant 32 : index
    %c0_18 = arith.constant 0 : index
    %75 = vector.load %arg18[%c32, %c0_18] : memref<576x768xbf16, #tpu.memory_space<vmem>>, vector<16x768xbf16>
    tpu.vector_store %arg18[%c32, %c0_18], %74 {strides = array<i32>} : memref<576x768xbf16, #tpu.memory_space<vmem>>, vector<16x768xbf16>,
    %c1_i32_19 = arith.constant 1 : i32
    %76 = tpu.dynamic_rotate %66 by %c1_i32_19 dim 1 : vector<16x768xf32>, i32 -> vector<16x768xf32>
    %77 = arith.truncf %76 : vector<16x768xf32> to vector<16x768xbf16>
    %c48 = arith.constant 48 : index
    %c0_20 = arith.constant 0 : index
    %78 = vector.load %arg18[%c48, %c0_20] : memref<576x768xbf16, #tpu.memory_space<vmem>>, vector<16x768xbf16>
    tpu.vector_store %arg18[%c48, %c0_20], %77 {strides = array<i32>} : memref<576x768xbf16, #tpu.memory_space<vmem>>, vector<16x768xbf16>,
    %79 = arith.truncf %66 : vector<16x768xf32> to vector<16x768xbf16>
    %c64 = arith.constant 64 : index
    %c0_21 = arith.constant 0 : index
    %80 = vector.load %arg18[%c64, %c0_21] : memref<576x768xbf16, #tpu.memory_space<vmem>>, vector<16x768xbf16>
    tpu.vector_store %arg18[%c64, %c0_21], %79 {strides = array<i32>} : memref<576x768xbf16, #tpu.memory_space<vmem>>, vector<16x768xbf16>,
    %c767_i32_22 = arith.constant 767 : i32
    %81 = tpu.dynamic_rotate %66 by %c767_i32_22 dim 1 : vector<16x768xf32>, i32 -> vector<16x768xf32>
    %82 = arith.truncf %81 : vector<16x768xf32> to vector<16x768xbf16>
    %c80 = arith.constant 80 : index
    %c0_23 = arith.constant 0 : index
    %83 = vector.load %arg18[%c80, %c0_23] : memref<576x768xbf16, #tpu.memory_space<vmem>>, vector<16x768xbf16>
    tpu.vector_store %arg18[%c80, %c0_23], %82 {strides = array<i32>} : memref<576x768xbf16, #tpu.memory_space<vmem>>, vector<16x768xbf16>,
    %c751_i32_24 = arith.constant 751 : i32
    %84 = tpu.dynamic_rotate %66 by %c751_i32_24 dim 1 : vector<16x768xf32>, i32 -> vector<16x768xf32>
    %85 = arith.truncf %84 : vector<16x768xf32> to vector<16x768xbf16>
    %c96 = arith.constant 96 : index
    %c0_25 = arith.constant 0 : index
    %86 = vector.load %arg18[%c96, %c0_25] : memref<576x768xbf16, #tpu.memory_space<vmem>>, vector<16x768xbf16>
    tpu.vector_store %arg18[%c96, %c0_25], %85 {strides = array<i32>} : memref<576x768xbf16, #tpu.memory_space<vmem>>, vector<16x768xbf16>,
    %c750_i32_26 = arith.constant 750 : i32
    %87 = tpu.dynamic_rotate %66 by %c750_i32_26 dim 1 : vector<16x768xf32>, i32 -> vector<16x768xf32>
    %88 = arith.truncf %87 : vector<16x768xf32> to vector<16x768xbf16>
    %c112 = arith.constant 112 : index
    %c0_27 = arith.constant 0 : index
    %89 = vector.load %arg18[%c112, %c0_27] : memref<576x768xbf16, #tpu.memory_space<vmem>>, vector<16x768xbf16>
    tpu.vector_store %arg18[%c112, %c0_27], %88 {strides = array<i32>} : memref<576x768xbf16, #tpu.memory_space<vmem>>, vector<16x768xbf16>,
    %c749_i32_28 = arith.constant 749 : i32
    %90 = tpu.dynamic_rotate %66 by %c749_i32_28 dim 1 : vector<16x768xf32>, i32 -> vector<16x768xf32>
    %91 = arith.truncf %90 : vector<16x768xf32> to vector<16x768xbf16>
    %c128 = arith.constant 128 : index
    %c0_29 = arith.constant 0 : index
    %92 = vector.load %arg18[%c128, %c0_29] : memref<576x768xbf16, #tpu.memory_space<vmem>>, vector<16x768xbf16>
    tpu.vector_store %arg18[%c128, %c0_29], %91 {strides = array<i32>} : memref<576x768xbf16, #tpu.memory_space<vmem>>, vector<16x768xbf16>,
    %c0_30 = arith.constant 0 : index
    %c0_31 = arith.constant 0 : index
    %93 = vector.load %arg6[%c0_30, %c0_31] : memref<32x144xbf16, #tpu.memory_space<vmem>>, vector<32x144xbf16>
    %c0_32 = arith.constant 0 : index
    %c0_33 = arith.constant 0 : index
    %94 = vector.load %arg18[%c0_32, %c0_33] : memref<576x768xbf16, #tpu.memory_space<vmem>>, vector<144x768xbf16>
    %cst_34 = arith.constant dense<0.000000e+00> : vector<32x768xf32>
    %95 = tpu.matmul %93, %94, %cst_34 {dimension_numbers = #tpu.dot_dimension_numbers<[1], [0], [0], [1], [0, 0, 1, 1], [], []>} : vector<32x144xbf16>, vector<144x768xbf16>, vector<32x768xf32> -> vector<32x768xf32>
    %c0_35 = arith.constant 0 : index
    %c0_36 = arith.constant 0 : index
    %96 = vector.load %arg7[%c0_35, %c0_36] : memref<32x1xf32, #tpu.memory_space<vmem>>, vector<32x1xf32>
    %97 = vector.broadcast %96 : vector<32x1xf32> to vector<32x768xf32>
    %98 = arith.addf %95, %97 : vector<32x768xf32>
    %cst_37 = arith.constant 0.000000e+00 : f32
    %99 = vector.broadcast %cst_37 : f32 to vector<32x768xf32>
    %100 = arith.maximumf %98, %99 : vector<32x768xf32>
    %101 = vector.broadcast %0 : vector<1x768xf32> to vector<32x768xf32>
    %102 = arith.mulf %100, %101 : vector<32x768xf32>
    %c0_38 = arith.constant 0 : index
    %c0_39 = arith.constant 0 : index
    %103 = vector.load %arg8[%c0_38, %c0_39] : memref<16x9xf32, #tpu.memory_space<vmem>>, vector<16x9xf32>
    %cst_40 = arith.constant 0.000000e+00 : f32
    %104 = vector.broadcast %cst_40 : f32 to vector<16x768xf32>
    %c0_41 = arith.constant 0 : index
    %c0_42 = arith.constant 0 : index
    %105 = vector.load %arg9[%c0_41, %c0_42] : memref<16x1xf32, #tpu.memory_space<vmem>>, vector<16x1xf32>
    %106 = vector.broadcast %105 : vector<16x1xf32> to vector<16x768xf32>
    %107 = arith.addf %104, %106 : vector<16x768xf32>
    %108 = vector.extract_strided_slice %103 {offsets = [0, 0], sizes = [16, 1], strides = [1, 1]} : vector<16x9xf32> to vector<16x1xf32>
    %c19_i32_43 = arith.constant 19 : i32
    %109 = tpu.dynamic_rotate %4 by %c19_i32_43 dim 1 : vector<1x768xf32>, i32 -> vector<1x768xf32>
    %110 = vector.broadcast %108 : vector<16x1xf32> to vector<16x768xf32>
    %111 = vector.broadcast %109 : vector<1x768xf32> to vector<16x768xf32>
    %112 = arith.mulf %110, %111 : vector<16x768xf32>
    %113 = arith.addf %107, %112 : vector<16x768xf32>
    %114 = vector.extract_strided_slice %103 {offsets = [0, 1], sizes = [16, 1], strides = [1, 1]} : vector<16x9xf32> to vector<16x1xf32>
    %c18_i32_44 = arith.constant 18 : i32
    %115 = tpu.dynamic_rotate %4 by %c18_i32_44 dim 1 : vector<1x768xf32>, i32 -> vector<1x768xf32>
    %116 = vector.broadcast %114 : vector<16x1xf32> to vector<16x768xf32>
    %117 = vector.broadcast %115 : vector<1x768xf32> to vector<16x768xf32>
    %118 = arith.mulf %116, %117 : vector<16x768xf32>
    %119 = arith.addf %113, %118 : vector<16x768xf32>
    %120 = vector.extract_strided_slice %103 {offsets = [0, 2], sizes = [16, 1], strides = [1, 1]} : vector<16x9xf32> to vector<16x1xf32>
    %c17_i32_45 = arith.constant 17 : i32
    %121 = tpu.dynamic_rotate %4 by %c17_i32_45 dim 1 : vector<1x768xf32>, i32 -> vector<1x768xf32>
    %122 = vector.broadcast %120 : vector<16x1xf32> to vector<16x768xf32>
    %123 = vector.broadcast %121 : vector<1x768xf32> to vector<16x768xf32>
    %124 = arith.mulf %122, %123 : vector<16x768xf32>
    %125 = arith.addf %119, %124 : vector<16x768xf32>
    %126 = vector.extract_strided_slice %103 {offsets = [0, 3], sizes = [16, 1], strides = [1, 1]} : vector<16x9xf32> to vector<16x1xf32>
    %c1_i32_46 = arith.constant 1 : i32
    %127 = tpu.dynamic_rotate %4 by %c1_i32_46 dim 1 : vector<1x768xf32>, i32 -> vector<1x768xf32>
    %128 = vector.broadcast %126 : vector<16x1xf32> to vector<16x768xf32>
    %129 = vector.broadcast %127 : vector<1x768xf32> to vector<16x768xf32>
    %130 = arith.mulf %128, %129 : vector<16x768xf32>
    %131 = arith.addf %125, %130 : vector<16x768xf32>
    %132 = vector.extract_strided_slice %103 {offsets = [0, 4], sizes = [16, 1], strides = [1, 1]} : vector<16x9xf32> to vector<16x1xf32>
    %133 = vector.broadcast %132 : vector<16x1xf32> to vector<16x768xf32>
    %134 = vector.broadcast %4 : vector<1x768xf32> to vector<16x768xf32>
    %135 = arith.mulf %133, %134 : vector<16x768xf32>
    %136 = arith.addf %131, %135 : vector<16x768xf32>
    %137 = vector.extract_strided_slice %103 {offsets = [0, 5], sizes = [16, 1], strides = [1, 1]} : vector<16x9xf32> to vector<16x1xf32>
    %c767_i32_47 = arith.constant 767 : i32
    %138 = tpu.dynamic_rotate %4 by %c767_i32_47 dim 1 : vector<1x768xf32>, i32 -> vector<1x768xf32>
    %139 = vector.broadcast %137 : vector<16x1xf32> to vector<16x768xf32>
    %140 = vector.broadcast %138 : vector<1x768xf32> to vector<16x768xf32>
    %141 = arith.mulf %139, %140 : vector<16x768xf32>
    %142 = arith.addf %136, %141 : vector<16x768xf32>
    %143 = vector.extract_strided_slice %103 {offsets = [0, 6], sizes = [16, 1], strides = [1, 1]} : vector<16x9xf32> to vector<16x1xf32>
    %c751_i32_48 = arith.constant 751 : i32
    %144 = tpu.dynamic_rotate %4 by %c751_i32_48 dim 1 : vector<1x768xf32>, i32 -> vector<1x768xf32>
    %145 = vector.broadcast %143 : vector<16x1xf32> to vector<16x768xf32>
    %146 = vector.broadcast %144 : vector<1x768xf32> to vector<16x768xf32>
    %147 = arith.mulf %145, %146 : vector<16x768xf32>
    %148 = arith.addf %142, %147 : vector<16x768xf32>
    %149 = vector.extract_strided_slice %103 {offsets = [0, 7], sizes = [16, 1], strides = [1, 1]} : vector<16x9xf32> to vector<16x1xf32>
    %c750_i32_49 = arith.constant 750 : i32
    %150 = tpu.dynamic_rotate %4 by %c750_i32_49 dim 1 : vector<1x768xf32>, i32 -> vector<1x768xf32>
    %151 = vector.broadcast %149 : vector<16x1xf32> to vector<16x768xf32>
    %152 = vector.broadcast %150 : vector<1x768xf32> to vector<16x768xf32>
    %153 = arith.mulf %151, %152 : vector<16x768xf32>
    %154 = arith.addf %148, %153 : vector<16x768xf32>
    %155 = vector.extract_strided_slice %103 {offsets = [0, 8], sizes = [16, 1], strides = [1, 1]} : vector<16x9xf32> to vector<16x1xf32>
    %c749_i32_50 = arith.constant 749 : i32
    %156 = tpu.dynamic_rotate %4 by %c749_i32_50 dim 1 : vector<1x768xf32>, i32 -> vector<1x768xf32>
    %157 = vector.broadcast %155 : vector<16x1xf32> to vector<16x768xf32>
    %158 = vector.broadcast %156 : vector<1x768xf32> to vector<16x768xf32>
    %159 = arith.mulf %157, %158 : vector<16x768xf32>
    %160 = arith.addf %154, %159 : vector<16x768xf32>
    %cst_51 = arith.constant 0.000000e+00 : f32
    %161 = vector.broadcast %cst_51 : f32 to vector<16x768xf32>
    %162 = arith.maximumf %160, %161 : vector<16x768xf32>
    %163 = vector.broadcast %0 : vector<1x768xf32> to vector<16x768xf32>
    %164 = arith.mulf %162, %163 : vector<16x768xf32>
    %c19_i32_52 = arith.constant 19 : i32
    %165 = tpu.dynamic_rotate %164 by %c19_i32_52 dim 1 : vector<16x768xf32>, i32 -> vector<16x768xf32>
    %166 = arith.truncf %165 : vector<16x768xf32> to vector<16x768xbf16>
    %c0_53 = arith.constant 0 : index
    %c0_54 = arith.constant 0 : index
    %167 = vector.load %arg18[%c0_53, %c0_54] : memref<576x768xbf16, #tpu.memory_space<vmem>>, vector<16x768xbf16>
    tpu.vector_store %arg18[%c0_53, %c0_54], %166 {strides = array<i32>} : memref<576x768xbf16, #tpu.memory_space<vmem>>, vector<16x768xbf16>,
    %c18_i32_55 = arith.constant 18 : i32
    %168 = tpu.dynamic_rotate %164 by %c18_i32_55 dim 1 : vector<16x768xf32>, i32 -> vector<16x768xf32>
    %169 = arith.truncf %168 : vector<16x768xf32> to vector<16x768xbf16>
    %c16_56 = arith.constant 16 : index
    %c0_57 = arith.constant 0 : index
    %170 = vector.load %arg18[%c16_56, %c0_57] : memref<576x768xbf16, #tpu.memory_space<vmem>>, vector<16x768xbf16>
    tpu.vector_store %arg18[%c16_56, %c0_57], %169 {strides = array<i32>} : memref<576x768xbf16, #tpu.memory_space<vmem>>, vector<16x768xbf16>,
    %c17_i32_58 = arith.constant 17 : i32
    %171 = tpu.dynamic_rotate %164 by %c17_i32_58 dim 1 : vector<16x768xf32>, i32 -> vector<16x768xf32>
    %172 = arith.truncf %171 : vector<16x768xf32> to vector<16x768xbf16>
    %c32_59 = arith.constant 32 : index
    %c0_60 = arith.constant 0 : index
    %173 = vector.load %arg18[%c32_59, %c0_60] : memref<576x768xbf16, #tpu.memory_space<vmem>>, vector<16x768xbf16>
    tpu.vector_store %arg18[%c32_59, %c0_60], %172 {strides = array<i32>} : memref<576x768xbf16, #tpu.memory_space<vmem>>, vector<16x768xbf16>,
    %c1_i32_61 = arith.constant 1 : i32
    %174 = tpu.dynamic_rotate %164 by %c1_i32_61 dim 1 : vector<16x768xf32>, i32 -> vector<16x768xf32>
    %175 = arith.truncf %174 : vector<16x768xf32> to vector<16x768xbf16>
    %c48_62 = arith.constant 48 : index
    %c0_63 = arith.constant 0 : index
    %176 = vector.load %arg18[%c48_62, %c0_63] : memref<576x768xbf16, #tpu.memory_space<vmem>>, vector<16x768xbf16>
    tpu.vector_store %arg18[%c48_62, %c0_63], %175 {strides = array<i32>} : memref<576x768xbf16, #tpu.memory_space<vmem>>, vector<16x768xbf16>,
    %177 = arith.truncf %164 : vector<16x768xf32> to vector<16x768xbf16>
    %c64_64 = arith.constant 64 : index
    %c0_65 = arith.constant 0 : index
    %178 = vector.load %arg18[%c64_64, %c0_65] : memref<576x768xbf16, #tpu.memory_space<vmem>>, vector<16x768xbf16>
    tpu.vector_store %arg18[%c64_64, %c0_65], %177 {strides = array<i32>} : memref<576x768xbf16, #tpu.memory_space<vmem>>, vector<16x768xbf16>,
    %c767_i32_66 = arith.constant 767 : i32
    %179 = tpu.dynamic_rotate %164 by %c767_i32_66 dim 1 : vector<16x768xf32>, i32 -> vector<16x768xf32>
    %180 = arith.truncf %179 : vector<16x768xf32> to vector<16x768xbf16>
    %c80_67 = arith.constant 80 : index
    %c0_68 = arith.constant 0 : index
    %181 = vector.load %arg18[%c80_67, %c0_68] : memref<576x768xbf16, #tpu.memory_space<vmem>>, vector<16x768xbf16>
    tpu.vector_store %arg18[%c80_67, %c0_68], %180 {strides = array<i32>} : memref<576x768xbf16, #tpu.memory_space<vmem>>, vector<16x768xbf16>,
    %c751_i32_69 = arith.constant 751 : i32
    %182 = tpu.dynamic_rotate %164 by %c751_i32_69 dim 1 : vector<16x768xf32>, i32 -> vector<16x768xf32>
    %183 = arith.truncf %182 : vector<16x768xf32> to vector<16x768xbf16>
    %c96_70 = arith.constant 96 : index
    %c0_71 = arith.constant 0 : index
    %184 = vector.load %arg18[%c96_70, %c0_71] : memref<576x768xbf16, #tpu.memory_space<vmem>>, vector<16x768xbf16>
    tpu.vector_store %arg18[%c96_70, %c0_71], %183 {strides = array<i32>} : memref<576x768xbf16, #tpu.memory_space<vmem>>, vector<16x768xbf16>,
    %c750_i32_72 = arith.constant 750 : i32
    %185 = tpu.dynamic_rotate %164 by %c750_i32_72 dim 1 : vector<16x768xf32>, i32 -> vector<16x768xf32>
    %186 = arith.truncf %185 : vector<16x768xf32> to vector<16x768xbf16>
    %c112_73 = arith.constant 112 : index
    %c0_74 = arith.constant 0 : index
    %187 = vector.load %arg18[%c112_73, %c0_74] : memref<576x768xbf16, #tpu.memory_space<vmem>>, vector<16x768xbf16>
    tpu.vector_store %arg18[%c112_73, %c0_74], %186 {strides = array<i32>} : memref<576x768xbf16, #tpu.memory_space<vmem>>, vector<16x768xbf16>,
    %c749_i32_75 = arith.constant 749 : i32
    %188 = tpu.dynamic_rotate %164 by %c749_i32_75 dim 1 : vector<16x768xf32>, i32 -> vector<16x768xf32>
    %189 = arith.truncf %188 : vector<16x768xf32> to vector<16x768xbf16>
    %c128_76 = arith.constant 128 : index
    %c0_77 = arith.constant 0 : index
    %190 = vector.load %arg18[%c128_76, %c0_77] : memref<576x768xbf16, #tpu.memory_space<vmem>>, vector<16x768xbf16>
    tpu.vector_store %arg18[%c128_76, %c0_77], %189 {strides = array<i32>} : memref<576x768xbf16, #tpu.memory_space<vmem>>, vector<16x768xbf16>,
    %c0_78 = arith.constant 0 : index
    %c0_79 = arith.constant 0 : index
    %191 = vector.load %arg10[%c0_78, %c0_79] : memref<32x144xbf16, #tpu.memory_space<vmem>>, vector<32x144xbf16>
    %c0_80 = arith.constant 0 : index
    %c0_81 = arith.constant 0 : index
    %192 = vector.load %arg18[%c0_80, %c0_81] : memref<576x768xbf16, #tpu.memory_space<vmem>>, vector<144x768xbf16>
    %cst_82 = arith.constant dense<0.000000e+00> : vector<32x768xf32>
    %193 = tpu.matmul %191, %192, %cst_82 {dimension_numbers = #tpu.dot_dimension_numbers<[1], [0], [0], [1], [0, 0, 1, 1], [], []>} : vector<32x144xbf16>, vector<144x768xbf16>, vector<32x768xf32> -> vector<32x768xf32>
    %c0_83 = arith.constant 0 : index
    %c0_84 = arith.constant 0 : index
    %194 = vector.load %arg11[%c0_83, %c0_84] : memref<32x1xf32, #tpu.memory_space<vmem>>, vector<32x1xf32>
    %195 = vector.broadcast %194 : vector<32x1xf32> to vector<32x768xf32>
    %196 = arith.addf %193, %195 : vector<32x768xf32>
    %cst_85 = arith.constant 0.000000e+00 : f32
    %197 = vector.broadcast %cst_85 : f32 to vector<32x768xf32>
    %198 = arith.maximumf %196, %197 : vector<32x768xf32>
    %199 = vector.broadcast %0 : vector<1x768xf32> to vector<32x768xf32>
    %200 = arith.mulf %198, %199 : vector<32x768xf32>
    %c19_i32_86 = arith.constant 19 : i32
    %201 = tpu.dynamic_rotate %102 by %c19_i32_86 dim 1 : vector<32x768xf32>, i32 -> vector<32x768xf32>
    %202 = arith.truncf %201 : vector<32x768xf32> to vector<32x768xbf16>
    %c0_87 = arith.constant 0 : index
    %c0_88 = arith.constant 0 : index
    %203 = vector.load %arg18[%c0_87, %c0_88] : memref<576x768xbf16, #tpu.memory_space<vmem>>, vector<32x768xbf16>
    tpu.vector_store %arg18[%c0_87, %c0_88], %202 {strides = array<i32>} : memref<576x768xbf16, #tpu.memory_space<vmem>>, vector<32x768xbf16>,
    %c18_i32_89 = arith.constant 18 : i32
    %204 = tpu.dynamic_rotate %102 by %c18_i32_89 dim 1 : vector<32x768xf32>, i32 -> vector<32x768xf32>
    %205 = arith.truncf %204 : vector<32x768xf32> to vector<32x768xbf16>
    %c32_90 = arith.constant 32 : index
    %c0_91 = arith.constant 0 : index
    %206 = vector.load %arg18[%c32_90, %c0_91] : memref<576x768xbf16, #tpu.memory_space<vmem>>, vector<32x768xbf16>
    tpu.vector_store %arg18[%c32_90, %c0_91], %205 {strides = array<i32>} : memref<576x768xbf16, #tpu.memory_space<vmem>>, vector<32x768xbf16>,
    %c17_i32_92 = arith.constant 17 : i32
    %207 = tpu.dynamic_rotate %102 by %c17_i32_92 dim 1 : vector<32x768xf32>, i32 -> vector<32x768xf32>
    %208 = arith.truncf %207 : vector<32x768xf32> to vector<32x768xbf16>
    %c64_93 = arith.constant 64 : index
    %c0_94 = arith.constant 0 : index
    %209 = vector.load %arg18[%c64_93, %c0_94] : memref<576x768xbf16, #tpu.memory_space<vmem>>, vector<32x768xbf16>
    tpu.vector_store %arg18[%c64_93, %c0_94], %208 {strides = array<i32>} : memref<576x768xbf16, #tpu.memory_space<vmem>>, vector<32x768xbf16>,
    %c1_i32_95 = arith.constant 1 : i32
    %210 = tpu.dynamic_rotate %102 by %c1_i32_95 dim 1 : vector<32x768xf32>, i32 -> vector<32x768xf32>
    %211 = arith.truncf %210 : vector<32x768xf32> to vector<32x768xbf16>
    %c96_96 = arith.constant 96 : index
    %c0_97 = arith.constant 0 : index
    %212 = vector.load %arg18[%c96_96, %c0_97] : memref<576x768xbf16, #tpu.memory_space<vmem>>, vector<32x768xbf16>
    tpu.vector_store %arg18[%c96_96, %c0_97], %211 {strides = array<i32>} : memref<576x768xbf16, #tpu.memory_space<vmem>>, vector<32x768xbf16>,
    %213 = arith.truncf %102 : vector<32x768xf32> to vector<32x768xbf16>
    %c128_98 = arith.constant 128 : index
    %c0_99 = arith.constant 0 : index
    %214 = vector.load %arg18[%c128_98, %c0_99] : memref<576x768xbf16, #tpu.memory_space<vmem>>, vector<32x768xbf16>
    tpu.vector_store %arg18[%c128_98, %c0_99], %213 {strides = array<i32>} : memref<576x768xbf16, #tpu.memory_space<vmem>>, vector<32x768xbf16>,
    %c767_i32_100 = arith.constant 767 : i32
    %215 = tpu.dynamic_rotate %102 by %c767_i32_100 dim 1 : vector<32x768xf32>, i32 -> vector<32x768xf32>
    %216 = arith.truncf %215 : vector<32x768xf32> to vector<32x768xbf16>
    %c160 = arith.constant 160 : index
    %c0_101 = arith.constant 0 : index
    %217 = vector.load %arg18[%c160, %c0_101] : memref<576x768xbf16, #tpu.memory_space<vmem>>, vector<32x768xbf16>
    tpu.vector_store %arg18[%c160, %c0_101], %216 {strides = array<i32>} : memref<576x768xbf16, #tpu.memory_space<vmem>>, vector<32x768xbf16>,
    %c751_i32_102 = arith.constant 751 : i32
    %218 = tpu.dynamic_rotate %102 by %c751_i32_102 dim 1 : vector<32x768xf32>, i32 -> vector<32x768xf32>
    %219 = arith.truncf %218 : vector<32x768xf32> to vector<32x768xbf16>
    %c192 = arith.constant 192 : index
    %c0_103 = arith.constant 0 : index
    %220 = vector.load %arg18[%c192, %c0_103] : memref<576x768xbf16, #tpu.memory_space<vmem>>, vector<32x768xbf16>
    tpu.vector_store %arg18[%c192, %c0_103], %219 {strides = array<i32>} : memref<576x768xbf16, #tpu.memory_space<vmem>>, vector<32x768xbf16>,
    %c750_i32_104 = arith.constant 750 : i32
    %221 = tpu.dynamic_rotate %102 by %c750_i32_104 dim 1 : vector<32x768xf32>, i32 -> vector<32x768xf32>
    %222 = arith.truncf %221 : vector<32x768xf32> to vector<32x768xbf16>
    %c224 = arith.constant 224 : index
    %c0_105 = arith.constant 0 : index
    %223 = vector.load %arg18[%c224, %c0_105] : memref<576x768xbf16, #tpu.memory_space<vmem>>, vector<32x768xbf16>
    tpu.vector_store %arg18[%c224, %c0_105], %222 {strides = array<i32>} : memref<576x768xbf16, #tpu.memory_space<vmem>>, vector<32x768xbf16>,
    %c749_i32_106 = arith.constant 749 : i32
    %224 = tpu.dynamic_rotate %102 by %c749_i32_106 dim 1 : vector<32x768xf32>, i32 -> vector<32x768xf32>
    %225 = arith.truncf %224 : vector<32x768xf32> to vector<32x768xbf16>
    %c256 = arith.constant 256 : index
    %c0_107 = arith.constant 0 : index
    %226 = vector.load %arg18[%c256, %c0_107] : memref<576x768xbf16, #tpu.memory_space<vmem>>, vector<32x768xbf16>
    tpu.vector_store %arg18[%c256, %c0_107], %225 {strides = array<i32>} : memref<576x768xbf16, #tpu.memory_space<vmem>>, vector<32x768xbf16>,
    %c19_i32_108 = arith.constant 19 : i32
    %227 = tpu.dynamic_rotate %200 by %c19_i32_108 dim 1 : vector<32x768xf32>, i32 -> vector<32x768xf32>
    %228 = arith.truncf %227 : vector<32x768xf32> to vector<32x768xbf16>
    %c288 = arith.constant 288 : index
    %c0_109 = arith.constant 0 : index
    %229 = vector.load %arg18[%c288, %c0_109] : memref<576x768xbf16, #tpu.memory_space<vmem>>, vector<32x768xbf16>
    tpu.vector_store %arg18[%c288, %c0_109], %228 {strides = array<i32>} : memref<576x768xbf16, #tpu.memory_space<vmem>>, vector<32x768xbf16>,
    %c18_i32_110 = arith.constant 18 : i32
    %230 = tpu.dynamic_rotate %200 by %c18_i32_110 dim 1 : vector<32x768xf32>, i32 -> vector<32x768xf32>
    %231 = arith.truncf %230 : vector<32x768xf32> to vector<32x768xbf16>
    %c320 = arith.constant 320 : index
    %c0_111 = arith.constant 0 : index
    %232 = vector.load %arg18[%c320, %c0_111] : memref<576x768xbf16, #tpu.memory_space<vmem>>, vector<32x768xbf16>
    tpu.vector_store %arg18[%c320, %c0_111], %231 {strides = array<i32>} : memref<576x768xbf16, #tpu.memory_space<vmem>>, vector<32x768xbf16>,
    %c17_i32_112 = arith.constant 17 : i32
    %233 = tpu.dynamic_rotate %200 by %c17_i32_112 dim 1 : vector<32x768xf32>, i32 -> vector<32x768xf32>
    %234 = arith.truncf %233 : vector<32x768xf32> to vector<32x768xbf16>
    %c352 = arith.constant 352 : index
    %c0_113 = arith.constant 0 : index
    %235 = vector.load %arg18[%c352, %c0_113] : memref<576x768xbf16, #tpu.memory_space<vmem>>, vector<32x768xbf16>
    tpu.vector_store %arg18[%c352, %c0_113], %234 {strides = array<i32>} : memref<576x768xbf16, #tpu.memory_space<vmem>>, vector<32x768xbf16>,
    %c1_i32_114 = arith.constant 1 : i32
    %236 = tpu.dynamic_rotate %200 by %c1_i32_114 dim 1 : vector<32x768xf32>, i32 -> vector<32x768xf32>
    %237 = arith.truncf %236 : vector<32x768xf32> to vector<32x768xbf16>
    %c384 = arith.constant 384 : index
    %c0_115 = arith.constant 0 : index
    %238 = vector.load %arg18[%c384, %c0_115] : memref<576x768xbf16, #tpu.memory_space<vmem>>, vector<32x768xbf16>
    tpu.vector_store %arg18[%c384, %c0_115], %237 {strides = array<i32>} : memref<576x768xbf16, #tpu.memory_space<vmem>>, vector<32x768xbf16>,
    %239 = arith.truncf %200 : vector<32x768xf32> to vector<32x768xbf16>
    %c416 = arith.constant 416 : index
    %c0_116 = arith.constant 0 : index
    %240 = vector.load %arg18[%c416, %c0_116] : memref<576x768xbf16, #tpu.memory_space<vmem>>, vector<32x768xbf16>
    tpu.vector_store %arg18[%c416, %c0_116], %239 {strides = array<i32>} : memref<576x768xbf16, #tpu.memory_space<vmem>>, vector<32x768xbf16>,
    %c767_i32_117 = arith.constant 767 : i32
    %241 = tpu.dynamic_rotate %200 by %c767_i32_117 dim 1 : vector<32x768xf32>, i32 -> vector<32x768xf32>
    %242 = arith.truncf %241 : vector<32x768xf32> to vector<32x768xbf16>
    %c448 = arith.constant 448 : index
    %c0_118 = arith.constant 0 : index
    %243 = vector.load %arg18[%c448, %c0_118] : memref<576x768xbf16, #tpu.memory_space<vmem>>, vector<32x768xbf16>
    tpu.vector_store %arg18[%c448, %c0_118], %242 {strides = array<i32>} : memref<576x768xbf16, #tpu.memory_space<vmem>>, vector<32x768xbf16>,
    %c751_i32_119 = arith.constant 751 : i32
    %244 = tpu.dynamic_rotate %200 by %c751_i32_119 dim 1 : vector<32x768xf32>, i32 -> vector<32x768xf32>
    %245 = arith.truncf %244 : vector<32x768xf32> to vector<32x768xbf16>
    %c480 = arith.constant 480 : index
    %c0_120 = arith.constant 0 : index
    %246 = vector.load %arg18[%c480, %c0_120] : memref<576x768xbf16, #tpu.memory_space<vmem>>, vector<32x768xbf16>
    tpu.vector_store %arg18[%c480, %c0_120], %245 {strides = array<i32>} : memref<576x768xbf16, #tpu.memory_space<vmem>>, vector<32x768xbf16>,
    %c750_i32_121 = arith.constant 750 : i32
    %247 = tpu.dynamic_rotate %200 by %c750_i32_121 dim 1 : vector<32x768xf32>, i32 -> vector<32x768xf32>
    %248 = arith.truncf %247 : vector<32x768xf32> to vector<32x768xbf16>
    %c512 = arith.constant 512 : index
    %c0_122 = arith.constant 0 : index
    %249 = vector.load %arg18[%c512, %c0_122] : memref<576x768xbf16, #tpu.memory_space<vmem>>, vector<32x768xbf16>
    tpu.vector_store %arg18[%c512, %c0_122], %248 {strides = array<i32>} : memref<576x768xbf16, #tpu.memory_space<vmem>>, vector<32x768xbf16>,
    %c749_i32_123 = arith.constant 749 : i32
    %250 = tpu.dynamic_rotate %200 by %c749_i32_123 dim 1 : vector<32x768xf32>, i32 -> vector<32x768xf32>
    %251 = arith.truncf %250 : vector<32x768xf32> to vector<32x768xbf16>
    %c544 = arith.constant 544 : index
    %c0_124 = arith.constant 0 : index
    %252 = vector.load %arg18[%c544, %c0_124] : memref<576x768xbf16, #tpu.memory_space<vmem>>, vector<32x768xbf16>
    tpu.vector_store %arg18[%c544, %c0_124], %251 {strides = array<i32>} : memref<576x768xbf16, #tpu.memory_space<vmem>>, vector<32x768xbf16>,
    %c0_125 = arith.constant 0 : index
    %c0_126 = arith.constant 0 : index
    %253 = vector.load %arg12[%c0_125, %c0_126] : memref<32x576xbf16, #tpu.memory_space<vmem>>, vector<32x576xbf16>
    %c0_127 = arith.constant 0 : index
    %c0_128 = arith.constant 0 : index
    %254 = vector.load %arg18[%c0_127, %c0_128] : memref<576x768xbf16, #tpu.memory_space<vmem>>, vector<576x768xbf16>
    %cst_129 = arith.constant dense<0.000000e+00> : vector<32x768xf32>
    %255 = tpu.matmul %253, %254, %cst_129 {dimension_numbers = #tpu.dot_dimension_numbers<[1], [0], [0], [1], [0, 0, 1, 1], [], []>} : vector<32x576xbf16>, vector<576x768xbf16>, vector<32x768xf32> -> vector<32x768xf32>
    %c0_130 = arith.constant 0 : index
    %c0_131 = arith.constant 0 : index
    %256 = vector.load %arg13[%c0_130, %c0_131] : memref<32x1xf32, #tpu.memory_space<vmem>>, vector<32x1xf32>
    %257 = vector.broadcast %256 : vector<32x1xf32> to vector<32x768xf32>
    %258 = arith.addf %255, %257 : vector<32x768xf32>
    %cst_132 = arith.constant 0.000000e+00 : f32
    %259 = vector.broadcast %cst_132 : f32 to vector<32x768xf32>
    %260 = arith.maximumf %258, %259 : vector<32x768xf32>
    %c0_133 = arith.constant 0 : index
    %c0_134 = arith.constant 0 : index
    %261 = vector.load %arg14[%c0_133, %c0_134] : memref<2x32xf32, #tpu.memory_space<vmem>>, vector<2x32xf32>
    %cst_135 = arith.constant dense<0.000000e+00> : vector<2x768xf32>
    %262 = tpu.matmul %261, %260, %cst_135 {dimension_numbers = #tpu.dot_dimension_numbers<[1], [0], [0], [1], [0, 0, 1, 1], [], []>} : vector<2x32xf32>, vector<32x768xf32>, vector<2x768xf32> -> vector<2x768xf32>
    %c0_136 = arith.constant 0 : index
    %c0_137 = arith.constant 0 : index
    %263 = vector.load %arg15[%c0_136, %c0_137] : memref<2x1xf32, #tpu.memory_space<vmem>>, vector<2x1xf32>
    %264 = vector.broadcast %263 : vector<2x1xf32> to vector<2x768xf32>
    %265 = arith.addf %262, %264 : vector<2x768xf32>
    %266 = vector.extract_strided_slice %265 {offsets = [0, 0], sizes = [1, 768], strides = [1, 1]} : vector<2x768xf32> to vector<1x768xf32>
    %267 = vector.extract_strided_slice %265 {offsets = [1, 0], sizes = [1, 768], strides = [1, 1]} : vector<2x768xf32> to vector<1x768xf32>
    %268 = arith.subf %267, %266 : vector<1x768xf32>
    %269 = math.exp %268 : vector<1x768xf32>
    %cst_138 = arith.constant 1.000000e+00 : f32
    %270 = vector.broadcast %cst_138 : f32 to vector<1x768xf32>
    %271 = arith.addf %270, %269 : vector<1x768xf32>
    %cst_139 = arith.constant 1.000000e+00 : f32
    %272 = vector.broadcast %cst_139 : f32 to vector<1x768xf32>
    %273 = arith.divf %272, %271 : vector<1x768xf32>
    %274 = arith.subf %266, %267 : vector<1x768xf32>
    %275 = math.exp %274 : vector<1x768xf32>
    %cst_140 = arith.constant 1.000000e+00 : f32
    %276 = vector.broadcast %cst_140 : f32 to vector<1x768xf32>
    %277 = arith.addf %276, %275 : vector<1x768xf32>
    %cst_141 = arith.constant 1.000000e+00 : f32
    %278 = vector.broadcast %cst_141 : f32 to vector<1x768xf32>
    %279 = arith.divf %278, %277 : vector<1x768xf32>
    %c0_142 = arith.constant 0 : index
    %c0_143 = arith.constant 0 : index
    %c0_144 = arith.constant 0 : index
    %280 = vector.load %arg16[%c0_142, %c0_143, %c0_144] : memref<1x2x768xf32, #tpu.memory_space<vmem>>, vector<1x2x768xf32>
    %281 = vector.shape_cast %280 : vector<1x2x768xf32> to vector<2x768xf32>
    %282 = vector.shape_cast %265 : vector<2x768xf32> to vector<1x2x768xf32>
    tpu.vector_store %arg16[%c0_142, %c0_143, %c0_144], %282 {strides = array<i32>} : memref<1x2x768xf32, #tpu.memory_space<vmem>>, vector<1x2x768xf32>,
    %283 = tpu.concatenate %273, %279 in 0 : vector<1x768xf32>, vector<1x768xf32> -> vector<2x768xf32>
    %c0_145 = arith.constant 0 : index
    %c0_146 = arith.constant 0 : index
    %c0_147 = arith.constant 0 : index
    %284 = vector.load %arg17[%c0_145, %c0_146, %c0_147] : memref<1x2x768xf32, #tpu.memory_space<vmem>>, vector<1x2x768xf32>
    %285 = vector.shape_cast %284 : vector<1x2x768xf32> to vector<2x768xf32>
    %286 = vector.shape_cast %283 : vector<2x768xf32> to vector<1x2x768xf32>
    tpu.vector_store %arg17[%c0_145, %c0_146, %c0_147], %286 {strides = array<i32>} : memref<1x2x768xf32, #tpu.memory_space<vmem>>, vector<1x2x768xf32>,
    return
  }
  func.func @transform_0(%arg0: i32) -> (i32, i32, i32) {
    %c0_i32 = arith.constant 0 : i32
    %c0_i32_0 = arith.constant 0 : i32
    %c0_i32_1 = arith.constant 0 : i32
    return %arg0, %c0_i32, %c0_i32_0 : i32, i32, i32
  }
  func.func @transform_1(%arg0: i32) -> (i32, i32, i32) {
    %c0_i32 = arith.constant 0 : i32
    %c0_i32_0 = arith.constant 0 : i32
    %c0_i32_1 = arith.constant 0 : i32
    return %arg0, %c0_i32, %c0_i32_0 : i32, i32, i32
  }
  func.func @transform_2(%arg0: i32) -> (i32, i32) {
    %c0_i32 = arith.constant 0 : i32
    %c0_i32_0 = arith.constant 0 : i32
    %c0_i32_1 = arith.constant 0 : i32
    return %c0_i32, %c0_i32_0 : i32, i32
  }
  func.func @transform_3(%arg0: i32) -> (i32, i32) {
    %c0_i32 = arith.constant 0 : i32
    %c0_i32_0 = arith.constant 0 : i32
    %c0_i32_1 = arith.constant 0 : i32
    return %c0_i32, %c0_i32_0 : i32, i32
  }
  func.func @transform_4(%arg0: i32) -> (i32, i32) {
    %c0_i32 = arith.constant 0 : i32
    %c0_i32_0 = arith.constant 0 : i32
    %c0_i32_1 = arith.constant 0 : i32
    return %c0_i32, %c0_i32_0 : i32, i32
  }
  func.func @transform_5(%arg0: i32) -> (i32, i32) {
    %c0_i32 = arith.constant 0 : i32
    %c0_i32_0 = arith.constant 0 : i32
    %c0_i32_1 = arith.constant 0 : i32
    return %c0_i32, %c0_i32_0 : i32, i32
  }
  func.func @transform_6(%arg0: i32) -> (i32, i32) {
    %c0_i32 = arith.constant 0 : i32
    %c0_i32_0 = arith.constant 0 : i32
    %c0_i32_1 = arith.constant 0 : i32
    return %c0_i32, %c0_i32_0 : i32, i32
  }
  func.func @transform_7(%arg0: i32) -> (i32, i32) {
    %c0_i32 = arith.constant 0 : i32
    %c0_i32_0 = arith.constant 0 : i32
    %c0_i32_1 = arith.constant 0 : i32
    return %c0_i32, %c0_i32_0 : i32, i32
  }
  func.func @transform_8(%arg0: i32) -> (i32, i32) {
    %c0_i32 = arith.constant 0 : i32
    %c0_i32_0 = arith.constant 0 : i32
    %c0_i32_1 = arith.constant 0 : i32
    return %c0_i32, %c0_i32_0 : i32, i32
  }
  func.func @transform_9(%arg0: i32) -> (i32, i32) {
    %c0_i32 = arith.constant 0 : i32
    %c0_i32_0 = arith.constant 0 : i32
    %c0_i32_1 = arith.constant 0 : i32
    return %c0_i32, %c0_i32_0 : i32, i32
  }
  func.func @transform_10(%arg0: i32) -> (i32, i32) {
    %c0_i32 = arith.constant 0 : i32
    %c0_i32_0 = arith.constant 0 : i32
    %c0_i32_1 = arith.constant 0 : i32
    return %c0_i32, %c0_i32_0 : i32, i32
  }
  func.func @transform_11(%arg0: i32) -> (i32, i32) {
    %c0_i32 = arith.constant 0 : i32
    %c0_i32_0 = arith.constant 0 : i32
    %c0_i32_1 = arith.constant 0 : i32
    return %c0_i32, %c0_i32_0 : i32, i32
  }
  func.func @transform_12(%arg0: i32) -> (i32, i32) {
    %c0_i32 = arith.constant 0 : i32
    %c0_i32_0 = arith.constant 0 : i32
    %c0_i32_1 = arith.constant 0 : i32
    return %c0_i32, %c0_i32_0 : i32, i32
  }
  func.func @transform_13(%arg0: i32) -> (i32, i32) {
    %c0_i32 = arith.constant 0 : i32
    %c0_i32_0 = arith.constant 0 : i32
    %c0_i32_1 = arith.constant 0 : i32
    return %c0_i32, %c0_i32_0 : i32, i32
  }
  func.func @transform_14(%arg0: i32) -> (i32, i32) {
    %c0_i32 = arith.constant 0 : i32
    %c0_i32_0 = arith.constant 0 : i32
    %c0_i32_1 = arith.constant 0 : i32
    return %c0_i32, %c0_i32_0 : i32, i32
  }
  func.func @transform_15(%arg0: i32) -> (i32, i32, i32) {
    %c0_i32 = arith.constant 0 : i32
    %c0_i32_0 = arith.constant 0 : i32
    %c0_i32_1 = arith.constant 0 : i32
    return %arg0, %c0_i32, %c0_i32_0 : i32, i32, i32
  }
  func.func @transform_16(%arg0: i32) -> (i32, i32, i32) {
    %c0_i32 = arith.constant 0 : i32
    %c0_i32_0 = arith.constant 0 : i32
    %c0_i32_1 = arith.constant 0 : i32
    return %arg0, %c0_i32, %c0_i32_0 : i32, i32, i32
  }
}

</mosaic_0001>

<llo_original>
// kernel: coseg_forward_pallas.1
$region0: #{coseg_forward_pallas.1}
  #allocation0 [shape = 'u32[]', space=smem, size = 0x4, offset = 0x4, fixed_abs, tag = 'smem constant byte address 0x4 - core index']
  #allocation1 [shape = 'u32[144,128]{1,0:T(1,128)}', space=vmem, size = 0x12000, scoped, tag = 'internal scratch']
  #allocation2 [shape = 'bf16[576,768]{1,0:T(8,128)(2,1)}', space=vmem, size = 0xd8000, scoped, tag = 'scratch operand']
  %s0 = inlined_call_operand.vmem [shape: f32[2,1,768], index: 0, kind: input, shape index: {}]
  %s1 = inlined_call_operand.vmem [shape: f32[2,1,768], index: 1, kind: input, shape index: {}]
  %s2 = inlined_call_operand.vmem [shape: f32[1,768], index: 2, kind: input, shape index: {}]
  %s3 = inlined_call_operand.vmem [shape: f32[16,9], index: 3, kind: input, shape index: {}]
  %s4 = inlined_call_operand.vmem [shape: f32[16,1], index: 4, kind: input, shape index: {}]
  %s5 = inlined_call_operand.vmem [shape: bf16[32,144], index: 5, kind: input, shape index: {}]
  %s6 = inlined_call_operand.vmem [shape: f32[32,1], index: 6, kind: input, shape index: {}]
  %s7 = inlined_call_operand.vmem [shape: f32[16,9], index: 7, kind: input, shape index: {}]
  %s8 = inlined_call_operand.vmem [shape: f32[16,1], index: 8, kind: input, shape index: {}]
  %s9 = inlined_call_operand.vmem [shape: bf16[32,144], index: 9, kind: input, shape index: {}]
  %s10 = inlined_call_operand.vmem [shape: f32[32,1], index: 10, kind: input, shape index: {}]
  %s11 = inlined_call_operand.vmem [shape: bf16[32,576], index: 11, kind: input, shape index: {}]
  %s12 = inlined_call_operand.vmem [shape: f32[32,1], index: 12, kind: input, shape index: {}]
  %s13 = inlined_call_operand.vmem [shape: f32[2,32], index: 13, kind: input, shape index: {}]
  %s14 = inlined_call_operand.vmem [shape: f32[2,1], index: 14, kind: input, shape index: {}]
  %s15 = inlined_call_operand.vmem [shape: f32[2,2,768], index: 15, kind: output, shape index: {0}]
  %s16 = inlined_call_operand.vmem [shape: f32[2,2,768], index: 16, kind: output, shape index: {1}]
  %17 = xla_tuple %s15, %s16
  %s18 = sld [smem:[#allocation0]]
  $region101: #{coseg_forward_pallas.1} parent=0
    _
  %s20 = ssub.s32 1, %s18
  %s21 = scalar_select 0, %s20, %s18
  loop: start=0, step=1, limit=4
  $region2: #{coseg_forward_pallas.1} parent=0 // loop_pre_header
    _
  $region3: #{coseg_forward_pallas.1} parent=0 // loop_header
    %s23 = sphi 0, %s27
    %p24 = scmp.ge.s32.totalorder %s23, 4
    %s33 = sphi 0, %s35
    %s36 = sphi 0, %s33
    %s37 = sphi 0, %s36
    %s53 = sphi 0, %s37
    %s59 = sphi 0, %s61
    %s62 = sphi 0, %s59
    %s63 = sphi 0, %s62
    %s79 = sphi 0, %s63
    %s83 = sphi 0, %s83
    %s85 = sphi 0, %s83
    %s86 = sphi 0, %s85
    %s100 = sphi 0, %s86
    %s104 = sphi 0, %s104
    %s106 = sphi 0, %s104
    %s107 = sphi 0, %s106
    %s121 = sphi 0, %s107
    %s125 = sphi 0, %s125
    %s127 = sphi 0, %s125
    %s128 = sphi 0, %s127
    %s142 = sphi 0, %s128
    %s146 = sphi 0, %s146
    %s148 = sphi 0, %s146
    %s149 = sphi 0, %s148
    %s163 = sphi 0, %s149
    %s167 = sphi 0, %s167
    %s169 = sphi 0, %s167
    %s170 = sphi 0, %s169
    %s184 = sphi 0, %s170
    %s188 = sphi 0, %s188
    %s190 = sphi 0, %s188
    %s191 = sphi 0, %s190
    %s205 = sphi 0, %s191
    %s209 = sphi 0, %s209
    %s211 = sphi 0, %s209
    %s212 = sphi 0, %s211
    %s226 = sphi 0, %s212
    %s230 = sphi 0, %s230
    %s232 = sphi 0, %s230
    %s233 = sphi 0, %s232
    %s247 = sphi 0, %s233
    %s251 = sphi 0, %s251
    %s253 = sphi 0, %s251
    %s254 = sphi 0, %s253
    %s268 = sphi 0, %s254
    %s272 = sphi 0, %s272
    %s274 = sphi 0, %s272
    %s275 = sphi 0, %s274
    %s289 = sphi 0, %s275
    %s293 = sphi 0, %s293
    %s295 = sphi 0, %s293
    %s296 = sphi 0, %s295
    %s310 = sphi 0, %s296
    %s314 = sphi 0, %s314
    %s316 = sphi 0, %s314
    %s317 = sphi 0, %s316
    %s331 = sphi 0, %s317
    %s335 = sphi 0, %s335
    %s337 = sphi 0, %s335
    %s338 = sphi 0, %s337
    %s352 = sphi 0, %s338
    %s358 = sphi 0, %s360
    %s361 = sphi 0, %s358
    %s362 = sphi 0, %s361
    %s378 = sphi 0, %s362
    %s384 = sphi 0, %s386
    %s387 = sphi 0, %s384
    %s388 = sphi 0, %s387
    %s404 = sphi 0, %s388
  $region4: #{coseg_forward_pallas.1} parent=0 // loop_header_branch
    %26 = sbr.rel (%p24) target = $region8
  $region5: #{coseg_forward_pallas.1} parent=0 // loop_body
    %s28 = ssub.s32 %s23, 1
    %s29 = ssub.s32 %s23, 2
    %s30 = sadd.s32 %s23, 1
    %s31 = ssub.s32 %s23, %s30
    %p32 = scmp.eq.s32.totalorder %s31, 0
    %s34 = sadd.s32 %s33, 1
    %s35 = scalar_select %p32, %s33, %s34
    %p38 = pneg %p32
    %p39 = scmp.eq.s32.totalorder %s23, 1
    %p40 = por %p38, %p39
    %p41 = scmp.ne.s32.totalorder %s33, %s36
    %p42 = scmp.eq.s32.totalorder %s23, 0
    %p43 = por %p41, %p42
    %p44 = scmp.ne.s32.totalorder %s33, %s36
    %p45 = scmp.eq.s32.totalorder %s28, 1
    %p46 = por %p44, %p45
    %p47 = scmp.ne.s32.totalorder %s36, %s37
    %p48 = scmp.eq.s32.totalorder %s28, 0
    %p49 = por %p47, %p48
    %p50 = scmp.ne.s32.totalorder %s36, %s37
    %p51 = scmp.eq.s32.totalorder %s29, 1
    %p52 = por %p50, %p51
    %p54 = scmp.ne.s32.totalorder %s37, %s53
    %p55 = scmp.eq.s32.totalorder %s29, 0
    %p56 = por %p54, %p55
    %s57 = ssub.s32 %s23, %s30
    %p58 = scmp.eq.s32.totalorder %s57, 0
    %s60 = sadd.s32 %s59, 1
    %s61 = scalar_select %p58, %s59, %s60
    %p64 = pneg %p58
    %p65 = scmp.eq.s32.totalorder %s23, 1
    %p66 = por %p64, %p65
    %p67 = scmp.ne.s32.totalorder %s59, %s62
    %p68 = scmp.eq.s32.totalorder %s23, 0
    %p69 = por %p67, %p68
    %p70 = scmp.ne.s32.totalorder %s59, %s62
    %p71 = scmp.eq.s32.totalorder %s28, 1
    %p72 = por %p70, %p71
    %p73 = scmp.ne.s32.totalorder %s62, %s63
    %p74 = scmp.eq.s32.totalorder %s28, 0
    %p75 = por %p73, %p74
    %p76 = scmp.ne.s32.totalorder %s62, %s63
    %p77 = scmp.eq.s32.totalorder %s29, 1
    %p78 = por %p76, %p77
    %p80 = scmp.ne.s32.totalorder %s63, %s79
    %p81 = scmp.eq.s32.totalorder %s29, 0
    %p82 = por %p80, %p81
    %s84 = sadd.s32 %s83, 1
    %p87 = scmp.eq.s32.totalorder %s23, 1
    %p88 = scmp.ne.s32.totalorder %s83, %s85
    %p89 = scmp.eq.s32.totalorder %s23, 0
    %p90 = por %p88, %p89
    %p91 = scmp.ne.s32.totalorder %s83, %s85
    %p92 = scmp.eq.s32.totalorder %s28, 1
    %p93 = por %p91, %p92
    %p94 = scmp.ne.s32.totalorder %s85, %s86
    %p95 = scmp.eq.s32.totalorder %s28, 0
    %p96 = por %p94, %p95
    %p97 = scmp.ne.s32.totalorder %s85, %s86
    %p98 = scmp.eq.s32.totalorder %s29, 1
    %p99 = por %p97, %p98
    %p101 = scmp.ne.s32.totalorder %s86, %s100
    %p102 = scmp.eq.s32.totalorder %s29, 0
    %p103 = por %p101, %p102
    %s105 = sadd.s32 %s104, 1
    %p108 = scmp.eq.s32.totalorder %s23, 1
    %p109 = scmp.ne.s32.totalorder %s104, %s106
    %p110 = scmp.eq.s32.totalorder %s23, 0
    %p111 = por %p109, %p110
    %p112 = scmp.ne.s32.totalorder %s104, %s106
    %p113 = scmp.eq.s32.totalorder %s28, 1
    %p114 = por %p112, %p113
    %p115 = scmp.ne.s32.totalorder %s106, %s107
    %p116 = scmp.eq.s32.totalorder %s28, 0
    %p117 = por %p115, %p116
    %p118 = scmp.ne.s32.totalorder %s106, %s107
    %p119 = scmp.eq.s32.totalorder %s29, 1
    %p120 = por %p118, %p119
    %p122 = scmp.ne.s32.totalorder %s107, %s121
    %p123 = scmp.eq.s32.totalorder %s29, 0
    %p124 = por %p122, %p123
    %s126 = sadd.s32 %s125, 1
    %p129 = scmp.eq.s32.totalorder %s23, 1
    %p130 = scmp.ne.s32.totalorder %s125, %s127
    %p131 = scmp.eq.s32.totalorder %s23, 0
    %p132 = por %p130, %p131
    %p133 = scmp.ne.s32.totalorder %s125, %s127
    %p134 = scmp.eq.s32.totalorder %s28, 1
    %p135 = por %p133, %p134
    %p136 = scmp.ne.s32.totalorder %s127, %s128
    %p137 = scmp.eq.s32.totalorder %s28, 0
    %p138 = por %p136, %p137
    %p139 = scmp.ne.s32.totalorder %s127, %s128
    %p140 = scmp.eq.s32.totalorder %s29, 1
    %p141 = por %p139, %p140
    %p143 = scmp.ne.s32.totalorder %s128, %s142
    %p144 = scmp.eq.s32.totalorder %s29, 0
    %p145 = por %p143, %p144
    %s147 = sadd.s32 %s146, 1
    %p150 = scmp.eq.s32.totalorder %s23, 1
    %p151 = scmp.ne.s32.totalorder %s146, %s148
    %p152 = scmp.eq.s32.totalorder %s23, 0
    %p153 = por %p151, %p152
    %p154 = scmp.ne.s32.totalorder %s146, %s148
    %p155 = scmp.eq.s32.totalorder %s28, 1
    %p156 = por %p154, %p155
    %p157 = scmp.ne.s32.totalorder %s148, %s149
    %p158 = scmp.eq.s32.totalorder %s28, 0
    %p159 = por %p157, %p158
    %p160 = scmp.ne.s32.totalorder %s148, %s149
    %p161 = scmp.eq.s32.totalorder %s29, 1
    %p162 = por %p160, %p161
    %p164 = scmp.ne.s32.totalorder %s149, %s163
    %p165 = scmp.eq.s32.totalorder %s29, 0
    %p166 = por %p164, %p165
    %s168 = sadd.s32 %s167, 1
    %p171 = scmp.eq.s32.totalorder %s23, 1
    %p172 = scmp.ne.s32.totalorder %s167, %s169
    %p173 = scmp.eq.s32.totalorder %s23, 0
    %p174 = por %p172, %p173
    %p175 = scmp.ne.s32.totalorder %s167, %s169
    %p176 = scmp.eq.s32.totalorder %s28, 1
    %p177 = por %p175, %p176
    %p178 = scmp.ne.s32.totalorder %s169, %s170
    %p179 = scmp.eq.s32.totalorder %s28, 0
    %p180 = por %p178, %p179
    %p181 = scmp.ne.s32.totalorder %s169, %s170
    %p182 = scmp.eq.s32.totalorder %s29, 1
    %p183 = por %p181, %p182
    %p185 = scmp.ne.s32.totalorder %s170, %s184
    %p186 = scmp.eq.s32.totalorder %s29, 0
    %p187 = por %p185, %p186
    %s189 = sadd.s32 %s188, 1
    %p192 = scmp.eq.s32.totalorder %s23, 1
    %p193 = scmp.ne.s32.totalorder %s188, %s190
    %p194 = scmp.eq.s32.totalorder %s23, 0
    %p195 = por %p193, %p194
    %p196 = scmp.ne.s32.totalorder %s188, %s190
    %p197 = scmp.eq.s32.totalorder %s28, 1
    %p198 = por %p196, %p197
    %p199 = scmp.ne.s32.totalorder %s190, %s191
    %p200 = scmp.eq.s32.totalorder %s28, 0
    %p201 = por %p199, %p200
    %p202 = scmp.ne.s32.totalorder %s190, %s191
    %p203 = scmp.eq.s32.totalorder %s29, 1
    %p204 = por %p202, %p203
    %p206 = scmp.ne.s32.totalorder %s191, %s205
    %p207 = scmp.eq.s32.totalorder %s29, 0
    %p208 = por %p206, %p207
    %s210 = sadd.s32 %s209, 1
    %p213 = scmp.eq.s32.totalorder %s23, 1
    %p214 = scmp.ne.s32.totalorder %s209, %s211
    %p215 = scmp.eq.s32.totalorder %s23, 0
    %p216 = por %p214, %p215
    %p217 = scmp.ne.s32.totalorder %s209, %s211
    %p218 = scmp.eq.s32.totalorder %s28, 1
    %p219 = por %p217, %p218
    %p220 = scmp.ne.s32.totalorder %s211, %s212
    %p221 = scmp.eq.s32.totalorder %s28, 0
    %p222 = por %p220, %p221
    %p223 = scmp.ne.s32.totalorder %s211, %s212
    %p224 = scmp.eq.s32.totalorder %s29, 1
    %p225 = por %p223, %p224
    %p227 = scmp.ne.s32.totalorder %s212, %s226
    %p228 = scmp.eq.s32.totalorder %s29, 0
    %p229 = por %p227, %p228
    %s231 = sadd.s32 %s230, 1
    %p234 = scmp.eq.s32.totalorder %s23, 1
    %p235 = scmp.ne.s32.totalorder %s230, %s232
    %p236 = scmp.eq.s32.totalorder %s23, 0
    %p237 = por %p235, %p236
    %p238 = scmp.ne.s32.totalorder %s230, %s232
    %p239 = scmp.eq.s32.totalorder %s28, 1
    %p240 = por %p238, %p239
    %p241 = scmp.ne.s32.totalorder %s232, %s233
    %p242 = scmp.eq.s32.totalorder %s28, 0
    %p243 = por %p241, %p242
    %p244 = scmp.ne.s32.totalorder %s232, %s233
    %p245 = scmp.eq.s32.totalorder %s29, 1
    %p246 = por %p244, %p245
    %p248 = scmp.ne.s32.totalorder %s233, %s247
    %p249 = scmp.eq.s32.totalorder %s29, 0
    %p250 = por %p248, %p249
    %s252 = sadd.s32 %s251, 1
    %p255 = scmp.eq.s32.totalorder %s23, 1
    %p256 = scmp.ne.s32.totalorder %s251, %s253
    %p257 = scmp.eq.s32.totalorder %s23, 0
    %p258 = por %p256, %p257
    %p259 = scmp.ne.s32.totalorder %s251, %s253
    %p260 = scmp.eq.s32.totalorder %s28, 1
    %p261 = por %p259, %p260
    %p262 = scmp.ne.s32.totalorder %s253, %s254
    %p263 = scmp.eq.s32.totalorder %s28, 0
    %p264 = por %p262, %p263
    %p265 = scmp.ne.s32.totalorder %s253, %s254
    %p266 = scmp.eq.s32.totalorder %s29, 1
    %p267 = por %p265, %p266
    %p269 = scmp.ne.s32.totalorder %s254, %s268
    %p270 = scmp.eq.s32.totalorder %s29, 0
    %p271 = por %p269, %p270
    %s273 = sadd.s32 %s272, 1
    %p276 = scmp.eq.s32.totalorder %s23, 1
    %p277 = scmp.ne.s32.totalorder %s272, %s274
    %p278 = scmp.eq.s32.totalorder %s23, 0
    %p279 = por %p277, %p278
    %p280 = scmp.ne.s32.totalorder %s272, %s274
    %p281 = scmp.eq.s32.totalorder %s28, 1
    %p282 = por %p280, %p281
    %p283 = scmp.ne.s32.totalorder %s274, %s275
    %p284 = scmp.eq.s32.totalorder %s28, 0
    %p285 = por %p283, %p284
    %p286 = scmp.ne.s32.totalorder %s274, %s275
    %p287 = scmp.eq.s32.totalorder %s29, 1
    %p288 = por %p286, %p287
    %p290 = scmp.ne.s32.totalorder %s275, %s289
    %p291 = scmp.eq.s32.totalorder %s29, 0
    %p292 = por %p290, %p291
    %s294 = sadd.s32 %s293, 1
    %p297 = scmp.eq.s32.totalorder %s23, 1
    %p298 = scmp.ne.s32.totalorder %s293, %s295
    %p299 = scmp.eq.s32.totalorder %s23, 0
    %p300 = por %p298, %p299
    %p301 = scmp.ne.s32.totalorder %s293, %s295
    %p302 = scmp.eq.s32.totalorder %s28, 1
    %p303 = por %p301, %p302
    %p304 = scmp.ne.s32.totalorder %s295, %s296
    %p305 = scmp.eq.s32.totalorder %s28, 0
    %p306 = por %p304, %p305
    %p307 = scmp.ne.s32.totalorder %s295, %s296
    %p308 = scmp.eq.s32.totalorder %s29, 1
    %p309 = por %p307, %p308
    %p311 = scmp.ne.s32.totalorder %s296, %s310
    %p312 = scmp.eq.s32.totalorder %s29, 0
    %p313 = por %p311, %p312
    %s315 = sadd.s32 %s314, 1
    %p318 = scmp.eq.s32.totalorder %s23, 1
    %p319 = scmp.ne.s32.totalorder %s314, %s316
    %p320 = scmp.eq.s32.totalorder %s23, 0
    %p321 = por %p319, %p320
    %p322 = scmp.ne.s32.totalorder %s314, %s316
    %p323 = scmp.eq.s32.totalorder %s28, 1
    %p324 = por %p322, %p323
    %p325 = scmp.ne.s32.totalorder %s316, %s317
    %p326 = scmp.eq.s32.totalorder %s28, 0
    %p327 = por %p325, %p326
    %p328 = scmp.ne.s32.totalorder %s316, %s317
    %p329 = scmp.eq.s32.totalorder %s29, 1
    %p330 = por %p328, %p329
    %p332 = scmp.ne.s32.totalorder %s317, %s331
    %p333 = scmp.eq.s32.totalorder %s29, 0
    %p334 = por %p332, %p333
    %s336 = sadd.s32 %s335, 1
    %p339 = scmp.eq.s32.totalorder %s23, 1
    %p340 = scmp.ne.s32.totalorder %s335, %s337
    %p341 = scmp.eq.s32.totalorder %s23, 0
    %p342 = por %p340, %p341
    %p343 = scmp.ne.s32.totalorder %s335, %s337
    %p344 = scmp.eq.s32.totalorder %s28, 1
    %p345 = por %p343, %p344
    %p346 = scmp.ne.s32.totalorder %s337, %s338
    %p347 = scmp.eq.s32.totalorder %s28, 0
    %p348 = por %p346, %p347
    %p349 = scmp.ne.s32.totalorder %s337, %s338
    %p350 = scmp.eq.s32.totalorder %s29, 1
    %p351 = por %p349, %p350
    %p353 = scmp.ne.s32.totalorder %s338, %s352
    %p354 = scmp.eq.s32.totalorder %s29, 0
    %p355 = por %p353, %p354
    %s356 = ssub.s32 %s23, %s30
    %p357 = scmp.eq.s32.totalorder %s356, 0
    %s359 = sadd.s32 %s358, 1
    %s360 = scalar_select %p357, %s358, %s359
    %p363 = pneg %p357
    %p364 = scmp.eq.s32.totalorder %s23, 1
    %p365 = por %p363, %p364
    %p366 = scmp.ne.s32.totalorder %s358, %s361
    %p367 = scmp.eq.s32.totalorder %s23, 0
    %p368 = por %p366, %p367
    %p369 = scmp.ne.s32.totalorder %s358, %s361
    %p370 = scmp.eq.s32.totalorder %s28, 1
    %p371 = por %p369, %p370
    %p372 = scmp.ne.s32.totalorder %s361, %s362
    %p373 = scmp.eq.s32.totalorder %s28, 0
    %p374 = por %p372, %p373
    %p375 = scmp.ne.s32.totalorder %s361, %s362
    %p376 = scmp.eq.s32.totalorder %s29, 1
    %p377 = por %p375, %p376
    %p379 = scmp.ne.s32.totalorder %s362, %s378
    %p380 = scmp.eq.s32.totalorder %s29, 0
    %p381 = por %p379, %p380
    %s382 = ssub.s32 %s23, %s30
    %p383 = scmp.eq.s32.totalorder %s382, 0
    %s385 = sadd.s32 %s384, 1
    %s386 = scalar_select %p383, %s384, %s385
    %p389 = pneg %p383
    %p390 = scmp.eq.s32.totalorder %s23, 1
    %p391 = por %p389, %p390
    %p392 = scmp.ne.s32.totalorder %s384, %s387
    %p393 = scmp.eq.s32.totalorder %s23, 0
    %p394 = por %p392, %p393
    %p395 = scmp.ne.s32.totalorder %s384, %s387
    %p396 = scmp.eq.s32.totalorder %s28, 1
    %p397 = por %p395, %p396
    %p398 = scmp.ne.s32.totalorder %s387, %s388
    %p399 = scmp.eq.s32.totalorder %s28, 0
    %p400 = por %p398, %p399
    %p401 = scmp.ne.s32.totalorder %s387, %s388
    %p402 = scmp.eq.s32.totalorder %s29, 1
    %p403 = por %p401, %p402
    %p405 = scmp.ne.s32.totalorder %s388, %s404
    %p406 = scmp.eq.s32.totalorder %s29, 0
    %p407 = por %p405, %p406
    %p408 = scmp.le.s32.totalorder 1, %s23
    %p409 = scmp.lt.s32.totalorder %s23, 3
    %p410 = pnand %p408, %p409
    %p411 = pneg %p410
    // Predicated region
    $region9: #{coseg_forward_pallas.1} parent=5 // pred_check
      _
    $region10: #{coseg_forward_pallas.1} parent=5 // pred_check_branch
      %413 = sbr.rel (%p410) target = $region12
    $region11: #{coseg_forward_pallas.1} parent=5 // pred_region
      %s414 = ssub.s32 %s23, 1
      // Predicated region
      $region13: #{coseg_forward_pallas.1} parent=11 // pred_check
        %p415 = pneg %p96
      $region14: #{coseg_forward_pallas.1} parent=11 // pred_check_branch
        %417 = sbr.rel (%p415) target = $region16
      $region15: #{coseg_forward_pallas.1} parent=11 // pred_region
        _
      $region16: #{coseg_forward_pallas.1} parent=11 // pred_fallthru
        _
      // Predicated region
      $region17: #{coseg_forward_pallas.1} parent=11 // pred_check
        %p418 = pneg %p117
      $region18: #{coseg_forward_pallas.1} parent=11 // pred_check_branch
        %420 = sbr.rel (%p418) target = $region20
      $region19: #{coseg_forward_pallas.1} parent=11 // pred_region
        _
      $region20: #{coseg_forward_pallas.1} parent=11 // pred_fallthru
        _
      // Predicated region
      $region21: #{coseg_forward_pallas.1} parent=11 // pred_check
        %p421 = pneg %p138
      $region22: #{coseg_forward_pallas.1} parent=11 // pred_check_branch
        %423 = sbr.rel (%p421) target = $region24
      $region23: #{coseg_forward_pallas.1} parent=11 // pred_region
        _
      $region24: #{coseg_forward_pallas.1} parent=11 // pred_fallthru
        _
      // Predicated region
      $region25: #{coseg_forward_pallas.1} parent=11 // pred_check
        %p424 = pneg %p159
      $region26: #{coseg_forward_pallas.1} parent=11 // pred_check_branch
        %426 = sbr.rel (%p424) target = $region28
      $region27: #{coseg_forward_pallas.1} parent=11 // pred_region
        _
      $region28: #{coseg_forward_pallas.1} parent=11 // pred_fallthru
        _
      // Predicated region
      $region29: #{coseg_forward_pallas.1} parent=11 // pred_check
        %p427 = pneg %p180
      $region30: #{coseg_forward_pallas.1} parent=11 // pred_check_branch
        %429 = sbr.rel (%p427) target = $region32
      $region31: #{coseg_forward_pallas.1} parent=11 // pred_region
        _
      $region32: #{coseg_forward_pallas.1} parent=11 // pred_fallthru
        _
      // Predicated region
      $region33: #{coseg_forward_pallas.1} parent=11 // pred_check
        %p430 = pneg %p201
      $region34: #{coseg_forward_pallas.1} parent=11 // pred_check_branch
        %432 = sbr.rel (%p430) target = $region36
      $region35: #{coseg_forward_pallas.1} parent=11 // pred_region
        _
      $region36: #{coseg_forward_pallas.1} parent=11 // pred_fallthru
        _
      // Predicated region
      $region37: #{coseg_forward_pallas.1} parent=11 // pred_check
        %p433 = pneg %p222
      $region38: #{coseg_forward_pallas.1} parent=11 // pred_check_branch
        %435 = sbr.rel (%p433) target = $region40
      $region39: #{coseg_forward_pallas.1} parent=11 // pred_region
        _
      $region40: #{coseg_forward_pallas.1} parent=11 // pred_fallthru
        _
      // Predicated region
      $region41: #{coseg_forward_pallas.1} parent=11 // pred_check
        %p436 = pneg %p243
      $region42: #{coseg_forward_pallas.1} parent=11 // pred_check_branch
        %438 = sbr.rel (%p436) target = $region44
      $region43: #{coseg_forward_pallas.1} parent=11 // pred_region
        _
      $region44: #{coseg_forward_pallas.1} parent=11 // pred_fallthru
        _
      // Predicated region
      $region45: #{coseg_forward_pallas.1} parent=11 // pred_check
        %p439 = pneg %p264
      $region46: #{coseg_forward_pallas.1} parent=11 // pred_check_branch
        %441 = sbr.rel (%p439) target = $region48
      $region47: #{coseg_forward_pallas.1} parent=11 // pred_region
        _
      $region48: #{coseg_forward_pallas.1} parent=11 // pred_fallthru
        _
      // Predicated region
      $region49: #{coseg_forward_pallas.1} parent=11 // pred_check
        %p442 = pneg %p285
      $region50: #{coseg_forward_pallas.1} parent=11 // pred_check_branch
        %444 = sbr.rel (%p442) target = $region52
      $region51: #{coseg_forward_pallas.1} parent=11 // pred_region
        _
      $region52: #{coseg_forward_pallas.1} parent=11 // pred_fallthru
        _
      // Predicated region
      $region53: #{coseg_forward_pallas.1} parent=11 // pred_check
        %p445 = pneg %p306
      $region54: #{coseg_forward_pallas.1} parent=11 // pred_check_branch
        %447 = sbr.rel (%p445) target = $region56
      $region55: #{coseg_forward_pallas.1} parent=11 // pred_region
        _
      $region56: #{coseg_forward_pallas.1} parent=11 // pred_fallthru
        _
      // Predicated region
      $region57: #{coseg_forward_pallas.1} parent=11 // pred_check
        %p448 = pneg %p327
      $region58: #{coseg_forward_pallas.1} parent=11 // pred_check_branch
        %450 = sbr.rel (%p448) target = $region60
      $region59: #{coseg_forward_pallas.1} parent=11 // pred_region
        _
      $region60: #{coseg_forward_pallas.1} parent=11 // pred_fallthru
        _
      // Predicated region
      $region61: #{coseg_forward_pallas.1} parent=11 // pred_check
        %p451 = pneg %p348
      $region62: #{coseg_forward_pallas.1} parent=11 // pred_check_branch
        %453 = sbr.rel (%p451) target = $region64
      $region63: #{coseg_forward_pallas.1} parent=11 // pred_region
        _
      $region64: #{coseg_forward_pallas.1} parent=11 // pred_fallthru
        _
    $region12: #{coseg_forward_pallas.1} parent=5 // pred_fallthru
      _
    %p454 = scmp.lt.s32.totalorder %s23, 2
    // Predicated region
    $region65: #{coseg_forward_pallas.1} parent=5 // pred_check
      %p455 = pneg %p454
    $region66: #{coseg_forward_pallas.1} parent=5 // pred_check_branch
      %457 = sbr.rel (%p455) target = $region68
    $region67: #{coseg_forward_pallas.1} parent=5 // pred_region
      // Predicated region
      $region69: #{coseg_forward_pallas.1} parent=67 // pred_check
        %p458 = pneg %p43
      $region70: #{coseg_forward_pallas.1} parent=67 // pred_check_branch
        %460 = sbr.rel (%p458) target = $region72
      $region71: #{coseg_forward_pallas.1} parent=67 // pred_region
        %p461 = scmp.lt.s32.totalorder %s23, 1
        %s462 = scalar_select %p461, %s23, 1
        %s463 = smul.addr %s462, 6
        %s464 = scalar_lea.vmem %s0, %s463
      $region72: #{coseg_forward_pallas.1} parent=67 // pred_fallthru
        _
      // Predicated region
      $region73: #{coseg_forward_pallas.1} parent=67 // pred_check
        %p465 = pneg %p69
      $region74: #{coseg_forward_pallas.1} parent=67 // pred_check_branch
        %467 = sbr.rel (%p465) target = $region76
      $region75: #{coseg_forward_pallas.1} parent=67 // pred_region
        %p468 = scmp.lt.s32.totalorder %s23, 1
        %s469 = scalar_select %p468, %s23, 1
        %s470 = smul.addr %s469, 6
        %s471 = scalar_lea.vmem %s1, %s470
      $region76: #{coseg_forward_pallas.1} parent=67 // pred_fallthru
        _
    $region68: #{coseg_forward_pallas.1} parent=5 // pred_fallthru
      _
    %p472 = scmp.le.s32.totalorder 1, %s23
    %p473 = scmp.lt.s32.totalorder %s23, 3
    %p474 = pnand %p472, %p473
    %p475 = pneg %p474
    // Predicated region
    $region77: #{coseg_forward_pallas.1} parent=5 // pred_check
      _
    $region78: #{coseg_forward_pallas.1} parent=5 // pred_check_branch
      %477 = sbr.rel (%p474) target = $region80
    $region79: #{coseg_forward_pallas.1} parent=5 // pred_region
      %s478 = ssub.s32 %s23, 1
      %p479 = scmp.lt.s32.totalorder %s28, 1
      %s480 = scalar_select %p479, %s28, 1
      %s481 = smul.addr %s480, 6
      %s482 = scalar_lea.vmem %s0, %s481
      %p483 = pneg %p49
      %p484 = pneg %p46
      %p485 = scmp.lt.s32.totalorder %s28, 1
      %s486 = scalar_select %p485, %s28, 1
      %s487 = smul.addr %s486, 6
      %s488 = scalar_lea.vmem %s1, %s487
      %p489 = pneg %p75
      %p490 = pneg %p72
      %p491 = pneg %p96
      %p492 = pneg %p93
      %p493 = pneg %p117
      %p494 = pneg %p114
      %p495 = pneg %p138
      %p496 = pneg %p135
      %p497 = pneg %p159
      %p498 = pneg %p156
      %p499 = pneg %p180
      %p500 = pneg %p177
      %p501 = pneg %p201
      %p502 = pneg %p198
      %p503 = pneg %p222
      %p504 = pneg %p219
      %p505 = pneg %p243
      %p506 = pneg %p240
      %p507 = pneg %p264
      %p508 = pneg %p261
      %p509 = pneg %p285
      %p510 = pneg %p282
      %p511 = pneg %p306
      %p512 = pneg %p303
      %p513 = pneg %p327
      %p514 = pneg %p324
      %p515 = pneg %p348
      %p516 = pneg %p345
      %p517 = pneg %p374
      %p518 = pneg %p371
      %p519 = scmp.lt.s32.totalorder %s28, 1
      %s520 = scalar_select %p519, %s28, 1
      %s521 = smul.addr %s520, 6
      %s522 = smul.addr %s521, 2
      %s523 = scalar_lea.vmem %s15, %s522
      %p524 = pneg %p400
      %p525 = pneg %p397
      %p526 = scmp.lt.s32.totalorder %s28, 1
      %s527 = scalar_select %p526, %s28, 1
      %s528 = smul.addr %s527, 6
      %s529 = smul.addr %s528, 2
      %s530 = scalar_lea.vmem %s16, %s529
      %p531 = scmp.lt.s32.totalorder %s28, 1
      %s532 = scalar_select %p531, %s28, 1
      %s533 = smul.addr %s532, 6
      %s534 = scalar_lea.vmem %s0, %s533
      %p535 = scmp.lt.s32.totalorder %s28, 1
      %s536 = scalar_select %p535, %s28, 1
      %s537 = smul.addr %s536, 6
      %s538 = scalar_lea.vmem %s1, %s537
      %p539 = scmp.lt.s32.totalorder %s28, 1
      %s540 = scalar_select %p539, %s28, 1
      %s541 = smul.addr %s540, 6
      %s542 = smul.addr %s541, 2
      %s543 = scalar_lea.vmem %s15, %s542
      %p544 = scmp.lt.s32.totalorder %s28, 1
      %s545 = scalar_select %p544, %s28, 1
      %s546 = smul.addr %s545, 6
      %s547 = smul.addr %s546, 2
      %s548 = scalar_lea.vmem %s16, %s547
      %v550 = vld [vmem:[%s2] sm:$0x3f]
      %v551 = vld [vmem:[%s534] sm:$0x3f]
      %v552 = vld [vmem:[%s538] sm:$0x3f]
      %v553 = vld [vmem:[%s3] sm:$0xff]
      %v554 = vld [vmem:[%s3 + $0x8] sm:$0xff]
      %v555 = vld [vmem:[%s4] sm:$0xff]
      %v556 = vld [vmem:[%s4 + $0x8] sm:$0xff]
      %558 = vset.pattern.permute.xlu0 0
      %559 = vperm.xlu0 %558, %v555
      %v560 = vpop.permute.xlu0 %559
      %563 = vset.pattern.permute.xlu0 0
      %564 = vperm.xlu0 %563, %v556
      %v565 = vpop.permute.xlu0 %564
      %v567 = vadd.f32 %v560, 0.0
      %v568 = vadd.f32 %v565, 0.0
      %v570 = vlaneseq
      %v571 = vshrl.u32 %v570, 7
      %v572 = vsub.s32 0, %v571
      %v573 = vrot.slane %v551, %v572
      %v574 = vlaneseq
      %v575 = vshrl.u32 %v574, 7
      %v576 = vsub.s32 1, %v575
      %v577 = vrot.slane %v551, %v576
      %v578 = vlaneseq
      %v579 = vshrl.u32 %v578, 7
      %v580 = vsub.s32 2, %v579
      %v581 = vrot.slane %v551, %v580
      %v582 = vlaneseq
      %v583 = vshrl.u32 %v582, 7
      %v584 = vsub.s32 3, %v583
      %v585 = vrot.slane %v551, %v584
      %v586 = vlaneseq
      %v587 = vshrl.u32 %v586, 7
      %v588 = vsub.s32 4, %v587
      %v589 = vrot.slane %v551, %v588
      %v590 = vlaneseq
      %v591 = vshrl.u32 %v590, 7
      %v592 = vsub.s32 5, %v591
      %v593 = vrot.slane %v551, %v592
      %600 = vrot.lane.b32.xlu0 %v573, 19
      %v601 = vpop.permute.xlu0 %600
      %602 = vrot.lane.b32.xlu0 %v577, 19
      %v603 = vpop.permute.xlu0 %602
      %604 = vrot.lane.b32.xlu0 %v581, 19
      %v605 = vpop.permute.xlu0 %604
      %606 = vrot.lane.b32.xlu0 %v585, 19
      %v607 = vpop.permute.xlu0 %606
      %608 = vrot.lane.b32.xlu0 %v589, 19
      %v609 = vpop.permute.xlu0 %608
      %610 = vrot.lane.b32.xlu0 %v593, 19
      %v611 = vpop.permute.xlu0 %610
      %v612 = vlaneseq
      %v613 = vand.u32 %v612, 127
      %vm614 = vcmp.lt.s32.totalorder %v613, 19
      %v615 = vsel %vm614, %v609, %v611
      %v616 = vsel %vm614, %v607, %v609
      %v617 = vsel %vm614, %v605, %v607
      %v618 = vsel %vm614, %v603, %v605
      %v619 = vsel %vm614, %v601, %v603
      %v620 = vsel %vm614, %v611, %v601
      %622 = vset.pattern.permute.xlu0 0
      %623 = vperm.xlu0 %622, %v553
      %v624 = vpop.permute.xlu0 %623
      %627 = vset.pattern.permute.xlu0 0
      %628 = vperm.xlu0 %627, %v554
      %v629 = vpop.permute.xlu0 %628
      %v631 = vlaneseq
      %v632 = vshrl.u32 %v631, 7
      %v633 = vsub.s32 0, %v632
      %v634 = vrot.slane %v620, %v633
      %v635 = vlaneseq
      %v636 = vshrl.u32 %v635, 7
      %v637 = vsub.s32 0, %v636
      %v638 = vrot.slane %v619, %v637
      %v639 = vlaneseq
      %v640 = vshrl.u32 %v639, 7
      %v641 = vsub.s32 0, %v640
      %v642 = vrot.slane %v618, %v641
      %v643 = vlaneseq
      %v644 = vshrl.u32 %v643, 7
      %v645 = vsub.s32 0, %v644
      %v646 = vrot.slane %v617, %v645
      %v647 = vlaneseq
      %v648 = vshrl.u32 %v647, 7
      %v649 = vsub.s32 0, %v648
      %v650 = vrot.slane %v616, %v649
      %v651 = vlaneseq
      %v652 = vshrl.u32 %v651, 7
      %v653 = vsub.s32 0, %v652
      %v654 = vrot.slane %v615, %v653
      %v655 = vmul.f32 %v624, %v634
      %v656 = vmul.f32 %v624, %v638
      %v657 = vmul.f32 %v624, %v642
      %v658 = vmul.f32 %v624, %v646
      %v659 = vmul.f32 %v624, %v650
      %v660 = vmul.f32 %v624, %v654
      %v661 = vmul.f32 %v629, %v634
      %v662 = vmul.f32 %v629, %v638
      %v663 = vmul.f32 %v629, %v642
      %v664 = vmul.f32 %v629, %v646
      %v665 = vmul.f32 %v629, %v650
      %v666 = vmul.f32 %v629, %v654
      %v667 = vadd.f32 %v567, %v655
      %v668 = vadd.f32 %v567, %v656
      %v669 = vadd.f32 %v567, %v657
      %v670 = vadd.f32 %v567, %v658
      %v671 = vadd.f32 %v567, %v659
      %v672 = vadd.f32 %v567, %v660
      %v673 = vadd.f32 %v568, %v661
      %v674 = vadd.f32 %v568, %v662
      %v675 = vadd.f32 %v568, %v663
      %v676 = vadd.f32 %v568, %v664
      %v677 = vadd.f32 %v568, %v665
      %v678 = vadd.f32 %v568, %v666
      %679 = vrot.lane.b32.xlu0 %v573, 18
      %v680 = vpop.permute.xlu0 %679
      %681 = vrot.lane.b32.xlu0 %v577, 18
      %v682 = vpop.permute.xlu0 %681
      %683 = vrot.lane.b32.xlu0 %v581, 18
      %v684 = vpop.permute.xlu0 %683
      %685 = vrot.lane.b32.xlu0 %v585, 18
      %v686 = vpop.permute.xlu0 %685
      %687 = vrot.lane.b32.xlu0 %v589, 18
      %v688 = vpop.permute.xlu0 %687
      %689 = vrot.lane.b32.xlu0 %v593, 18
      %v690 = vpop.permute.xlu0 %689
      %vm691 = vcmp.lt.s32.totalorder %v613, 18
      %v692 = vsel %vm691, %v688, %v690
      %v693 = vsel %vm691, %v686, %v688
      %v694 = vsel %vm691, %v684, %v686
      %v695 = vsel %vm691, %v682, %v684
      %v696 = vsel %vm691, %v680, %v682
      %v697 = vsel %vm691, %v690, %v680
      %698 = vset.pattern.permute.xlu0 1
      %699 = vperm.xlu0 %698, %v553
      %v700 = vpop.permute.xlu0 %699
      %702 = vset.pattern.permute.xlu0 1
      %703 = vperm.xlu0 %702, %v554
      %v704 = vpop.permute.xlu0 %703
      %v706 = vlaneseq
      %v707 = vshrl.u32 %v706, 7
      %v708 = vsub.s32 0, %v707
      %v709 = vrot.slane %v697, %v708
      %v710 = vlaneseq
      %v711 = vshrl.u32 %v710, 7
      %v712 = vsub.s32 0, %v711
      %v713 = vrot.slane %v696, %v712
      %v714 = vlaneseq
      %v715 = vshrl.u32 %v714, 7
      %v716 = vsub.s32 0, %v715
      %v717 = vrot.slane %v695, %v716
      %v718 = vlaneseq
      %v719 = vshrl.u32 %v718, 7
      %v720 = vsub.s32 0, %v719
      %v721 = vrot.slane %v694, %v720
      %v722 = vlaneseq
      %v723 = vshrl.u32 %v722, 7
      %v724 = vsub.s32 0, %v723
      %v725 = vrot.slane %v693, %v724
      %v726 = vlaneseq
      %v727 = vshrl.u32 %v726, 7
      %v728 = vsub.s32 0, %v727
      %v729 = vrot.slane %v692, %v728
      %v730 = vmul.f32 %v700, %v709
      %v731 = vmul.f32 %v700, %v713
      %v732 = vmul.f32 %v700, %v717
      %v733 = vmul.f32 %v700, %v721
      %v734 = vmul.f32 %v700, %v725
      %v735 = vmul.f32 %v700, %v729
      %v736 = vmul.f32 %v704, %v709
      %v737 = vmul.f32 %v704, %v713
      %v738 = vmul.f32 %v704, %v717
      %v739 = vmul.f32 %v704, %v721
      %v740 = vmul.f32 %v704, %v725
      %v741 = vmul.f32 %v704, %v729
      %v742 = vadd.f32 %v667, %v730
      %v743 = vadd.f32 %v668, %v731
      %v744 = vadd.f32 %v669, %v732
      %v745 = vadd.f32 %v670, %v733
      %v746 = vadd.f32 %v671, %v734
      %v747 = vadd.f32 %v672, %v735
      %v748 = vadd.f32 %v673, %v736
      %v749 = vadd.f32 %v674, %v737
      %v750 = vadd.f32 %v675, %v738
      %v751 = vadd.f32 %v676, %v739
      %v752 = vadd.f32 %v677, %v740
      %v753 = vadd.f32 %v678, %v741
      %754 = vrot.lane.b32.xlu0 %v573, 17
      %v755 = vpop.permute.xlu0 %754
      %756 = vrot.lane.b32.xlu0 %v577, 17
      %v757 = vpop.permute.xlu0 %756
      %758 = vrot.lane.b32.xlu0 %v581, 17
      %v759 = vpop.permute.xlu0 %758
      %760 = vrot.lane.b32.xlu0 %v585, 17
      %v761 = vpop.permute.xlu0 %760
      %762 = vrot.lane.b32.xlu0 %v589, 17
      %v763 = vpop.permute.xlu0 %762
      %764 = vrot.lane.b32.xlu0 %v593, 17
      %v765 = vpop.permute.xlu0 %764
      %vm766 = vcmp.lt.s32.totalorder %v613, 17
      %v767 = vsel %vm766, %v763, %v765
      %v768 = vsel %vm766, %v761, %v763
      %v769 = vsel %vm766, %v759, %v761
      %v770 = vsel %vm766, %v757, %v759
      %v771 = vsel %vm766, %v755, %v757
      %v772 = vsel %vm766, %v765, %v755
      %773 = vset.pattern.permute.xlu0 2
      %774 = vperm.xlu0 %773, %v553
      %v775 = vpop.permute.xlu0 %774
      %777 = vset.pattern.permute.xlu0 2
      %778 = vperm.xlu0 %777, %v554
      %v779 = vpop.permute.xlu0 %778
      %v781 = vlaneseq
      %v782 = vshrl.u32 %v781, 7
      %v783 = vsub.s32 0, %v782
      %v784 = vrot.slane %v772, %v783
      %v785 = vlaneseq
      %v786 = vshrl.u32 %v785, 7
      %v787 = vsub.s32 0, %v786
      %v788 = vrot.slane %v771, %v787
      %v789 = vlaneseq
      %v790 = vshrl.u32 %v789, 7
      %v791 = vsub.s32 0, %v790
      %v792 = vrot.slane %v770, %v791
      %v793 = vlaneseq
      %v794 = vshrl.u32 %v793, 7
      %v795 = vsub.s32 0, %v794
      %v796 = vrot.slane %v769, %v795
      %v797 = vlaneseq
      %v798 = vshrl.u32 %v797, 7
      %v799 = vsub.s32 0, %v798
      %v800 = vrot.slane %v768, %v799
      %v801 = vlaneseq
      %v802 = vshrl.u32 %v801, 7
      %v803 = vsub.s32 0, %v802
      %v804 = vrot.slane %v767, %v803
      %v805 = vmul.f32 %v775, %v784
      %v806 = vmul.f32 %v775, %v788
      %v807 = vmul.f32 %v775, %v792
      %v808 = vmul.f32 %v775, %v796
      %v809 = vmul.f32 %v775, %v800
      %v810 = vmul.f32 %v775, %v804
      %v811 = vmul.f32 %v779, %v784
      %v812 = vmul.f32 %v779, %v788
      %v813 = vmul.f32 %v779, %v792
      %v814 = vmul.f32 %v779, %v796
      %v815 = vmul.f32 %v779, %v800
      %v816 = vmul.f32 %v779, %v804
      %v817 = vadd.f32 %v742, %v805
      %v818 = vadd.f32 %v743, %v806
      %v819 = vadd.f32 %v744, %v807
      %v820 = vadd.f32 %v745, %v808
      %v821 = vadd.f32 %v746, %v809
      %v822 = vadd.f32 %v747, %v810
      %v823 = vadd.f32 %v748, %v811
      %v824 = vadd.f32 %v749, %v812
      %v825 = vadd.f32 %v750, %v813
      %v826 = vadd.f32 %v751, %v814
      %v827 = vadd.f32 %v752, %v815
      %v828 = vadd.f32 %v753, %v816
      %829 = vrot.lane.b32.xlu0 %v573, 1
      %v830 = vpop.permute.xlu0 %829
      %831 = vrot.lane.b32.xlu0 %v577, 1
      %v832 = vpop.permute.xlu0 %831
      %833 = vrot.lane.b32.xlu0 %v581, 1
      %v834 = vpop.permute.xlu0 %833
      %835 = vrot.lane.b32.xlu0 %v585, 1
      %v836 = vpop.permute.xlu0 %835
      %837 = vrot.lane.b32.xlu0 %v589, 1
      %v838 = vpop.permute.xlu0 %837
      %839 = vrot.lane.b32.xlu0 %v593, 1
      %v840 = vpop.permute.xlu0 %839
      %vm841 = vcmp.lt.s32.totalorder %v613, 1
      %v842 = vsel %vm841, %v838, %v840
      %v843 = vsel %vm841, %v836, %v838
      %v844 = vsel %vm841, %v834, %v836
      %v845 = vsel %vm841, %v832, %v834
      %v846 = vsel %vm841, %v830, %v832
      %v847 = vsel %vm841, %v840, %v830
      %848 = vset.pattern.permute.xlu0 3
      %849 = vperm.xlu0 %848, %v553
      %v850 = vpop.permute.xlu0 %849
      %852 = vset.pattern.permute.xlu0 3
      %853 = vperm.xlu0 %852, %v554
      %v854 = vpop.permute.xlu0 %853
      %v856 = vlaneseq
      %v857 = vshrl.u32 %v856, 7
      %v858 = vsub.s32 0, %v857
      %v859 = vrot.slane %v847, %v858
      %v860 = vlaneseq
      %v861 = vshrl.u32 %v860, 7
      %v862 = vsub.s32 0, %v861
      %v863 = vrot.slane %v846, %v862
      %v864 = vlaneseq
      %v865 = vshrl.u32 %v864, 7
      %v866 = vsub.s32 0, %v865
      %v867 = vrot.slane %v845, %v866
      %v868 = vlaneseq
      %v869 = vshrl.u32 %v868, 7
      %v870 = vsub.s32 0, %v869
      %v871 = vrot.slane %v844, %v870
      %v872 = vlaneseq
      %v873 = vshrl.u32 %v872, 7
      %v874 = vsub.s32 0, %v873
      %v875 = vrot.slane %v843, %v874
      %v876 = vlaneseq
      %v877 = vshrl.u32 %v876, 7
      %v878 = vsub.s32 0, %v877
      %v879 = vrot.slane %v842, %v878
      %v880 = vmul.f32 %v850, %v859
      %v881 = vmul.f32 %v850, %v863
      %v882 = vmul.f32 %v850, %v867
      %v883 = vmul.f32 %v850, %v871
      %v884 = vmul.f32 %v850, %v875
      %v885 = vmul.f32 %v850, %v879
      %v886 = vmul.f32 %v854, %v859
      %v887 = vmul.f32 %v854, %v863
      %v888 = vmul.f32 %v854, %v867
      %v889 = vmul.f32 %v854, %v871
      %v890 = vmul.f32 %v854, %v875
      %v891 = vmul.f32 %v854, %v879
      %v892 = vadd.f32 %v817, %v880
      %v893 = vadd.f32 %v818, %v881
      %v894 = vadd.f32 %v819, %v882
      %v895 = vadd.f32 %v820, %v883
      %v896 = vadd.f32 %v821, %v884
      %v897 = vadd.f32 %v822, %v885
      %v898 = vadd.f32 %v823, %v886
      %v899 = vadd.f32 %v824, %v887
      %v900 = vadd.f32 %v825, %v888
      %v901 = vadd.f32 %v826, %v889
      %v902 = vadd.f32 %v827, %v890
      %v903 = vadd.f32 %v828, %v891
      %904 = vset.pattern.permute.xlu0 4
      %905 = vperm.xlu0 %904, %v553
      %v906 = vpop.permute.xlu0 %905
      %908 = vset.pattern.permute.xlu0 4
      %909 = vperm.xlu0 %908, %v554
      %v910 = vpop.permute.xlu0 %909
      %v912 = vmul.f32 %v906, %v573
      %v913 = vmul.f32 %v906, %v577
      %v914 = vmul.f32 %v906, %v581
      %v915 = vmul.f32 %v906, %v585
      %v916 = vmul.f32 %v906, %v589
      %v917 = vmul.f32 %v906, %v593
      %v918 = vmul.f32 %v910, %v573
      %v919 = vmul.f32 %v910, %v577
      %v920 = vmul.f32 %v910, %v581
      %v921 = vmul.f32 %v910, %v585
      %v922 = vmul.f32 %v910, %v589
      %v923 = vmul.f32 %v910, %v593
      %v924 = vadd.f32 %v892, %v912
      %v925 = vadd.f32 %v893, %v913
      %v926 = vadd.f32 %v894, %v914
      %v927 = vadd.f32 %v895, %v915
      %v928 = vadd.f32 %v896, %v916
      %v929 = vadd.f32 %v897, %v917
      %v930 = vadd.f32 %v898, %v918
      %v931 = vadd.f32 %v899, %v919
      %v932 = vadd.f32 %v900, %v920
      %v933 = vadd.f32 %v901, %v921
      %v934 = vadd.f32 %v902, %v922
      %v935 = vadd.f32 %v903, %v923
      %936 = vrot.lane.b32.xlu0 %v573, 127
      %v937 = vpop.permute.xlu0 %936
      %938 = vrot.lane.b32.xlu0 %v577, 127
      %v939 = vpop.permute.xlu0 %938
      %940 = vrot.lane.b32.xlu0 %v581, 127
      %v941 = vpop.permute.xlu0 %940
      %942 = vrot.lane.b32.xlu0 %v585, 127
      %v943 = vpop.permute.xlu0 %942
      %944 = vrot.lane.b32.xlu0 %v589, 127
      %v945 = vpop.permute.xlu0 %944
      %946 = vrot.lane.b32.xlu0 %v593, 127
      %v947 = vpop.permute.xlu0 %946
      %vm948 = vcmp.lt.s32.totalorder %v613, 127
      %v949 = vsel %vm948, %v945, %v947
      %v950 = vsel %vm948, %v943, %v945
      %v951 = vsel %vm948, %v941, %v943
      %v952 = vsel %vm948, %v939, %v941
      %v953 = vsel %vm948, %v937, %v939
      %v954 = vsel %vm948, %v947, %v937
      %955 = vset.pattern.permute.xlu0 5
      %956 = vperm.xlu0 %955, %v553
      %v957 = vpop.permute.xlu0 %956
      %959 = vset.pattern.permute.xlu0 5
      %960 = vperm.xlu0 %959, %v554
      %v961 = vpop.permute.xlu0 %960
      %v963 = vlaneseq
      %v964 = vshrl.u32 %v963, 7
      %v965 = vsub.s32 0, %v964
      %v966 = vrot.slane %v953, %v965
      %v967 = vlaneseq
      %v968 = vshrl.u32 %v967, 7
      %v969 = vsub.s32 0, %v968
      %v970 = vrot.slane %v952, %v969
      %v971 = vlaneseq
      %v972 = vshrl.u32 %v971, 7
      %v973 = vsub.s32 0, %v972
      %v974 = vrot.slane %v951, %v973
      %v975 = vlaneseq
      %v976 = vshrl.u32 %v975, 7
      %v977 = vsub.s32 0, %v976
      %v978 = vrot.slane %v950, %v977
      %v979 = vlaneseq
      %v980 = vshrl.u32 %v979, 7
      %v981 = vsub.s32 0, %v980
      %v982 = vrot.slane %v949, %v981
      %v983 = vlaneseq
      %v984 = vshrl.u32 %v983, 7
      %v985 = vsub.s32 0, %v984
      %v986 = vrot.slane %v954, %v985
      %v987 = vmul.f32 %v957, %v966
      %v988 = vmul.f32 %v957, %v970
      %v989 = vmul.f32 %v957, %v974
      %v990 = vmul.f32 %v957, %v978
      %v991 = vmul.f32 %v957, %v982
      %v992 = vmul.f32 %v957, %v986
      %v993 = vmul.f32 %v961, %v966
      %v994 = vmul.f32 %v961, %v970
      %v995 = vmul.f32 %v961, %v974
      %v996 = vmul.f32 %v961, %v978
      %v997 = vmul.f32 %v961, %v982
      %v998 = vmul.f32 %v961, %v986
      %v999 = vadd.f32 %v924, %v987
      %v1000 = vadd.f32 %v925, %v988
      %v1001 = vadd.f32 %v926, %v989
      %v1002 = vadd.f32 %v927, %v990
      %v1003 = vadd.f32 %v928, %v991
      %v1004 = vadd.f32 %v929, %v992
      %v1005 = vadd.f32 %v930, %v993
      %v1006 = vadd.f32 %v931, %v994
      %v1007 = vadd.f32 %v932, %v995
      %v1008 = vadd.f32 %v933, %v996
      %v1009 = vadd.f32 %v934, %v997
      %v1010 = vadd.f32 %v935, %v998
      %1011 = vrot.lane.b32.xlu0 %v573, 111
      %v1012 = vpop.permute.xlu0 %1011
      %1013 = vrot.lane.b32.xlu0 %v577, 111
      %v1014 = vpop.permute.xlu0 %1013
      %1015 = vrot.lane.b32.xlu0 %v581, 111
      %v1016 = vpop.permute.xlu0 %1015
      %1017 = vrot.lane.b32.xlu0 %v585, 111
      %v1018 = vpop.permute.xlu0 %1017
      %1019 = vrot.lane.b32.xlu0 %v589, 111
      %v1020 = vpop.permute.xlu0 %1019
      %1021 = vrot.lane.b32.xlu0 %v593, 111
      %v1022 = vpop.permute.xlu0 %1021
      %vm1023 = vcmp.lt.s32.totalorder %v613, 111
      %v1024 = vsel %vm1023, %v1020, %v1022
      %v1025 = vsel %vm1023, %v1018, %v1020
      %v1026 = vsel %vm1023, %v1016, %v1018
      %v1027 = vsel %vm1023, %v1014, %v1016
      %v1028 = vsel %vm1023, %v1012, %v1014
      %v1029 = vsel %vm1023, %v1022, %v1012
      %1030 = vset.pattern.permute.xlu0 6
      %1031 = vperm.xlu0 %1030, %v553
      %v1032 = vpop.permute.xlu0 %1031
      %1034 = vset.pattern.permute.xlu0 6
      %1035 = vperm.xlu0 %1034, %v554
      %v1036 = vpop.permute.xlu0 %1035
      %v1038 = vlaneseq
      %v1039 = vshrl.u32 %v1038, 7
      %v1040 = vsub.s32 0, %v1039
      %v1041 = vrot.slane %v1028, %v1040
      %v1042 = vlaneseq
      %v1043 = vshrl.u32 %v1042, 7
      %v1044 = vsub.s32 0, %v1043
      %v1045 = vrot.slane %v1027, %v1044
      %v1046 = vlaneseq
      %v1047 = vshrl.u32 %v1046, 7
      %v1048 = vsub.s32 0, %v1047
      %v1049 = vrot.slane %v1026, %v1048
      %v1050 = vlaneseq
      %v1051 = vshrl.u32 %v1050, 7
      %v1052 = vsub.s32 0, %v1051
      %v1053 = vrot.slane %v1025, %v1052
      %v1054 = vlaneseq
      %v1055 = vshrl.u32 %v1054, 7
      %v1056 = vsub.s32 0, %v1055
      %v1057 = vrot.slane %v1024, %v1056
      %v1058 = vlaneseq
      %v1059 = vshrl.u32 %v1058, 7
      %v1060 = vsub.s32 0, %v1059
      %v1061 = vrot.slane %v1029, %v1060
      %v1062 = vmul.f32 %v1032, %v1041
      %v1063 = vmul.f32 %v1032, %v1045
      %v1064 = vmul.f32 %v1032, %v1049
      %v1065 = vmul.f32 %v1032, %v1053
      %v1066 = vmul.f32 %v1032, %v1057
      %v1067 = vmul.f32 %v1032, %v1061
      %v1068 = vmul.f32 %v1036, %v1041
      %v1069 = vmul.f32 %v1036, %v1045
      %v1070 = vmul.f32 %v1036, %v1049
      %v1071 = vmul.f32 %v1036, %v1053
      %v1072 = vmul.f32 %v1036, %v1057
      %v1073 = vmul.f32 %v1036, %v1061
      %v1074 = vadd.f32 %v999, %v1062
      %v1075 = vadd.f32 %v1000, %v1063
      %v1076 = vadd.f32 %v1001, %v1064
      %v1077 = vadd.f32 %v1002, %v1065
      %v1078 = vadd.f32 %v1003, %v1066
      %v1079 = vadd.f32 %v1004, %v1067
      %v1080 = vadd.f32 %v1005, %v1068
      %v1081 = vadd.f32 %v1006, %v1069
      %v1082 = vadd.f32 %v1007, %v1070
      %v1083 = vadd.f32 %v1008, %v1071
      %v1084 = vadd.f32 %v1009, %v1072
      %v1085 = vadd.f32 %v1010, %v1073
      %1086 = vrot.lane.b32.xlu0 %v573, 110
      %v1087 = vpop.permute.xlu0 %1086
      %1088 = vrot.lane.b32.xlu0 %v577, 110
      %v1089 = vpop.permute.xlu0 %1088
      %1090 = vrot.lane.b32.xlu0 %v581, 110
      %v1091 = vpop.permute.xlu0 %1090
      %1092 = vrot.lane.b32.xlu0 %v585, 110
      %v1093 = vpop.permute.xlu0 %1092
      %1094 = vrot.lane.b32.xlu0 %v589, 110
      %v1095 = vpop.permute.xlu0 %1094
      %1096 = vrot.lane.b32.xlu0 %v593, 110
      %v1097 = vpop.permute.xlu0 %1096
      %vm1098 = vcmp.lt.s32.totalorder %v613, 110
      %v1099 = vsel %vm1098, %v1095, %v1097
      %v1100 = vsel %vm1098, %v1093, %v1095
      %v1101 = vsel %vm1098, %v1091, %v1093
      %v1102 = vsel %vm1098, %v1089, %v1091
      %v1103 = vsel %vm1098, %v1087, %v1089
      %v1104 = vsel %vm1098, %v1097, %v1087
      %1105 = vset.pattern.permute.xlu0 7
      %1106 = vperm.xlu0 %1105, %v553
      %v1107 = vpop.permute.xlu0 %1106
      %1109 = vset.pattern.permute.xlu0 7
      %1110 = vperm.xlu0 %1109, %v554
      %v1111 = vpop.permute.xlu0 %1110
      %v1113 = vlaneseq
      %v1114 = vshrl.u32 %v1113, 7
      %v1115 = vsub.s32 0, %v1114
      %v1116 = vrot.slane %v1103, %v1115
      %v1117 = vlaneseq
      %v1118 = vshrl.u32 %v1117, 7
      %v1119 = vsub.s32 0, %v1118
      %v1120 = vrot.slane %v1102, %v1119
      %v1121 = vlaneseq
      %v1122 = vshrl.u32 %v1121, 7
      %v1123 = vsub.s32 0, %v1122
      %v1124 = vrot.slane %v1101, %v1123
      %v1125 = vlaneseq
      %v1126 = vshrl.u32 %v1125, 7
      %v1127 = vsub.s32 0, %v1126
      %v1128 = vrot.slane %v1100, %v1127
      %v1129 = vlaneseq
      %v1130 = vshrl.u32 %v1129, 7
      %v1131 = vsub.s32 0, %v1130
      %v1132 = vrot.slane %v1099, %v1131
      %v1133 = vlaneseq
      %v1134 = vshrl.u32 %v1133, 7
      %v1135 = vsub.s32 0, %v1134
      %v1136 = vrot.slane %v1104, %v1135
      %v1137 = vmul.f32 %v1107, %v1116
      %v1138 = vmul.f32 %v1107, %v1120
      %v1139 = vmul.f32 %v1107, %v1124
      %v1140 = vmul.f32 %v1107, %v1128
      %v1141 = vmul.f32 %v1107, %v1132
      %v1142 = vmul.f32 %v1107, %v1136
      %v1143 = vmul.f32 %v1111, %v1116
      %v1144 = vmul.f32 %v1111, %v1120
      %v1145 = vmul.f32 %v1111, %v1124
      %v1146 = vmul.f32 %v1111, %v1128
      %v1147 = vmul.f32 %v1111, %v1132
      %v1148 = vmul.f32 %v1111, %v1136
      %v1149 = vadd.f32 %v1074, %v1137
      %v1150 = vadd.f32 %v1075, %v1138
      %v1151 = vadd.f32 %v1076, %v1139
      %v1152 = vadd.f32 %v1077, %v1140
      %v1153 = vadd.f32 %v1078, %v1141
      %v1154 = vadd.f32 %v1079, %v1142
      %v1155 = vadd.f32 %v1080, %v1143
      %v1156 = vadd.f32 %v1081, %v1144
      %v1157 = vadd.f32 %v1082, %v1145
      %v1158 = vadd.f32 %v1083, %v1146
      %v1159 = vadd.f32 %v1084, %v1147
      %v1160 = vadd.f32 %v1085, %v1148
      %1161 = vrot.lane.b32.xlu0 %v573, 109
      %v1162 = vpop.permute.xlu0 %1161
      %1163 = vrot.lane.b32.xlu0 %v577, 109
      %v1164 = vpop.permute.xlu0 %1163
      %1165 = vrot.lane.b32.xlu0 %v581, 109
      %v1166 = vpop.permute.xlu0 %1165
      %1167 = vrot.lane.b32.xlu0 %v585, 109
      %v1168 = vpop.permute.xlu0 %1167
      %1169 = vrot.lane.b32.xlu0 %v589, 109
      %v1170 = vpop.permute.xlu0 %1169
      %1171 = vrot.lane.b32.xlu0 %v593, 109
      %v1172 = vpop.permute.xlu0 %1171
      %vm1173 = vcmp.lt.s32.totalorder %v613, 109
      %v1174 = vsel %vm1173, %v1170, %v1172
      %v1175 = vsel %vm1173, %v1168, %v1170
      %v1176 = vsel %vm1173, %v1166, %v1168
      %v1177 = vsel %vm1173, %v1164, %v1166
      %v1178 = vsel %vm1173, %v1162, %v1164
      %v1179 = vsel %vm1173, %v1172, %v1162
      %1180 = vset.pattern.permute.xlu0 8
      %1181 = vperm.xlu0 %1180, %v553
      %v1182 = vpop.permute.xlu0 %1181
      %1184 = vset.pattern.permute.xlu0 8
      %1185 = vperm.xlu0 %1184, %v554
      %v1186 = vpop.permute.xlu0 %1185
      %v1188 = vlaneseq
      %v1189 = vshrl.u32 %v1188, 7
      %v1190 = vsub.s32 0, %v1189
      %v1191 = vrot.slane %v1178, %v1190
      %v1192 = vlaneseq
      %v1193 = vshrl.u32 %v1192, 7
      %v1194 = vsub.s32 0, %v1193
      %v1195 = vrot.slane %v1177, %v1194
      %v1196 = vlaneseq
      %v1197 = vshrl.u32 %v1196, 7
      %v1198 = vsub.s32 0, %v1197
      %v1199 = vrot.slane %v1176, %v1198
      %v1200 = vlaneseq
      %v1201 = vshrl.u32 %v1200, 7
      %v1202 = vsub.s32 0, %v1201
      %v1203 = vrot.slane %v1175, %v1202
      %v1204 = vlaneseq
      %v1205 = vshrl.u32 %v1204, 7
      %v1206 = vsub.s32 0, %v1205
      %v1207 = vrot.slane %v1174, %v1206
      %v1208 = vlaneseq
      %v1209 = vshrl.u32 %v1208, 7
      %v1210 = vsub.s32 0, %v1209
      %v1211 = vrot.slane %v1179, %v1210
      %v1212 = vmul.f32 %v1182, %v1191
      %v1213 = vmul.f32 %v1182, %v1195
      %v1214 = vmul.f32 %v1182, %v1199
      %v1215 = vmul.f32 %v1182, %v1203
      %v1216 = vmul.f32 %v1182, %v1207
      %v1217 = vmul.f32 %v1182, %v1211
      %v1218 = vmul.f32 %v1186, %v1191
      %v1219 = vmul.f32 %v1186, %v1195
      %v1220 = vmul.f32 %v1186, %v1199
      %v1221 = vmul.f32 %v1186, %v1203
      %v1222 = vmul.f32 %v1186, %v1207
      %v1223 = vmul.f32 %v1186, %v1211
      %v1224 = vadd.f32 %v1149, %v1212
      %v1225 = vadd.f32 %v1150, %v1213
      %v1226 = vadd.f32 %v1151, %v1214
      %v1227 = vadd.f32 %v1152, %v1215
      %v1228 = vadd.f32 %v1153, %v1216
      %v1229 = vadd.f32 %v1154, %v1217
      %v1230 = vadd.f32 %v1155, %v1218
      %v1231 = vadd.f32 %v1156, %v1219
      %v1232 = vadd.f32 %v1157, %v1220
      %v1233 = vadd.f32 %v1158, %v1221
      %v1234 = vadd.f32 %v1159, %v1222
      %v1235 = vadd.f32 %v1160, %v1223
      %v1236 = vmax.f32 %v1224, 0.0
      %v1237 = vmax.f32 %v1225, 0.0
      %v1238 = vmax.f32 %v1226, 0.0
      %v1239 = vmax.f32 %v1227, 0.0
      %v1240 = vmax.f32 %v1228, 0.0
      %v1241 = vmax.f32 %v1229, 0.0
      %v1242 = vmax.f32 %v1230, 0.0
      %v1243 = vmax.f32 %v1231, 0.0
      %v1244 = vmax.f32 %v1232, 0.0
      %v1245 = vmax.f32 %v1233, 0.0
      %v1246 = vmax.f32 %v1234, 0.0
      %v1247 = vmax.f32 %v1235, 0.0
      %v1249 = vlaneseq
      %v1250 = vshrl.u32 %v1249, 7
      %v1251 = vsub.s32 0, %v1250
      %v1252 = vrot.slane %v550, %v1251
      %v1253 = vlaneseq
      %v1254 = vshrl.u32 %v1253, 7
      %v1255 = vsub.s32 1, %v1254
      %v1256 = vrot.slane %v550, %v1255
      %v1257 = vlaneseq
      %v1258 = vshrl.u32 %v1257, 7
      %v1259 = vsub.s32 2, %v1258
      %v1260 = vrot.slane %v550, %v1259
      %v1261 = vlaneseq
      %v1262 = vshrl.u32 %v1261, 7
      %v1263 = vsub.s32 3, %v1262
      %v1264 = vrot.slane %v550, %v1263
      %v1265 = vlaneseq
      %v1266 = vshrl.u32 %v1265, 7
      %v1267 = vsub.s32 4, %v1266
      %v1268 = vrot.slane %v550, %v1267
      %v1269 = vlaneseq
      %v1270 = vshrl.u32 %v1269, 7
      %v1271 = vsub.s32 5, %v1270
      %v1272 = vrot.slane %v550, %v1271
      %v1279 = vmul.f32 %v1236, %v1252
      %v1280 = vmul.f32 %v1237, %v1256
      %v1281 = vmul.f32 %v1238, %v1260
      %v1282 = vmul.f32 %v1239, %v1264
      %v1283 = vmul.f32 %v1240, %v1268
      %v1284 = vmul.f32 %v1241, %v1272
      %v1285 = vmul.f32 %v1242, %v1252
      %v1286 = vmul.f32 %v1243, %v1256
      %v1287 = vmul.f32 %v1244, %v1260
      %v1288 = vmul.f32 %v1245, %v1264
      %v1289 = vmul.f32 %v1246, %v1268
      %v1290 = vmul.f32 %v1247, %v1272
      %1291 = vrot.lane.b32.xlu0 %v1279, 19
      %v1292 = vpop.permute.xlu0 %1291
      %1293 = vrot.lane.b32.xlu0 %v1285, 19
      %v1294 = vpop.permute.xlu0 %1293
      %1295 = vrot.lane.b32.xlu0 %v1280, 19
      %v1296 = vpop.permute.xlu0 %1295
      %1297 = vrot.lane.b32.xlu0 %v1286, 19
      %v1298 = vpop.permute.xlu0 %1297
      %1299 = vrot.lane.b32.xlu0 %v1281, 19
      %v1300 = vpop.permute.xlu0 %1299
      %1301 = vrot.lane.b32.xlu0 %v1287, 19
      %v1302 = vpop.permute.xlu0 %1301
      %1303 = vrot.lane.b32.xlu0 %v1282, 19
      %v1304 = vpop.permute.xlu0 %1303
      %1305 = vrot.lane.b32.xlu0 %v1288, 19
      %v1306 = vpop.permute.xlu0 %1305
      %1307 = vrot.lane.b32.xlu0 %v1283, 19
      %v1308 = vpop.permute.xlu0 %1307
      %1309 = vrot.lane.b32.xlu0 %v1289, 19
      %v1310 = vpop.permute.xlu0 %1309
      %1311 = vrot.lane.b32.xlu0 %v1284, 19
      %v1312 = vpop.permute.xlu0 %1311
      %1313 = vrot.lane.b32.xlu0 %v1290, 19
      %v1314 = vpop.permute.xlu0 %1313
      %v1315 = vsel %vm614, %v1308, %v1312
      %v1316 = vsel %vm614, %v1310, %v1314
      %v1317 = vsel %vm614, %v1304, %v1308
      %v1318 = vsel %vm614, %v1306, %v1310
      %v1319 = vsel %vm614, %v1300, %v1304
      %v1320 = vsel %vm614, %v1302, %v1306
      %v1321 = vsel %vm614, %v1296, %v1300
      %v1322 = vsel %vm614, %v1298, %v1302
      %v1323 = vsel %vm614, %v1292, %v1296
      %v1324 = vsel %vm614, %v1294, %v1298
      %v1325 = vsel %vm614, %v1312, %v1292
      %v1326 = vsel %vm614, %v1314, %v1294
      %v1327 = vpack.c.bf16 %v1326, %v1325
      %v1328 = vpack.c.bf16 %v1324, %v1323
      %v1329 = vpack.c.bf16 %v1322, %v1321
      %v1330 = vpack.c.bf16 %v1320, %v1319
      %v1331 = vpack.c.bf16 %v1318, %v1317
      %v1332 = vpack.c.bf16 %v1316, %v1315
      %v1339 = vunpack.c.l.b16 %v1327
      %v1340 = vunpack.c.l.b16 %v1328
      %v1341 = vunpack.c.l.b16 %v1329
      %v1342 = vunpack.c.l.b16 %v1330
      %v1343 = vunpack.c.l.b16 %v1331
      %v1344 = vunpack.c.l.b16 %v1332
      %v1345 = vunpack.c.h.b16 %v1327
      %v1346 = vunpack.c.h.b16 %v1328
      %v1347 = vunpack.c.h.b16 %v1329
      %v1348 = vunpack.c.h.b16 %v1330
      %v1349 = vunpack.c.h.b16 %v1331
      %v1350 = vunpack.c.h.b16 %v1332
      %v1351 = vpack.c.b16 %v1340, %v1339
      %v1352 = vpack.c.b16 %v1342, %v1341
      %v1353 = vpack.c.b16 %v1344, %v1343
      %v1354 = vpack.c.b16 %v1346, %v1345
      %v1355 = vpack.c.b16 %v1348, %v1347
      %v1356 = vpack.c.b16 %v1350, %v1349
      %1363 = vst [vmem:[#allocation2] sm:$0xff] %v1351
      %1364 = vst [vmem:[#allocation2 + $0x8] sm:$0xff] %v1352
      %1365 = vst [vmem:[#allocation2 + $0x10] sm:$0xff] %v1353
      %1366 = vst [vmem:[#allocation2 + $0x18] sm:$0xff] %v1354
      %1367 = vst [vmem:[#allocation2 + $0x20] sm:$0xff] %v1355
      %1368 = vst [vmem:[#allocation2 + $0x28] sm:$0xff] %v1356
      %1369 = vrot.lane.b32.xlu0 %v1279, 18
      %v1370 = vpop.permute.xlu0 %1369
      %1371 = vrot.lane.b32.xlu0 %v1285, 18
      %v1372 = vpop.permute.xlu0 %1371
      %1373 = vrot.lane.b32.xlu0 %v1280, 18
      %v1374 = vpop.permute.xlu0 %1373
      %1375 = vrot.lane.b32.xlu0 %v1286, 18
      %v1376 = vpop.permute.xlu0 %1375
      %1377 = vrot.lane.b32.xlu0 %v1281, 18
      %v1378 = vpop.permute.xlu0 %1377
      %1379 = vrot.lane.b32.xlu0 %v1287, 18
      %v1380 = vpop.permute.xlu0 %1379
      %1381 = vrot.lane.b32.xlu0 %v1282, 18
      %v1382 = vpop.permute.xlu0 %1381
      %1383 = vrot.lane.b32.xlu0 %v1288, 18
      %v1384 = vpop.permute.xlu0 %1383
      %1385 = vrot.lane.b32.xlu0 %v1283, 18
      %v1386 = vpop.permute.xlu0 %1385
      %1387 = vrot.lane.b32.xlu0 %v1289, 18
      %v1388 = vpop.permute.xlu0 %1387
      %1389 = vrot.lane.b32.xlu0 %v1284, 18
      %v1390 = vpop.permute.xlu0 %1389
      %1391 = vrot.lane.b32.xlu0 %v1290, 18
      %v1392 = vpop.permute.xlu0 %1391
      %v1393 = vsel %vm691, %v1386, %v1390
      %v1394 = vsel %vm691, %v1388, %v1392
      %v1395 = vsel %vm691, %v1382, %v1386
      %v1396 = vsel %vm691, %v1384, %v1388
      %v1397 = vsel %vm691, %v1378, %v1382
      %v1398 = vsel %vm691, %v1380, %v1384
      %v1399 = vsel %vm691, %v1374, %v1378
      %v1400 = vsel %vm691, %v1376, %v1380
      %v1401 = vsel %vm691, %v1370, %v1374
      %v1402 = vsel %vm691, %v1372, %v1376
      %v1403 = vsel %vm691, %v1390, %v1370
      %v1404 = vsel %vm691, %v1392, %v1372
      %v1405 = vpack.c.bf16 %v1404, %v1403
      %v1406 = vpack.c.bf16 %v1402, %v1401
      %v1407 = vpack.c.bf16 %v1400, %v1399
      %v1408 = vpack.c.bf16 %v1398, %v1397
      %v1409 = vpack.c.bf16 %v1396, %v1395
      %v1410 = vpack.c.bf16 %v1394, %v1393
      %v1417 = vunpack.c.l.b16 %v1405
      %v1418 = vunpack.c.l.b16 %v1406
      %v1419 = vunpack.c.l.b16 %v1407
      %v1420 = vunpack.c.l.b16 %v1408
      %v1421 = vunpack.c.l.b16 %v1409
      %v1422 = vunpack.c.l.b16 %v1410
      %v1423 = vunpack.c.h.b16 %v1405
      %v1424 = vunpack.c.h.b16 %v1406
      %v1425 = vunpack.c.h.b16 %v1407
      %v1426 = vunpack.c.h.b16 %v1408
      %v1427 = vunpack.c.h.b16 %v1409
      %v1428 = vunpack.c.h.b16 %v1410
      %v1429 = vpack.c.b16 %v1418, %v1417
      %v1430 = vpack.c.b16 %v1420, %v1419
      %v1431 = vpack.c.b16 %v1422, %v1421
      %v1432 = vpack.c.b16 %v1424, %v1423
      %v1433 = vpack.c.b16 %v1426, %v1425
      %v1434 = vpack.c.b16 %v1428, %v1427
      %1441 = vst [vmem:[#allocation2 + $0x30] sm:$0xff] %v1429
      %1442 = vst [vmem:[#allocation2 + $0x38] sm:$0xff] %v1430
      %1443 = vst [vmem:[#allocation2 + $0x40] sm:$0xff] %v1431
      %1444 = vst [vmem:[#allocation2 + $0x48] sm:$0xff] %v1432
      %1445 = vst [vmem:[#allocation2 + $0x50] sm:$0xff] %v1433
      %1446 = vst [vmem:[#allocation2 + $0x58] sm:$0xff] %v1434
      %1447 = vrot.lane.b32.xlu0 %v1279, 17
      %v1448 = vpop.permute.xlu0 %1447
      %1449 = vrot.lane.b32.xlu0 %v1285, 17
      %v1450 = vpop.permute.xlu0 %1449
      %1451 = vrot.lane.b32.xlu0 %v1280, 17
      %v1452 = vpop.permute.xlu0 %1451
      %1453 = vrot.lane.b32.xlu0 %v1286, 17
      %v1454 = vpop.permute.xlu0 %1453
      %1455 = vrot.lane.b32.xlu0 %v1281, 17
      %v1456 = vpop.permute.xlu0 %1455
      %1457 = vrot.lane.b32.xlu0 %v1287, 17
      %v1458 = vpop.permute.xlu0 %1457
      %1459 = vrot.lane.b32.xlu0 %v1282, 17
      %v1460 = vpop.permute.xlu0 %1459
      %1461 = vrot.lane.b32.xlu0 %v1288, 17
      %v1462 = vpop.permute.xlu0 %1461
      %1463 = vrot.lane.b32.xlu0 %v1283, 17
      %v1464 = vpop.permute.xlu0 %1463
      %1465 = vrot.lane.b32.xlu0 %v1289, 17
      %v1466 = vpop.permute.xlu0 %1465
      %1467 = vrot.lane.b32.xlu0 %v1284, 17
      %v1468 = vpop.permute.xlu0 %1467
      %1469 = vrot.lane.b32.xlu0 %v1290, 17
      %v1470 = vpop.permute.xlu0 %1469
      %v1471 = vsel %vm766, %v1464, %v1468
      %v1472 = vsel %vm766, %v1466, %v1470
      %v1473 = vsel %vm766, %v1460, %v1464
      %v1474 = vsel %vm766, %v1462, %v1466
      %v1475 = vsel %vm766, %v1456, %v1460
      %v1476 = vsel %vm766, %v1458, %v1462
      %v1477 = vsel %vm766, %v1452, %v1456
      %v1478 = vsel %vm766, %v1454, %v1458
      %v1479 = vsel %vm766, %v1448, %v1452
      %v1480 = vsel %vm766, %v1450, %v1454
      %v1481 = vsel %vm766, %v1468, %v1448
      %v1482 = vsel %vm766, %v1470, %v1450
      %v1483 = vpack.c.bf16 %v1482, %v1481
      %v1484 = vpack.c.bf16 %v1480, %v1479
      %v1485 = vpack.c.bf16 %v1478, %v1477
      %v1486 = vpack.c.bf16 %v1476, %v1475
      %v1487 = vpack.c.bf16 %v1474, %v1473
      %v1488 = vpack.c.bf16 %v1472, %v1471
      %v1495 = vunpack.c.l.b16 %v1483
      %v1496 = vunpack.c.l.b16 %v1484
      %v1497 = vunpack.c.l.b16 %v1485
      %v1498 = vunpack.c.l.b16 %v1486
      %v1499 = vunpack.c.l.b16 %v1487
      %v1500 = vunpack.c.l.b16 %v1488
      %v1501 = vunpack.c.h.b16 %v1483
      %v1502 = vunpack.c.h.b16 %v1484
      %v1503 = vunpack.c.h.b16 %v1485
      %v1504 = vunpack.c.h.b16 %v1486
      %v1505 = vunpack.c.h.b16 %v1487
      %v1506 = vunpack.c.h.b16 %v1488
      %v1507 = vpack.c.b16 %v1496, %v1495
      %v1508 = vpack.c.b16 %v1498, %v1497
      %v1509 = vpack.c.b16 %v1500, %v1499
      %v1510 = vpack.c.b16 %v1502, %v1501
      %v1511 = vpack.c.b16 %v1504, %v1503
      %v1512 = vpack.c.b16 %v1506, %v1505
      %1519 = vst [vmem:[#allocation2 + $0x60] sm:$0xff] %v1507
      %1520 = vst [vmem:[#allocation2 + $0x68] sm:$0xff] %v1508
      %1521 = vst [vmem:[#allocation2 + $0x70] sm:$0xff] %v1509
      %1522 = vst [vmem:[#allocation2 + $0x78] sm:$0xff] %v1510
      %1523 = vst [vmem:[#allocation2 + $0x80] sm:$0xff] %v1511
      %1524 = vst [vmem:[#allocation2 + $0x88] sm:$0xff] %v1512
      %1525 = vrot.lane.b32.xlu0 %v1279, 1
      %v1526 = vpop.permute.xlu0 %1525
      %1527 = vrot.lane.b32.xlu0 %v1285, 1
      %v1528 = vpop.permute.xlu0 %1527
      %1529 = vrot.lane.b32.xlu0 %v1280, 1
      %v1530 = vpop.permute.xlu0 %1529
      %1531 = vrot.lane.b32.xlu0 %v1286, 1
      %v1532 = vpop.permute.xlu0 %1531
      %1533 = vrot.lane.b32.xlu0 %v1281, 1
      %v1534 = vpop.permute.xlu0 %1533
      %1535 = vrot.lane.b32.xlu0 %v1287, 1
      %v1536 = vpop.permute.xlu0 %1535
      %1537 = vrot.lane.b32.xlu0 %v1282, 1
      %v1538 = vpop.permute.xlu0 %1537
      %1539 = vrot.lane.b32.xlu0 %v1288, 1
      %v1540 = vpop.permute.xlu0 %1539
      %1541 = vrot.lane.b32.xlu0 %v1283, 1
      %v1542 = vpop.permute.xlu0 %1541
      %1543 = vrot.lane.b32.xlu0 %v1289, 1
      %v1544 = vpop.permute.xlu0 %1543
      %1545 = vrot.lane.b32.xlu0 %v1284, 1
      %v1546 = vpop.permute.xlu0 %1545
      %1547 = vrot.lane.b32.xlu0 %v1290, 1
      %v1548 = vpop.permute.xlu0 %1547
      %v1549 = vsel %vm841, %v1542, %v1546
      %v1550 = vsel %vm841, %v1544, %v1548
      %v1551 = vsel %vm841, %v1538, %v1542
      %v1552 = vsel %vm841, %v1540, %v1544
      %v1553 = vsel %vm841, %v1534, %v1538
      %v1554 = vsel %vm841, %v1536, %v1540
      %v1555 = vsel %vm841, %v1530, %v1534
      %v1556 = vsel %vm841, %v1532, %v1536
      %v1557 = vsel %vm841, %v1526, %v1530
      %v1558 = vsel %vm841, %v1528, %v1532
      %v1559 = vsel %vm841, %v1546, %v1526
      %v1560 = vsel %vm841, %v1548, %v1528
      %v1561 = vpack.c.bf16 %v1560, %v1559
      %v1562 = vpack.c.bf16 %v1558, %v1557
      %v1563 = vpack.c.bf16 %v1556, %v1555
      %v1564 = vpack.c.bf16 %v1554, %v1553
      %v1565 = vpack.c.bf16 %v1552, %v1551
      %v1566 = vpack.c.bf16 %v1550, %v1549
      %v1573 = vunpack.c.l.b16 %v1561
      %v1574 = vunpack.c.l.b16 %v1562
      %v1575 = vunpack.c.l.b16 %v1563
      %v1576 = vunpack.c.l.b16 %v1564
      %v1577 = vunpack.c.l.b16 %v1565
      %v1578 = vunpack.c.l.b16 %v1566
      %v1579 = vunpack.c.h.b16 %v1561
      %v1580 = vunpack.c.h.b16 %v1562
      %v1581 = vunpack.c.h.b16 %v1563
      %v1582 = vunpack.c.h.b16 %v1564
      %v1583 = vunpack.c.h.b16 %v1565
      %v1584 = vunpack.c.h.b16 %v1566
      %v1585 = vpack.c.b16 %v1574, %v1573
      %v1586 = vpack.c.b16 %v1576, %v1575
      %v1587 = vpack.c.b16 %v1578, %v1577
      %v1588 = vpack.c.b16 %v1580, %v1579
      %v1589 = vpack.c.b16 %v1582, %v1581
      %v1590 = vpack.c.b16 %v1584, %v1583
      %1597 = vst [vmem:[#allocation2 + $0x90] sm:$0xff] %v1585
      %1598 = vst [vmem:[#allocation2 + $0x98] sm:$0xff] %v1586
      %1599 = vst [vmem:[#allocation2 + $0xa0] sm:$0xff] %v1587
      %1600 = vst [vmem:[#allocation2 + $0xa8] sm:$0xff] %v1588
      %1601 = vst [vmem:[#allocation2 + $0xb0] sm:$0xff] %v1589
      %1602 = vst [vmem:[#allocation2 + $0xb8] sm:$0xff] %v1590
      %v1603 = vpack.c.bf16 %v1285, %v1279
      %v1604 = vpack.c.bf16 %v1286, %v1280
      %v1605 = vpack.c.bf16 %v1287, %v1281
      %v1606 = vpack.c.bf16 %v1288, %v1282
      %v1607 = vpack.c.bf16 %v1289, %v1283
      %v1608 = vpack.c.bf16 %v1290, %v1284
      %v1615 = vunpack.c.l.b16 %v1603
      %v1616 = vunpack.c.l.b16 %v1604
      %v1617 = vunpack.c.l.b16 %v1605
      %v1618 = vunpack.c.l.b16 %v1606
      %v1619 = vunpack.c.l.b16 %v1607
      %v1620 = vunpack.c.l.b16 %v1608
      %v1621 = vunpack.c.h.b16 %v1603
      %v1622 = vunpack.c.h.b16 %v1604
      %v1623 = vunpack.c.h.b16 %v1605
      %v1624 = vunpack.c.h.b16 %v1606
      %v1625 = vunpack.c.h.b16 %v1607
      %v1626 = vunpack.c.h.b16 %v1608
      %v1627 = vpack.c.b16 %v1616, %v1615
      %v1628 = vpack.c.b16 %v1618, %v1617
      %v1629 = vpack.c.b16 %v1620, %v1619
      %v1630 = vpack.c.b16 %v1622, %v1621
      %v1631 = vpack.c.b16 %v1624, %v1623
      %v1632 = vpack.c.b16 %v1626, %v1625
      %1639 = vst [vmem:[#allocation2 + $0xc0] sm:$0xff] %v1627
      %1640 = vst [vmem:[#allocation2 + $0xc8] sm:$0xff] %v1628
      %1641 = vst [vmem:[#allocation2 + $0xd0] sm:$0xff] %v1629
      %1642 = vst [vmem:[#allocation2 + $0xd8] sm:$0xff] %v1630
      %1643 = vst [vmem:[#allocation2 + $0xe0] sm:$0xff] %v1631
      %1644 = vst [vmem:[#allocation2 + $0xe8] sm:$0xff] %v1632
      %1645 = vrot.lane.b32.xlu0 %v1279, 127
      %v1646 = vpop.permute.xlu0 %1645
      %1647 = vrot.lane.b32.xlu0 %v1285, 127
      %v1648 = vpop.permute.xlu0 %1647
      %1649 = vrot.lane.b32.xlu0 %v1280, 127
      %v1650 = vpop.permute.xlu0 %1649
      %1651 = vrot.lane.b32.xlu0 %v1286, 127
      %v1652 = vpop.permute.xlu0 %1651
      %1653 = vrot.lane.b32.xlu0 %v1281, 127
      %v1654 = vpop.permute.xlu0 %1653
      %1655 = vrot.lane.b32.xlu0 %v1287, 127
      %v1656 = vpop.permute.xlu0 %1655
      %1657 = vrot.lane.b32.xlu0 %v1282, 127
      %v1658 = vpop.permute.xlu0 %1657
      %1659 = vrot.lane.b32.xlu0 %v1288, 127
      %v1660 = vpop.permute.xlu0 %1659
      %1661 = vrot.lane.b32.xlu0 %v1283, 127
      %v1662 = vpop.permute.xlu0 %1661
      %1663 = vrot.lane.b32.xlu0 %v1289, 127
      %v1664 = vpop.permute.xlu0 %1663
      %1665 = vrot.lane.b32.xlu0 %v1284, 127
      %v1666 = vpop.permute.xlu0 %1665
      %1667 = vrot.lane.b32.xlu0 %v1290, 127
      %v1668 = vpop.permute.xlu0 %1667
      %v1669 = vsel %vm948, %v1662, %v1666
      %v1670 = vsel %vm948, %v1664, %v1668
      %v1671 = vsel %vm948, %v1658, %v1662
      %v1672 = vsel %vm948, %v1660, %v1664
      %v1673 = vsel %vm948, %v1654, %v1658
      %v1674 = vsel %vm948, %v1656, %v1660
      %v1675 = vsel %vm948, %v1650, %v1654
      %v1676 = vsel %vm948, %v1652, %v1656
      %v1677 = vsel %vm948, %v1646, %v1650
      %v1678 = vsel %vm948, %v1648, %v1652
      %v1679 = vsel %vm948, %v1666, %v1646
      %v1680 = vsel %vm948, %v1668, %v1648
      %v1681 = vpack.c.bf16 %v1678, %v1677
      %v1682 = vpack.c.bf16 %v1676, %v1675
      %v1683 = vpack.c.bf16 %v1674, %v1673
      %v1684 = vpack.c.bf16 %v1672, %v1671
      %v1685 = vpack.c.bf16 %v1670, %v1669
      %v1686 = vpack.c.bf16 %v1680, %v1679
      %v1693 = vunpack.c.l.b16 %v1681
      %v1694 = vunpack.c.l.b16 %v1682
      %v1695 = vunpack.c.l.b16 %v1683
      %v1696 = vunpack.c.l.b16 %v1684
      %v1697 = vunpack.c.l.b16 %v1685
      %v1698 = vunpack.c.l.b16 %v1686
      %v1699 = vunpack.c.h.b16 %v1681
      %v1700 = vunpack.c.h.b16 %v1682
      %v1701 = vunpack.c.h.b16 %v1683
      %v1702 = vunpack.c.h.b16 %v1684
      %v1703 = vunpack.c.h.b16 %v1685
      %v1704 = vunpack.c.h.b16 %v1686
      %v1705 = vpack.c.b16 %v1694, %v1693
      %v1706 = vpack.c.b16 %v1696, %v1695
      %v1707 = vpack.c.b16 %v1698, %v1697
      %v1708 = vpack.c.b16 %v1700, %v1699
      %v1709 = vpack.c.b16 %v1702, %v1701
      %v1710 = vpack.c.b16 %v1704, %v1703
      %1717 = vst [vmem:[#allocation2 + $0xf0] sm:$0xff] %v1705
      %1718 = vst [vmem:[#allocation2 + $0xf8] sm:$0xff] %v1706
      %1719 = vst [vmem:[#allocation2 + $0x100] sm:$0xff] %v1707
      %1720 = vst [vmem:[#allocation2 + $0x108] sm:$0xff] %v1708
      %1721 = vst [vmem:[#allocation2 + $0x110] sm:$0xff] %v1709
      %1722 = vst [vmem:[#allocation2 + $0x118] sm:$0xff] %v1710
      %1723 = vrot.lane.b32.xlu0 %v1279, 111
      %v1724 = vpop.permute.xlu0 %1723
      %1725 = vrot.lane.b32.xlu0 %v1285, 111
      %v1726 = vpop.permute.xlu0 %1725
      %1727 = vrot.lane.b32.xlu0 %v1280, 111
      %v1728 = vpop.permute.xlu0 %1727
      %1729 = vrot.lane.b32.xlu0 %v1286, 111
      %v1730 = vpop.permute.xlu0 %1729
      %1731 = vrot.lane.b32.xlu0 %v1281, 111
      %v1732 = vpop.permute.xlu0 %1731
      %1733 = vrot.lane.b32.xlu0 %v1287, 111
      %v1734 = vpop.permute.xlu0 %1733
      %1735 = vrot.lane.b32.xlu0 %v1282, 111
      %v1736 = vpop.permute.xlu0 %1735
      %1737 = vrot.lane.b32.xlu0 %v1288, 111
      %v1738 = vpop.permute.xlu0 %1737
      %1739 = vrot.lane.b32.xlu0 %v1283, 111
      %v1740 = vpop.permute.xlu0 %1739
      %1741 = vrot.lane.b32.xlu0 %v1289, 111
      %v1742 = vpop.permute.xlu0 %1741
      %1743 = vrot.lane.b32.xlu0 %v1284, 111
      %v1744 = vpop.permute.xlu0 %1743
      %1745 = vrot.lane.b32.xlu0 %v1290, 111
      %v1746 = vpop.permute.xlu0 %1745
      %v1747 = vsel %vm1023, %v1740, %v1744
      %v1748 = vsel %vm1023, %v1742, %v1746
      %v1749 = vsel %vm1023, %v1736, %v1740
      %v1750 = vsel %vm1023, %v1738, %v1742
      %v1751 = vsel %vm1023, %v1732, %v1736
      %v1752 = vsel %vm1023, %v1734, %v1738
      %v1753 = vsel %vm1023, %v1728, %v1732
      %v1754 = vsel %vm1023, %v1730, %v1734
      %v1755 = vsel %vm1023, %v1724, %v1728
      %v1756 = vsel %vm1023, %v1726, %v1730
      %v1757 = vsel %vm1023, %v1744, %v1724
      %v1758 = vsel %vm1023, %v1746, %v1726
      %v1759 = vpack.c.bf16 %v1756, %v1755
      %v1760 = vpack.c.bf16 %v1754, %v1753
      %v1761 = vpack.c.bf16 %v1752, %v1751
      %v1762 = vpack.c.bf16 %v1750, %v1749
      %v1763 = vpack.c.bf16 %v1748, %v1747
      %v1764 = vpack.c.bf16 %v1758, %v1757
      %v1771 = vunpack.c.l.b16 %v1759
      %v1772 = vunpack.c.l.b16 %v1760
      %v1773 = vunpack.c.l.b16 %v1761
      %v1774 = vunpack.c.l.b16 %v1762
      %v1775 = vunpack.c.l.b16 %v1763
      %v1776 = vunpack.c.l.b16 %v1764
      %v1777 = vunpack.c.h.b16 %v1759
      %v1778 = vunpack.c.h.b16 %v1760
      %v1779 = vunpack.c.h.b16 %v1761
      %v1780 = vunpack.c.h.b16 %v1762
      %v1781 = vunpack.c.h.b16 %v1763
      %v1782 = vunpack.c.h.b16 %v1764
      %v1783 = vpack.c.b16 %v1772, %v1771
      %v1784 = vpack.c.b16 %v1774, %v1773
      %v1785 = vpack.c.b16 %v1776, %v1775
      %v1786 = vpack.c.b16 %v1778, %v1777
      %v1787 = vpack.c.b16 %v1780, %v1779
      %v1788 = vpack.c.b16 %v1782, %v1781
      %1795 = vst [vmem:[#allocation2 + $0x120] sm:$0xff] %v1783
      %1796 = vst [vmem:[#allocation2 + $0x128] sm:$0xff] %v1784
      %1797 = vst [vmem:[#allocation2 + $0x130] sm:$0xff] %v1785
      %1798 = vst [vmem:[#allocation2 + $0x138] sm:$0xff] %v1786
      %1799 = vst [vmem:[#allocation2 + $0x140] sm:$0xff] %v1787
      %1800 = vst [vmem:[#allocation2 + $0x148] sm:$0xff] %v1788
      %1801 = vrot.lane.b32.xlu0 %v1279, 110
      %v1802 = vpop.permute.xlu0 %1801
      %1803 = vrot.lane.b32.xlu0 %v1285, 110
      %v1804 = vpop.permute.xlu0 %1803
      %1805 = vrot.lane.b32.xlu0 %v1280, 110
      %v1806 = vpop.permute.xlu0 %1805
      %1807 = vrot.lane.b32.xlu0 %v1286, 110
      %v1808 = vpop.permute.xlu0 %1807
      %1809 = vrot.lane.b32.xlu0 %v1281, 110
      %v1810 = vpop.permute.xlu0 %1809
      %1811 = vrot.lane.b32.xlu0 %v1287, 110
      %v1812 = vpop.permute.xlu0 %1811
      %1813 = vrot.lane.b32.xlu0 %v1282, 110
      %v1814 = vpop.permute.xlu0 %1813
      %1815 = vrot.lane.b32.xlu0 %v1288, 110
      %v1816 = vpop.permute.xlu0 %1815
      %1817 = vrot.lane.b32.xlu0 %v1283, 110
      %v1818 = vpop.permute.xlu0 %1817
      %1819 = vrot.lane.b32.xlu0 %v1289, 110
      %v1820 = vpop.permute.xlu0 %1819
      %1821 = vrot.lane.b32.xlu0 %v1284, 110
      %v1822 = vpop.permute.xlu0 %1821
      %1823 = vrot.lane.b32.xlu0 %v1290, 110
      %v1824 = vpop.permute.xlu0 %1823
      %v1825 = vsel %vm1098, %v1818, %v1822
      %v1826 = vsel %vm1098, %v1820, %v1824
      %v1827 = vsel %vm1098, %v1814, %v1818
      %v1828 = vsel %vm1098, %v1816, %v1820
      %v1829 = vsel %vm1098, %v1810, %v1814
      %v1830 = vsel %vm1098, %v1812, %v1816
      %v1831 = vsel %vm1098, %v1806, %v1810
      %v1832 = vsel %vm1098, %v1808, %v1812
      %v1833 = vsel %vm1098, %v1802, %v1806
      %v1834 = vsel %vm1098, %v1804, %v1808
      %v1835 = vsel %vm1098, %v1822, %v1802
      %v1836 = vsel %vm1098, %v1824, %v1804
      %v1837 = vpack.c.bf16 %v1834, %v1833
      %v1838 = vpack.c.bf16 %v1832, %v1831
      %v1839 = vpack.c.bf16 %v1830, %v1829
      %v1840 = vpack.c.bf16 %v1828, %v1827
      %v1841 = vpack.c.bf16 %v1826, %v1825
      %v1842 = vpack.c.bf16 %v1836, %v1835
      %v1849 = vunpack.c.l.b16 %v1837
      %v1850 = vunpack.c.l.b16 %v1838
      %v1851 = vunpack.c.l.b16 %v1839
      %v1852 = vunpack.c.l.b16 %v1840
      %v1853 = vunpack.c.l.b16 %v1841
      %v1854 = vunpack.c.l.b16 %v1842
      %v1855 = vunpack.c.h.b16 %v1837
      %v1856 = vunpack.c.h.b16 %v1838
      %v1857 = vunpack.c.h.b16 %v1839
      %v1858 = vunpack.c.h.b16 %v1840
      %v1859 = vunpack.c.h.b16 %v1841
      %v1860 = vunpack.c.h.b16 %v1842
      %v1861 = vpack.c.b16 %v1850, %v1849
      %v1862 = vpack.c.b16 %v1852, %v1851
      %v1863 = vpack.c.b16 %v1854, %v1853
      %v1864 = vpack.c.b16 %v1856, %v1855
      %v1865 = vpack.c.b16 %v1858, %v1857
      %v1866 = vpack.c.b16 %v1860, %v1859
      %1873 = vst [vmem:[#allocation2 + $0x150] sm:$0xff] %v1861
      %1874 = vst [vmem:[#allocation2 + $0x158] sm:$0xff] %v1862
      %1875 = vst [vmem:[#allocation2 + $0x160] sm:$0xff] %v1863
      %1876 = vst [vmem:[#allocation2 + $0x168] sm:$0xff] %v1864
      %1877 = vst [vmem:[#allocation2 + $0x170] sm:$0xff] %v1865
      %1878 = vst [vmem:[#allocation2 + $0x178] sm:$0xff] %v1866
      %1879 = vrot.lane.b32.xlu0 %v1279, 109
      %v1880 = vpop.permute.xlu0 %1879
      %1881 = vrot.lane.b32.xlu0 %v1285, 109
      %v1882 = vpop.permute.xlu0 %1881
      %1883 = vrot.lane.b32.xlu0 %v1280, 109
      %v1884 = vpop.permute.xlu0 %1883
      %1885 = vrot.lane.b32.xlu0 %v1286, 109
      %v1886 = vpop.permute.xlu0 %1885
      %1887 = vrot.lane.b32.xlu0 %v1281, 109
      %v1888 = vpop.permute.xlu0 %1887
      %1889 = vrot.lane.b32.xlu0 %v1287, 109
      %v1890 = vpop.permute.xlu0 %1889
      %1891 = vrot.lane.b32.xlu0 %v1282, 109
      %v1892 = vpop.permute.xlu0 %1891
      %1893 = vrot.lane.b32.xlu0 %v1288, 109
      %v1894 = vpop.permute.xlu0 %1893
      %1895 = vrot.lane.b32.xlu0 %v1283, 109
      %v1896 = vpop.permute.xlu0 %1895
      %1897 = vrot.lane.b32.xlu0 %v1289, 109
      %v1898 = vpop.permute.xlu0 %1897
      %1899 = vrot.lane.b32.xlu0 %v1284, 109
      %v1900 = vpop.permute.xlu0 %1899
      %1901 = vrot.lane.b32.xlu0 %v1290, 109
      %v1902 = vpop.permute.xlu0 %1901
      %v1903 = vsel %vm1173, %v1896, %v1900
      %v1904 = vsel %vm1173, %v1898, %v1902
      %v1905 = vsel %vm1173, %v1892, %v1896
      %v1906 = vsel %vm1173, %v1894, %v1898
      %v1907 = vsel %vm1173, %v1888, %v1892
      %v1908 = vsel %vm1173, %v1890, %v1894
      %v1909 = vsel %vm1173, %v1884, %v1888
      %v1910 = vsel %vm1173, %v1886, %v1890
      %v1911 = vsel %vm1173, %v1880, %v1884
      %v1912 = vsel %vm1173, %v1882, %v1886
      %v1913 = vsel %vm1173, %v1900, %v1880
      %v1914 = vsel %vm1173, %v1902, %v1882
      %v1915 = vpack.c.bf16 %v1912, %v1911
      %v1916 = vpack.c.bf16 %v1910, %v1909
      %v1917 = vpack.c.bf16 %v1908, %v1907
      %v1918 = vpack.c.bf16 %v1906, %v1905
      %v1919 = vpack.c.bf16 %v1904, %v1903
      %v1920 = vpack.c.bf16 %v1914, %v1913
      %v1927 = vunpack.c.l.b16 %v1915
      %v1928 = vunpack.c.l.b16 %v1916
      %v1929 = vunpack.c.l.b16 %v1917
      %v1930 = vunpack.c.l.b16 %v1918
      %v1931 = vunpack.c.l.b16 %v1919
      %v1932 = vunpack.c.l.b16 %v1920
      %v1933 = vunpack.c.h.b16 %v1915
      %v1934 = vunpack.c.h.b16 %v1916
      %v1935 = vunpack.c.h.b16 %v1917
      %v1936 = vunpack.c.h.b16 %v1918
      %v1937 = vunpack.c.h.b16 %v1919
      %v1938 = vunpack.c.h.b16 %v1920
      %v1939 = vpack.c.b16 %v1928, %v1927
      %v1940 = vpack.c.b16 %v1930, %v1929
      %v1941 = vpack.c.b16 %v1932, %v1931
      %v1942 = vpack.c.b16 %v1934, %v1933
      %v1943 = vpack.c.b16 %v1936, %v1935
      %v1944 = vpack.c.b16 %v1938, %v1937
      %1951 = vst [vmem:[#allocation2 + $0x180] sm:$0xff] %v1939
      %1952 = vst [vmem:[#allocation2 + $0x188] sm:$0xff] %v1940
      %1953 = vst [vmem:[#allocation2 + $0x190] sm:$0xff] %v1941
      %1954 = vst [vmem:[#allocation2 + $0x198] sm:$0xff] %v1942
      %1955 = vst [vmem:[#allocation2 + $0x1a0] sm:$0xff] %v1943
      %1956 = vst [vmem:[#allocation2 + $0x1a8] sm:$0xff] %v1944
      %v1957 = vld [vmem:[%s5] sm:$0xff]
      %v1958 = vld [vmem:[%s5 + $0x8] sm:$0xff]
      %v1959 = vld [vmem:[%s5 + $0x10] sm:$0xff]
      %v1960 = vld [vmem:[%s5 + $0x18] sm:$0xff]
      %v1961 = vld [vmem:[#allocation2] sm:$0xff]
      %v1962 = vld [vmem:[#allocation2 + $0x8] sm:$0xff]
      %v1963 = vld [vmem:[#allocation2 + $0x10] sm:$0xff]
      %v1964 = vld [vmem:[#allocation2 + $0x18] sm:$0xff]
      %v1965 = vld [vmem:[#allocation2 + $0x20] sm:$0xff]
      %v1966 = vld [vmem:[#allocation2 + $0x28] sm:$0xff]
      %v1967 = vld [vmem:[#allocation2 + $0x30] sm:$0xff]
      %v1968 = vld [vmem:[#allocation2 + $0x38] sm:$0xff]
      %v1969 = vld [vmem:[#allocation2 + $0x40] sm:$0xff]
      %v1970 = vld [vmem:[#allocation2 + $0x48] sm:$0xff]
      %v1971 = vld [vmem:[#allocation2 + $0x50] sm:$0xff]
      %v1972 = vld [vmem:[#allocation2 + $0x58] sm:$0xff]
      %v1973 = vld [vmem:[#allocation2 + $0x60] sm:$0xff]
      %v1974 = vld [vmem:[#allocation2 + $0x68] sm:$0xff]
      %v1975 = vld [vmem:[#allocation2 + $0x70] sm:$0xff]
      %v1976 = vld [vmem:[#allocation2 + $0x78] sm:$0xff]
      %v1977 = vld [vmem:[#allocation2 + $0x80] sm:$0xff]
      %v1978 = vld [vmem:[#allocation2 + $0x88] sm:$0xff]
      %v1979 = vld [vmem:[#allocation2 + $0x90] sm:$0xff]
      %v1980 = vld [vmem:[#allocation2 + $0x98] sm:$0xff]
      %v1981 = vld [vmem:[#allocation2 + $0xa0] sm:$0xff]
      %v1982 = vld [vmem:[#allocation2 + $0xa8] sm:$0xff]
      %v1983 = vld [vmem:[#allocation2 + $0xb0] sm:$0xff]
      %v1984 = vld [vmem:[#allocation2 + $0xb8] sm:$0xff]
      %v1985 = vld [vmem:[#allocation2 + $0xc0] sm:$0xff]
      %v1986 = vld [vmem:[#allocation2 + $0xc8] sm:$0xff]
      %v1987 = vld [vmem:[#allocation2 + $0xd0] sm:$0xff]
      %v1988 = vld [vmem:[#allocation2 + $0xd8] sm:$0xff]
      %v1989 = vld [vmem:[#allocation2 + $0xe0] sm:$0xff]
      %v1990 = vld [vmem:[#allocation2 + $0xe8] sm:$0xff]
      %v1991 = vld [vmem:[#allocation2 + $0xf0] sm:$0xff]
      %v1992 = vld [vmem:[#allocation2 + $0xf8] sm:$0xff]
      %v1993 = vld [vmem:[#allocation2 + $0x100] sm:$0xff]
      %v1994 = vld [vmem:[#allocation2 + $0x108] sm:$0xff]
      %v1995 = vld [vmem:[#allocation2 + $0x110] sm:$0xff]
      %v1996 = vld [vmem:[#allocation2 + $0x118] sm:$0xff]
      %v1997 = vld [vmem:[#allocation2 + $0x120] sm:$0xff]
      %v1998 = vld [vmem:[#allocation2 + $0x128] sm:$0xff]
      %v1999 = vld [vmem:[#allocation2 + $0x130] sm:$0xff]
      %v2000 = vld [vmem:[#allocation2 + $0x138] sm:$0xff]
      %v2001 = vld [vmem:[#allocation2 + $0x140] sm:$0xff]
      %v2002 = vld [vmem:[#allocation2 + $0x148] sm:$0xff]
      %v2003 = vld [vmem:[#allocation2 + $0x150] sm:$0xff]
      %v2004 = vld [vmem:[#allocation2 + $0x158] sm:$0xff]
      %v2005 = vld [vmem:[#allocation2 + $0x160] sm:$0xff]
      %v2006 = vld [vmem:[#allocation2 + $0x168] sm:$0xff]
      %v2007 = vld [vmem:[#allocation2 + $0x170] sm:$0xff]
      %v2008 = vld [vmem:[#allocation2 + $0x178] sm:$0xff]
      %v2009 = vld [vmem:[#allocation2 + $0x180] sm:$0xff]
      %v2010 = vld [vmem:[#allocation2 + $0x188] sm:$0xff]
      %v2011 = vld [vmem:[#allocation2 + $0x190] sm:$0xff]
      %v2012 = vld [vmem:[#allocation2 + $0x198] sm:$0xff]
      %v2013 = vld [vmem:[#allocation2 + $0x1a0] sm:$0xff]
      %v2014 = vld [vmem:[#allocation2 + $0x1a8] sm:$0xff]
      %v2015 = vld [vmem:[%s6] sm:$0xff]
      %v2016 = vld [vmem:[%s6 + $0x8] sm:$0xff]
      %v2017 = vld [vmem:[%s6 + $0x10] sm:$0xff]
      %v2018 = vld [vmem:[%s6 + $0x18] sm:$0xff]
      %2020 = vset.pattern.permute.xlu0 0
      %2021 = vperm.xlu0 %2020, %v2015
      %v2022 = vpop.permute.xlu0 %2021
      %2025 = vset.pattern.permute.xlu0 0
      %2026 = vperm.xlu0 %2025, %v2016
      %v2027 = vpop.permute.xlu0 %2026
      %2030 = vset.pattern.permute.xlu0 0
      %2031 = vperm.xlu0 %2030, %v2017
      %v2032 = vpop.permute.xlu0 %2031
      %2035 = vset.pattern.permute.xlu0 0
      %2036 = vperm.xlu0 %2035, %v2018
      %v2037 = vpop.permute.xlu0 %2036
      %v2043 = vunpack.c.l.b16 %v1957
      %v2044 = vunpack.c.h.b16 %v1957
      %v2045 = vunpack.c.l.b16 %v1958
      %v2046 = vunpack.c.h.b16 %v1958
      %v2047 = vunpack.c.l.b16 %v1959
      %v2048 = vunpack.c.h.b16 %v1959
      %v2049 = vunpack.c.l.b16 %v1960
      %v2050 = vunpack.c.h.b16 %v1960
      %v2051 = vpack.c.b16 %v2045, %v2043
      %v2052 = vpack.c.b16 %v2046, %v2044
      %v2053 = vpack.c.b16 %v2049, %v2047
      %v2054 = vpack.c.b16 %v2050, %v2048
      %v2111 = vunpack.c.l.b16 %v1961
      %v2112 = vunpack.c.h.b16 %v1961
      %v2113 = vunpack.c.l.b16 %v1962
      %v2114 = vunpack.c.h.b16 %v1962
      %v2115 = vunpack.c.l.b16 %v1963
      %v2116 = vunpack.c.h.b16 %v1963
      %v2117 = vunpack.c.l.b16 %v1964
      %v2118 = vunpack.c.h.b16 %v1964
      %v2119 = vunpack.c.l.b16 %v1965
      %v2120 = vunpack.c.h.b16 %v1965
      %v2121 = vunpack.c.l.b16 %v1966
      %v2122 = vunpack.c.h.b16 %v1966
      %v2123 = vunpack.c.l.b16 %v1967
      %v2124 = vunpack.c.h.b16 %v1967
      %v2125 = vunpack.c.l.b16 %v1968
      %v2126 = vunpack.c.h.b16 %v1968
      %v2127 = vunpack.c.l.b16 %v1969
      %v2128 = vunpack.c.h.b16 %v1969
      %v2129 = vunpack.c.l.b16 %v1970
      %v2130 = vunpack.c.h.b16 %v1970
      %v2131 = vunpack.c.l.b16 %v1971
      %v2132 = vunpack.c.h.b16 %v1971
      %v2133 = vunpack.c.l.b16 %v1972
      %v2134 = vunpack.c.h.b16 %v1972
      %v2135 = vunpack.c.l.b16 %v1973
      %v2136 = vunpack.c.h.b16 %v1973
      %v2137 = vunpack.c.l.b16 %v1974
      %v2138 = vunpack.c.h.b16 %v1974
      %v2139 = vunpack.c.l.b16 %v1975
      %v2140 = vunpack.c.h.b16 %v1975
      %v2141 = vunpack.c.l.b16 %v1976
      %v2142 = vunpack.c.h.b16 %v1976
      %v2143 = vunpack.c.l.b16 %v1977
      %v2144 = vunpack.c.h.b16 %v1977
      %v2145 = vunpack.c.l.b16 %v1978
      %v2146 = vunpack.c.h.b16 %v1978
      %v2147 = vunpack.c.l.b16 %v1979
      %v2148 = vunpack.c.h.b16 %v1979
      %v2149 = vunpack.c.l.b16 %v1980
      %v2150 = vunpack.c.h.b16 %v1980
      %v2151 = vunpack.c.l.b16 %v1981
      %v2152 = vunpack.c.h.b16 %v1981
      %v2153 = vunpack.c.l.b16 %v1982
      %v2154 = vunpack.c.h.b16 %v1982
      %v2155 = vunpack.c.l.b16 %v1983
      %v2156 = vunpack.c.h.b16 %v1983
      %v2157 = vunpack.c.l.b16 %v1984
      %v2158 = vunpack.c.h.b16 %v1984
      %v2159 = vunpack.c.l.b16 %v1985
      %v2160 = vunpack.c.h.b16 %v1985
      %v2161 = vunpack.c.l.b16 %v1986
      %v2162 = vunpack.c.h.b16 %v1986
      %v2163 = vunpack.c.l.b16 %v1987
      %v2164 = vunpack.c.h.b16 %v1987
      %v2165 = vunpack.c.l.b16 %v1988
      %v2166 = vunpack.c.h.b16 %v1988
      %v2167 = vunpack.c.l.b16 %v1989
      %v2168 = vunpack.c.h.b16 %v1989
      %v2169 = vunpack.c.l.b16 %v1990
      %v2170 = vunpack.c.h.b16 %v1990
      %v2171 = vunpack.c.l.b16 %v1991
      %v2172 = vunpack.c.h.b16 %v1991
      %v2173 = vunpack.c.l.b16 %v1992
      %v2174 = vunpack.c.h.b16 %v1992
      %v2175 = vunpack.c.l.b16 %v1993
      %v2176 = vunpack.c.h.b16 %v1993
      %v2177 = vunpack.c.l.b16 %v1994
      %v2178 = vunpack.c.h.b16 %v1994
      %v2179 = vunpack.c.l.b16 %v1995
      %v2180 = vunpack.c.h.b16 %v1995
      %v2181 = vunpack.c.l.b16 %v1996
      %v2182 = vunpack.c.h.b16 %v1996
      %v2183 = vunpack.c.l.b16 %v1997
      %v2184 = vunpack.c.h.b16 %v1997
      %v2185 = vunpack.c.l.b16 %v1998
      %v2186 = vunpack.c.h.b16 %v1998
      %v2187 = vunpack.c.l.b16 %v1999
      %v2188 = vunpack.c.h.b16 %v1999
      %v2189 = vunpack.c.l.b16 %v2000
      %v2190 = vunpack.c.h.b16 %v2000
      %v2191 = vunpack.c.l.b16 %v2001
      %v2192 = vunpack.c.h.b16 %v2001
      %v2193 = vunpack.c.l.b16 %v2002
      %v2194 = vunpack.c.h.b16 %v2002
      %v2195 = vunpack.c.l.b16 %v2003
      %v2196 = vunpack.c.h.b16 %v2003
      %v2197 = vunpack.c.l.b16 %v2004
      %v2198 = vunpack.c.h.b16 %v2004
      %v2199 = vunpack.c.l.b16 %v2005
      %v2200 = vunpack.c.h.b16 %v2005
      %v2201 = vunpack.c.l.b16 %v2006
      %v2202 = vunpack.c.h.b16 %v2006
      %v2203 = vunpack.c.l.b16 %v2007
      %v2204 = vunpack.c.h.b16 %v2007
      %v2205 = vunpack.c.l.b16 %v2008
      %v2206 = vunpack.c.h.b16 %v2008
      %v2207 = vunpack.c.l.b16 %v2009
      %v2208 = vunpack.c.h.b16 %v2009
      %v2209 = vunpack.c.l.b16 %v2010
      %v2210 = vunpack.c.h.b16 %v2010
      %v2211 = vunpack.c.l.b16 %v2011
      %v2212 = vunpack.c.h.b16 %v2011
      %v2213 = vunpack.c.l.b16 %v2012
      %v2214 = vunpack.c.h.b16 %v2012
      %v2215 = vunpack.c.l.b16 %v2013
      %v2216 = vunpack.c.h.b16 %v2013
      %v2217 = vunpack.c.l.b16 %v2014
      %v2218 = vunpack.c.h.b16 %v2014
      %v2219 = vpack.c.b16 %v2117, %v2111
      %v2220 = vpack.c.b16 %v2118, %v2112
      %v2221 = vpack.c.b16 %v2119, %v2113
      %v2222 = vpack.c.b16 %v2120, %v2114
      %v2223 = vpack.c.b16 %v2121, %v2115
      %v2224 = vpack.c.b16 %v2122, %v2116
      %v2225 = vpack.c.b16 %v2129, %v2123
      %v2226 = vpack.c.b16 %v2130, %v2124
      %v2227 = vpack.c.b16 %v2131, %v2125
      %v2228 = vpack.c.b16 %v2132, %v2126
      %v2229 = vpack.c.b16 %v2133, %v2127
      %v2230 = vpack.c.b16 %v2134, %v2128
      %v2231 = vpack.c.b16 %v2141, %v2135
      %v2232 = vpack.c.b16 %v2142, %v2136
      %v2233 = vpack.c.b16 %v2143, %v2137
      %v2234 = vpack.c.b16 %v2144, %v2138
      %v2235 = vpack.c.b16 %v2145, %v2139
      %v2236 = vpack.c.b16 %v2146, %v2140
      %v2237 = vpack.c.b16 %v2153, %v2147
      %v2238 = vpack.c.b16 %v2154, %v2148
      %v2239 = vpack.c.b16 %v2155, %v2149
      %v2240 = vpack.c.b16 %v2156, %v2150
      %v2241 = vpack.c.b16 %v2157, %v2151
      %v2242 = vpack.c.b16 %v2158, %v2152
      %v2243 = vpack.c.b16 %v2165, %v2159
      %v2244 = vpack.c.b16 %v2166, %v2160
      %v2245 = vpack.c.b16 %v2167, %v2161
      %v2246 = vpack.c.b16 %v2168, %v2162
      %v2247 = vpack.c.b16 %v2169, %v2163
      %v2248 = vpack.c.b16 %v2170, %v2164
      %v2249 = vpack.c.b16 %v2177, %v2171
      %v2250 = vpack.c.b16 %v2178, %v2172
      %v2251 = vpack.c.b16 %v2179, %v2173
      %v2252 = vpack.c.b16 %v2180, %v2174
      %v2253 = vpack.c.b16 %v2181, %v2175
      %v2254 = vpack.c.b16 %v2182, %v2176
      %v2255 = vpack.c.b16 %v2189, %v2183
      %v2256 = vpack.c.b16 %v2190, %v2184
      %v2257 = vpack.c.b16 %v2191, %v2185
      %v2258 = vpack.c.b16 %v2192, %v2186
      %v2259 = vpack.c.b16 %v2193, %v2187
      %v2260 = vpack.c.b16 %v2194, %v2188
      %v2261 = vpack.c.b16 %v2201, %v2195
      %v2262 = vpack.c.b16 %v2202, %v2196
      %v2263 = vpack.c.b16 %v2203, %v2197
      %v2264 = vpack.c.b16 %v2204, %v2198
      %v2265 = vpack.c.b16 %v2205, %v2199
      %v2266 = vpack.c.b16 %v2206, %v2200
      %v2267 = vpack.c.b16 %v2213, %v2207
      %v2268 = vpack.c.b16 %v2214, %v2208
      %v2269 = vpack.c.b16 %v2215, %v2209
      %v2270 = vpack.c.b16 %v2216, %v2210
      %v2271 = vpack.c.b16 %v2217, %v2211
      %v2272 = vpack.c.b16 %v2218, %v2212
      %vm2327 = vcmask 130048
      %v2329 = vsel %vm2327, %v2052, 0
      %v2332 = vsel %vm2327, %v2054, 0
      %2334 = vmatprep.subr.bf16.mxu0 %v2262
      %2335 = vmatpush1.bf16.msra.mxu0 %v2261
      %2336 = vmatprep.subr.bf16.mxu0 %v2256
      %2337 = vmatpush1.bf16.msra.mxu0 %v2255
      %2338 = vmatprep.subr.bf16.mxu0 %v2250
      %2339 = vmatpush1.bf16.msra.mxu0 %v2249
      %2340 = vmatprep.subr.bf16.mxu0 %v2244
      %2341 = vmatpush1.bf16.msra.mxu0 %v2243
      %2342 = vmatprep.subr.bf16.mxu0 %v2238
      %2343 = vmatpush1.bf16.msra.mxu0 %v2237
      %2344 = vmatprep.subr.bf16.mxu0 %v2232
      %2345 = vmatpush1.bf16.msra.mxu0 %v2231
      %2346 = vmatprep.subr.bf16.mxu0 %v2226
      %2347 = vmatpush1.bf16.msra.mxu0 %v2225
      %2348 = vmatprep.subr.bf16.mxu0 %v2220
      %2349 = vmatpush1.bf16.msra.mxu0 %v2219
      %2350 = vmatprep.subr.bf16.mxu0 0
      %2351 = vmatpush2.bf16.msra.mxu0 0
      %2352 = vmatprep.subr.bf16.mxu0 0
      %2353 = vmatpush2.bf16.msra.mxu0 0
      %2354 = vmatprep.subr.bf16.mxu0 0
      %2355 = vmatpush2.bf16.msra.mxu0 0
      %2356 = vmatprep.subr.bf16.mxu0 0
      %2357 = vmatpush2.bf16.msra.mxu0 0
      %2358 = vmatprep.subr.bf16.mxu0 0
      %2359 = vmatpush2.bf16.msra.mxu0 0
      %2360 = vmatprep.subr.bf16.mxu0 0
      %2361 = vmatpush2.bf16.msra.mxu0 0
      %2362 = vmatprep.subr.bf16.mxu0 0
      %2363 = vmatpush2.bf16.msra.mxu0 0
      %2364 = vmatprep.subr.bf16.mxu0 %v2268
      %2365 = vmatpush2.bf16.msra.mxu0 %v2267
      %2366 = vmatprep.mubr.bf16.mxu0 %v2329
      %2367 = vmatmul.mubr.bf16.gmra.mxu0 %v2051
      %v2368 = vpop.f32.mrf.mxu0
      %v2369 = vadd.f32 %v2022, %v2368
      %v2370 = vpop.f32.mrf.mxu0
      %v2371 = vadd.f32 %v2022, %v2370
      %v2372 = vpop.f32.mrf.mxu0
      %v2373 = vadd.f32 %v2027, %v2372
      %v2374 = vpop.f32.mrf.mxu0
      %v2375 = vadd.f32 %v2027, %v2374
      %2376 = vmatprep.mubr.bf16.mxu0 %v2332
      %2377 = vmatmul.mubr.bf16.gmra.mxu0 %v2053
      %v2378 = vpop.f32.mrf.mxu0
      %v2379 = vadd.f32 %v2032, %v2378
      %v2380 = vpop.f32.mrf.mxu0
      %v2381 = vadd.f32 %v2032, %v2380
      %v2382 = vpop.f32.mrf.mxu0
      %v2383 = vadd.f32 %v2037, %v2382
      %v2384 = vpop.f32.mrf.mxu0
      %v2385 = vadd.f32 %v2037, %v2384
      %2386 = vdwg.mxu0
      %2387 = vmatprep.subr.bf16.mxu0 %v2264
      %2388 = vmatpush1.bf16.msra.mxu0 %v2263
      %2389 = vmatprep.subr.bf16.mxu0 %v2258
      %2390 = vmatpush1.bf16.msra.mxu0 %v2257
      %2391 = vmatprep.subr.bf16.mxu0 %v2252
      %2392 = vmatpush1.bf16.msra.mxu0 %v2251
      %2393 = vmatprep.subr.bf16.mxu0 %v2246
      %2394 = vmatpush1.bf16.msra.mxu0 %v2245
      %2395 = vmatprep.subr.bf16.mxu0 %v2240
      %2396 = vmatpush1.bf16.msra.mxu0 %v2239
      %2397 = vmatprep.subr.bf16.mxu0 %v2234
      %2398 = vmatpush1.bf16.msra.mxu0 %v2233
      %2399 = vmatprep.subr.bf16.mxu0 %v2228
      %2400 = vmatpush1.bf16.msra.mxu0 %v2227
      %2401 = vmatprep.subr.bf16.mxu0 %v2222
      %2402 = vmatpush1.bf16.msra.mxu0 %v2221
      %2403 = vmatprep.subr.bf16.mxu0 0
      %2404 = vmatpush2.bf16.msra.mxu0 0
      %2405 = vmatprep.subr.bf16.mxu0 0
      %2406 = vmatpush2.bf16.msra.mxu0 0
      %2407 = vmatprep.subr.bf16.mxu0 0
      %2408 = vmatpush2.bf16.msra.mxu0 0
      %2409 = vmatprep.subr.bf16.mxu0 0
      %2410 = vmatpush2.bf16.msra.mxu0 0
      %2411 = vmatprep.subr.bf16.mxu0 0
      %2412 = vmatpush2.bf16.msra.mxu0 0
      %2413 = vmatprep.subr.bf16.mxu0 0
      %2414 = vmatpush2.bf16.msra.mxu0 0
      %2415 = vmatprep.subr.bf16.mxu0 0
      %2416 = vmatpush2.bf16.msra.mxu0 0
      %2417 = vmatprep.subr.bf16.mxu0 %v2270
      %2418 = vmatpush2.bf16.msra.mxu0 %v2269
      %2419 = vmatprep.mubr.bf16.mxu0 %v2329
      %2420 = vmatmul.mubr.bf16.gmra.mxu0 %v2051
      %v2421 = vpop.f32.mrf.mxu0
      %v2422 = vadd.f32 %v2022, %v2421
      %v2423 = vpop.f32.mrf.mxu0
      %v2424 = vadd.f32 %v2022, %v2423
      %v2425 = vpop.f32.mrf.mxu0
      %v2426 = vadd.f32 %v2027, %v2425
      %v2427 = vpop.f32.mrf.mxu0
      %v2428 = vadd.f32 %v2027, %v2427
      %2429 = vmatprep.mubr.bf16.mxu0 %v2332
      %2430 = vmatmul.mubr.bf16.gmra.mxu0 %v2053
      %v2431 = vpop.f32.mrf.mxu0
      %v2432 = vadd.f32 %v2032, %v2431
      %v2433 = vpop.f32.mrf.mxu0
      %v2434 = vadd.f32 %v2032, %v2433
      %v2435 = vpop.f32.mrf.mxu0
      %v2436 = vadd.f32 %v2037, %v2435
      %v2437 = vpop.f32.mrf.mxu0
      %v2438 = vadd.f32 %v2037, %v2437
      %2439 = vdwg.mxu0
      %2440 = vmatprep.subr.bf16.mxu0 %v2266
      %2441 = vmatpush1.bf16.msra.mxu0 %v2265
      %2442 = vmatprep.subr.bf16.mxu0 %v2260
      %2443 = vmatpush1.bf16.msra.mxu0 %v2259
      %2444 = vmatprep.subr.bf16.mxu0 %v2254
      %2445 = vmatpush1.bf16.msra.mxu0 %v2253
      %2446 = vmatprep.subr.bf16.mxu0 %v2248
      %2447 = vmatpush1.bf16.msra.mxu0 %v2247
      %2448 = vmatprep.subr.bf16.mxu0 %v2242
      %2449 = vmatpush1.bf16.msra.mxu0 %v2241
      %2450 = vmatprep.subr.bf16.mxu0 %v2236
      %2451 = vmatpush1.bf16.msra.mxu0 %v2235
      %2452 = vmatprep.subr.bf16.mxu0 %v2230
      %2453 = vmatpush1.bf16.msra.mxu0 %v2229
      %2454 = vmatprep.subr.bf16.mxu0 %v2224
      %2455 = vmatpush1.bf16.msra.mxu0 %v2223
      %2456 = vmatprep.subr.bf16.mxu0 0
      %2457 = vmatpush2.bf16.msra.mxu0 0
      %2458 = vmatprep.subr.bf16.mxu0 0
      %2459 = vmatpush2.bf16.msra.mxu0 0
      %2460 = vmatprep.subr.bf16.mxu0 0
      %2461 = vmatpush2.bf16.msra.mxu0 0
      %2462 = vmatprep.subr.bf16.mxu0 0
      %2463 = vmatpush2.bf16.msra.mxu0 0
      %2464 = vmatprep.subr.bf16.mxu0 0
      %2465 = vmatpush2.bf16.msra.mxu0 0
      %2466 = vmatprep.subr.bf16.mxu0 0
      %2467 = vmatpush2.bf16.msra.mxu0 0
      %2468 = vmatprep.subr.bf16.mxu0 0
      %2469 = vmatpush2.bf16.msra.mxu0 0
      %2470 = vmatprep.subr.bf16.mxu0 %v2272
      %2471 = vmatpush2.bf16.msra.mxu0 %v2271
      %2472 = vmatprep.mubr.bf16.mxu0 %v2329
      %2473 = vmatmul.mubr.bf16.gmra.mxu0 %v2051
      %v2474 = vpop.f32.mrf.mxu0
      %v2475 = vadd.f32 %v2022, %v2474
      %v2476 = vpop.f32.mrf.mxu0
      %v2477 = vadd.f32 %v2022, %v2476
      %v2478 = vpop.f32.mrf.mxu0
      %v2479 = vadd.f32 %v2027, %v2478
      %v2480 = vpop.f32.mrf.mxu0
      %v2481 = vadd.f32 %v2027, %v2480
      %2482 = vmatprep.mubr.bf16.mxu0 %v2332
      %2483 = vmatmul.mubr.bf16.gmra.mxu0 %v2053
      %v2484 = vpop.f32.mrf.mxu0
      %v2485 = vadd.f32 %v2032, %v2484
      %v2486 = vpop.f32.mrf.mxu0
      %v2487 = vadd.f32 %v2032, %v2486
      %v2488 = vpop.f32.mrf.mxu0
      %v2489 = vadd.f32 %v2037, %v2488
      %v2490 = vpop.f32.mrf.mxu0
      %v2491 = vadd.f32 %v2037, %v2490
      %2492 = vdwg.mxu0
      %v2493 = vmax.f32 %v2369, 0.0
      %v2494 = vmax.f32 %v2371, 0.0
      %v2495 = vmax.f32 %v2422, 0.0
      %v2496 = vmax.f32 %v2424, 0.0
      %v2497 = vmax.f32 %v2475, 0.0
      %v2498 = vmax.f32 %v2477, 0.0
      %v2499 = vmax.f32 %v2373, 0.0
      %v2500 = vmax.f32 %v2375, 0.0
      %v2501 = vmax.f32 %v2426, 0.0
      %v2502 = vmax.f32 %v2428, 0.0
      %v2503 = vmax.f32 %v2479, 0.0
      %v2504 = vmax.f32 %v2481, 0.0
      %v2505 = vmax.f32 %v2379, 0.0
      %v2506 = vmax.f32 %v2381, 0.0
      %v2507 = vmax.f32 %v2432, 0.0
      %v2508 = vmax.f32 %v2434, 0.0
      %v2509 = vmax.f32 %v2485, 0.0
      %v2510 = vmax.f32 %v2487, 0.0
      %v2511 = vmax.f32 %v2383, 0.0
      %v2512 = vmax.f32 %v2385, 0.0
      %v2513 = vmax.f32 %v2436, 0.0
      %v2514 = vmax.f32 %v2438, 0.0
      %v2515 = vmax.f32 %v2489, 0.0
      %v2516 = vmax.f32 %v2491, 0.0
      %v2517 = vmul.f32 %v2493, %v1252
      %v2518 = vmul.f32 %v2494, %v1256
      %v2519 = vmul.f32 %v2495, %v1260
      %v2520 = vmul.f32 %v2496, %v1264
      %v2521 = vmul.f32 %v2497, %v1268
      %v2522 = vmul.f32 %v2498, %v1272
      %v2523 = vmul.f32 %v2499, %v1252
      %v2524 = vmul.f32 %v2500, %v1256
      %v2525 = vmul.f32 %v2501, %v1260
      %v2526 = vmul.f32 %v2502, %v1264
      %v2527 = vmul.f32 %v2503, %v1268
      %v2528 = vmul.f32 %v2504, %v1272
      %v2529 = vmul.f32 %v2505, %v1252
      %v2530 = vmul.f32 %v2506, %v1256
      %v2531 = vmul.f32 %v2507, %v1260
      %v2532 = vmul.f32 %v2508, %v1264
      %v2533 = vmul.f32 %v2509, %v1268
      %v2534 = vmul.f32 %v2510, %v1272
      %v2535 = vmul.f32 %v2511, %v1252
      %v2536 = vmul.f32 %v2512, %v1256
      %v2537 = vmul.f32 %v2513, %v1260
      %v2538 = vmul.f32 %v2514, %v1264
      %v2539 = vmul.f32 %v2515, %v1268
      %v2540 = vmul.f32 %v2516, %v1272
      %v2541 = vld [vmem:[%s7] sm:$0xff]
      %v2542 = vld [vmem:[%s7 + $0x8] sm:$0xff]
      %v2543 = vld [vmem:[%s8] sm:$0xff]
      %v2544 = vld [vmem:[%s8 + $0x8] sm:$0xff]
      %2546 = vset.pattern.permute.xlu0 0
      %2547 = vperm.xlu0 %2546, %v2543
      %v2548 = vpop.permute.xlu0 %2547
      %2551 = vset.pattern.permute.xlu0 0
      %2552 = vperm.xlu0 %2551, %v2544
      %v2553 = vpop.permute.xlu0 %2552
      %v2555 = vadd.f32 %v2548, 0.0
      %v2556 = vadd.f32 %v2553, 0.0
      %v2558 = vlaneseq
      %v2559 = vshrl.u32 %v2558, 7
      %v2560 = vsub.s32 0, %v2559
      %v2561 = vrot.slane %v552, %v2560
      %v2562 = vlaneseq
      %v2563 = vshrl.u32 %v2562, 7
      %v2564 = vsub.s32 1, %v2563
      %v2565 = vrot.slane %v552, %v2564
      %v2566 = vlaneseq
      %v2567 = vshrl.u32 %v2566, 7
      %v2568 = vsub.s32 2, %v2567
      %v2569 = vrot.slane %v552, %v2568
      %v2570 = vlaneseq
      %v2571 = vshrl.u32 %v2570, 7
      %v2572 = vsub.s32 3, %v2571
      %v2573 = vrot.slane %v552, %v2572
      %v2574 = vlaneseq
      %v2575 = vshrl.u32 %v2574, 7
      %v2576 = vsub.s32 4, %v2575
      %v2577 = vrot.slane %v552, %v2576
      %v2578 = vlaneseq
      %v2579 = vshrl.u32 %v2578, 7
      %v2580 = vsub.s32 5, %v2579
      %v2581 = vrot.slane %v552, %v2580
      %2588 = vrot.lane.b32.xlu0 %v2561, 19
      %v2589 = vpop.permute.xlu0 %2588
      %2590 = vrot.lane.b32.xlu0 %v2565, 19
      %v2591 = vpop.permute.xlu0 %2590
      %2592 = vrot.lane.b32.xlu0 %v2569, 19
      %v2593 = vpop.permute.xlu0 %2592
      %2594 = vrot.lane.b32.xlu0 %v2573, 19
      %v2595 = vpop.permute.xlu0 %2594
      %2596 = vrot.lane.b32.xlu0 %v2577, 19
      %v2597 = vpop.permute.xlu0 %2596
      %2598 = vrot.lane.b32.xlu0 %v2581, 19
      %v2599 = vpop.permute.xlu0 %2598
      %v2600 = vsel %vm614, %v2597, %v2599
      %v2601 = vsel %vm614, %v2595, %v2597
      %v2602 = vsel %vm614, %v2593, %v2595
      %v2603 = vsel %vm614, %v2591, %v2593
      %v2604 = vsel %vm614, %v2589, %v2591
      %v2605 = vsel %vm614, %v2599, %v2589
      %2607 = vset.pattern.permute.xlu0 0
      %2608 = vperm.xlu0 %2607, %v2541
      %v2609 = vpop.permute.xlu0 %2608
      %2612 = vset.pattern.permute.xlu0 0
      %2613 = vperm.xlu0 %2612, %v2542
      %v2614 = vpop.permute.xlu0 %2613
      %v2616 = vlaneseq
      %v2617 = vshrl.u32 %v2616, 7
      %v2618 = vsub.s32 0, %v2617
      %v2619 = vrot.slane %v2605, %v2618
      %v2620 = vlaneseq
      %v2621 = vshrl.u32 %v2620, 7
      %v2622 = vsub.s32 0, %v2621
      %v2623 = vrot.slane %v2604, %v2622
      %v2624 = vlaneseq
      %v2625 = vshrl.u32 %v2624, 7
      %v2626 = vsub.s32 0, %v2625
      %v2627 = vrot.slane %v2603, %v2626
      %v2628 = vlaneseq
      %v2629 = vshrl.u32 %v2628, 7
      %v2630 = vsub.s32 0, %v2629
      %v2631 = vrot.slane %v2602, %v2630
      %v2632 = vlaneseq
      %v2633 = vshrl.u32 %v2632, 7
      %v2634 = vsub.s32 0, %v2633
      %v2635 = vrot.slane %v2601, %v2634
      %v2636 = vlaneseq
      %v2637 = vshrl.u32 %v2636, 7
      %v2638 = vsub.s32 0, %v2637
      %v2639 = vrot.slane %v2600, %v2638
      %v2640 = vmul.f32 %v2609, %v2619
      %v2641 = vmul.f32 %v2609, %v2623
      %v2642 = vmul.f32 %v2609, %v2627
      %v2643 = vmul.f32 %v2609, %v2631
      %v2644 = vmul.f32 %v2609, %v2635
      %v2645 = vmul.f32 %v2609, %v2639
      %v2646 = vmul.f32 %v2614, %v2619
      %v2647 = vmul.f32 %v2614, %v2623
      %v2648 = vmul.f32 %v2614, %v2627
      %v2649 = vmul.f32 %v2614, %v2631
      %v2650 = vmul.f32 %v2614, %v2635
      %v2651 = vmul.f32 %v2614, %v2639
      %v2652 = vadd.f32 %v2555, %v2640
      %v2653 = vadd.f32 %v2555, %v2641
      %v2654 = vadd.f32 %v2555, %v2642
      %v2655 = vadd.f32 %v2555, %v2643
      %v2656 = vadd.f32 %v2555, %v2644
      %v2657 = vadd.f32 %v2555, %v2645
      %v2658 = vadd.f32 %v2556, %v2646
      %v2659 = vadd.f32 %v2556, %v2647
      %v2660 = vadd.f32 %v2556, %v2648
      %v2661 = vadd.f32 %v2556, %v2649
      %v2662 = vadd.f32 %v2556, %v2650
      %v2663 = vadd.f32 %v2556, %v2651
      %2664 = vrot.lane.b32.xlu0 %v2561, 18
      %v2665 = vpop.permute.xlu0 %2664
      %2666 = vrot.lane.b32.xlu0 %v2565, 18
      %v2667 = vpop.permute.xlu0 %2666
      %2668 = vrot.lane.b32.xlu0 %v2569, 18
      %v2669 = vpop.permute.xlu0 %2668
      %2670 = vrot.lane.b32.xlu0 %v2573, 18
      %v2671 = vpop.permute.xlu0 %2670
      %2672 = vrot.lane.b32.xlu0 %v2577, 18
      %v2673 = vpop.permute.xlu0 %2672
      %2674 = vrot.lane.b32.xlu0 %v2581, 18
      %v2675 = vpop.permute.xlu0 %2674
      %v2676 = vsel %vm691, %v2673, %v2675
      %v2677 = vsel %vm691, %v2671, %v2673
      %v2678 = vsel %vm691, %v2669, %v2671
      %v2679 = vsel %vm691, %v2667, %v2669
      %v2680 = vsel %vm691, %v2665, %v2667
      %v2681 = vsel %vm691, %v2675, %v2665
      %2682 = vset.pattern.permute.xlu0 1
      %2683 = vperm.xlu0 %2682, %v2541
      %v2684 = vpop.permute.xlu0 %2683
      %2686 = vset.pattern.permute.xlu0 1
      %2687 = vperm.xlu0 %2686, %v2542
      %v2688 = vpop.permute.xlu0 %2687
      %v2690 = vlaneseq
      %v2691 = vshrl.u32 %v2690, 7
      %v2692 = vsub.s32 0, %v2691
      %v2693 = vrot.slane %v2681, %v2692
      %v2694 = vlaneseq
      %v2695 = vshrl.u32 %v2694, 7
      %v2696 = vsub.s32 0, %v2695
      %v2697 = vrot.slane %v2680, %v2696
      %v2698 = vlaneseq
      %v2699 = vshrl.u32 %v2698, 7
      %v2700 = vsub.s32 0, %v2699
      %v2701 = vrot.slane %v2679, %v2700
      %v2702 = vlaneseq
      %v2703 = vshrl.u32 %v2702, 7
      %v2704 = vsub.s32 0, %v2703
      %v2705 = vrot.slane %v2678, %v2704
      %v2706 = vlaneseq
      %v2707 = vshrl.u32 %v2706, 7
      %v2708 = vsub.s32 0, %v2707
      %v2709 = vrot.slane %v2677, %v2708
      %v2710 = vlaneseq
      %v2711 = vshrl.u32 %v2710, 7
      %v2712 = vsub.s32 0, %v2711
      %v2713 = vrot.slane %v2676, %v2712
      %v2714 = vmul.f32 %v2684, %v2693
      %v2715 = vmul.f32 %v2684, %v2697
      %v2716 = vmul.f32 %v2684, %v2701
      %v2717 = vmul.f32 %v2684, %v2705
      %v2718 = vmul.f32 %v2684, %v2709
      %v2719 = vmul.f32 %v2684, %v2713
      %v2720 = vmul.f32 %v2688, %v2693
      %v2721 = vmul.f32 %v2688, %v2697
      %v2722 = vmul.f32 %v2688, %v2701
      %v2723 = vmul.f32 %v2688, %v2705
      %v2724 = vmul.f32 %v2688, %v2709
      %v2725 = vmul.f32 %v2688, %v2713
      %v2726 = vadd.f32 %v2652, %v2714
      %v2727 = vadd.f32 %v2653, %v2715
      %v2728 = vadd.f32 %v2654, %v2716
      %v2729 = vadd.f32 %v2655, %v2717
      %v2730 = vadd.f32 %v2656, %v2718
      %v2731 = vadd.f32 %v2657, %v2719
      %v2732 = vadd.f32 %v2658, %v2720
      %v2733 = vadd.f32 %v2659, %v2721
      %v2734 = vadd.f32 %v2660, %v2722
      %v2735 = vadd.f32 %v2661, %v2723
      %v2736 = vadd.f32 %v2662, %v2724
      %v2737 = vadd.f32 %v2663, %v2725
      %2738 = vrot.lane.b32.xlu0 %v2561, 17
      %v2739 = vpop.permute.xlu0 %2738
      %2740 = vrot.lane.b32.xlu0 %v2565, 17
      %v2741 = vpop.permute.xlu0 %2740
      %2742 = vrot.lane.b32.xlu0 %v2569, 17
      %v2743 = vpop.permute.xlu0 %2742
      %2744 = vrot.lane.b32.xlu0 %v2573, 17
      %v2745 = vpop.permute.xlu0 %2744
      %2746 = vrot.lane.b32.xlu0 %v2577, 17
      %v2747 = vpop.permute.xlu0 %2746
      %2748 = vrot.lane.b32.xlu0 %v2581, 17
      %v2749 = vpop.permute.xlu0 %2748
      %v2750 = vsel %vm766, %v2747, %v2749
      %v2751 = vsel %vm766, %v2745, %v2747
      %v2752 = vsel %vm766, %v2743, %v2745
      %v2753 = vsel %vm766, %v2741, %v2743
      %v2754 = vsel %vm766, %v2739, %v2741
      %v2755 = vsel %vm766, %v2749, %v2739
      %2756 = vset.pattern.permute.xlu0 2
      %2757 = vperm.xlu0 %2756, %v2541
      %v2758 = vpop.permute.xlu0 %2757
      %2760 = vset.pattern.permute.xlu0 2
      %2761 = vperm.xlu0 %2760, %v2542
      %v2762 = vpop.permute.xlu0 %2761
      %v2764 = vlaneseq
      %v2765 = vshrl.u32 %v2764, 7
      %v2766 = vsub.s32 0, %v2765
      %v2767 = vrot.slane %v2755, %v2766
      %v2768 = vlaneseq
      %v2769 = vshrl.u32 %v2768, 7
      %v2770 = vsub.s32 0, %v2769
      %v2771 = vrot.slane %v2754, %v2770
      %v2772 = vlaneseq
      %v2773 = vshrl.u32 %v2772, 7
      %v2774 = vsub.s32 0, %v2773
      %v2775 = vrot.slane %v2753, %v2774
      %v2776 = vlaneseq
      %v2777 = vshrl.u32 %v2776, 7
      %v2778 = vsub.s32 0, %v2777
      %v2779 = vrot.slane %v2752, %v2778
      %v2780 = vlaneseq
      %v2781 = vshrl.u32 %v2780, 7
      %v2782 = vsub.s32 0, %v2781
      %v2783 = vrot.slane %v2751, %v2782
      %v2784 = vlaneseq
      %v2785 = vshrl.u32 %v2784, 7
      %v2786 = vsub.s32 0, %v2785
      %v2787 = vrot.slane %v2750, %v2786
      %v2788 = vmul.f32 %v2758, %v2767
      %v2789 = vmul.f32 %v2758, %v2771
      %v2790 = vmul.f32 %v2758, %v2775
      %v2791 = vmul.f32 %v2758, %v2779
      %v2792 = vmul.f32 %v2758, %v2783
      %v2793 = vmul.f32 %v2758, %v2787
      %v2794 = vmul.f32 %v2762, %v2767
      %v2795 = vmul.f32 %v2762, %v2771
      %v2796 = vmul.f32 %v2762, %v2775
      %v2797 = vmul.f32 %v2762, %v2779
      %v2798 = vmul.f32 %v2762, %v2783
      %v2799 = vmul.f32 %v2762, %v2787
      %v2800 = vadd.f32 %v2726, %v2788
      %v2801 = vadd.f32 %v2727, %v2789
      %v2802 = vadd.f32 %v2728, %v2790
      %v2803 = vadd.f32 %v2729, %v2791
      %v2804 = vadd.f32 %v2730, %v2792
      %v2805 = vadd.f32 %v2731, %v2793
      %v2806 = vadd.f32 %v2732, %v2794
      %v2807 = vadd.f32 %v2733, %v2795
      %v2808 = vadd.f32 %v2734, %v2796
      %v2809 = vadd.f32 %v2735, %v2797
      %v2810 = vadd.f32 %v2736, %v2798
      %v2811 = vadd.f32 %v2737, %v2799
      %2812 = vrot.lane.b32.xlu0 %v2561, 1
      %v2813 = vpop.permute.xlu0 %2812
      %2814 = vrot.lane.b32.xlu0 %v2565, 1
      %v2815 = vpop.permute.xlu0 %2814
      %2816 = vrot.lane.b32.xlu0 %v2569, 1
      %v2817 = vpop.permute.xlu0 %2816
      %2818 = vrot.lane.b32.xlu0 %v2573, 1
      %v2819 = vpop.permute.xlu0 %2818
      %2820 = vrot.lane.b32.xlu0 %v2577, 1
      %v2821 = vpop.permute.xlu0 %2820
      %2822 = vrot.lane.b32.xlu0 %v2581, 1
      %v2823 = vpop.permute.xlu0 %2822
      %v2824 = vsel %vm841, %v2821, %v2823
      %v2825 = vsel %vm841, %v2819, %v2821
      %v2826 = vsel %vm841, %v2817, %v2819
      %v2827 = vsel %vm841, %v2815, %v2817
      %v2828 = vsel %vm841, %v2813, %v2815
      %v2829 = vsel %vm841, %v2823, %v2813
      %2830 = vset.pattern.permute.xlu0 3
      %2831 = vperm.xlu0 %2830, %v2541
      %v2832 = vpop.permute.xlu0 %2831
      %2834 = vset.pattern.permute.xlu0 3
      %2835 = vperm.xlu0 %2834, %v2542
      %v2836 = vpop.permute.xlu0 %2835
      %v2838 = vlaneseq
      %v2839 = vshrl.u32 %v2838, 7
      %v2840 = vsub.s32 0, %v2839
      %v2841 = vrot.slane %v2829, %v2840
      %v2842 = vlaneseq
      %v2843 = vshrl.u32 %v2842, 7
      %v2844 = vsub.s32 0, %v2843
      %v2845 = vrot.slane %v2828, %v2844
      %v2846 = vlaneseq
      %v2847 = vshrl.u32 %v2846, 7
      %v2848 = vsub.s32 0, %v2847
      %v2849 = vrot.slane %v2827, %v2848
      %v2850 = vlaneseq
      %v2851 = vshrl.u32 %v2850, 7
      %v2852 = vsub.s32 0, %v2851
      %v2853 = vrot.slane %v2826, %v2852
      %v2854 = vlaneseq
      %v2855 = vshrl.u32 %v2854, 7
      %v2856 = vsub.s32 0, %v2855
      %v2857 = vrot.slane %v2825, %v2856
      %v2858 = vlaneseq
      %v2859 = vshrl.u32 %v2858, 7
      %v2860 = vsub.s32 0, %v2859
      %v2861 = vrot.slane %v2824, %v2860
      %v2862 = vmul.f32 %v2832, %v2841
      %v2863 = vmul.f32 %v2832, %v2845
      %v2864 = vmul.f32 %v2832, %v2849
      %v2865 = vmul.f32 %v2832, %v2853
      %v2866 = vmul.f32 %v2832, %v2857
      %v2867 = vmul.f32 %v2832, %v2861
      %v2868 = vmul.f32 %v2836, %v2841
      %v2869 = vmul.f32 %v2836, %v2845
      %v2870 = vmul.f32 %v2836, %v2849
      %v2871 = vmul.f32 %v2836, %v2853
      %v2872 = vmul.f32 %v2836, %v2857
      %v2873 = vmul.f32 %v2836, %v2861
      %v2874 = vadd.f32 %v2800, %v2862
      %v2875 = vadd.f32 %v2801, %v2863
      %v2876 = vadd.f32 %v2802, %v2864
      %v2877 = vadd.f32 %v2803, %v2865
      %v2878 = vadd.f32 %v2804, %v2866
      %v2879 = vadd.f32 %v2805, %v2867
      %v2880 = vadd.f32 %v2806, %v2868
      %v2881 = vadd.f32 %v2807, %v2869
      %v2882 = vadd.f32 %v2808, %v2870
      %v2883 = vadd.f32 %v2809, %v2871
      %v2884 = vadd.f32 %v2810, %v2872
      %v2885 = vadd.f32 %v2811, %v2873
      %2886 = vset.pattern.permute.xlu0 4
      %2887 = vperm.xlu0 %2886, %v2541
      %v2888 = vpop.permute.xlu0 %2887
      %2890 = vset.pattern.permute.xlu0 4
      %2891 = vperm.xlu0 %2890, %v2542
      %v2892 = vpop.permute.xlu0 %2891
      %v2894 = vmul.f32 %v2888, %v2561
      %v2895 = vmul.f32 %v2888, %v2565
      %v2896 = vmul.f32 %v2888, %v2569
      %v2897 = vmul.f32 %v2888, %v2573
      %v2898 = vmul.f32 %v2888, %v2577
      %v2899 = vmul.f32 %v2888, %v2581
      %v2900 = vmul.f32 %v2892, %v2561
      %v2901 = vmul.f32 %v2892, %v2565
      %v2902 = vmul.f32 %v2892, %v2569
      %v2903 = vmul.f32 %v2892, %v2573
      %v2904 = vmul.f32 %v2892, %v2577
      %v2905 = vmul.f32 %v2892, %v2581
      %v2906 = vadd.f32 %v2874, %v2894
      %v2907 = vadd.f32 %v2875, %v2895
      %v2908 = vadd.f32 %v2876, %v2896
      %v2909 = vadd.f32 %v2877, %v2897
      %v2910 = vadd.f32 %v2878, %v2898
      %v2911 = vadd.f32 %v2879, %v2899
      %v2912 = vadd.f32 %v2880, %v2900
      %v2913 = vadd.f32 %v2881, %v2901
      %v2914 = vadd.f32 %v2882, %v2902
      %v2915 = vadd.f32 %v2883, %v2903
      %v2916 = vadd.f32 %v2884, %v2904
      %v2917 = vadd.f32 %v2885, %v2905
      %2918 = vrot.lane.b32.xlu0 %v2561, 127
      %v2919 = vpop.permute.xlu0 %2918
      %2920 = vrot.lane.b32.xlu0 %v2565, 127
      %v2921 = vpop.permute.xlu0 %2920
      %2922 = vrot.lane.b32.xlu0 %v2569, 127
      %v2923 = vpop.permute.xlu0 %2922
      %2924 = vrot.lane.b32.xlu0 %v2573, 127
      %v2925 = vpop.permute.xlu0 %2924
      %2926 = vrot.lane.b32.xlu0 %v2577, 127
      %v2927 = vpop.permute.xlu0 %2926
      %2928 = vrot.lane.b32.xlu0 %v2581, 127
      %v2929 = vpop.permute.xlu0 %2928
      %v2930 = vsel %vm948, %v2927, %v2929
      %v2931 = vsel %vm948, %v2925, %v2927
      %v2932 = vsel %vm948, %v2923, %v2925
      %v2933 = vsel %vm948, %v2921, %v2923
      %v2934 = vsel %vm948, %v2919, %v2921
      %v2935 = vsel %vm948, %v2929, %v2919
      %2936 = vset.pattern.permute.xlu0 5
      %2937 = vperm.xlu0 %2936, %v2541
      %v2938 = vpop.permute.xlu0 %2937
      %2940 = vset.pattern.permute.xlu0 5
      %2941 = vperm.xlu0 %2940, %v2542
      %v2942 = vpop.permute.xlu0 %2941
      %v2944 = vlaneseq
      %v2945 = vshrl.u32 %v2944, 7
      %v2946 = vsub.s32 0, %v2945
      %v2947 = vrot.slane %v2934, %v2946
      %v2948 = vlaneseq
      %v2949 = vshrl.u32 %v2948, 7
      %v2950 = vsub.s32 0, %v2949
      %v2951 = vrot.slane %v2933, %v2950
      %v2952 = vlaneseq
      %v2953 = vshrl.u32 %v2952, 7
      %v2954 = vsub.s32 0, %v2953
      %v2955 = vrot.slane %v2932, %v2954
      %v2956 = vlaneseq
      %v2957 = vshrl.u32 %v2956, 7
      %v2958 = vsub.s32 0, %v2957
      %v2959 = vrot.slane %v2931, %v2958
      %v2960 = vlaneseq
      %v2961 = vshrl.u32 %v2960, 7
      %v2962 = vsub.s32 0, %v2961
      %v2963 = vrot.slane %v2930, %v2962
      %v2964 = vlaneseq
      %v2965 = vshrl.u32 %v2964, 7
      %v2966 = vsub.s32 0, %v2965
      %v2967 = vrot.slane %v2935, %v2966
      %v2968 = vmul.f32 %v2938, %v2947
      %v2969 = vmul.f32 %v2938, %v2951
      %v2970 = vmul.f32 %v2938, %v2955
      %v2971 = vmul.f32 %v2938, %v2959
      %v2972 = vmul.f32 %v2938, %v2963
      %v2973 = vmul.f32 %v2938, %v2967
      %v2974 = vmul.f32 %v2942, %v2947
      %v2975 = vmul.f32 %v2942, %v2951
      %v2976 = vmul.f32 %v2942, %v2955
      %v2977 = vmul.f32 %v2942, %v2959
      %v2978 = vmul.f32 %v2942, %v2963
      %v2979 = vmul.f32 %v2942, %v2967
      %v2980 = vadd.f32 %v2906, %v2968
      %v2981 = vadd.f32 %v2907, %v2969
      %v2982 = vadd.f32 %v2908, %v2970
      %v2983 = vadd.f32 %v2909, %v2971
      %v2984 = vadd.f32 %v2910, %v2972
      %v2985 = vadd.f32 %v2911, %v2973
      %v2986 = vadd.f32 %v2912, %v2974
      %v2987 = vadd.f32 %v2913, %v2975
      %v2988 = vadd.f32 %v2914, %v2976
      %v2989 = vadd.f32 %v2915, %v2977
      %v2990 = vadd.f32 %v2916, %v2978
      %v2991 = vadd.f32 %v2917, %v2979
      %2992 = vrot.lane.b32.xlu0 %v2561, 111
      %v2993 = vpop.permute.xlu0 %2992
      %2994 = vrot.lane.b32.xlu0 %v2565, 111
      %v2995 = vpop.permute.xlu0 %2994
      %2996 = vrot.lane.b32.xlu0 %v2569, 111
      %v2997 = vpop.permute.xlu0 %2996
      %2998 = vrot.lane.b32.xlu0 %v2573, 111
      %v2999 = vpop.permute.xlu0 %2998
      %3000 = vrot.lane.b32.xlu0 %v2577, 111
      %v3001 = vpop.permute.xlu0 %3000
      %3002 = vrot.lane.b32.xlu0 %v2581, 111
      %v3003 = vpop.permute.xlu0 %3002
      %v3004 = vsel %vm1023, %v3001, %v3003
      %v3005 = vsel %vm1023, %v2999, %v3001
      %v3006 = vsel %vm1023, %v2997, %v2999
      %v3007 = vsel %vm1023, %v2995, %v2997
      %v3008 = vsel %vm1023, %v2993, %v2995
      %v3009 = vsel %vm1023, %v3003, %v2993
      %3010 = vset.pattern.permute.xlu0 6
      %3011 = vperm.xlu0 %3010, %v2541
      %v3012 = vpop.permute.xlu0 %3011
      %3014 = vset.pattern.permute.xlu0 6
      %3015 = vperm.xlu0 %3014, %v2542
      %v3016 = vpop.permute.xlu0 %3015
      %v3018 = vlaneseq
      %v3019 = vshrl.u32 %v3018, 7
      %v3020 = vsub.s32 0, %v3019
      %v3021 = vrot.slane %v3008, %v3020
      %v3022 = vlaneseq
      %v3023 = vshrl.u32 %v3022, 7
      %v3024 = vsub.s32 0, %v3023
      %v3025 = vrot.slane %v3007, %v3024
      %v3026 = vlaneseq
      %v3027 = vshrl.u32 %v3026, 7
      %v3028 = vsub.s32 0, %v3027
      %v3029 = vrot.slane %v3006, %v3028
      %v3030 = vlaneseq
      %v3031 = vshrl.u32 %v3030, 7
      %v3032 = vsub.s32 0, %v3031
      %v3033 = vrot.slane %v3005, %v3032
      %v3034 = vlaneseq
      %v3035 = vshrl.u32 %v3034, 7
      %v3036 = vsub.s32 0, %v3035
      %v3037 = vrot.slane %v3004, %v3036
      %v3038 = vlaneseq
      %v3039 = vshrl.u32 %v3038, 7
      %v3040 = vsub.s32 0, %v3039
      %v3041 = vrot.slane %v3009, %v3040
      %v3042 = vmul.f32 %v3012, %v3021
      %v3043 = vmul.f32 %v3012, %v3025
      %v3044 = vmul.f32 %v3012, %v3029
      %v3045 = vmul.f32 %v3012, %v3033
      %v3046 = vmul.f32 %v3012, %v3037
      %v3047 = vmul.f32 %v3012, %v3041
      %v3048 = vmul.f32 %v3016, %v3021
      %v3049 = vmul.f32 %v3016, %v3025
      %v3050 = vmul.f32 %v3016, %v3029
      %v3051 = vmul.f32 %v3016, %v3033
      %v3052 = vmul.f32 %v3016, %v3037
      %v3053 = vmul.f32 %v3016, %v3041
      %v3054 = vadd.f32 %v2980, %v3042
      %v3055 = vadd.f32 %v2981, %v3043
      %v3056 = vadd.f32 %v2982, %v3044
      %v3057 = vadd.f32 %v2983, %v3045
      %v3058 = vadd.f32 %v2984, %v3046
      %v3059 = vadd.f32 %v2985, %v3047
      %v3060 = vadd.f32 %v2986, %v3048
      %v3061 = vadd.f32 %v2987, %v3049
      %v3062 = vadd.f32 %v2988, %v3050
      %v3063 = vadd.f32 %v2989, %v3051
      %v3064 = vadd.f32 %v2990, %v3052
      %v3065 = vadd.f32 %v2991, %v3053
      %3066 = vrot.lane.b32.xlu0 %v2561, 110
      %v3067 = vpop.permute.xlu0 %3066
      %3068 = vrot.lane.b32.xlu0 %v2565, 110
      %v3069 = vpop.permute.xlu0 %3068
      %3070 = vrot.lane.b32.xlu0 %v2569, 110
      %v3071 = vpop.permute.xlu0 %3070
      %3072 = vrot.lane.b32.xlu0 %v2573, 110
      %v3073 = vpop.permute.xlu0 %3072
      %3074 = vrot.lane.b32.xlu0 %v2577, 110
      %v3075 = vpop.permute.xlu0 %3074
      %3076 = vrot.lane.b32.xlu0 %v2581, 110
      %v3077 = vpop.permute.xlu0 %3076
      %v3078 = vsel %vm1098, %v3075, %v3077
      %v3079 = vsel %vm1098, %v3073, %v3075
      %v3080 = vsel %vm1098, %v3071, %v3073
      %v3081 = vsel %vm1098, %v3069, %v3071
      %v3082 = vsel %vm1098, %v3067, %v3069
      %v3083 = vsel %vm1098, %v3077, %v3067
      %3084 = vset.pattern.permute.xlu0 7
      %3085 = vperm.xlu0 %3084, %v2541
      %v3086 = vpop.permute.xlu0 %3085
      %3088 = vset.pattern.permute.xlu0 7
      %3089 = vperm.xlu0 %3088, %v2542
      %v3090 = vpop.permute.xlu0 %3089
      %v3092 = vlaneseq
      %v3093 = vshrl.u32 %v3092, 7
      %v3094 = vsub.s32 0, %v3093
      %v3095 = vrot.slane %v3082, %v3094
      %v3096 = vlaneseq
      %v3097 = vshrl.u32 %v3096, 7
      %v3098 = vsub.s32 0, %v3097
      %v3099 = vrot.slane %v3081, %v3098
      %v3100 = vlaneseq
      %v3101 = vshrl.u32 %v3100, 7
      %v3102 = vsub.s32 0, %v3101
      %v3103 = vrot.slane %v3080, %v3102
      %v3104 = vlaneseq
      %v3105 = vshrl.u32 %v3104, 7
      %v3106 = vsub.s32 0, %v3105
      %v3107 = vrot.slane %v3079, %v3106
      %v3108 = vlaneseq
      %v3109 = vshrl.u32 %v3108, 7
      %v3110 = vsub.s32 0, %v3109
      %v3111 = vrot.slane %v3078, %v3110
      %v3112 = vlaneseq
      %v3113 = vshrl.u32 %v3112, 7
      %v3114 = vsub.s32 0, %v3113
      %v3115 = vrot.slane %v3083, %v3114
      %v3116 = vmul.f32 %v3086, %v3095
      %v3117 = vmul.f32 %v3086, %v3099
      %v3118 = vmul.f32 %v3086, %v3103
      %v3119 = vmul.f32 %v3086, %v3107
      %v3120 = vmul.f32 %v3086, %v3111
      %v3121 = vmul.f32 %v3086, %v3115
      %v3122 = vmul.f32 %v3090, %v3095
      %v3123 = vmul.f32 %v3090, %v3099
      %v3124 = vmul.f32 %v3090, %v3103
      %v3125 = vmul.f32 %v3090, %v3107
      %v3126 = vmul.f32 %v3090, %v3111
      %v3127 = vmul.f32 %v3090, %v3115
      %v3128 = vadd.f32 %v3054, %v3116
      %v3129 = vadd.f32 %v3055, %v3117
      %v3130 = vadd.f32 %v3056, %v3118
      %v3131 = vadd.f32 %v3057, %v3119
      %v3132 = vadd.f32 %v3058, %v3120
      %v3133 = vadd.f32 %v3059, %v3121
      %v3134 = vadd.f32 %v3060, %v3122
      %v3135 = vadd.f32 %v3061, %v3123
      %v3136 = vadd.f32 %v3062, %v3124
      %v3137 = vadd.f32 %v3063, %v3125
      %v3138 = vadd.f32 %v3064, %v3126
      %v3139 = vadd.f32 %v3065, %v3127
      %3140 = vrot.lane.b32.xlu0 %v2561, 109
      %v3141 = vpop.permute.xlu0 %3140
      %3142 = vrot.lane.b32.xlu0 %v2565, 109
      %v3143 = vpop.permute.xlu0 %3142
      %3144 = vrot.lane.b32.xlu0 %v2569, 109
      %v3145 = vpop.permute.xlu0 %3144
      %3146 = vrot.lane.b32.xlu0 %v2573, 109
      %v3147 = vpop.permute.xlu0 %3146
      %3148 = vrot.lane.b32.xlu0 %v2577, 109
      %v3149 = vpop.permute.xlu0 %3148
      %3150 = vrot.lane.b32.xlu0 %v2581, 109
      %v3151 = vpop.permute.xlu0 %3150
      %v3152 = vsel %vm1173, %v3149, %v3151
      %v3153 = vsel %vm1173, %v3147, %v3149
      %v3154 = vsel %vm1173, %v3145, %v3147
      %v3155 = vsel %vm1173, %v3143, %v3145
      %v3156 = vsel %vm1173, %v3141, %v3143
      %v3157 = vsel %vm1173, %v3151, %v3141
      %3158 = vset.pattern.permute.xlu0 8
      %3159 = vperm.xlu0 %3158, %v2541
      %v3160 = vpop.permute.xlu0 %3159
      %3162 = vset.pattern.permute.xlu0 8
      %3163 = vperm.xlu0 %3162, %v2542
      %v3164 = vpop.permute.xlu0 %3163
      %v3166 = vlaneseq
      %v3167 = vshrl.u32 %v3166, 7
      %v3168 = vsub.s32 0, %v3167
      %v3169 = vrot.slane %v3156, %v3168
      %v3170 = vlaneseq
      %v3171 = vshrl.u32 %v3170, 7
      %v3172 = vsub.s32 0, %v3171
      %v3173 = vrot.slane %v3155, %v3172
      %v3174 = vlaneseq
      %v3175 = vshrl.u32 %v3174, 7
      %v3176 = vsub.s32 0, %v3175
      %v3177 = vrot.slane %v3154, %v3176
      %v3178 = vlaneseq
      %v3179 = vshrl.u32 %v3178, 7
      %v3180 = vsub.s32 0, %v3179
      %v3181 = vrot.slane %v3153, %v3180
      %v3182 = vlaneseq
      %v3183 = vshrl.u32 %v3182, 7
      %v3184 = vsub.s32 0, %v3183
      %v3185 = vrot.slane %v3152, %v3184
      %v3186 = vlaneseq
      %v3187 = vshrl.u32 %v3186, 7
      %v3188 = vsub.s32 0, %v3187
      %v3189 = vrot.slane %v3157, %v3188
      %v3190 = vmul.f32 %v3160, %v3169
      %v3191 = vmul.f32 %v3160, %v3173
      %v3192 = vmul.f32 %v3160, %v3177
      %v3193 = vmul.f32 %v3160, %v3181
      %v3194 = vmul.f32 %v3160, %v3185
      %v3195 = vmul.f32 %v3160, %v3189
      %v3196 = vmul.f32 %v3164, %v3169
      %v3197 = vmul.f32 %v3164, %v3173
      %v3198 = vmul.f32 %v3164, %v3177
      %v3199 = vmul.f32 %v3164, %v3181
      %v3200 = vmul.f32 %v3164, %v3185
      %v3201 = vmul.f32 %v3164, %v3189
      %v3202 = vadd.f32 %v3128, %v3190
      %v3203 = vadd.f32 %v3129, %v3191
      %v3204 = vadd.f32 %v3130, %v3192
      %v3205 = vadd.f32 %v3131, %v3193
      %v3206 = vadd.f32 %v3132, %v3194
      %v3207 = vadd.f32 %v3133, %v3195
      %v3208 = vadd.f32 %v3134, %v3196
      %v3209 = vadd.f32 %v3135, %v3197
      %v3210 = vadd.f32 %v3136, %v3198
      %v3211 = vadd.f32 %v3137, %v3199
      %v3212 = vadd.f32 %v3138, %v3200
      %v3213 = vadd.f32 %v3139, %v3201
      %v3214 = vmax.f32 %v3202, 0.0
      %v3215 = vmax.f32 %v3203, 0.0
      %v3216 = vmax.f32 %v3204, 0.0
      %v3217 = vmax.f32 %v3205, 0.0
      %v3218 = vmax.f32 %v3206, 0.0
      %v3219 = vmax.f32 %v3207, 0.0
      %v3220 = vmax.f32 %v3208, 0.0
      %v3221 = vmax.f32 %v3209, 0.0
      %v3222 = vmax.f32 %v3210, 0.0
      %v3223 = vmax.f32 %v3211, 0.0
      %v3224 = vmax.f32 %v3212, 0.0
      %v3225 = vmax.f32 %v3213, 0.0
      %v3226 = vmul.f32 %v3214, %v1252
      %v3227 = vmul.f32 %v3215, %v1256
      %v3228 = vmul.f32 %v3216, %v1260
      %v3229 = vmul.f32 %v3217, %v1264
      %v3230 = vmul.f32 %v3218, %v1268
      %v3231 = vmul.f32 %v3219, %v1272
      %v3232 = vmul.f32 %v3220, %v1252
      %v3233 = vmul.f32 %v3221, %v1256
      %v3234 = vmul.f32 %v3222, %v1260
      %v3235 = vmul.f32 %v3223, %v1264
      %v3236 = vmul.f32 %v3224, %v1268
      %v3237 = vmul.f32 %v3225, %v1272
      %3238 = vrot.lane.b32.xlu0 %v3226, 19
      %v3239 = vpop.permute.xlu0 %3238
      %3240 = vrot.lane.b32.xlu0 %v3232, 19
      %v3241 = vpop.permute.xlu0 %3240
      %3242 = vrot.lane.b32.xlu0 %v3227, 19
      %v3243 = vpop.permute.xlu0 %3242
      %3244 = vrot.lane.b32.xlu0 %v3233, 19
      %v3245 = vpop.permute.xlu0 %3244
      %3246 = vrot.lane.b32.xlu0 %v3228, 19
      %v3247 = vpop.permute.xlu0 %3246
      %3248 = vrot.lane.b32.xlu0 %v3234, 19
      %v3249 = vpop.permute.xlu0 %3248
      %3250 = vrot.lane.b32.xlu0 %v3229, 19
      %v3251 = vpop.permute.xlu0 %3250
      %3252 = vrot.lane.b32.xlu0 %v3235, 19
      %v3253 = vpop.permute.xlu0 %3252
      %3254 = vrot.lane.b32.xlu0 %v3230, 19
      %v3255 = vpop.permute.xlu0 %3254
      %3256 = vrot.lane.b32.xlu0 %v3236, 19
      %v3257 = vpop.permute.xlu0 %3256
      %3258 = vrot.lane.b32.xlu0 %v3231, 19
      %v3259 = vpop.permute.xlu0 %3258
      %3260 = vrot.lane.b32.xlu0 %v3237, 19
      %v3261 = vpop.permute.xlu0 %3260
      %v3262 = vsel %vm614, %v3255, %v3259
      %v3263 = vsel %vm614, %v3257, %v3261
      %v3264 = vsel %vm614, %v3251, %v3255
      %v3265 = vsel %vm614, %v3253, %v3257
      %v3266 = vsel %vm614, %v3247, %v3251
      %v3267 = vsel %vm614, %v3249, %v3253
      %v3268 = vsel %vm614, %v3243, %v3247
      %v3269 = vsel %vm614, %v3245, %v3249
      %v3270 = vsel %vm614, %v3239, %v3243
      %v3271 = vsel %vm614, %v3241, %v3245
      %v3272 = vsel %vm614, %v3259, %v3239
      %v3273 = vsel %vm614, %v3261, %v3241
      %v3274 = vpack.c.bf16 %v3273, %v3272
      %v3275 = vpack.c.bf16 %v3271, %v3270
      %v3276 = vpack.c.bf16 %v3269, %v3268
      %v3277 = vpack.c.bf16 %v3267, %v3266
      %v3278 = vpack.c.bf16 %v3265, %v3264
      %v3279 = vpack.c.bf16 %v3263, %v3262
      %v3286 = vunpack.c.l.b16 %v3274
      %v3287 = vunpack.c.l.b16 %v3275
      %v3288 = vunpack.c.l.b16 %v3276
      %v3289 = vunpack.c.l.b16 %v3277
      %v3290 = vunpack.c.l.b16 %v3278
      %v3291 = vunpack.c.l.b16 %v3279
      %v3292 = vunpack.c.h.b16 %v3274
      %v3293 = vunpack.c.h.b16 %v3275
      %v3294 = vunpack.c.h.b16 %v3276
      %v3295 = vunpack.c.h.b16 %v3277
      %v3296 = vunpack.c.h.b16 %v3278
      %v3297 = vunpack.c.h.b16 %v3279
      %v3298 = vpack.c.b16 %v3287, %v3286
      %v3299 = vpack.c.b16 %v3289, %v3288
      %v3300 = vpack.c.b16 %v3291, %v3290
      %v3301 = vpack.c.b16 %v3293, %v3292
      %v3302 = vpack.c.b16 %v3295, %v3294
      %v3303 = vpack.c.b16 %v3297, %v3296
      %3310 = vst [vmem:[#allocation2] sm:$0xff] %v3298
      %3311 = vst [vmem:[#allocation2 + $0x8] sm:$0xff] %v3299
      %3312 = vst [vmem:[#allocation2 + $0x10] sm:$0xff] %v3300
      %3313 = vst [vmem:[#allocation2 + $0x18] sm:$0xff] %v3301
      %3314 = vst [vmem:[#allocation2 + $0x20] sm:$0xff] %v3302
      %3315 = vst [vmem:[#allocation2 + $0x28] sm:$0xff] %v3303
      %3316 = vrot.lane.b32.xlu0 %v3226, 18
      %v3317 = vpop.permute.xlu0 %3316
      %3318 = vrot.lane.b32.xlu0 %v3232, 18
      %v3319 = vpop.permute.xlu0 %3318
      %3320 = vrot.lane.b32.xlu0 %v3227, 18
      %v3321 = vpop.permute.xlu0 %3320
      %3322 = vrot.lane.b32.xlu0 %v3233, 18
      %v3323 = vpop.permute.xlu0 %3322
      %3324 = vrot.lane.b32.xlu0 %v3228, 18
      %v3325 = vpop.permute.xlu0 %3324
      %3326 = vrot.lane.b32.xlu0 %v3234, 18
      %v3327 = vpop.permute.xlu0 %3326
      %3328 = vrot.lane.b32.xlu0 %v3229, 18
      %v3329 = vpop.permute.xlu0 %3328
      %3330 = vrot.lane.b32.xlu0 %v3235, 18
      %v3331 = vpop.permute.xlu0 %3330
      %3332 = vrot.lane.b32.xlu0 %v3230, 18
      %v3333 = vpop.permute.xlu0 %3332
      %3334 = vrot.lane.b32.xlu0 %v3236, 18
      %v3335 = vpop.permute.xlu0 %3334
      %3336 = vrot.lane.b32.xlu0 %v3231, 18
      %v3337 = vpop.permute.xlu0 %3336
      %3338 = vrot.lane.b32.xlu0 %v3237, 18
      %v3339 = vpop.permute.xlu0 %3338
      %v3340 = vsel %vm691, %v3333, %v3337
      %v3341 = vsel %vm691, %v3335, %v3339
      %v3342 = vsel %vm691, %v3329, %v3333
      %v3343 = vsel %vm691, %v3331, %v3335
      %v3344 = vsel %vm691, %v3325, %v3329
      %v3345 = vsel %vm691, %v3327, %v3331
      %v3346 = vsel %vm691, %v3321, %v3325
      %v3347 = vsel %vm691, %v3323, %v3327
      %v3348 = vsel %vm691, %v3317, %v3321
      %v3349 = vsel %vm691, %v3319, %v3323
      %v3350 = vsel %vm691, %v3337, %v3317
      %v3351 = vsel %vm691, %v3339, %v3319
      %v3352 = vpack.c.bf16 %v3351, %v3350
      %v3353 = vpack.c.bf16 %v3349, %v3348
      %v3354 = vpack.c.bf16 %v3347, %v3346
      %v3355 = vpack.c.bf16 %v3345, %v3344
      %v3356 = vpack.c.bf16 %v3343, %v3342
      %v3357 = vpack.c.bf16 %v3341, %v3340
      %v3364 = vunpack.c.l.b16 %v3352
      %v3365 = vunpack.c.l.b16 %v3353
      %v3366 = vunpack.c.l.b16 %v3354
      %v3367 = vunpack.c.l.b16 %v3355
      %v3368 = vunpack.c.l.b16 %v3356
      %v3369 = vunpack.c.l.b16 %v3357
      %v3370 = vunpack.c.h.b16 %v3352
      %v3371 = vunpack.c.h.b16 %v3353
      %v3372 = vunpack.c.h.b16 %v3354
      %v3373 = vunpack.c.h.b16 %v3355
      %v3374 = vunpack.c.h.b16 %v3356
      %v3375 = vunpack.c.h.b16 %v3357
      %v3376 = vpack.c.b16 %v3365, %v3364
      %v3377 = vpack.c.b16 %v3367, %v3366
      %v3378 = vpack.c.b16 %v3369, %v3368
      %v3379 = vpack.c.b16 %v3371, %v3370
      %v3380 = vpack.c.b16 %v3373, %v3372
      %v3381 = vpack.c.b16 %v3375, %v3374
      %3388 = vst [vmem:[#allocation2 + $0x30] sm:$0xff] %v3376
      %3389 = vst [vmem:[#allocation2 + $0x38] sm:$0xff] %v3377
      %3390 = vst [vmem:[#allocation2 + $0x40] sm:$0xff] %v3378
      %3391 = vst [vmem:[#allocation2 + $0x48] sm:$0xff] %v3379
      %3392 = vst [vmem:[#allocation2 + $0x50] sm:$0xff] %v3380
      %3393 = vst [vmem:[#allocation2 + $0x58] sm:$0xff] %v3381
      %3394 = vrot.lane.b32.xlu0 %v3226, 17
      %v3395 = vpop.permute.xlu0 %3394
      %3396 = vrot.lane.b32.xlu0 %v3232, 17
      %v3397 = vpop.permute.xlu0 %3396
      %3398 = vrot.lane.b32.xlu0 %v3227, 17
      %v3399 = vpop.permute.xlu0 %3398
      %3400 = vrot.lane.b32.xlu0 %v3233, 17
      %v3401 = vpop.permute.xlu0 %3400
      %3402 = vrot.lane.b32.xlu0 %v3228, 17
      %v3403 = vpop.permute.xlu0 %3402
      %3404 = vrot.lane.b32.xlu0 %v3234, 17
      %v3405 = vpop.permute.xlu0 %3404
      %3406 = vrot.lane.b32.xlu0 %v3229, 17
      %v3407 = vpop.permute.xlu0 %3406
      %3408 = vrot.lane.b32.xlu0 %v3235, 17
      %v3409 = vpop.permute.xlu0 %3408
      %3410 = vrot.lane.b32.xlu0 %v3230, 17
      %v3411 = vpop.permute.xlu0 %3410
      %3412 = vrot.lane.b32.xlu0 %v3236, 17
      %v3413 = vpop.permute.xlu0 %3412
      %3414 = vrot.lane.b32.xlu0 %v3231, 17
      %v3415 = vpop.permute.xlu0 %3414
      %3416 = vrot.lane.b32.xlu0 %v3237, 17
      %v3417 = vpop.permute.xlu0 %3416
      %v3418 = vsel %vm766, %v3411, %v3415
      %v3419 = vsel %vm766, %v3413, %v3417
      %v3420 = vsel %vm766, %v3407, %v3411
      %v3421 = vsel %vm766, %v3409, %v3413
      %v3422 = vsel %vm766, %v3403, %v3407
      %v3423 = vsel %vm766, %v3405, %v3409
      %v3424 = vsel %vm766, %v3399, %v3403
      %v3425 = vsel %vm766, %v3401, %v3405
      %v3426 = vsel %vm766, %v3395, %v3399
      %v3427 = vsel %vm766, %v3397, %v3401
      %v3428 = vsel %vm766, %v3415, %v3395
      %v3429 = vsel %vm766, %v3417, %v3397
      %v3430 = vpack.c.bf16 %v3429, %v3428
      %v3431 = vpack.c.bf16 %v3427, %v3426
      %v3432 = vpack.c.bf16 %v3425, %v3424
      %v3433 = vpack.c.bf16 %v3423, %v3422
      %v3434 = vpack.c.bf16 %v3421, %v3420
      %v3435 = vpack.c.bf16 %v3419, %v3418
      %v3442 = vunpack.c.l.b16 %v3430
      %v3443 = vunpack.c.l.b16 %v3431
      %v3444 = vunpack.c.l.b16 %v3432
      %v3445 = vunpack.c.l.b16 %v3433
      %v3446 = vunpack.c.l.b16 %v3434
      %v3447 = vunpack.c.l.b16 %v3435
      %v3448 = vunpack.c.h.b16 %v3430
      %v3449 = vunpack.c.h.b16 %v3431
      %v3450 = vunpack.c.h.b16 %v3432
      %v3451 = vunpack.c.h.b16 %v3433
      %v3452 = vunpack.c.h.b16 %v3434
      %v3453 = vunpack.c.h.b16 %v3435
      %v3454 = vpack.c.b16 %v3443, %v3442
      %v3455 = vpack.c.b16 %v3445, %v3444
      %v3456 = vpack.c.b16 %v3447, %v3446
      %v3457 = vpack.c.b16 %v3449, %v3448
      %v3458 = vpack.c.b16 %v3451, %v3450
      %v3459 = vpack.c.b16 %v3453, %v3452
      %3466 = vst [vmem:[#allocation2 + $0x60] sm:$0xff] %v3454
      %3467 = vst [vmem:[#allocation2 + $0x68] sm:$0xff] %v3455
      %3468 = vst [vmem:[#allocation2 + $0x70] sm:$0xff] %v3456
      %3469 = vst [vmem:[#allocation2 + $0x78] sm:$0xff] %v3457
      %3470 = vst [vmem:[#allocation2 + $0x80] sm:$0xff] %v3458
      %3471 = vst [vmem:[#allocation2 + $0x88] sm:$0xff] %v3459
      %3472 = vrot.lane.b32.xlu0 %v3226, 1
      %v3473 = vpop.permute.xlu0 %3472
      %3474 = vrot.lane.b32.xlu0 %v3232, 1
      %v3475 = vpop.permute.xlu0 %3474
      %3476 = vrot.lane.b32.xlu0 %v3227, 1
      %v3477 = vpop.permute.xlu0 %3476
      %3478 = vrot.lane.b32.xlu0 %v3233, 1
      %v3479 = vpop.permute.xlu0 %3478
      %3480 = vrot.lane.b32.xlu0 %v3228, 1
      %v3481 = vpop.permute.xlu0 %3480
      %3482 = vrot.lane.b32.xlu0 %v3234, 1
      %v3483 = vpop.permute.xlu0 %3482
      %3484 = vrot.lane.b32.xlu0 %v3229, 1
      %v3485 = vpop.permute.xlu0 %3484
      %3486 = vrot.lane.b32.xlu0 %v3235, 1
      %v3487 = vpop.permute.xlu0 %3486
      %3488 = vrot.lane.b32.xlu0 %v3230, 1
      %v3489 = vpop.permute.xlu0 %3488
      %3490 = vrot.lane.b32.xlu0 %v3236, 1
      %v3491 = vpop.permute.xlu0 %3490
      %3492 = vrot.lane.b32.xlu0 %v3231, 1
      %v3493 = vpop.permute.xlu0 %3492
      %3494 = vrot.lane.b32.xlu0 %v3237, 1
      %v3495 = vpop.permute.xlu0 %3494
      %v3496 = vsel %vm841, %v3489, %v3493
      %v3497 = vsel %vm841, %v3491, %v3495
      %v3498 = vsel %vm841, %v3485, %v3489
      %v3499 = vsel %vm841, %v3487, %v3491
      %v3500 = vsel %vm841, %v3481, %v3485
      %v3501 = vsel %vm841, %v3483, %v3487
      %v3502 = vsel %vm841, %v3477, %v3481
      %v3503 = vsel %vm841, %v3479, %v3483
      %v3504 = vsel %vm841, %v3473, %v3477
      %v3505 = vsel %vm841, %v3475, %v3479
      %v3506 = vsel %vm841, %v3493, %v3473
      %v3507 = vsel %vm841, %v3495, %v3475
      %v3508 = vpack.c.bf16 %v3507, %v3506
      %v3509 = vpack.c.bf16 %v3505, %v3504
      %v3510 = vpack.c.bf16 %v3503, %v3502
      %v3511 = vpack.c.bf16 %v3501, %v3500
      %v3512 = vpack.c.bf16 %v3499, %v3498
      %v3513 = vpack.c.bf16 %v3497, %v3496
      %v3520 = vunpack.c.l.b16 %v3508
      %v3521 = vunpack.c.l.b16 %v3509
      %v3522 = vunpack.c.l.b16 %v3510
      %v3523 = vunpack.c.l.b16 %v3511
      %v3524 = vunpack.c.l.b16 %v3512
      %v3525 = vunpack.c.l.b16 %v3513
      %v3526 = vunpack.c.h.b16 %v3508
      %v3527 = vunpack.c.h.b16 %v3509
      %v3528 = vunpack.c.h.b16 %v3510
      %v3529 = vunpack.c.h.b16 %v3511
      %v3530 = vunpack.c.h.b16 %v3512
      %v3531 = vunpack.c.h.b16 %v3513
      %v3532 = vpack.c.b16 %v3521, %v3520
      %v3533 = vpack.c.b16 %v3523, %v3522
      %v3534 = vpack.c.b16 %v3525, %v3524
      %v3535 = vpack.c.b16 %v3527, %v3526
      %v3536 = vpack.c.b16 %v3529, %v3528
      %v3537 = vpack.c.b16 %v3531, %v3530
      %3544 = vst [vmem:[#allocation2 + $0x90] sm:$0xff] %v3532
      %3545 = vst [vmem:[#allocation2 + $0x98] sm:$0xff] %v3533
      %3546 = vst [vmem:[#allocation2 + $0xa0] sm:$0xff] %v3534
      %3547 = vst [vmem:[#allocation2 + $0xa8] sm:$0xff] %v3535
      %3548 = vst [vmem:[#allocation2 + $0xb0] sm:$0xff] %v3536
      %3549 = vst [vmem:[#allocation2 + $0xb8] sm:$0xff] %v3537
      %v3550 = vpack.c.bf16 %v3232, %v3226
      %v3551 = vpack.c.bf16 %v3233, %v3227
      %v3552 = vpack.c.bf16 %v3234, %v3228
      %v3553 = vpack.c.bf16 %v3235, %v3229
      %v3554 = vpack.c.bf16 %v3236, %v3230
      %v3555 = vpack.c.bf16 %v3237, %v3231
      %v3562 = vunpack.c.l.b16 %v3550
      %v3563 = vunpack.c.l.b16 %v3551
      %v3564 = vunpack.c.l.b16 %v3552
      %v3565 = vunpack.c.l.b16 %v3553
      %v3566 = vunpack.c.l.b16 %v3554
      %v3567 = vunpack.c.l.b16 %v3555
      %v3568 = vunpack.c.h.b16 %v3550
      %v3569 = vunpack.c.h.b16 %v3551
      %v3570 = vunpack.c.h.b16 %v3552
      %v3571 = vunpack.c.h.b16 %v3553
      %v3572 = vunpack.c.h.b16 %v3554
      %v3573 = vunpack.c.h.b16 %v3555
      %v3574 = vpack.c.b16 %v3563, %v3562
      %v3575 = vpack.c.b16 %v3565, %v3564
      %v3576 = vpack.c.b16 %v3567, %v3566
      %v3577 = vpack.c.b16 %v3569, %v3568
      %v3578 = vpack.c.b16 %v3571, %v3570
      %v3579 = vpack.c.b16 %v3573, %v3572
      %3586 = vst [vmem:[#allocation2 + $0xc0] sm:$0xff] %v3574
      %3587 = vst [vmem:[#allocation2 + $0xc8] sm:$0xff] %v3575
      %3588 = vst [vmem:[#allocation2 + $0xd0] sm:$0xff] %v3576
      %3589 = vst [vmem:[#allocation2 + $0xd8] sm:$0xff] %v3577
      %3590 = vst [vmem:[#allocation2 + $0xe0] sm:$0xff] %v3578
      %3591 = vst [vmem:[#allocation2 + $0xe8] sm:$0xff] %v3579
      %3592 = vrot.lane.b32.xlu0 %v3226, 127
      %v3593 = vpop.permute.xlu0 %3592
      %3594 = vrot.lane.b32.xlu0 %v3232, 127
      %v3595 = vpop.permute.xlu0 %3594
      %3596 = vrot.lane.b32.xlu0 %v3227, 127
      %v3597 = vpop.permute.xlu0 %3596
      %3598 = vrot.lane.b32.xlu0 %v3233, 127
      %v3599 = vpop.permute.xlu0 %3598
      %3600 = vrot.lane.b32.xlu0 %v3228, 127
      %v3601 = vpop.permute.xlu0 %3600
      %3602 = vrot.lane.b32.xlu0 %v3234, 127
      %v3603 = vpop.permute.xlu0 %3602
      %3604 = vrot.lane.b32.xlu0 %v3229, 127
      %v3605 = vpop.permute.xlu0 %3604
      %3606 = vrot.lane.b32.xlu0 %v3235, 127
      %v3607 = vpop.permute.xlu0 %3606
      %3608 = vrot.lane.b32.xlu0 %v3230, 127
      %v3609 = vpop.permute.xlu0 %3608
      %3610 = vrot.lane.b32.xlu0 %v3236, 127
      %v3611 = vpop.permute.xlu0 %3610
      %3612 = vrot.lane.b32.xlu0 %v3231, 127
      %v3613 = vpop.permute.xlu0 %3612
      %3614 = vrot.lane.b32.xlu0 %v3237, 127
      %v3615 = vpop.permute.xlu0 %3614
      %v3616 = vsel %vm948, %v3609, %v3613
      %v3617 = vsel %vm948, %v3611, %v3615
      %v3618 = vsel %vm948, %v3605, %v3609
      %v3619 = vsel %vm948, %v3607, %v3611
      %v3620 = vsel %vm948, %v3601, %v3605
      %v3621 = vsel %vm948, %v3603, %v3607
      %v3622 = vsel %vm948, %v3597, %v3601
      %v3623 = vsel %vm948, %v3599, %v3603
      %v3624 = vsel %vm948, %v3593, %v3597
      %v3625 = vsel %vm948, %v3595, %v3599
      %v3626 = vsel %vm948, %v3613, %v3593
      %v3627 = vsel %vm948, %v3615, %v3595
      %v3628 = vpack.c.bf16 %v3625, %v3624
      %v3629 = vpack.c.bf16 %v3623, %v3622
      %v3630 = vpack.c.bf16 %v3621, %v3620
      %v3631 = vpack.c.bf16 %v3619, %v3618
      %v3632 = vpack.c.bf16 %v3617, %v3616
      %v3633 = vpack.c.bf16 %v3627, %v3626
      %v3640 = vunpack.c.l.b16 %v3628
      %v3641 = vunpack.c.l.b16 %v3629
      %v3642 = vunpack.c.l.b16 %v3630
      %v3643 = vunpack.c.l.b16 %v3631
      %v3644 = vunpack.c.l.b16 %v3632
      %v3645 = vunpack.c.l.b16 %v3633
      %v3646 = vunpack.c.h.b16 %v3628
      %v3647 = vunpack.c.h.b16 %v3629
      %v3648 = vunpack.c.h.b16 %v3630
      %v3649 = vunpack.c.h.b16 %v3631
      %v3650 = vunpack.c.h.b16 %v3632
      %v3651 = vunpack.c.h.b16 %v3633
      %v3652 = vpack.c.b16 %v3641, %v3640
      %v3653 = vpack.c.b16 %v3643, %v3642
      %v3654 = vpack.c.b16 %v3645, %v3644
      %v3655 = vpack.c.b16 %v3647, %v3646
      %v3656 = vpack.c.b16 %v3649, %v3648
      %v3657 = vpack.c.b16 %v3651, %v3650
      %3664 = vst [vmem:[#allocation2 + $0xf0] sm:$0xff] %v3652
      %3665 = vst [vmem:[#allocation2 + $0xf8] sm:$0xff] %v3653
      %3666 = vst [vmem:[#allocation2 + $0x100] sm:$0xff] %v3654
      %3667 = vst [vmem:[#allocation2 + $0x108] sm:$0xff] %v3655
      %3668 = vst [vmem:[#allocation2 + $0x110] sm:$0xff] %v3656
      %3669 = vst [vmem:[#allocation2 + $0x118] sm:$0xff] %v3657
      %3670 = vrot.lane.b32.xlu0 %v3226, 111
      %v3671 = vpop.permute.xlu0 %3670
      %3672 = vrot.lane.b32.xlu0 %v3232, 111
      %v3673 = vpop.permute.xlu0 %3672
      %3674 = vrot.lane.b32.xlu0 %v3227, 111
      %v3675 = vpop.permute.xlu0 %3674
      %3676 = vrot.lane.b32.xlu0 %v3233, 111
      %v3677 = vpop.permute.xlu0 %3676
      %3678 = vrot.lane.b32.xlu0 %v3228, 111
      %v3679 = vpop.permute.xlu0 %3678
      %3680 = vrot.lane.b32.xlu0 %v3234, 111
      %v3681 = vpop.permute.xlu0 %3680
      %3682 = vrot.lane.b32.xlu0 %v3229, 111
      %v3683 = vpop.permute.xlu0 %3682
      %3684 = vrot.lane.b32.xlu0 %v3235, 111
      %v3685 = vpop.permute.xlu0 %3684
      %3686 = vrot.lane.b32.xlu0 %v3230, 111
      %v3687 = vpop.permute.xlu0 %3686
      %3688 = vrot.lane.b32.xlu0 %v3236, 111
      %v3689 = vpop.permute.xlu0 %3688
      %3690 = vrot.lane.b32.xlu0 %v3231, 111
      %v3691 = vpop.permute.xlu0 %3690
      %3692 = vrot.lane.b32.xlu0 %v3237, 111
      %v3693 = vpop.permute.xlu0 %3692
      %v3694 = vsel %vm1023, %v3687, %v3691
      %v3695 = vsel %vm1023, %v3689, %v3693
      %v3696 = vsel %vm1023, %v3683, %v3687
      %v3697 = vsel %vm1023, %v3685, %v3689
      %v3698 = vsel %vm1023, %v3679, %v3683
      %v3699 = vsel %vm1023, %v3681, %v3685
      %v3700 = vsel %vm1023, %v3675, %v3679
      %v3701 = vsel %vm1023, %v3677, %v3681
      %v3702 = vsel %vm1023, %v3671, %v3675
      %v3703 = vsel %vm1023, %v3673, %v3677
      %v3704 = vsel %vm1023, %v3691, %v3671
      %v3705 = vsel %vm1023, %v3693, %v3673
      %v3706 = vpack.c.bf16 %v3703, %v3702
      %v3707 = vpack.c.bf16 %v3701, %v3700
      %v3708 = vpack.c.bf16 %v3699, %v3698
      %v3709 = vpack.c.bf16 %v3697, %v3696
      %v3710 = vpack.c.bf16 %v3695, %v3694
      %v3711 = vpack.c.bf16 %v3705, %v3704
      %v3718 = vunpack.c.l.b16 %v3706
      %v3719 = vunpack.c.l.b16 %v3707
      %v3720 = vunpack.c.l.b16 %v3708
      %v3721 = vunpack.c.l.b16 %v3709
      %v3722 = vunpack.c.l.b16 %v3710
      %v3723 = vunpack.c.l.b16 %v3711
      %v3724 = vunpack.c.h.b16 %v3706
      %v3725 = vunpack.c.h.b16 %v3707
      %v3726 = vunpack.c.h.b16 %v3708
      %v3727 = vunpack.c.h.b16 %v3709
      %v3728 = vunpack.c.h.b16 %v3710
      %v3729 = vunpack.c.h.b16 %v3711
      %v3730 = vpack.c.b16 %v3719, %v3718
      %v3731 = vpack.c.b16 %v3721, %v3720
      %v3732 = vpack.c.b16 %v3723, %v3722
      %v3733 = vpack.c.b16 %v3725, %v3724
      %v3734 = vpack.c.b16 %v3727, %v3726
      %v3735 = vpack.c.b16 %v3729, %v3728
      %3742 = vst [vmem:[#allocation2 + $0x120] sm:$0xff] %v3730
      %3743 = vst [vmem:[#allocation2 + $0x128] sm:$0xff] %v3731
      %3744 = vst [vmem:[#allocation2 + $0x130] sm:$0xff] %v3732
      %3745 = vst [vmem:[#allocation2 + $0x138] sm:$0xff] %v3733
      %3746 = vst [vmem:[#allocation2 + $0x140] sm:$0xff] %v3734
      %3747 = vst [vmem:[#allocation2 + $0x148] sm:$0xff] %v3735
      %3748 = vrot.lane.b32.xlu0 %v3226, 110
      %v3749 = vpop.permute.xlu0 %3748
      %3750 = vrot.lane.b32.xlu0 %v3232, 110
      %v3751 = vpop.permute.xlu0 %3750
      %3752 = vrot.lane.b32.xlu0 %v3227, 110
      %v3753 = vpop.permute.xlu0 %3752
      %3754 = vrot.lane.b32.xlu0 %v3233, 110
      %v3755 = vpop.permute.xlu0 %3754
      %3756 = vrot.lane.b32.xlu0 %v3228, 110
      %v3757 = vpop.permute.xlu0 %3756
      %3758 = vrot.lane.b32.xlu0 %v3234, 110
      %v3759 = vpop.permute.xlu0 %3758
      %3760 = vrot.lane.b32.xlu0 %v3229, 110
      %v3761 = vpop.permute.xlu0 %3760
      %3762 = vrot.lane.b32.xlu0 %v3235, 110
      %v3763 = vpop.permute.xlu0 %3762
      %3764 = vrot.lane.b32.xlu0 %v3230, 110
      %v3765 = vpop.permute.xlu0 %3764
      %3766 = vrot.lane.b32.xlu0 %v3236, 110
      %v3767 = vpop.permute.xlu0 %3766
      %3768 = vrot.lane.b32.xlu0 %v3231, 110
      %v3769 = vpop.permute.xlu0 %3768
      %3770 = vrot.lane.b32.xlu0 %v3237, 110
      %v3771 = vpop.permute.xlu0 %3770
      %v3772 = vsel %vm1098, %v3765, %v3769
      %v3773 = vsel %vm1098, %v3767, %v3771
      %v3774 = vsel %vm1098, %v3761, %v3765
      %v3775 = vsel %vm1098, %v3763, %v3767
      %v3776 = vsel %vm1098, %v3757, %v3761
      %v3777 = vsel %vm1098, %v3759, %v3763
      %v3778 = vsel %vm1098, %v3753, %v3757
      %v3779 = vsel %vm1098, %v3755, %v3759
      %v3780 = vsel %vm1098, %v3749, %v3753
      %v3781 = vsel %vm1098, %v3751, %v3755
      %v3782 = vsel %vm1098, %v3769, %v3749
      %v3783 = vsel %vm1098, %v3771, %v3751
      %v3784 = vpack.c.bf16 %v3781, %v3780
      %v3785 = vpack.c.bf16 %v3779, %v3778
      %v3786 = vpack.c.bf16 %v3777, %v3776
      %v3787 = vpack.c.bf16 %v3775, %v3774
      %v3788 = vpack.c.bf16 %v3773, %v3772
      %v3789 = vpack.c.bf16 %v3783, %v3782
      %v3796 = vunpack.c.l.b16 %v3784
      %v3797 = vunpack.c.l.b16 %v3785
      %v3798 = vunpack.c.l.b16 %v3786
      %v3799 = vunpack.c.l.b16 %v3787
      %v3800 = vunpack.c.l.b16 %v3788
      %v3801 = vunpack.c.l.b16 %v3789
      %v3802 = vunpack.c.h.b16 %v3784
      %v3803 = vunpack.c.h.b16 %v3785
      %v3804 = vunpack.c.h.b16 %v3786
      %v3805 = vunpack.c.h.b16 %v3787
      %v3806 = vunpack.c.h.b16 %v3788
      %v3807 = vunpack.c.h.b16 %v3789
      %v3808 = vpack.c.b16 %v3797, %v3796
      %v3809 = vpack.c.b16 %v3799, %v3798
      %v3810 = vpack.c.b16 %v3801, %v3800
      %v3811 = vpack.c.b16 %v3803, %v3802
      %v3812 = vpack.c.b16 %v3805, %v3804
      %v3813 = vpack.c.b16 %v3807, %v3806
      %3820 = vst [vmem:[#allocation2 + $0x150] sm:$0xff] %v3808
      %3821 = vst [vmem:[#allocation2 + $0x158] sm:$0xff] %v3809
      %3822 = vst [vmem:[#allocation2 + $0x160] sm:$0xff] %v3810
      %3823 = vst [vmem:[#allocation2 + $0x168] sm:$0xff] %v3811
      %3824 = vst [vmem:[#allocation2 + $0x170] sm:$0xff] %v3812
      %3825 = vst [vmem:[#allocation2 + $0x178] sm:$0xff] %v3813
      %3826 = vrot.lane.b32.xlu0 %v3226, 109
      %v3827 = vpop.permute.xlu0 %3826
      %3828 = vrot.lane.b32.xlu0 %v3232, 109
      %v3829 = vpop.permute.xlu0 %3828
      %3830 = vrot.lane.b32.xlu0 %v3227, 109
      %v3831 = vpop.permute.xlu0 %3830
      %3832 = vrot.lane.b32.xlu0 %v3233, 109
      %v3833 = vpop.permute.xlu0 %3832
      %3834 = vrot.lane.b32.xlu0 %v3228, 109
      %v3835 = vpop.permute.xlu0 %3834
      %3836 = vrot.lane.b32.xlu0 %v3234, 109
      %v3837 = vpop.permute.xlu0 %3836
      %3838 = vrot.lane.b32.xlu0 %v3229, 109
      %v3839 = vpop.permute.xlu0 %3838
      %3840 = vrot.lane.b32.xlu0 %v3235, 109
      %v3841 = vpop.permute.xlu0 %3840
      %3842 = vrot.lane.b32.xlu0 %v3230, 109
      %v3843 = vpop.permute.xlu0 %3842
      %3844 = vrot.lane.b32.xlu0 %v3236, 109
      %v3845 = vpop.permute.xlu0 %3844
      %3846 = vrot.lane.b32.xlu0 %v3231, 109
      %v3847 = vpop.permute.xlu0 %3846
      %3848 = vrot.lane.b32.xlu0 %v3237, 109
      %v3849 = vpop.permute.xlu0 %3848
      %v3850 = vsel %vm1173, %v3843, %v3847
      %v3851 = vsel %vm1173, %v3845, %v3849
      %v3852 = vsel %vm1173, %v3839, %v3843
      %v3853 = vsel %vm1173, %v3841, %v3845
      %v3854 = vsel %vm1173, %v3835, %v3839
      %v3855 = vsel %vm1173, %v3837, %v3841
      %v3856 = vsel %vm1173, %v3831, %v3835
      %v3857 = vsel %vm1173, %v3833, %v3837
      %v3858 = vsel %vm1173, %v3827, %v3831
      %v3859 = vsel %vm1173, %v3829, %v3833
      %v3860 = vsel %vm1173, %v3847, %v3827
      %v3861 = vsel %vm1173, %v3849, %v3829
      %v3862 = vpack.c.bf16 %v3859, %v3858
      %v3863 = vpack.c.bf16 %v3857, %v3856
      %v3864 = vpack.c.bf16 %v3855, %v3854
      %v3865 = vpack.c.bf16 %v3853, %v3852
      %v3866 = vpack.c.bf16 %v3851, %v3850
      %v3867 = vpack.c.bf16 %v3861, %v3860
      %v3874 = vunpack.c.l.b16 %v3862
      %v3875 = vunpack.c.l.b16 %v3863
      %v3876 = vunpack.c.l.b16 %v3864
      %v3877 = vunpack.c.l.b16 %v3865
      %v3878 = vunpack.c.l.b16 %v3866
      %v3879 = vunpack.c.l.b16 %v3867
      %v3880 = vunpack.c.h.b16 %v3862
      %v3881 = vunpack.c.h.b16 %v3863
      %v3882 = vunpack.c.h.b16 %v3864
      %v3883 = vunpack.c.h.b16 %v3865
      %v3884 = vunpack.c.h.b16 %v3866
      %v3885 = vunpack.c.h.b16 %v3867
      %v3886 = vpack.c.b16 %v3875, %v3874
      %v3887 = vpack.c.b16 %v3877, %v3876
      %v3888 = vpack.c.b16 %v3879, %v3878
      %v3889 = vpack.c.b16 %v3881, %v3880
      %v3890 = vpack.c.b16 %v3883, %v3882
      %v3891 = vpack.c.b16 %v3885, %v3884
      %3898 = vst [vmem:[#allocation2 + $0x180] sm:$0xff] %v3886
      %3899 = vst [vmem:[#allocation2 + $0x188] sm:$0xff] %v3887
      %3900 = vst [vmem:[#allocation2 + $0x190] sm:$0xff] %v3888
      %3901 = vst [vmem:[#allocation2 + $0x198] sm:$0xff] %v3889
      %3902 = vst [vmem:[#allocation2 + $0x1a0] sm:$0xff] %v3890
      %3903 = vst [vmem:[#allocation2 + $0x1a8] sm:$0xff] %v3891
      %v3904 = vld [vmem:[%s9] sm:$0xff]
      %v3905 = vld [vmem:[%s9 + $0x8] sm:$0xff]
      %v3906 = vld [vmem:[%s9 + $0x10] sm:$0xff]
      %v3907 = vld [vmem:[%s9 + $0x18] sm:$0xff]
      %v3908 = vld [vmem:[#allocation2] sm:$0xff]
      %v3909 = vld [vmem:[#allocation2 + $0x8] sm:$0xff]
      %v3910 = vld [vmem:[#allocation2 + $0x10] sm:$0xff]
      %v3911 = vld [vmem:[#allocation2 + $0x18] sm:$0xff]
      %v3912 = vld [vmem:[#allocation2 + $0x20] sm:$0xff]
      %v3913 = vld [vmem:[#allocation2 + $0x28] sm:$0xff]
      %v3914 = vld [vmem:[#allocation2 + $0x30] sm:$0xff]
      %v3915 = vld [vmem:[#allocation2 + $0x38] sm:$0xff]
      %v3916 = vld [vmem:[#allocation2 + $0x40] sm:$0xff]
      %v3917 = vld [vmem:[#allocation2 + $0x48] sm:$0xff]
      %v3918 = vld [vmem:[#allocation2 + $0x50] sm:$0xff]
      %v3919 = vld [vmem:[#allocation2 + $0x58] sm:$0xff]
      %v3920 = vld [vmem:[#allocation2 + $0x60] sm:$0xff]
      %v3921 = vld [vmem:[#allocation2 + $0x68] sm:$0xff]
      %v3922 = vld [vmem:[#allocation2 + $0x70] sm:$0xff]
      %v3923 = vld [vmem:[#allocation2 + $0x78] sm:$0xff]
      %v3924 = vld [vmem:[#allocation2 + $0x80] sm:$0xff]
      %v3925 = vld [vmem:[#allocation2 + $0x88] sm:$0xff]
      %v3926 = vld [vmem:[#allocation2 + $0x90] sm:$0xff]
      %v3927 = vld [vmem:[#allocation2 + $0x98] sm:$0xff]
      %v3928 = vld [vmem:[#allocation2 + $0xa0] sm:$0xff]
      %v3929 = vld [vmem:[#allocation2 + $0xa8] sm:$0xff]
      %v3930 = vld [vmem:[#allocation2 + $0xb0] sm:$0xff]
      %v3931 = vld [vmem:[#allocation2 + $0xb8] sm:$0xff]
      %v3932 = vld [vmem:[#allocation2 + $0xc0] sm:$0xff]
      %v3933 = vld [vmem:[#allocation2 + $0xc8] sm:$0xff]
      %v3934 = vld [vmem:[#allocation2 + $0xd0] sm:$0xff]
      %v3935 = vld [vmem:[#allocation2 + $0xd8] sm:$0xff]
      %v3936 = vld [vmem:[#allocation2 + $0xe0] sm:$0xff]
      %v3937 = vld [vmem:[#allocation2 + $0xe8] sm:$0xff]
      %v3938 = vld [vmem:[#allocation2 + $0xf0] sm:$0xff]
      %v3939 = vld [vmem:[#allocation2 + $0xf8] sm:$0xff]
      %v3940 = vld [vmem:[#allocation2 + $0x100] sm:$0xff]
      %v3941 = vld [vmem:[#allocation2 + $0x108] sm:$0xff]
      %v3942 = vld [vmem:[#allocation2 + $0x110] sm:$0xff]
      %v3943 = vld [vmem:[#allocation2 + $0x118] sm:$0xff]
      %v3944 = vld [vmem:[#allocation2 + $0x120] sm:$0xff]
      %v3945 = vld [vmem:[#allocation2 + $0x128] sm:$0xff]
      %v3946 = vld [vmem:[#allocation2 + $0x130] sm:$0xff]
      %v3947 = vld [vmem:[#allocation2 + $0x138] sm:$0xff]
      %v3948 = vld [vmem:[#allocation2 + $0x140] sm:$0xff]
      %v3949 = vld [vmem:[#allocation2 + $0x148] sm:$0xff]
      %v3950 = vld [vmem:[#allocation2 + $0x150] sm:$0xff]
      %v3951 = vld [vmem:[#allocation2 + $0x158] sm:$0xff]
      %v3952 = vld [vmem:[#allocation2 + $0x160] sm:$0xff]
      %v3953 = vld [vmem:[#allocation2 + $0x168] sm:$0xff]
      %v3954 = vld [vmem:[#allocation2 + $0x170] sm:$0xff]
      %v3955 = vld [vmem:[#allocation2 + $0x178] sm:$0xff]
      %v3956 = vld [vmem:[#allocation2 + $0x180] sm:$0xff]
      %v3957 = vld [vmem:[#allocation2 + $0x188] sm:$0xff]
      %v3958 = vld [vmem:[#allocation2 + $0x190] sm:$0xff]
      %v3959 = vld [vmem:[#allocation2 + $0x198] sm:$0xff]
      %v3960 = vld [vmem:[#allocation2 + $0x1a0] sm:$0xff]
      %v3961 = vld [vmem:[#allocation2 + $0x1a8] sm:$0xff]
      %v3962 = vld [vmem:[%s10] sm:$0xff]
      %v3963 = vld [vmem:[%s10 + $0x8] sm:$0xff]
      %v3964 = vld [vmem:[%s10 + $0x10] sm:$0xff]
      %v3965 = vld [vmem:[%s10 + $0x18] sm:$0xff]
      %3967 = vset.pattern.permute.xlu0 0
      %3968 = vperm.xlu0 %3967, %v3962
      %v3969 = vpop.permute.xlu0 %3968
      %3972 = vset.pattern.permute.xlu0 0
      %3973 = vperm.xlu0 %3972, %v3963
      %v3974 = vpop.permute.xlu0 %3973
      %3977 = vset.pattern.permute.xlu0 0
      %3978 = vperm.xlu0 %3977, %v3964
      %v3979 = vpop.permute.xlu0 %3978
      %3982 = vset.pattern.permute.xlu0 0
      %3983 = vperm.xlu0 %3982, %v3965
      %v3984 = vpop.permute.xlu0 %3983
      %v3990 = vunpack.c.l.b16 %v3904
      %v3991 = vunpack.c.h.b16 %v3904
      %v3992 = vunpack.c.l.b16 %v3905
      %v3993 = vunpack.c.h.b16 %v3905
      %v3994 = vunpack.c.l.b16 %v3906
      %v3995 = vunpack.c.h.b16 %v3906
      %v3996 = vunpack.c.l.b16 %v3907
      %v3997 = vunpack.c.h.b16 %v3907
      %v3998 = vpack.c.b16 %v3992, %v3990
      %v3999 = vpack.c.b16 %v3993, %v3991
      %v4000 = vpack.c.b16 %v3996, %v3994
      %v4001 = vpack.c.b16 %v3997, %v3995
      %v4058 = vunpack.c.l.b16 %v3908
      %v4059 = vunpack.c.h.b16 %v3908
      %v4060 = vunpack.c.l.b16 %v3909
      %v4061 = vunpack.c.h.b16 %v3909
      %v4062 = vunpack.c.l.b16 %v3910
      %v4063 = vunpack.c.h.b16 %v3910
      %v4064 = vunpack.c.l.b16 %v3911
      %v4065 = vunpack.c.h.b16 %v3911
      %v4066 = vunpack.c.l.b16 %v3912
      %v4067 = vunpack.c.h.b16 %v3912
      %v4068 = vunpack.c.l.b16 %v3913
      %v4069 = vunpack.c.h.b16 %v3913
      %v4070 = vunpack.c.l.b16 %v3914
      %v4071 = vunpack.c.h.b16 %v3914
      %v4072 = vunpack.c.l.b16 %v3915
      %v4073 = vunpack.c.h.b16 %v3915
      %v4074 = vunpack.c.l.b16 %v3916
      %v4075 = vunpack.c.h.b16 %v3916
      %v4076 = vunpack.c.l.b16 %v3917
      %v4077 = vunpack.c.h.b16 %v3917
      %v4078 = vunpack.c.l.b16 %v3918
      %v4079 = vunpack.c.h.b16 %v3918
      %v4080 = vunpack.c.l.b16 %v3919
      %v4081 = vunpack.c.h.b16 %v3919
      %v4082 = vunpack.c.l.b16 %v3920
      %v4083 = vunpack.c.h.b16 %v3920
      %v4084 = vunpack.c.l.b16 %v3921
      %v4085 = vunpack.c.h.b16 %v3921
      %v4086 = vunpack.c.l.b16 %v3922
      %v4087 = vunpack.c.h.b16 %v3922
      %v4088 = vunpack.c.l.b16 %v3923
      %v4089 = vunpack.c.h.b16 %v3923
      %v4090 = vunpack.c.l.b16 %v3924
      %v4091 = vunpack.c.h.b16 %v3924
      %v4092 = vunpack.c.l.b16 %v3925
      %v4093 = vunpack.c.h.b16 %v3925
      %v4094 = vunpack.c.l.b16 %v3926
      %v4095 = vunpack.c.h.b16 %v3926
      %v4096 = vunpack.c.l.b16 %v3927
      %v4097 = vunpack.c.h.b16 %v3927
      %v4098 = vunpack.c.l.b16 %v3928
      %v4099 = vunpack.c.h.b16 %v3928
      %v4100 = vunpack.c.l.b16 %v3929
      %v4101 = vunpack.c.h.b16 %v3929
      %v4102 = vunpack.c.l.b16 %v3930
      %v4103 = vunpack.c.h.b16 %v3930
      %v4104 = vunpack.c.l.b16 %v3931
      %v4105 = vunpack.c.h.b16 %v3931
      %v4106 = vunpack.c.l.b16 %v3932
      %v4107 = vunpack.c.h.b16 %v3932
      %v4108 = vunpack.c.l.b16 %v3933
      %v4109 = vunpack.c.h.b16 %v3933
      %v4110 = vunpack.c.l.b16 %v3934
      %v4111 = vunpack.c.h.b16 %v3934
      %v4112 = vunpack.c.l.b16 %v3935
      %v4113 = vunpack.c.h.b16 %v3935
      %v4114 = vunpack.c.l.b16 %v3936
      %v4115 = vunpack.c.h.b16 %v3936
      %v4116 = vunpack.c.l.b16 %v3937
      %v4117 = vunpack.c.h.b16 %v3937
      %v4118 = vunpack.c.l.b16 %v3938
      %v4119 = vunpack.c.h.b16 %v3938
      %v4120 = vunpack.c.l.b16 %v3939
      %v4121 = vunpack.c.h.b16 %v3939
      %v4122 = vunpack.c.l.b16 %v3940
      %v4123 = vunpack.c.h.b16 %v3940
      %v4124 = vunpack.c.l.b16 %v3941
      %v4125 = vunpack.c.h.b16 %v3941
      %v4126 = vunpack.c.l.b16 %v3942
      %v4127 = vunpack.c.h.b16 %v3942
      %v4128 = vunpack.c.l.b16 %v3943
      %v4129 = vunpack.c.h.b16 %v3943
      %v4130 = vunpack.c.l.b16 %v3944
      %v4131 = vunpack.c.h.b16 %v3944
      %v4132 = vunpack.c.l.b16 %v3945
      %v4133 = vunpack.c.h.b16 %v3945
      %v4134 = vunpack.c.l.b16 %v3946
      %v4135 = vunpack.c.h.b16 %v3946
      %v4136 = vunpack.c.l.b16 %v3947
      %v4137 = vunpack.c.h.b16 %v3947
      %v4138 = vunpack.c.l.b16 %v3948
      %v4139 = vunpack.c.h.b16 %v3948
      %v4140 = vunpack.c.l.b16 %v3949
      %v4141 = vunpack.c.h.b16 %v3949
      %v4142 = vunpack.c.l.b16 %v3950
      %v4143 = vunpack.c.h.b16 %v3950
      %v4144 = vunpack.c.l.b16 %v3951
      %v4145 = vunpack.c.h.b16 %v3951
      %v4146 = vunpack.c.l.b16 %v3952
      %v4147 = vunpack.c.h.b16 %v3952
      %v4148 = vunpack.c.l.b16 %v3953
      %v4149 = vunpack.c.h.b16 %v3953
      %v4150 = vunpack.c.l.b16 %v3954
      %v4151 = vunpack.c.h.b16 %v3954
      %v4152 = vunpack.c.l.b16 %v3955
      %v4153 = vunpack.c.h.b16 %v3955
      %v4154 = vunpack.c.l.b16 %v3956
      %v4155 = vunpack.c.h.b16 %v3956
      %v4156 = vunpack.c.l.b16 %v3957
      %v4157 = vunpack.c.h.b16 %v3957
      %v4158 = vunpack.c.l.b16 %v3958
      %v4159 = vunpack.c.h.b16 %v3958
      %v4160 = vunpack.c.l.b16 %v3959
      %v4161 = vunpack.c.h.b16 %v3959
      %v4162 = vunpack.c.l.b16 %v3960
      %v4163 = vunpack.c.h.b16 %v3960
      %v4164 = vunpack.c.l.b16 %v3961
      %v4165 = vunpack.c.h.b16 %v3961
      %v4166 = vpack.c.b16 %v4064, %v4058
      %v4167 = vpack.c.b16 %v4065, %v4059
      %v4168 = vpack.c.b16 %v4066, %v4060
      %v4169 = vpack.c.b16 %v4067, %v4061
      %v4170 = vpack.c.b16 %v4068, %v4062
      %v4171 = vpack.c.b16 %v4069, %v4063
      %v4172 = vpack.c.b16 %v4076, %v4070
      %v4173 = vpack.c.b16 %v4077, %v4071
      %v4174 = vpack.c.b16 %v4078, %v4072
      %v4175 = vpack.c.b16 %v4079, %v4073
      %v4176 = vpack.c.b16 %v4080, %v4074
      %v4177 = vpack.c.b16 %v4081, %v4075
      %v4178 = vpack.c.b16 %v4088, %v4082
      %v4179 = vpack.c.b16 %v4089, %v4083
      %v4180 = vpack.c.b16 %v4090, %v4084
      %v4181 = vpack.c.b16 %v4091, %v4085
      %v4182 = vpack.c.b16 %v4092, %v4086
      %v4183 = vpack.c.b16 %v4093, %v4087
      %v4184 = vpack.c.b16 %v4100, %v4094
      %v4185 = vpack.c.b16 %v4101, %v4095
      %v4186 = vpack.c.b16 %v4102, %v4096
      %v4187 = vpack.c.b16 %v4103, %v4097
      %v4188 = vpack.c.b16 %v4104, %v4098
      %v4189 = vpack.c.b16 %v4105, %v4099
      %v4190 = vpack.c.b16 %v4112, %v4106
      %v4191 = vpack.c.b16 %v4113, %v4107
      %v4192 = vpack.c.b16 %v4114, %v4108
      %v4193 = vpack.c.b16 %v4115, %v4109
      %v4194 = vpack.c.b16 %v4116, %v4110
      %v4195 = vpack.c.b16 %v4117, %v4111
      %v4196 = vpack.c.b16 %v4124, %v4118
      %v4197 = vpack.c.b16 %v4125, %v4119
      %v4198 = vpack.c.b16 %v4126, %v4120
      %v4199 = vpack.c.b16 %v4127, %v4121
      %v4200 = vpack.c.b16 %v4128, %v4122
      %v4201 = vpack.c.b16 %v4129, %v4123
      %v4202 = vpack.c.b16 %v4136, %v4130
      %v4203 = vpack.c.b16 %v4137, %v4131
      %v4204 = vpack.c.b16 %v4138, %v4132
      %v4205 = vpack.c.b16 %v4139, %v4133
      %v4206 = vpack.c.b16 %v4140, %v4134
      %v4207 = vpack.c.b16 %v4141, %v4135
      %v4208 = vpack.c.b16 %v4148, %v4142
      %v4209 = vpack.c.b16 %v4149, %v4143
      %v4210 = vpack.c.b16 %v4150, %v4144
      %v4211 = vpack.c.b16 %v4151, %v4145
      %v4212 = vpack.c.b16 %v4152, %v4146
      %v4213 = vpack.c.b16 %v4153, %v4147
      %v4214 = vpack.c.b16 %v4160, %v4154
      %v4215 = vpack.c.b16 %v4161, %v4155
      %v4216 = vpack.c.b16 %v4162, %v4156
      %v4217 = vpack.c.b16 %v4163, %v4157
      %v4218 = vpack.c.b16 %v4164, %v4158
      %v4219 = vpack.c.b16 %v4165, %v4159
      %v4275 = vsel %vm2327, %v3999, 0
      %v4278 = vsel %vm2327, %v4001, 0
      %4280 = vmatprep.subr.bf16.mxu0 %v4209
      %4281 = vmatpush1.bf16.msra.mxu0 %v4208
      %4282 = vmatprep.subr.bf16.mxu0 %v4203
      %4283 = vmatpush1.bf16.msra.mxu0 %v4202
      %4284 = vmatprep.subr.bf16.mxu0 %v4197
      %4285 = vmatpush1.bf16.msra.mxu0 %v4196
      %4286 = vmatprep.subr.bf16.mxu0 %v4191
      %4287 = vmatpush1.bf16.msra.mxu0 %v4190
      %4288 = vmatprep.subr.bf16.mxu0 %v4185
      %4289 = vmatpush1.bf16.msra.mxu0 %v4184
      %4290 = vmatprep.subr.bf16.mxu0 %v4179
      %4291 = vmatpush1.bf16.msra.mxu0 %v4178
      %4292 = vmatprep.subr.bf16.mxu0 %v4173
      %4293 = vmatpush1.bf16.msra.mxu0 %v4172
      %4294 = vmatprep.subr.bf16.mxu0 %v4167
      %4295 = vmatpush1.bf16.msra.mxu0 %v4166
      %4296 = vmatprep.subr.bf16.mxu0 0
      %4297 = vmatpush2.bf16.msra.mxu0 0
      %4298 = vmatprep.subr.bf16.mxu0 0
      %4299 = vmatpush2.bf16.msra.mxu0 0
      %4300 = vmatprep.subr.bf16.mxu0 0
      %4301 = vmatpush2.bf16.msra.mxu0 0
      %4302 = vmatprep.subr.bf16.mxu0 0
      %4303 = vmatpush2.bf16.msra.mxu0 0
      %4304 = vmatprep.subr.bf16.mxu0 0
      %4305 = vmatpush2.bf16.msra.mxu0 0
      %4306 = vmatprep.subr.bf16.mxu0 0
      %4307 = vmatpush2.bf16.msra.mxu0 0
      %4308 = vmatprep.subr.bf16.mxu0 0
      %4309 = vmatpush2.bf16.msra.mxu0 0
      %4310 = vmatprep.subr.bf16.mxu0 %v4215
      %4311 = vmatpush2.bf16.msra.mxu0 %v4214
      %4312 = vmatprep.mubr.bf16.mxu0 %v4275
      %4313 = vmatmul.mubr.bf16.gmra.mxu0 %v3998
      %v4314 = vpop.f32.mrf.mxu0
      %v4315 = vadd.f32 %v3969, %v4314
      %v4316 = vpop.f32.mrf.mxu0
      %v4317 = vadd.f32 %v3969, %v4316
      %v4318 = vpop.f32.mrf.mxu0
      %v4319 = vadd.f32 %v3974, %v4318
      %v4320 = vpop.f32.mrf.mxu0
      %v4321 = vadd.f32 %v3974, %v4320
      %4322 = vmatprep.mubr.bf16.mxu0 %v4278
      %4323 = vmatmul.mubr.bf16.gmra.mxu0 %v4000
      %v4324 = vpop.f32.mrf.mxu0
      %v4325 = vadd.f32 %v3979, %v4324
      %v4326 = vpop.f32.mrf.mxu0
      %v4327 = vadd.f32 %v3979, %v4326
      %v4328 = vpop.f32.mrf.mxu0
      %v4329 = vadd.f32 %v3984, %v4328
      %v4330 = vpop.f32.mrf.mxu0
      %v4331 = vadd.f32 %v3984, %v4330
      %4332 = vdwg.mxu0
      %4333 = vmatprep.subr.bf16.mxu0 %v4211
      %4334 = vmatpush1.bf16.msra.mxu0 %v4210
      %4335 = vmatprep.subr.bf16.mxu0 %v4205
      %4336 = vmatpush1.bf16.msra.mxu0 %v4204
      %4337 = vmatprep.subr.bf16.mxu0 %v4199
      %4338 = vmatpush1.bf16.msra.mxu0 %v4198
      %4339 = vmatprep.subr.bf16.mxu0 %v4193
      %4340 = vmatpush1.bf16.msra.mxu0 %v4192
      %4341 = vmatprep.subr.bf16.mxu0 %v4187
      %4342 = vmatpush1.bf16.msra.mxu0 %v4186
      %4343 = vmatprep.subr.bf16.mxu0 %v4181
      %4344 = vmatpush1.bf16.msra.mxu0 %v4180
      %4345 = vmatprep.subr.bf16.mxu0 %v4175
      %4346 = vmatpush1.bf16.msra.mxu0 %v4174
      %4347 = vmatprep.subr.bf16.mxu0 %v4169
      %4348 = vmatpush1.bf16.msra.mxu0 %v4168
      %4349 = vmatprep.subr.bf16.mxu0 0
      %4350 = vmatpush2.bf16.msra.mxu0 0
      %4351 = vmatprep.subr.bf16.mxu0 0
      %4352 = vmatpush2.bf16.msra.mxu0 0
      %4353 = vmatprep.subr.bf16.mxu0 0
      %4354 = vmatpush2.bf16.msra.mxu0 0
      %4355 = vmatprep.subr.bf16.mxu0 0
      %4356 = vmatpush2.bf16.msra.mxu0 0
      %4357 = vmatprep.subr.bf16.mxu0 0
      %4358 = vmatpush2.bf16.msra.mxu0 0
      %4359 = vmatprep.subr.bf16.mxu0 0
      %4360 = vmatpush2.bf16.msra.mxu0 0
      %4361 = vmatprep.subr.bf16.mxu0 0
      %4362 = vmatpush2.bf16.msra.mxu0 0
      %4363 = vmatprep.subr.bf16.mxu0 %v4217
      %4364 = vmatpush2.bf16.msra.mxu0 %v4216
      %4365 = vmatprep.mubr.bf16.mxu0 %v4275
      %4366 = vmatmul.mubr.bf16.gmra.mxu0 %v3998
      %v4367 = vpop.f32.mrf.mxu0
      %v4368 = vadd.f32 %v3969, %v4367
      %v4369 = vpop.f32.mrf.mxu0
      %v4370 = vadd.f32 %v3969, %v4369
      %v4371 = vpop.f32.mrf.mxu0
      %v4372 = vadd.f32 %v3974, %v4371
      %v4373 = vpop.f32.mrf.mxu0
      %v4374 = vadd.f32 %v3974, %v4373
      %4375 = vmatprep.mubr.bf16.mxu0 %v4278
      %4376 = vmatmul.mubr.bf16.gmra.mxu0 %v4000
      %v4377 = vpop.f32.mrf.mxu0
      %v4378 = vadd.f32 %v3979, %v4377
      %v4379 = vpop.f32.mrf.mxu0
      %v4380 = vadd.f32 %v3979, %v4379
      %v4381 = vpop.f32.mrf.mxu0
      %v4382 = vadd.f32 %v3984, %v4381
      %v4383 = vpop.f32.mrf.mxu0
      %v4384 = vadd.f32 %v3984, %v4383
      %4385 = vdwg.mxu0
      %4386 = vmatprep.subr.bf16.mxu0 %v4213
      %4387 = vmatpush1.bf16.msra.mxu0 %v4212
      %4388 = vmatprep.subr.bf16.mxu0 %v4207
      %4389 = vmatpush1.bf16.msra.mxu0 %v4206
      %4390 = vmatprep.subr.bf16.mxu0 %v4201
      %4391 = vmatpush1.bf16.msra.mxu0 %v4200
      %4392 = vmatprep.subr.bf16.mxu0 %v4195
      %4393 = vmatpush1.bf16.msra.mxu0 %v4194
      %4394 = vmatprep.subr.bf16.mxu0 %v4189
      %4395 = vmatpush1.bf16.msra.mxu0 %v4188
      %4396 = vmatprep.subr.bf16.mxu0 %v4183
      %4397 = vmatpush1.bf16.msra.mxu0 %v4182
      %4398 = vmatprep.subr.bf16.mxu0 %v4177
      %4399 = vmatpush1.bf16.msra.mxu0 %v4176
      %4400 = vmatprep.subr.bf16.mxu0 %v4171
      %4401 = vmatpush1.bf16.msra.mxu0 %v4170
      %4402 = vmatprep.subr.bf16.mxu0 0
      %4403 = vmatpush2.bf16.msra.mxu0 0
      %4404 = vmatprep.subr.bf16.mxu0 0
      %4405 = vmatpush2.bf16.msra.mxu0 0
      %4406 = vmatprep.subr.bf16.mxu0 0
      %4407 = vmatpush2.bf16.msra.mxu0 0
      %4408 = vmatprep.subr.bf16.mxu0 0
      %4409 = vmatpush2.bf16.msra.mxu0 0
      %4410 = vmatprep.subr.bf16.mxu0 0
      %4411 = vmatpush2.bf16.msra.mxu0 0
      %4412 = vmatprep.subr.bf16.mxu0 0
      %4413 = vmatpush2.bf16.msra.mxu0 0
      %4414 = vmatprep.subr.bf16.mxu0 0
      %4415 = vmatpush2.bf16.msra.mxu0 0
      %4416 = vmatprep.subr.bf16.mxu0 %v4219
      %4417 = vmatpush2.bf16.msra.mxu0 %v4218
      %4418 = vmatprep.mubr.bf16.mxu0 %v4275
      %4419 = vmatmul.mubr.bf16.gmra.mxu0 %v3998
      %v4420 = vpop.f32.mrf.mxu0
      %v4421 = vadd.f32 %v3969, %v4420
      %v4422 = vpop.f32.mrf.mxu0
      %v4423 = vadd.f32 %v3969, %v4422
      %v4424 = vpop.f32.mrf.mxu0
      %v4425 = vadd.f32 %v3974, %v4424
      %v4426 = vpop.f32.mrf.mxu0
      %v4427 = vadd.f32 %v3974, %v4426
      %4428 = vmatprep.mubr.bf16.mxu0 %v4278
      %4429 = vmatmul.mubr.bf16.gmra.mxu0 %v4000
      %v4430 = vpop.f32.mrf.mxu0
      %v4431 = vadd.f32 %v3979, %v4430
      %v4432 = vpop.f32.mrf.mxu0
      %v4433 = vadd.f32 %v3979, %v4432
      %v4434 = vpop.f32.mrf.mxu0
      %v4435 = vadd.f32 %v3984, %v4434
      %v4436 = vpop.f32.mrf.mxu0
      %v4437 = vadd.f32 %v3984, %v4436
      %4438 = vdwg.mxu0
      %v4439 = vmax.f32 %v4315, 0.0
      %v4440 = vmax.f32 %v4317, 0.0
      %v4441 = vmax.f32 %v4368, 0.0
      %v4442 = vmax.f32 %v4370, 0.0
      %v4443 = vmax.f32 %v4421, 0.0
      %v4444 = vmax.f32 %v4423, 0.0
      %v4445 = vmax.f32 %v4319, 0.0
      %v4446 = vmax.f32 %v4321, 0.0
      %v4447 = vmax.f32 %v4372, 0.0
      %v4448 = vmax.f32 %v4374, 0.0
      %v4449 = vmax.f32 %v4425, 0.0
      %v4450 = vmax.f32 %v4427, 0.0
      %v4451 = vmax.f32 %v4325, 0.0
      %v4452 = vmax.f32 %v4327, 0.0
      %v4453 = vmax.f32 %v4378, 0.0
      %v4454 = vmax.f32 %v4380, 0.0
      %v4455 = vmax.f32 %v4431, 0.0
      %v4456 = vmax.f32 %v4433, 0.0
      %v4457 = vmax.f32 %v4329, 0.0
      %v4458 = vmax.f32 %v4331, 0.0
      %v4459 = vmax.f32 %v4382, 0.0
      %v4460 = vmax.f32 %v4384, 0.0
      %v4461 = vmax.f32 %v4435, 0.0
      %v4462 = vmax.f32 %v4437, 0.0
      %v4463 = vmul.f32 %v4439, %v1252
      %v4464 = vmul.f32 %v4440, %v1256
      %v4465 = vmul.f32 %v4441, %v1260
      %v4466 = vmul.f32 %v4442, %v1264
      %v4467 = vmul.f32 %v4443, %v1268
      %v4468 = vmul.f32 %v4444, %v1272
      %v4469 = vmul.f32 %v4445, %v1252
      %v4470 = vmul.f32 %v4446, %v1256
      %v4471 = vmul.f32 %v4447, %v1260
      %v4472 = vmul.f32 %v4448, %v1264
      %v4473 = vmul.f32 %v4449, %v1268
      %v4474 = vmul.f32 %v4450, %v1272
      %v4475 = vmul.f32 %v4451, %v1252
      %v4476 = vmul.f32 %v4452, %v1256
      %v4477 = vmul.f32 %v4453, %v1260
      %v4478 = vmul.f32 %v4454, %v1264
      %v4479 = vmul.f32 %v4455, %v1268
      %v4480 = vmul.f32 %v4456, %v1272
      %v4481 = vmul.f32 %v4457, %v1252
      %v4482 = vmul.f32 %v4458, %v1256
      %v4483 = vmul.f32 %v4459, %v1260
      %v4484 = vmul.f32 %v4460, %v1264
      %v4485 = vmul.f32 %v4461, %v1268
      %v4486 = vmul.f32 %v4462, %v1272
      %4487 = vrot.lane.b32.xlu0 %v2517, 19
      %v4488 = vpop.permute.xlu0 %4487
      %4489 = vrot.lane.b32.xlu0 %v2523, 19
      %v4490 = vpop.permute.xlu0 %4489
      %4491 = vrot.lane.b32.xlu0 %v2529, 19
      %v4492 = vpop.permute.xlu0 %4491
      %4493 = vrot.lane.b32.xlu0 %v2535, 19
      %v4494 = vpop.permute.xlu0 %4493
      %4495 = vrot.lane.b32.xlu0 %v2518, 19
      %v4496 = vpop.permute.xlu0 %4495
      %4497 = vrot.lane.b32.xlu0 %v2524, 19
      %v4498 = vpop.permute.xlu0 %4497
      %4499 = vrot.lane.b32.xlu0 %v2530, 19
      %v4500 = vpop.permute.xlu0 %4499
      %4501 = vrot.lane.b32.xlu0 %v2536, 19
      %v4502 = vpop.permute.xlu0 %4501
      %4503 = vrot.lane.b32.xlu0 %v2519, 19
      %v4504 = vpop.permute.xlu0 %4503
      %4505 = vrot.lane.b32.xlu0 %v2525, 19
      %v4506 = vpop.permute.xlu0 %4505
      %4507 = vrot.lane.b32.xlu0 %v2531, 19
      %v4508 = vpop.permute.xlu0 %4507
      %4509 = vrot.lane.b32.xlu0 %v2537, 19
      %v4510 = vpop.permute.xlu0 %4509
      %4511 = vrot.lane.b32.xlu0 %v2520, 19
      %v4512 = vpop.permute.xlu0 %4511
      %4513 = vrot.lane.b32.xlu0 %v2526, 19
      %v4514 = vpop.permute.xlu0 %4513
      %4515 = vrot.lane.b32.xlu0 %v2532, 19
      %v4516 = vpop.permute.xlu0 %4515
      %4517 = vrot.lane.b32.xlu0 %v2538, 19
      %v4518 = vpop.permute.xlu0 %4517
      %4519 = vrot.lane.b32.xlu0 %v2521, 19
      %v4520 = vpop.permute.xlu0 %4519
      %4521 = vrot.lane.b32.xlu0 %v2527, 19
      %v4522 = vpop.permute.xlu0 %4521
      %4523 = vrot.lane.b32.xlu0 %v2533, 19
      %v4524 = vpop.permute.xlu0 %4523
      %4525 = vrot.lane.b32.xlu0 %v2539, 19
      %v4526 = vpop.permute.xlu0 %4525
      %4527 = vrot.lane.b32.xlu0 %v2522, 19
      %v4528 = vpop.permute.xlu0 %4527
      %4529 = vrot.lane.b32.xlu0 %v2528, 19
      %v4530 = vpop.permute.xlu0 %4529
      %4531 = vrot.lane.b32.xlu0 %v2534, 19
      %v4532 = vpop.permute.xlu0 %4531
      %4533 = vrot.lane.b32.xlu0 %v2540, 19
      %v4534 = vpop.permute.xlu0 %4533
      %v4535 = vsel %vm614, %v4520, %v4528
      %v4536 = vsel %vm614, %v4522, %v4530
      %v4537 = vsel %vm614, %v4524, %v4532
      %v4538 = vsel %vm614, %v4526, %v4534
      %v4539 = vsel %vm614, %v4512, %v4520
      %v4540 = vsel %vm614, %v4514, %v4522
      %v4541 = vsel %vm614, %v4516, %v4524
      %v4542 = vsel %vm614, %v4518, %v4526
      %v4543 = vsel %vm614, %v4504, %v4512
      %v4544 = vsel %vm614, %v4506, %v4514
      %v4545 = vsel %vm614, %v4508, %v4516
      %v4546 = vsel %vm614, %v4510, %v4518
      %v4547 = vsel %vm614, %v4496, %v4504
      %v4548 = vsel %vm614, %v4498, %v4506
      %v4549 = vsel %vm614, %v4500, %v4508
      %v4550 = vsel %vm614, %v4502, %v4510
      %v4551 = vsel %vm614, %v4488, %v4496
      %v4552 = vsel %vm614, %v4490, %v4498
      %v4553 = vsel %vm614, %v4492, %v4500
      %v4554 = vsel %vm614, %v4494, %v4502
      %v4555 = vsel %vm614, %v4528, %v4488
      %v4556 = vsel %vm614, %v4530, %v4490
      %v4557 = vsel %vm614, %v4532, %v4492
      %v4558 = vsel %vm614, %v4534, %v4494
      %v4559 = vpack.c.bf16 %v4556, %v4555
      %v4560 = vpack.c.bf16 %v4552, %v4551
      %v4561 = vpack.c.bf16 %v4548, %v4547
      %v4562 = vpack.c.bf16 %v4544, %v4543
      %v4563 = vpack.c.bf16 %v4540, %v4539
      %v4564 = vpack.c.bf16 %v4536, %v4535
      %v4565 = vpack.c.bf16 %v4558, %v4557
      %v4566 = vpack.c.bf16 %v4554, %v4553
      %v4567 = vpack.c.bf16 %v4550, %v4549
      %v4568 = vpack.c.bf16 %v4546, %v4545
      %v4569 = vpack.c.bf16 %v4542, %v4541
      %v4570 = vpack.c.bf16 %v4538, %v4537
      %v4583 = vunpack.c.l.b16 %v4559
      %v4584 = vunpack.c.l.b16 %v4560
      %v4585 = vunpack.c.l.b16 %v4561
      %v4586 = vunpack.c.l.b16 %v4562
      %v4587 = vunpack.c.l.b16 %v4563
      %v4588 = vunpack.c.l.b16 %v4564
      %v4589 = vunpack.c.h.b16 %v4559
      %v4590 = vunpack.c.h.b16 %v4560
      %v4591 = vunpack.c.h.b16 %v4561
      %v4592 = vunpack.c.h.b16 %v4562
      %v4593 = vunpack.c.h.b16 %v4563
      %v4594 = vunpack.c.h.b16 %v4564
      %v4595 = vunpack.c.l.b16 %v4565
      %v4596 = vunpack.c.l.b16 %v4566
      %v4597 = vunpack.c.l.b16 %v4567
      %v4598 = vunpack.c.l.b16 %v4568
      %v4599 = vunpack.c.l.b16 %v4569
      %v4600 = vunpack.c.l.b16 %v4570
      %v4601 = vunpack.c.h.b16 %v4565
      %v4602 = vunpack.c.h.b16 %v4566
      %v4603 = vunpack.c.h.b16 %v4567
      %v4604 = vunpack.c.h.b16 %v4568
      %v4605 = vunpack.c.h.b16 %v4569
      %v4606 = vunpack.c.h.b16 %v4570
      %v4607 = vpack.c.b16 %v4584, %v4583
      %v4608 = vpack.c.b16 %v4586, %v4585
      %v4609 = vpack.c.b16 %v4588, %v4587
      %v4610 = vpack.c.b16 %v4590, %v4589
      %v4611 = vpack.c.b16 %v4592, %v4591
      %v4612 = vpack.c.b16 %v4594, %v4593
      %v4613 = vpack.c.b16 %v4596, %v4595
      %v4614 = vpack.c.b16 %v4598, %v4597
      %v4615 = vpack.c.b16 %v4600, %v4599
      %v4616 = vpack.c.b16 %v4602, %v4601
      %v4617 = vpack.c.b16 %v4604, %v4603
      %v4618 = vpack.c.b16 %v4606, %v4605
      %4631 = vst [vmem:[#allocation2] sm:$0xff] %v4607
      %4632 = vst [vmem:[#allocation2 + $0x8] sm:$0xff] %v4608
      %4633 = vst [vmem:[#allocation2 + $0x10] sm:$0xff] %v4609
      %4634 = vst [vmem:[#allocation2 + $0x18] sm:$0xff] %v4610
      %4635 = vst [vmem:[#allocation2 + $0x20] sm:$0xff] %v4611
      %4636 = vst [vmem:[#allocation2 + $0x28] sm:$0xff] %v4612
      %4637 = vst [vmem:[#allocation2 + $0x30] sm:$0xff] %v4613
      %4638 = vst [vmem:[#allocation2 + $0x38] sm:$0xff] %v4614
      %4639 = vst [vmem:[#allocation2 + $0x40] sm:$0xff] %v4615
      %4640 = vst [vmem:[#allocation2 + $0x48] sm:$0xff] %v4616
      %4641 = vst [vmem:[#allocation2 + $0x50] sm:$0xff] %v4617
      %4642 = vst [vmem:[#allocation2 + $0x58] sm:$0xff] %v4618
      %4643 = vrot.lane.b32.xlu0 %v2517, 18
      %v4644 = vpop.permute.xlu0 %4643
      %4645 = vrot.lane.b32.xlu0 %v2523, 18
      %v4646 = vpop.permute.xlu0 %4645
      %4647 = vrot.lane.b32.xlu0 %v2529, 18
      %v4648 = vpop.permute.xlu0 %4647
      %4649 = vrot.lane.b32.xlu0 %v2535, 18
      %v4650 = vpop.permute.xlu0 %4649
      %4651 = vrot.lane.b32.xlu0 %v2518, 18
      %v4652 = vpop.permute.xlu0 %4651
      %4653 = vrot.lane.b32.xlu0 %v2524, 18
      %v4654 = vpop.permute.xlu0 %4653
      %4655 = vrot.lane.b32.xlu0 %v2530, 18
      %v4656 = vpop.permute.xlu0 %4655
      %4657 = vrot.lane.b32.xlu0 %v2536, 18
      %v4658 = vpop.permute.xlu0 %4657
      %4659 = vrot.lane.b32.xlu0 %v2519, 18
      %v4660 = vpop.permute.xlu0 %4659
      %4661 = vrot.lane.b32.xlu0 %v2525, 18
      %v4662 = vpop.permute.xlu0 %4661
      %4663 = vrot.lane.b32.xlu0 %v2531, 18
      %v4664 = vpop.permute.xlu0 %4663
      %4665 = vrot.lane.b32.xlu0 %v2537, 18
      %v4666 = vpop.permute.xlu0 %4665
      %4667 = vrot.lane.b32.xlu0 %v2520, 18
      %v4668 = vpop.permute.xlu0 %4667
      %4669 = vrot.lane.b32.xlu0 %v2526, 18
      %v4670 = vpop.permute.xlu0 %4669
      %4671 = vrot.lane.b32.xlu0 %v2532, 18
      %v4672 = vpop.permute.xlu0 %4671
      %4673 = vrot.lane.b32.xlu0 %v2538, 18
      %v4674 = vpop.permute.xlu0 %4673
      %4675 = vrot.lane.b32.xlu0 %v2521, 18
      %v4676 = vpop.permute.xlu0 %4675
      %4677 = vrot.lane.b32.xlu0 %v2527, 18
      %v4678 = vpop.permute.xlu0 %4677
      %4679 = vrot.lane.b32.xlu0 %v2533, 18
      %v4680 = vpop.permute.xlu0 %4679
      %4681 = vrot.lane.b32.xlu0 %v2539, 18
      %v4682 = vpop.permute.xlu0 %4681
      %4683 = vrot.lane.b32.xlu0 %v2522, 18
      %v4684 = vpop.permute.xlu0 %4683
      %4685 = vrot.lane.b32.xlu0 %v2528, 18
      %v4686 = vpop.permute.xlu0 %4685
      %4687 = vrot.lane.b32.xlu0 %v2534, 18
      %v4688 = vpop.permute.xlu0 %4687
      %4689 = vrot.lane.b32.xlu0 %v2540, 18
      %v4690 = vpop.permute.xlu0 %4689
      %v4691 = vsel %vm691, %v4676, %v4684
      %v4692 = vsel %vm691, %v4678, %v4686
      %v4693 = vsel %vm691, %v4680, %v4688
      %v4694 = vsel %vm691, %v4682, %v4690
      %v4695 = vsel %vm691, %v4668, %v4676
      %v4696 = vsel %vm691, %v4670, %v4678
      %v4697 = vsel %vm691, %v4672, %v4680
      %v4698 = vsel %vm691, %v4674, %v4682
      %v4699 = vsel %vm691, %v4660, %v4668
      %v4700 = vsel %vm691, %v4662, %v4670
      %v4701 = vsel %vm691, %v4664, %v4672
      %v4702 = vsel %vm691, %v4666, %v4674
      %v4703 = vsel %vm691, %v4652, %v4660
      %v4704 = vsel %vm691, %v4654, %v4662
      %v4705 = vsel %vm691, %v4656, %v4664
      %v4706 = vsel %vm691, %v4658, %v4666
      %v4707 = vsel %vm691, %v4644, %v4652
      %v4708 = vsel %vm691, %v4646, %v4654
      %v4709 = vsel %vm691, %v4648, %v4656
      %v4710 = vsel %vm691, %v4650, %v4658
      %v4711 = vsel %vm691, %v4684, %v4644
      %v4712 = vsel %vm691, %v4686, %v4646
      %v4713 = vsel %vm691, %v4688, %v4648
      %v4714 = vsel %vm691, %v4690, %v4650
      %v4715 = vpack.c.bf16 %v4712, %v4711
      %v4716 = vpack.c.bf16 %v4708, %v4707
      %v4717 = vpack.c.bf16 %v4704, %v4703
      %v4718 = vpack.c.bf16 %v4700, %v4699
      %v4719 = vpack.c.bf16 %v4696, %v4695
      %v4720 = vpack.c.bf16 %v4692, %v4691
      %v4721 = vpack.c.bf16 %v4714, %v4713
      %v4722 = vpack.c.bf16 %v4710, %v4709
      %v4723 = vpack.c.bf16 %v4706, %v4705
      %v4724 = vpack.c.bf16 %v4702, %v4701
      %v4725 = vpack.c.bf16 %v4698, %v4697
      %v4726 = vpack.c.bf16 %v4694, %v4693
      %v4739 = vunpack.c.l.b16 %v4715
      %v4740 = vunpack.c.l.b16 %v4716
      %v4741 = vunpack.c.l.b16 %v4717
      %v4742 = vunpack.c.l.b16 %v4718
      %v4743 = vunpack.c.l.b16 %v4719
      %v4744 = vunpack.c.l.b16 %v4720
      %v4745 = vunpack.c.h.b16 %v4715
      %v4746 = vunpack.c.h.b16 %v4716
      %v4747 = vunpack.c.h.b16 %v4717
      %v4748 = vunpack.c.h.b16 %v4718
      %v4749 = vunpack.c.h.b16 %v4719
      %v4750 = vunpack.c.h.b16 %v4720
      %v4751 = vunpack.c.l.b16 %v4721
      %v4752 = vunpack.c.l.b16 %v4722
      %v4753 = vunpack.c.l.b16 %v4723
      %v4754 = vunpack.c.l.b16 %v4724
      %v4755 = vunpack.c.l.b16 %v4725
      %v4756 = vunpack.c.l.b16 %v4726
      %v4757 = vunpack.c.h.b16 %v4721
      %v4758 = vunpack.c.h.b16 %v4722
      %v4759 = vunpack.c.h.b16 %v4723
      %v4760 = vunpack.c.h.b16 %v4724
      %v4761 = vunpack.c.h.b16 %v4725
      %v4762 = vunpack.c.h.b16 %v4726
      %v4763 = vpack.c.b16 %v4740, %v4739
      %v4764 = vpack.c.b16 %v4742, %v4741
      %v4765 = vpack.c.b16 %v4744, %v4743
      %v4766 = vpack.c.b16 %v4746, %v4745
      %v4767 = vpack.c.b16 %v4748, %v4747
      %v4768 = vpack.c.b16 %v4750, %v4749
      %v4769 = vpack.c.b16 %v4752, %v4751
      %v4770 = vpack.c.b16 %v4754, %v4753
      %v4771 = vpack.c.b16 %v4756, %v4755
      %v4772 = vpack.c.b16 %v4758, %v4757
      %v4773 = vpack.c.b16 %v4760, %v4759
      %v4774 = vpack.c.b16 %v4762, %v4761
      %4787 = vst [vmem:[#allocation2 + $0x60] sm:$0xff] %v4763
      %4788 = vst [vmem:[#allocation2 + $0x68] sm:$0xff] %v4764
      %4789 = vst [vmem:[#allocation2 + $0x70] sm:$0xff] %v4765
      %4790 = vst [vmem:[#allocation2 + $0x78] sm:$0xff] %v4766
      %4791 = vst [vmem:[#allocation2 + $0x80] sm:$0xff] %v4767
      %4792 = vst [vmem:[#allocation2 + $0x88] sm:$0xff] %v4768
      %4793 = vst [vmem:[#allocation2 + $0x90] sm:$0xff] %v4769
      %4794 = vst [vmem:[#allocation2 + $0x98] sm:$0xff] %v4770
      %4795 = vst [vmem:[#allocation2 + $0xa0] sm:$0xff] %v4771
      %4796 = vst [vmem:[#allocation2 + $0xa8] sm:$0xff] %v4772
      %4797 = vst [vmem:[#allocation2 + $0xb0] sm:$0xff] %v4773
      %4798 = vst [vmem:[#allocation2 + $0xb8] sm:$0xff] %v4774
      %4799 = vrot.lane.b32.xlu0 %v2517, 17
      %v4800 = vpop.permute.xlu0 %4799
      %4801 = vrot.lane.b32.xlu0 %v2523, 17
      %v4802 = vpop.permute.xlu0 %4801
      %4803 = vrot.lane.b32.xlu0 %v2529, 17
      %v4804 = vpop.permute.xlu0 %4803
      %4805 = vrot.lane.b32.xlu0 %v2535, 17
      %v4806 = vpop.permute.xlu0 %4805
      %4807 = vrot.lane.b32.xlu0 %v2518, 17
      %v4808 = vpop.permute.xlu0 %4807
      %4809 = vrot.lane.b32.xlu0 %v2524, 17
      %v4810 = vpop.permute.xlu0 %4809
      %4811 = vrot.lane.b32.xlu0 %v2530, 17
      %v4812 = vpop.permute.xlu0 %4811
      %4813 = vrot.lane.b32.xlu0 %v2536, 17
      %v4814 = vpop.permute.xlu0 %4813
      %4815 = vrot.lane.b32.xlu0 %v2519, 17
      %v4816 = vpop.permute.xlu0 %4815
      %4817 = vrot.lane.b32.xlu0 %v2525, 17
      %v4818 = vpop.permute.xlu0 %4817
      %4819 = vrot.lane.b32.xlu0 %v2531, 17
      %v4820 = vpop.permute.xlu0 %4819
      %4821 = vrot.lane.b32.xlu0 %v2537, 17
      %v4822 = vpop.permute.xlu0 %4821
      %4823 = vrot.lane.b32.xlu0 %v2520, 17
      %v4824 = vpop.permute.xlu0 %4823
      %4825 = vrot.lane.b32.xlu0 %v2526, 17
      %v4826 = vpop.permute.xlu0 %4825
      %4827 = vrot.lane.b32.xlu0 %v2532, 17
      %v4828 = vpop.permute.xlu0 %4827
      %4829 = vrot.lane.b32.xlu0 %v2538, 17
      %v4830 = vpop.permute.xlu0 %4829
      %4831 = vrot.lane.b32.xlu0 %v2521, 17
      %v4832 = vpop.permute.xlu0 %4831
      %4833 = vrot.lane.b32.xlu0 %v2527, 17
      %v4834 = vpop.permute.xlu0 %4833
      %4835 = vrot.lane.b32.xlu0 %v2533, 17
      %v4836 = vpop.permute.xlu0 %4835
      %4837 = vrot.lane.b32.xlu0 %v2539, 17
      %v4838 = vpop.permute.xlu0 %4837
      %4839 = vrot.lane.b32.xlu0 %v2522, 17
      %v4840 = vpop.permute.xlu0 %4839
      %4841 = vrot.lane.b32.xlu0 %v2528, 17
      %v4842 = vpop.permute.xlu0 %4841
      %4843 = vrot.lane.b32.xlu0 %v2534, 17
      %v4844 = vpop.permute.xlu0 %4843
      %4845 = vrot.lane.b32.xlu0 %v2540, 17
      %v4846 = vpop.permute.xlu0 %4845
      %v4847 = vsel %vm766, %v4832, %v4840
      %v4848 = vsel %vm766, %v4834, %v4842
      %v4849 = vsel %vm766, %v4836, %v4844
      %v4850 = vsel %vm766, %v4838, %v4846
      %v4851 = vsel %vm766, %v4824, %v4832
      %v4852 = vsel %vm766, %v4826, %v4834
      %v4853 = vsel %vm766, %v4828, %v4836
      %v4854 = vsel %vm766, %v4830, %v4838
      %v4855 = vsel %vm766, %v4816, %v4824
      %v4856 = vsel %vm766, %v4818, %v4826
      %v4857 = vsel %vm766, %v4820, %v4828
      %v4858 = vsel %vm766, %v4822, %v4830
      %v4859 = vsel %vm766, %v4808, %v4816
      %v4860 = vsel %vm766, %v4810, %v4818
      %v4861 = vsel %vm766, %v4812, %v4820
      %v4862 = vsel %vm766, %v4814, %v4822
      %v4863 = vsel %vm766, %v4800, %v4808
      %v4864 = vsel %vm766, %v4802, %v4810
      %v4865 = vsel %vm766, %v4804, %v4812
      %v4866 = vsel %vm766, %v4806, %v4814
      %v4867 = vsel %vm766, %v4840, %v4800
      %v4868 = vsel %vm766, %v4842, %v4802
      %v4869 = vsel %vm766, %v4844, %v4804
      %v4870 = vsel %vm766, %v4846, %v4806
      %v4871 = vpack.c.bf16 %v4868, %v4867
      %v4872 = vpack.c.bf16 %v4864, %v4863
      %v4873 = vpack.c.bf16 %v4860, %v4859
      %v4874 = vpack.c.bf16 %v4856, %v4855
      %v4875 = vpack.c.bf16 %v4852, %v4851
      %v4876 = vpack.c.bf16 %v4848, %v4847
      %v4877 = vpack.c.bf16 %v4870, %v4869
      %v4878 = vpack.c.bf16 %v4866, %v4865
      %v4879 = vpack.c.bf16 %v4862, %v4861
      %v4880 = vpack.c.bf16 %v4858, %v4857
      %v4881 = vpack.c.bf16 %v4854, %v4853
      %v4882 = vpack.c.bf16 %v4850, %v4849
      %v4895 = vunpack.c.l.b16 %v4871
      %v4896 = vunpack.c.l.b16 %v4872
      %v4897 = vunpack.c.l.b16 %v4873
      %v4898 = vunpack.c.l.b16 %v4874
      %v4899 = vunpack.c.l.b16 %v4875
      %v4900 = vunpack.c.l.b16 %v4876
      %v4901 = vunpack.c.h.b16 %v4871
      %v4902 = vunpack.c.h.b16 %v4872
      %v4903 = vunpack.c.h.b16 %v4873
      %v4904 = vunpack.c.h.b16 %v4874
      %v4905 = vunpack.c.h.b16 %v4875
      %v4906 = vunpack.c.h.b16 %v4876
      %v4907 = vunpack.c.l.b16 %v4877
      %v4908 = vunpack.c.l.b16 %v4878
      %v4909 = vunpack.c.l.b16 %v4879
      %v4910 = vunpack.c.l.b16 %v4880
      %v4911 = vunpack.c.l.b16 %v4881
      %v4912 = vunpack.c.l.b16 %v4882
      %v4913 = vunpack.c.h.b16 %v4877
      %v4914 = vunpack.c.h.b16 %v4878
      %v4915 = vunpack.c.h.b16 %v4879
      %v4916 = vunpack.c.h.b16 %v4880
      %v4917 = vunpack.c.h.b16 %v4881
      %v4918 = vunpack.c.h.b16 %v4882
      %v4919 = vpack.c.b16 %v4896, %v4895
      %v4920 = vpack.c.b16 %v4898, %v4897
      %v4921 = vpack.c.b16 %v4900, %v4899
      %v4922 = vpack.c.b16 %v4902, %v4901
      %v4923 = vpack.c.b16 %v4904, %v4903
      %v4924 = vpack.c.b16 %v4906, %v4905
      %v4925 = vpack.c.b16 %v4908, %v4907
      %v4926 = vpack.c.b16 %v4910, %v4909
      %v4927 = vpack.c.b16 %v4912, %v4911
      %v4928 = vpack.c.b16 %v4914, %v4913
      %v4929 = vpack.c.b16 %v4916, %v4915
      %v4930 = vpack.c.b16 %v4918, %v4917
      %4943 = vst [vmem:[#allocation2 + $0xc0] sm:$0xff] %v4919
      %4944 = vst [vmem:[#allocation2 + $0xc8] sm:$0xff] %v4920
      %4945 = vst [vmem:[#allocation2 + $0xd0] sm:$0xff] %v4921
      %4946 = vst [vmem:[#allocation2 + $0xd8] sm:$0xff] %v4922
      %4947 = vst [vmem:[#allocation2 + $0xe0] sm:$0xff] %v4923
      %4948 = vst [vmem:[#allocation2 + $0xe8] sm:$0xff] %v4924
      %4949 = vst [vmem:[#allocation2 + $0xf0] sm:$0xff] %v4925
      %4950 = vst [vmem:[#allocation2 + $0xf8] sm:$0xff] %v4926
      %4951 = vst [vmem:[#allocation2 + $0x100] sm:$0xff] %v4927
      %4952 = vst [vmem:[#allocation2 + $0x108] sm:$0xff] %v4928
      %4953 = vst [vmem:[#allocation2 + $0x110] sm:$0xff] %v4929
      %4954 = vst [vmem:[#allocation2 + $0x118] sm:$0xff] %v4930
      %4955 = vrot.lane.b32.xlu0 %v2517, 1
      %v4956 = vpop.permute.xlu0 %4955
      %4957 = vrot.lane.b32.xlu0 %v2523, 1
      %v4958 = vpop.permute.xlu0 %4957
      %4959 = vrot.lane.b32.xlu0 %v2529, 1
      %v4960 = vpop.permute.xlu0 %4959
      %4961 = vrot.lane.b32.xlu0 %v2535, 1
      %v4962 = vpop.permute.xlu0 %4961
      %4963 = vrot.lane.b32.xlu0 %v2518, 1
      %v4964 = vpop.permute.xlu0 %4963
      %4965 = vrot.lane.b32.xlu0 %v2524, 1
      %v4966 = vpop.permute.xlu0 %4965
      %4967 = vrot.lane.b32.xlu0 %v2530, 1
      %v4968 = vpop.permute.xlu0 %4967
      %4969 = vrot.lane.b32.xlu0 %v2536, 1
      %v4970 = vpop.permute.xlu0 %4969
      %4971 = vrot.lane.b32.xlu0 %v2519, 1
      %v4972 = vpop.permute.xlu0 %4971
      %4973 = vrot.lane.b32.xlu0 %v2525, 1
      %v4974 = vpop.permute.xlu0 %4973
      %4975 = vrot.lane.b32.xlu0 %v2531, 1
      %v4976 = vpop.permute.xlu0 %4975
      %4977 = vrot.lane.b32.xlu0 %v2537, 1
      %v4978 = vpop.permute.xlu0 %4977
      %4979 = vrot.lane.b32.xlu0 %v2520, 1
      %v4980 = vpop.permute.xlu0 %4979
      %4981 = vrot.lane.b32.xlu0 %v2526, 1
      %v4982 = vpop.permute.xlu0 %4981
      %4983 = vrot.lane.b32.xlu0 %v2532, 1
      %v4984 = vpop.permute.xlu0 %4983
      %4985 = vrot.lane.b32.xlu0 %v2538, 1
      %v4986 = vpop.permute.xlu0 %4985
      %4987 = vrot.lane.b32.xlu0 %v2521, 1
      %v4988 = vpop.permute.xlu0 %4987
      %4989 = vrot.lane.b32.xlu0 %v2527, 1
      %v4990 = vpop.permute.xlu0 %4989
      %4991 = vrot.lane.b32.xlu0 %v2533, 1
      %v4992 = vpop.permute.xlu0 %4991
      %4993 = vrot.lane.b32.xlu0 %v2539, 1
      %v4994 = vpop.permute.xlu0 %4993
      %4995 = vrot.lane.b32.xlu0 %v2522, 1
      %v4996 = vpop.permute.xlu0 %4995
      %4997 = vrot.lane.b32.xlu0 %v2528, 1
      %v4998 = vpop.permute.xlu0 %4997
      %4999 = vrot.lane.b32.xlu0 %v2534, 1
      %v5000 = vpop.permute.xlu0 %4999
      %5001 = vrot.lane.b32.xlu0 %v2540, 1
      %v5002 = vpop.permute.xlu0 %5001
      %v5003 = vsel %vm841, %v4988, %v4996
      %v5004 = vsel %vm841, %v4990, %v4998
      %v5005 = vsel %vm841, %v4992, %v5000
      %v5006 = vsel %vm841, %v4994, %v5002
      %v5007 = vsel %vm841, %v4980, %v4988
      %v5008 = vsel %vm841, %v4982, %v4990
      %v5009 = vsel %vm841, %v4984, %v4992
      %v5010 = vsel %vm841, %v4986, %v4994
      %v5011 = vsel %vm841, %v4972, %v4980
      %v5012 = vsel %vm841, %v4974, %v4982
      %v5013 = vsel %vm841, %v4976, %v4984
      %v5014 = vsel %vm841, %v4978, %v4986
      %v5015 = vsel %vm841, %v4964, %v4972
      %v5016 = vsel %vm841, %v4966, %v4974
      %v5017 = vsel %vm841, %v4968, %v4976
      %v5018 = vsel %vm841, %v4970, %v4978
      %v5019 = vsel %vm841, %v4956, %v4964
      %v5020 = vsel %vm841, %v4958, %v4966
      %v5021 = vsel %vm841, %v4960, %v4968
      %v5022 = vsel %vm841, %v4962, %v4970
      %v5023 = vsel %vm841, %v4996, %v4956
      %v5024 = vsel %vm841, %v4998, %v4958
      %v5025 = vsel %vm841, %v5000, %v4960
      %v5026 = vsel %vm841, %v5002, %v4962
      %v5027 = vpack.c.bf16 %v5024, %v5023
      %v5028 = vpack.c.bf16 %v5020, %v5019
      %v5029 = vpack.c.bf16 %v5016, %v5015
      %v5030 = vpack.c.bf16 %v5012, %v5011
      %v5031 = vpack.c.bf16 %v5008, %v5007
      %v5032 = vpack.c.bf16 %v5004, %v5003
      %v5033 = vpack.c.bf16 %v5026, %v5025
      %v5034 = vpack.c.bf16 %v5022, %v5021
      %v5035 = vpack.c.bf16 %v5018, %v5017
      %v5036 = vpack.c.bf16 %v5014, %v5013
      %v5037 = vpack.c.bf16 %v5010, %v5009
      %v5038 = vpack.c.bf16 %v5006, %v5005
      %v5051 = vunpack.c.l.b16 %v5027
      %v5052 = vunpack.c.l.b16 %v5028
      %v5053 = vunpack.c.l.b16 %v5029
      %v5054 = vunpack.c.l.b16 %v5030
      %v5055 = vunpack.c.l.b16 %v5031
      %v5056 = vunpack.c.l.b16 %v5032
      %v5057 = vunpack.c.h.b16 %v5027
      %v5058 = vunpack.c.h.b16 %v5028
      %v5059 = vunpack.c.h.b16 %v5029
      %v5060 = vunpack.c.h.b16 %v5030
      %v5061 = vunpack.c.h.b16 %v5031
      %v5062 = vunpack.c.h.b16 %v5032
      %v5063 = vunpack.c.l.b16 %v5033
      %v5064 = vunpack.c.l.b16 %v5034
      %v5065 = vunpack.c.l.b16 %v5035
      %v5066 = vunpack.c.l.b16 %v5036
      %v5067 = vunpack.c.l.b16 %v5037
      %v5068 = vunpack.c.l.b16 %v5038
      %v5069 = vunpack.c.h.b16 %v5033
      %v5070 = vunpack.c.h.b16 %v5034
      %v5071 = vunpack.c.h.b16 %v5035
      %v5072 = vunpack.c.h.b16 %v5036
      %v5073 = vunpack.c.h.b16 %v5037
      %v5074 = vunpack.c.h.b16 %v5038
      %v5075 = vpack.c.b16 %v5052, %v5051
      %v5076 = vpack.c.b16 %v5054, %v5053
      %v5077 = vpack.c.b16 %v5056, %v5055
      %v5078 = vpack.c.b16 %v5058, %v5057
      %v5079 = vpack.c.b16 %v5060, %v5059
      %v5080 = vpack.c.b16 %v5062, %v5061
      %v5081 = vpack.c.b16 %v5064, %v5063
      %v5082 = vpack.c.b16 %v5066, %v5065
      %v5083 = vpack.c.b16 %v5068, %v5067
      %v5084 = vpack.c.b16 %v5070, %v5069
      %v5085 = vpack.c.b16 %v5072, %v5071
      %v5086 = vpack.c.b16 %v5074, %v5073
      %5099 = vst [vmem:[#allocation2 + $0x120] sm:$0xff] %v5075
      %5100 = vst [vmem:[#allocation2 + $0x128] sm:$0xff] %v5076
      %5101 = vst [vmem:[#allocation2 + $0x130] sm:$0xff] %v5077
      %5102 = vst [vmem:[#allocation2 + $0x138] sm:$0xff] %v5078
      %5103 = vst [vmem:[#allocation2 + $0x140] sm:$0xff] %v5079
      %5104 = vst [vmem:[#allocation2 + $0x148] sm:$0xff] %v5080
      %5105 = vst [vmem:[#allocation2 + $0x150] sm:$0xff] %v5081
      %5106 = vst [vmem:[#allocation2 + $0x158] sm:$0xff] %v5082
      %5107 = vst [vmem:[#allocation2 + $0x160] sm:$0xff] %v5083
      %5108 = vst [vmem:[#allocation2 + $0x168] sm:$0xff] %v5084
      %5109 = vst [vmem:[#allocation2 + $0x170] sm:$0xff] %v5085
      %5110 = vst [vmem:[#allocation2 + $0x178] sm:$0xff] %v5086
      %v5111 = vpack.c.bf16 %v2523, %v2517
      %v5112 = vpack.c.bf16 %v2524, %v2518
      %v5113 = vpack.c.bf16 %v2525, %v2519
      %v5114 = vpack.c.bf16 %v2526, %v2520
      %v5115 = vpack.c.bf16 %v2527, %v2521
      %v5116 = vpack.c.bf16 %v2528, %v2522
      %v5117 = vpack.c.bf16 %v2535, %v2529
      %v5118 = vpack.c.bf16 %v2536, %v2530
      %v5119 = vpack.c.bf16 %v2537, %v2531
      %v5120 = vpack.c.bf16 %v2538, %v2532
      %v5121 = vpack.c.bf16 %v2539, %v2533
      %v5122 = vpack.c.bf16 %v2540, %v2534
      %v5135 = vunpack.c.l.b16 %v5111
      %v5136 = vunpack.c.l.b16 %v5112
      %v5137 = vunpack.c.l.b16 %v5113
      %v5138 = vunpack.c.l.b16 %v5114
      %v5139 = vunpack.c.l.b16 %v5115
      %v5140 = vunpack.c.l.b16 %v5116
      %v5141 = vunpack.c.h.b16 %v5111
      %v5142 = vunpack.c.h.b16 %v5112
      %v5143 = vunpack.c.h.b16 %v5113
      %v5144 = vunpack.c.h.b16 %v5114
      %v5145 = vunpack.c.h.b16 %v5115
      %v5146 = vunpack.c.h.b16 %v5116
      %v5147 = vunpack.c.l.b16 %v5117
      %v5148 = vunpack.c.l.b16 %v5118
      %v5149 = vunpack.c.l.b16 %v5119
      %v5150 = vunpack.c.l.b16 %v5120
      %v5151 = vunpack.c.l.b16 %v5121
      %v5152 = vunpack.c.l.b16 %v5122
      %v5153 = vunpack.c.h.b16 %v5117
      %v5154 = vunpack.c.h.b16 %v5118
      %v5155 = vunpack.c.h.b16 %v5119
      %v5156 = vunpack.c.h.b16 %v5120
      %v5157 = vunpack.c.h.b16 %v5121
      %v5158 = vunpack.c.h.b16 %v5122
      %v5159 = vpack.c.b16 %v5136, %v5135
      %v5160 = vpack.c.b16 %v5138, %v5137
      %v5161 = vpack.c.b16 %v5140, %v5139
      %v5162 = vpack.c.b16 %v5142, %v5141
      %v5163 = vpack.c.b16 %v5144, %v5143
      %v5164 = vpack.c.b16 %v5146, %v5145
      %v5165 = vpack.c.b16 %v5148, %v5147
      %v5166 = vpack.c.b16 %v5150, %v5149
      %v5167 = vpack.c.b16 %v5152, %v5151
      %v5168 = vpack.c.b16 %v5154, %v5153
      %v5169 = vpack.c.b16 %v5156, %v5155
      %v5170 = vpack.c.b16 %v5158, %v5157
      %5183 = vst [vmem:[#allocation2 + $0x180] sm:$0xff] %v5159
      %5184 = vst [vmem:[#allocation2 + $0x188] sm:$0xff] %v5160
      %5185 = vst [vmem:[#allocation2 + $0x190] sm:$0xff] %v5161
      %5186 = vst [vmem:[#allocation2 + $0x198] sm:$0xff] %v5162
      %5187 = vst [vmem:[#allocation2 + $0x1a0] sm:$0xff] %v5163
      %5188 = vst [vmem:[#allocation2 + $0x1a8] sm:$0xff] %v5164
      %5189 = vst [vmem:[#allocation2 + $0x1b0] sm:$0xff] %v5165
      %5190 = vst [vmem:[#allocation2 + $0x1b8] sm:$0xff] %v5166
      %5191 = vst [vmem:[#allocation2 + $0x1c0] sm:$0xff] %v5167
      %5192 = vst [vmem:[#allocation2 + $0x1c8] sm:$0xff] %v5168
      %5193 = vst [vmem:[#allocation2 + $0x1d0] sm:$0xff] %v5169
      %5194 = vst [vmem:[#allocation2 + $0x1d8] sm:$0xff] %v5170
      %5195 = vrot.lane.b32.xlu0 %v2517, 127
      %v5196 = vpop.permute.xlu0 %5195
      %5197 = vrot.lane.b32.xlu0 %v2523, 127
      %v5198 = vpop.permute.xlu0 %5197
      %5199 = vrot.lane.b32.xlu0 %v2529, 127
      %v5200 = vpop.permute.xlu0 %5199
      %5201 = vrot.lane.b32.xlu0 %v2535, 127
      %v5202 = vpop.permute.xlu0 %5201
      %5203 = vrot.lane.b32.xlu0 %v2518, 127
      %v5204 = vpop.permute.xlu0 %5203
      %5205 = vrot.lane.b32.xlu0 %v2524, 127
      %v5206 = vpop.permute.xlu0 %5205
      %5207 = vrot.lane.b32.xlu0 %v2530, 127
      %v5208 = vpop.permute.xlu0 %5207
      %5209 = vrot.lane.b32.xlu0 %v2536, 127
      %v5210 = vpop.permute.xlu0 %5209
      %5211 = vrot.lane.b32.xlu0 %v2519, 127
      %v5212 = vpop.permute.xlu0 %5211
      %5213 = vrot.lane.b32.xlu0 %v2525, 127
      %v5214 = vpop.permute.xlu0 %5213
      %5215 = vrot.lane.b32.xlu0 %v2531, 127
      %v5216 = vpop.permute.xlu0 %5215
      %5217 = vrot.lane.b32.xlu0 %v2537, 127
      %v5218 = vpop.permute.xlu0 %5217
      %5219 = vrot.lane.b32.xlu0 %v2520, 127
      %v5220 = vpop.permute.xlu0 %5219
      %5221 = vrot.lane.b32.xlu0 %v2526, 127
      %v5222 = vpop.permute.xlu0 %5221
      %5223 = vrot.lane.b32.xlu0 %v2532, 127
      %v5224 = vpop.permute.xlu0 %5223
      %5225 = vrot.lane.b32.xlu0 %v2538, 127
      %v5226 = vpop.permute.xlu0 %5225
      %5227 = vrot.lane.b32.xlu0 %v2521, 127
      %v5228 = vpop.permute.xlu0 %5227
      %5229 = vrot.lane.b32.xlu0 %v2527, 127
      %v5230 = vpop.permute.xlu0 %5229
      %5231 = vrot.lane.b32.xlu0 %v2533, 127
      %v5232 = vpop.permute.xlu0 %5231
      %5233 = vrot.lane.b32.xlu0 %v2539, 127
      %v5234 = vpop.permute.xlu0 %5233
      %5235 = vrot.lane.b32.xlu0 %v2522, 127
      %v5236 = vpop.permute.xlu0 %5235
      %5237 = vrot.lane.b32.xlu0 %v2528, 127
      %v5238 = vpop.permute.xlu0 %5237
      %5239 = vrot.lane.b32.xlu0 %v2534, 127
      %v5240 = vpop.permute.xlu0 %5239
      %5241 = vrot.lane.b32.xlu0 %v2540, 127
      %v5242 = vpop.permute.xlu0 %5241
      %v5243 = vsel %vm948, %v5228, %v5236
      %v5244 = vsel %vm948, %v5230, %v5238
      %v5245 = vsel %vm948, %v5232, %v5240
      %v5246 = vsel %vm948, %v5234, %v5242
      %v5247 = vsel %vm948, %v5220, %v5228
      %v5248 = vsel %vm948, %v5222, %v5230
      %v5249 = vsel %vm948, %v5224, %v5232
      %v5250 = vsel %vm948, %v5226, %v5234
      %v5251 = vsel %vm948, %v5212, %v5220
      %v5252 = vsel %vm948, %v5214, %v5222
      %v5253 = vsel %vm948, %v5216, %v5224
      %v5254 = vsel %vm948, %v5218, %v5226
      %v5255 = vsel %vm948, %v5204, %v5212
      %v5256 = vsel %vm948, %v5206, %v5214
      %v5257 = vsel %vm948, %v5208, %v5216
      %v5258 = vsel %vm948, %v5210, %v5218
      %v5259 = vsel %vm948, %v5196, %v5204
      %v5260 = vsel %vm948, %v5198, %v5206
      %v5261 = vsel %vm948, %v5200, %v5208
      %v5262 = vsel %vm948, %v5202, %v5210
      %v5263 = vsel %vm948, %v5236, %v5196
      %v5264 = vsel %vm948, %v5238, %v5198
      %v5265 = vsel %vm948, %v5240, %v5200
      %v5266 = vsel %vm948, %v5242, %v5202
      %v5267 = vpack.c.bf16 %v5260, %v5259
      %v5268 = vpack.c.bf16 %v5256, %v5255
      %v5269 = vpack.c.bf16 %v5252, %v5251
      %v5270 = vpack.c.bf16 %v5248, %v5247
      %v5271 = vpack.c.bf16 %v5244, %v5243
      %v5272 = vpack.c.bf16 %v5264, %v5263
      %v5273 = vpack.c.bf16 %v5262, %v5261
      %v5274 = vpack.c.bf16 %v5258, %v5257
      %v5275 = vpack.c.bf16 %v5254, %v5253
      %v5276 = vpack.c.bf16 %v5250, %v5249
      %v5277 = vpack.c.bf16 %v5246, %v5245
      %v5278 = vpack.c.bf16 %v5266, %v5265
      %v5291 = vunpack.c.l.b16 %v5267
      %v5292 = vunpack.c.l.b16 %v5268
      %v5293 = vunpack.c.l.b16 %v5269
      %v5294 = vunpack.c.l.b16 %v5270
      %v5295 = vunpack.c.l.b16 %v5271
      %v5296 = vunpack.c.l.b16 %v5272
      %v5297 = vunpack.c.h.b16 %v5267
      %v5298 = vunpack.c.h.b16 %v5268
      %v5299 = vunpack.c.h.b16 %v5269
      %v5300 = vunpack.c.h.b16 %v5270
      %v5301 = vunpack.c.h.b16 %v5271
      %v5302 = vunpack.c.h.b16 %v5272
      %v5303 = vunpack.c.l.b16 %v5273
      %v5304 = vunpack.c.l.b16 %v5274
      %v5305 = vunpack.c.l.b16 %v5275
      %v5306 = vunpack.c.l.b16 %v5276
      %v5307 = vunpack.c.l.b16 %v5277
      %v5308 = vunpack.c.l.b16 %v5278
      %v5309 = vunpack.c.h.b16 %v5273
      %v5310 = vunpack.c.h.b16 %v5274
      %v5311 = vunpack.c.h.b16 %v5275
      %v5312 = vunpack.c.h.b16 %v5276
      %v5313 = vunpack.c.h.b16 %v5277
      %v5314 = vunpack.c.h.b16 %v5278
      %v5315 = vpack.c.b16 %v5292, %v5291
      %v5316 = vpack.c.b16 %v5294, %v5293
      %v5317 = vpack.c.b16 %v5296, %v5295
      %v5318 = vpack.c.b16 %v5298, %v5297
      %v5319 = vpack.c.b16 %v5300, %v5299
      %v5320 = vpack.c.b16 %v5302, %v5301
      %v5321 = vpack.c.b16 %v5304, %v5303
      %v5322 = vpack.c.b16 %v5306, %v5305
      %v5323 = vpack.c.b16 %v5308, %v5307
      %v5324 = vpack.c.b16 %v5310, %v5309
      %v5325 = vpack.c.b16 %v5312, %v5311
      %v5326 = vpack.c.b16 %v5314, %v5313
      %5339 = vst [vmem:[#allocation2 + $0x1e0] sm:$0xff] %v5315
      %5340 = vst [vmem:[#allocation2 + $0x1e8] sm:$0xff] %v5316
      %5341 = vst [vmem:[#allocation2 + $0x1f0] sm:$0xff] %v5317
      %5342 = vst [vmem:[#allocation2 + $0x1f8] sm:$0xff] %v5318
      %5343 = vst [vmem:[#allocation2 + $0x200] sm:$0xff] %v5319
      %5344 = vst [vmem:[#allocation2 + $0x208] sm:$0xff] %v5320
      %5345 = vst [vmem:[#allocation2 + $0x210] sm:$0xff] %v5321
      %5346 = vst [vmem:[#allocation2 + $0x218] sm:$0xff] %v5322
      %5347 = vst [vmem:[#allocation2 + $0x220] sm:$0xff] %v5323
      %5348 = vst [vmem:[#allocation2 + $0x228] sm:$0xff] %v5324
      %5349 = vst [vmem:[#allocation2 + $0x230] sm:$0xff] %v5325
      %5350 = vst [vmem:[#allocation2 + $0x238] sm:$0xff] %v5326
      %5351 = vrot.lane.b32.xlu0 %v2517, 111
      %v5352 = vpop.permute.xlu0 %5351
      %5353 = vrot.lane.b32.xlu0 %v2523, 111
      %v5354 = vpop.permute.xlu0 %5353
      %5355 = vrot.lane.b32.xlu0 %v2529, 111
      %v5356 = vpop.permute.xlu0 %5355
      %5357 = vrot.lane.b32.xlu0 %v2535, 111
      %v5358 = vpop.permute.xlu0 %5357
      %5359 = vrot.lane.b32.xlu0 %v2518, 111
      %v5360 = vpop.permute.xlu0 %5359
      %5361 = vrot.lane.b32.xlu0 %v2524, 111
      %v5362 = vpop.permute.xlu0 %5361
      %5363 = vrot.lane.b32.xlu0 %v2530, 111
      %v5364 = vpop.permute.xlu0 %5363
      %5365 = vrot.lane.b32.xlu0 %v2536, 111
      %v5366 = vpop.permute.xlu0 %5365
      %5367 = vrot.lane.b32.xlu0 %v2519, 111
      %v5368 = vpop.permute.xlu0 %5367
      %5369 = vrot.lane.b32.xlu0 %v2525, 111
      %v5370 = vpop.permute.xlu0 %5369
      %5371 = vrot.lane.b32.xlu0 %v2531, 111
      %v5372 = vpop.permute.xlu0 %5371
      %5373 = vrot.lane.b32.xlu0 %v2537, 111
      %v5374 = vpop.permute.xlu0 %5373
      %5375 = vrot.lane.b32.xlu0 %v2520, 111
      %v5376 = vpop.permute.xlu0 %5375
      %5377 = vrot.lane.b32.xlu0 %v2526, 111
      %v5378 = vpop.permute.xlu0 %5377
      %5379 = vrot.lane.b32.xlu0 %v2532, 111
      %v5380 = vpop.permute.xlu0 %5379
      %5381 = vrot.lane.b32.xlu0 %v2538, 111
      %v5382 = vpop.permute.xlu0 %5381
      %5383 = vrot.lane.b32.xlu0 %v2521, 111
      %v5384 = vpop.permute.xlu0 %5383
      %5385 = vrot.lane.b32.xlu0 %v2527, 111
      %v5386 = vpop.permute.xlu0 %5385
      %5387 = vrot.lane.b32.xlu0 %v2533, 111
      %v5388 = vpop.permute.xlu0 %5387
      %5389 = vrot.lane.b32.xlu0 %v2539, 111
      %v5390 = vpop.permute.xlu0 %5389
      %5391 = vrot.lane.b32.xlu0 %v2522, 111
      %v5392 = vpop.permute.xlu0 %5391
      %5393 = vrot.lane.b32.xlu0 %v2528, 111
      %v5394 = vpop.permute.xlu0 %5393
      %5395 = vrot.lane.b32.xlu0 %v2534, 111
      %v5396 = vpop.permute.xlu0 %5395
      %5397 = vrot.lane.b32.xlu0 %v2540, 111
      %v5398 = vpop.permute.xlu0 %5397
      %v5399 = vsel %vm1023, %v5384, %v5392
      %v5400 = vsel %vm1023, %v5386, %v5394
      %v5401 = vsel %vm1023, %v5388, %v5396
      %v5402 = vsel %vm1023, %v5390, %v5398
      %v5403 = vsel %vm1023, %v5376, %v5384
      %v5404 = vsel %vm1023, %v5378, %v5386
      %v5405 = vsel %vm1023, %v5380, %v5388
      %v5406 = vsel %vm1023, %v5382, %v5390
      %v5407 = vsel %vm1023, %v5368, %v5376
      %v5408 = vsel %vm1023, %v5370, %v5378
      %v5409 = vsel %vm1023, %v5372, %v5380
      %v5410 = vsel %vm1023, %v5374, %v5382
      %v5411 = vsel %vm1023, %v5360, %v5368
      %v5412 = vsel %vm1023, %v5362, %v5370
      %v5413 = vsel %vm1023, %v5364, %v5372
      %v5414 = vsel %vm1023, %v5366, %v5374
      %v5415 = vsel %vm1023, %v5352, %v5360
      %v5416 = vsel %vm1023, %v5354, %v5362
      %v5417 = vsel %vm1023, %v5356, %v5364
      %v5418 = vsel %vm1023, %v5358, %v5366
      %v5419 = vsel %vm1023, %v5392, %v5352
      %v5420 = vsel %vm1023, %v5394, %v5354
      %v5421 = vsel %vm1023, %v5396, %v5356
      %v5422 = vsel %vm1023, %v5398, %v5358
      %v5423 = vpack.c.bf16 %v5416, %v5415
      %v5424 = vpack.c.bf16 %v5412, %v5411
      %v5425 = vpack.c.bf16 %v5408, %v5407
      %v5426 = vpack.c.bf16 %v5404, %v5403
      %v5427 = vpack.c.bf16 %v5400, %v5399
      %v5428 = vpack.c.bf16 %v5420, %v5419
      %v5429 = vpack.c.bf16 %v5418, %v5417
      %v5430 = vpack.c.bf16 %v5414, %v5413
      %v5431 = vpack.c.bf16 %v5410, %v5409
      %v5432 = vpack.c.bf16 %v5406, %v5405
      %v5433 = vpack.c.bf16 %v5402, %v5401
      %v5434 = vpack.c.bf16 %v5422, %v5421
      %v5447 = vunpack.c.l.b16 %v5423
      %v5448 = vunpack.c.l.b16 %v5424
      %v5449 = vunpack.c.l.b16 %v5425
      %v5450 = vunpack.c.l.b16 %v5426
      %v5451 = vunpack.c.l.b16 %v5427
      %v5452 = vunpack.c.l.b16 %v5428
      %v5453 = vunpack.c.h.b16 %v5423
      %v5454 = vunpack.c.h.b16 %v5424
      %v5455 = vunpack.c.h.b16 %v5425
      %v5456 = vunpack.c.h.b16 %v5426
      %v5457 = vunpack.c.h.b16 %v5427
      %v5458 = vunpack.c.h.b16 %v5428
      %v5459 = vunpack.c.l.b16 %v5429
      %v5460 = vunpack.c.l.b16 %v5430
      %v5461 = vunpack.c.l.b16 %v5431
      %v5462 = vunpack.c.l.b16 %v5432
      %v5463 = vunpack.c.l.b16 %v5433
      %v5464 = vunpack.c.l.b16 %v5434
      %v5465 = vunpack.c.h.b16 %v5429
      %v5466 = vunpack.c.h.b16 %v5430
      %v5467 = vunpack.c.h.b16 %v5431
      %v5468 = vunpack.c.h.b16 %v5432
      %v5469 = vunpack.c.h.b16 %v5433
      %v5470 = vunpack.c.h.b16 %v5434
      %v5471 = vpack.c.b16 %v5448, %v5447
      %v5472 = vpack.c.b16 %v5450, %v5449
      %v5473 = vpack.c.b16 %v5452, %v5451
      %v5474 = vpack.c.b16 %v5454, %v5453
      %v5475 = vpack.c.b16 %v5456, %v5455
      %v5476 = vpack.c.b16 %v5458, %v5457
      %v5477 = vpack.c.b16 %v5460, %v5459
      %v5478 = vpack.c.b16 %v5462, %v5461
      %v5479 = vpack.c.b16 %v5464, %v5463
      %v5480 = vpack.c.b16 %v5466, %v5465
      %v5481 = vpack.c.b16 %v5468, %v5467
      %v5482 = vpack.c.b16 %v5470, %v5469
      %5495 = vst [vmem:[#allocation2 + $0x240] sm:$0xff] %v5471
      %5496 = vst [vmem:[#allocation2 + $0x248] sm:$0xff] %v5472
      %5497 = vst [vmem:[#allocation2 + $0x250] sm:$0xff] %v5473
      %5498 = vst [vmem:[#allocation2 + $0x258] sm:$0xff] %v5474
      %5499 = vst [vmem:[#allocation2 + $0x260] sm:$0xff] %v5475
      %5500 = vst [vmem:[#allocation2 + $0x268] sm:$0xff] %v5476
      %5501 = vst [vmem:[#allocation2 + $0x270] sm:$0xff] %v5477
      %5502 = vst [vmem:[#allocation2 + $0x278] sm:$0xff] %v5478
      %5503 = vst [vmem:[#allocation2 + $0x280] sm:$0xff] %v5479
      %5504 = vst [vmem:[#allocation2 + $0x288] sm:$0xff] %v5480
      %5505 = vst [vmem:[#allocation2 + $0x290] sm:$0xff] %v5481
      %5506 = vst [vmem:[#allocation2 + $0x298] sm:$0xff] %v5482
      %5507 = vrot.lane.b32.xlu0 %v2517, 110
      %v5508 = vpop.permute.xlu0 %5507
      %5509 = vrot.lane.b32.xlu0 %v2523, 110
      %v5510 = vpop.permute.xlu0 %5509
      %5511 = vrot.lane.b32.xlu0 %v2529, 110
      %v5512 = vpop.permute.xlu0 %5511
      %5513 = vrot.lane.b32.xlu0 %v2535, 110
      %v5514 = vpop.permute.xlu0 %5513
      %5515 = vrot.lane.b32.xlu0 %v2518, 110
      %v5516 = vpop.permute.xlu0 %5515
      %5517 = vrot.lane.b32.xlu0 %v2524, 110
      %v5518 = vpop.permute.xlu0 %5517
      %5519 = vrot.lane.b32.xlu0 %v2530, 110
      %v5520 = vpop.permute.xlu0 %5519
      %5521 = vrot.lane.b32.xlu0 %v2536, 110
      %v5522 = vpop.permute.xlu0 %5521
      %5523 = vrot.lane.b32.xlu0 %v2519, 110
      %v5524 = vpop.permute.xlu0 %5523
      %5525 = vrot.lane.b32.xlu0 %v2525, 110
      %v5526 = vpop.permute.xlu0 %5525
      %5527 = vrot.lane.b32.xlu0 %v2531, 110
      %v5528 = vpop.permute.xlu0 %5527
      %5529 = vrot.lane.b32.xlu0 %v2537, 110
      %v5530 = vpop.permute.xlu0 %5529
      %5531 = vrot.lane.b32.xlu0 %v2520, 110
      %v5532 = vpop.permute.xlu0 %5531
      %5533 = vrot.lane.b32.xlu0 %v2526, 110
      %v5534 = vpop.permute.xlu0 %5533
      %5535 = vrot.lane.b32.xlu0 %v2532, 110
      %v5536 = vpop.permute.xlu0 %5535
      %5537 = vrot.lane.b32.xlu0 %v2538, 110
      %v5538 = vpop.permute.xlu0 %5537
      %5539 = vrot.lane.b32.xlu0 %v2521, 110
      %v5540 = vpop.permute.xlu0 %5539
      %5541 = vrot.lane.b32.xlu0 %v2527, 110
      %v5542 = vpop.permute.xlu0 %5541
      %5543 = vrot.lane.b32.xlu0 %v2533, 110
      %v5544 = vpop.permute.xlu0 %5543
      %5545 = vrot.lane.b32.xlu0 %v2539, 110
      %v5546 = vpop.permute.xlu0 %5545
      %5547 = vrot.lane.b32.xlu0 %v2522, 110
      %v5548 = vpop.permute.xlu0 %5547
      %5549 = vrot.lane.b32.xlu0 %v2528, 110
      %v5550 = vpop.permute.xlu0 %5549
      %5551 = vrot.lane.b32.xlu0 %v2534, 110
      %v5552 = vpop.permute.xlu0 %5551
      %5553 = vrot.lane.b32.xlu0 %v2540, 110
      %v5554 = vpop.permute.xlu0 %5553
      %v5555 = vsel %vm1098, %v5540, %v5548
      %v5556 = vsel %vm1098, %v5542, %v5550
      %v5557 = vsel %vm1098, %v5544, %v5552
      %v5558 = vsel %vm1098, %v5546, %v5554
      %v5559 = vsel %vm1098, %v5532, %v5540
      %v5560 = vsel %vm1098, %v5534, %v5542
      %v5561 = vsel %vm1098, %v5536, %v5544
      %v5562 = vsel %vm1098, %v5538, %v5546
      %v5563 = vsel %vm1098, %v5524, %v5532
      %v5564 = vsel %vm1098, %v5526, %v5534
      %v5565 = vsel %vm1098, %v5528, %v5536
      %v5566 = vsel %vm1098, %v5530, %v5538
      %v5567 = vsel %vm1098, %v5516, %v5524
      %v5568 = vsel %vm1098, %v5518, %v5526
      %v5569 = vsel %vm1098, %v5520, %v5528
      %v5570 = vsel %vm1098, %v5522, %v5530
      %v5571 = vsel %vm1098, %v5508, %v5516
      %v5572 = vsel %vm1098, %v5510, %v5518
      %v5573 = vsel %vm1098, %v5512, %v5520
      %v5574 = vsel %vm1098, %v5514, %v5522
      %v5575 = vsel %vm1098, %v5548, %v5508
      %v5576 = vsel %vm1098, %v5550, %v5510
      %v5577 = vsel %vm1098, %v5552, %v5512
      %v5578 = vsel %vm1098, %v5554, %v5514
      %v5579 = vpack.c.bf16 %v5572, %v5571
      %v5580 = vpack.c.bf16 %v5568, %v5567
      %v5581 = vpack.c.bf16 %v5564, %v5563
      %v5582 = vpack.c.bf16 %v5560, %v5559
      %v5583 = vpack.c.bf16 %v5556, %v5555
      %v5584 = vpack.c.bf16 %v5576, %v5575
      %v5585 = vpack.c.bf16 %v5574, %v5573
      %v5586 = vpack.c.bf16 %v5570, %v5569
      %v5587 = vpack.c.bf16 %v5566, %v5565
      %v5588 = vpack.c.bf16 %v5562, %v5561
      %v5589 = vpack.c.bf16 %v5558, %v5557
      %v5590 = vpack.c.bf16 %v5578, %v5577
      %v5603 = vunpack.c.l.b16 %v5579
      %v5604 = vunpack.c.l.b16 %v5580
      %v5605 = vunpack.c.l.b16 %v5581
      %v5606 = vunpack.c.l.b16 %v5582
      %v5607 = vunpack.c.l.b16 %v5583
      %v5608 = vunpack.c.l.b16 %v5584
      %v5609 = vunpack.c.h.b16 %v5579
      %v5610 = vunpack.c.h.b16 %v5580
      %v5611 = vunpack.c.h.b16 %v5581
      %v5612 = vunpack.c.h.b16 %v5582
      %v5613 = vunpack.c.h.b16 %v5583
      %v5614 = vunpack.c.h.b16 %v5584
      %v5615 = vunpack.c.l.b16 %v5585
      %v5616 = vunpack.c.l.b16 %v5586
      %v5617 = vunpack.c.l.b16 %v5587
      %v5618 = vunpack.c.l.b16 %v5588
      %v5619 = vunpack.c.l.b16 %v5589
      %v5620 = vunpack.c.l.b16 %v5590
      %v5621 = vunpack.c.h.b16 %v5585
      %v5622 = vunpack.c.h.b16 %v5586
      %v5623 = vunpack.c.h.b16 %v5587
      %v5624 = vunpack.c.h.b16 %v5588
      %v5625 = vunpack.c.h.b16 %v5589
      %v5626 = vunpack.c.h.b16 %v5590
      %v5627 = vpack.c.b16 %v5604, %v5603
      %v5628 = vpack.c.b16 %v5606, %v5605
      %v5629 = vpack.c.b16 %v5608, %v5607
      %v5630 = vpack.c.b16 %v5610, %v5609
      %v5631 = vpack.c.b16 %v5612, %v5611
      %v5632 = vpack.c.b16 %v5614, %v5613
      %v5633 = vpack.c.b16 %v5616, %v5615
      %v5634 = vpack.c.b16 %v5618, %v5617
      %v5635 = vpack.c.b16 %v5620, %v5619
      %v5636 = vpack.c.b16 %v5622, %v5621
      %v5637 = vpack.c.b16 %v5624, %v5623
      %v5638 = vpack.c.b16 %v5626, %v5625
      %5651 = vst [vmem:[#allocation2 + $0x2a0] sm:$0xff] %v5627
      %5652 = vst [vmem:[#allocation2 + $0x2a8] sm:$0xff] %v5628
      %5653 = vst [vmem:[#allocation2 + $0x2b0] sm:$0xff] %v5629
      %5654 = vst [vmem:[#allocation2 + $0x2b8] sm:$0xff] %v5630
      %5655 = vst [vmem:[#allocation2 + $0x2c0] sm:$0xff] %v5631
      %5656 = vst [vmem:[#allocation2 + $0x2c8] sm:$0xff] %v5632
      %5657 = vst [vmem:[#allocation2 + $0x2d0] sm:$0xff] %v5633
      %5658 = vst [vmem:[#allocation2 + $0x2d8] sm:$0xff] %v5634
      %5659 = vst [vmem:[#allocation2 + $0x2e0] sm:$0xff] %v5635
      %5660 = vst [vmem:[#allocation2 + $0x2e8] sm:$0xff] %v5636
      %5661 = vst [vmem:[#allocation2 + $0x2f0] sm:$0xff] %v5637
      %5662 = vst [vmem:[#allocation2 + $0x2f8] sm:$0xff] %v5638
      %5663 = vrot.lane.b32.xlu0 %v2517, 109
      %v5664 = vpop.permute.xlu0 %5663
      %5665 = vrot.lane.b32.xlu0 %v2523, 109
      %v5666 = vpop.permute.xlu0 %5665
      %5667 = vrot.lane.b32.xlu0 %v2529, 109
      %v5668 = vpop.permute.xlu0 %5667
      %5669 = vrot.lane.b32.xlu0 %v2535, 109
      %v5670 = vpop.permute.xlu0 %5669
      %5671 = vrot.lane.b32.xlu0 %v2518, 109
      %v5672 = vpop.permute.xlu0 %5671
      %5673 = vrot.lane.b32.xlu0 %v2524, 109
      %v5674 = vpop.permute.xlu0 %5673
      %5675 = vrot.lane.b32.xlu0 %v2530, 109
      %v5676 = vpop.permute.xlu0 %5675
      %5677 = vrot.lane.b32.xlu0 %v2536, 109
      %v5678 = vpop.permute.xlu0 %5677
      %5679 = vrot.lane.b32.xlu0 %v2519, 109
      %v5680 = vpop.permute.xlu0 %5679
      %5681 = vrot.lane.b32.xlu0 %v2525, 109
      %v5682 = vpop.permute.xlu0 %5681
      %5683 = vrot.lane.b32.xlu0 %v2531, 109
      %v5684 = vpop.permute.xlu0 %5683
      %5685 = vrot.lane.b32.xlu0 %v2537, 109
      %v5686 = vpop.permute.xlu0 %5685
      %5687 = vrot.lane.b32.xlu0 %v2520, 109
      %v5688 = vpop.permute.xlu0 %5687
      %5689 = vrot.lane.b32.xlu0 %v2526, 109
      %v5690 = vpop.permute.xlu0 %5689
      %5691 = vrot.lane.b32.xlu0 %v2532, 109
      %v5692 = vpop.permute.xlu0 %5691
      %5693 = vrot.lane.b32.xlu0 %v2538, 109
      %v5694 = vpop.permute.xlu0 %5693
      %5695 = vrot.lane.b32.xlu0 %v2521, 109
      %v5696 = vpop.permute.xlu0 %5695
      %5697 = vrot.lane.b32.xlu0 %v2527, 109
      %v5698 = vpop.permute.xlu0 %5697
      %5699 = vrot.lane.b32.xlu0 %v2533, 109
      %v5700 = vpop.permute.xlu0 %5699
      %5701 = vrot.lane.b32.xlu0 %v2539, 109
      %v5702 = vpop.permute.xlu0 %5701
      %5703 = vrot.lane.b32.xlu0 %v2522, 109
      %v5704 = vpop.permute.xlu0 %5703
      %5705 = vrot.lane.b32.xlu0 %v2528, 109
      %v5706 = vpop.permute.xlu0 %5705
      %5707 = vrot.lane.b32.xlu0 %v2534, 109
      %v5708 = vpop.permute.xlu0 %5707
      %5709 = vrot.lane.b32.xlu0 %v2540, 109
      %v5710 = vpop.permute.xlu0 %5709
      %v5711 = vsel %vm1173, %v5696, %v5704
      %v5712 = vsel %vm1173, %v5698, %v5706
      %v5713 = vsel %vm1173, %v5700, %v5708
      %v5714 = vsel %vm1173, %v5702, %v5710
      %v5715 = vsel %vm1173, %v5688, %v5696
      %v5716 = vsel %vm1173, %v5690, %v5698
      %v5717 = vsel %vm1173, %v5692, %v5700
      %v5718 = vsel %vm1173, %v5694, %v5702
      %v5719 = vsel %vm1173, %v5680, %v5688
      %v5720 = vsel %vm1173, %v5682, %v5690
      %v5721 = vsel %vm1173, %v5684, %v5692
      %v5722 = vsel %vm1173, %v5686, %v5694
      %v5723 = vsel %vm1173, %v5672, %v5680
      %v5724 = vsel %vm1173, %v5674, %v5682
      %v5725 = vsel %vm1173, %v5676, %v5684
      %v5726 = vsel %vm1173, %v5678, %v5686
      %v5727 = vsel %vm1173, %v5664, %v5672
      %v5728 = vsel %vm1173, %v5666, %v5674
      %v5729 = vsel %vm1173, %v5668, %v5676
      %v5730 = vsel %vm1173, %v5670, %v5678
      %v5731 = vsel %vm1173, %v5704, %v5664
      %v5732 = vsel %vm1173, %v5706, %v5666
      %v5733 = vsel %vm1173, %v5708, %v5668
      %v5734 = vsel %vm1173, %v5710, %v5670
      %v5735 = vpack.c.bf16 %v5728, %v5727
      %v5736 = vpack.c.bf16 %v5724, %v5723
      %v5737 = vpack.c.bf16 %v5720, %v5719
      %v5738 = vpack.c.bf16 %v5716, %v5715
      %v5739 = vpack.c.bf16 %v5712, %v5711
      %v5740 = vpack.c.bf16 %v5732, %v5731
      %v5741 = vpack.c.bf16 %v5730, %v5729
      %v5742 = vpack.c.bf16 %v5726, %v5725
      %v5743 = vpack.c.bf16 %v5722, %v5721
      %v5744 = vpack.c.bf16 %v5718, %v5717
      %v5745 = vpack.c.bf16 %v5714, %v5713
      %v5746 = vpack.c.bf16 %v5734, %v5733
      %v5759 = vunpack.c.l.b16 %v5735
      %v5760 = vunpack.c.l.b16 %v5736
      %v5761 = vunpack.c.l.b16 %v5737
      %v5762 = vunpack.c.l.b16 %v5738
      %v5763 = vunpack.c.l.b16 %v5739
      %v5764 = vunpack.c.l.b16 %v5740
      %v5765 = vunpack.c.h.b16 %v5735
      %v5766 = vunpack.c.h.b16 %v5736
      %v5767 = vunpack.c.h.b16 %v5737
      %v5768 = vunpack.c.h.b16 %v5738
      %v5769 = vunpack.c.h.b16 %v5739
      %v5770 = vunpack.c.h.b16 %v5740
      %v5771 = vunpack.c.l.b16 %v5741
      %v5772 = vunpack.c.l.b16 %v5742
      %v5773 = vunpack.c.l.b16 %v5743
      %v5774 = vunpack.c.l.b16 %v5744
      %v5775 = vunpack.c.l.b16 %v5745
      %v5776 = vunpack.c.l.b16 %v5746
      %v5777 = vunpack.c.h.b16 %v5741
      %v5778 = vunpack.c.h.b16 %v5742
      %v5779 = vunpack.c.h.b16 %v5743
      %v5780 = vunpack.c.h.b16 %v5744
      %v5781 = vunpack.c.h.b16 %v5745
      %v5782 = vunpack.c.h.b16 %v5746
      %v5783 = vpack.c.b16 %v5760, %v5759
      %v5784 = vpack.c.b16 %v5762, %v5761
      %v5785 = vpack.c.b16 %v5764, %v5763
      %v5786 = vpack.c.b16 %v5766, %v5765
      %v5787 = vpack.c.b16 %v5768, %v5767
      %v5788 = vpack.c.b16 %v5770, %v5769
      %v5789 = vpack.c.b16 %v5772, %v5771
      %v5790 = vpack.c.b16 %v5774, %v5773
      %v5791 = vpack.c.b16 %v5776, %v5775
      %v5792 = vpack.c.b16 %v5778, %v5777
      %v5793 = vpack.c.b16 %v5780, %v5779
      %v5794 = vpack.c.b16 %v5782, %v5781
      %5807 = vst [vmem:[#allocation2 + $0x300] sm:$0xff] %v5783
      %5808 = vst [vmem:[#allocation2 + $0x308] sm:$0xff] %v5784
      %5809 = vst [vmem:[#allocation2 + $0x310] sm:$0xff] %v5785
      %5810 = vst [vmem:[#allocation2 + $0x318] sm:$0xff] %v5786
      %5811 = vst [vmem:[#allocation2 + $0x320] sm:$0xff] %v5787
      %5812 = vst [vmem:[#allocation2 + $0x328] sm:$0xff] %v5788
      %5813 = vst [vmem:[#allocation2 + $0x330] sm:$0xff] %v5789
      %5814 = vst [vmem:[#allocation2 + $0x338] sm:$0xff] %v5790
      %5815 = vst [vmem:[#allocation2 + $0x340] sm:$0xff] %v5791
      %5816 = vst [vmem:[#allocation2 + $0x348] sm:$0xff] %v5792
      %5817 = vst [vmem:[#allocation2 + $0x350] sm:$0xff] %v5793
      %5818 = vst [vmem:[#allocation2 + $0x358] sm:$0xff] %v5794
      %5819 = vrot.lane.b32.xlu0 %v4463, 19
      %v5820 = vpop.permute.xlu0 %5819
      %5821 = vrot.lane.b32.xlu0 %v4469, 19
      %v5822 = vpop.permute.xlu0 %5821
      %5823 = vrot.lane.b32.xlu0 %v4475, 19
      %v5824 = vpop.permute.xlu0 %5823
      %5825 = vrot.lane.b32.xlu0 %v4481, 19
      %v5826 = vpop.permute.xlu0 %5825
      %5827 = vrot.lane.b32.xlu0 %v4464, 19
      %v5828 = vpop.permute.xlu0 %5827
      %5829 = vrot.lane.b32.xlu0 %v4470, 19
      %v5830 = vpop.permute.xlu0 %5829
      %5831 = vrot.lane.b32.xlu0 %v4476, 19
      %v5832 = vpop.permute.xlu0 %5831
      %5833 = vrot.lane.b32.xlu0 %v4482, 19
      %v5834 = vpop.permute.xlu0 %5833
      %5835 = vrot.lane.b32.xlu0 %v4465, 19
      %v5836 = vpop.permute.xlu0 %5835
      %5837 = vrot.lane.b32.xlu0 %v4471, 19
      %v5838 = vpop.permute.xlu0 %5837
      %5839 = vrot.lane.b32.xlu0 %v4477, 19
      %v5840 = vpop.permute.xlu0 %5839
      %5841 = vrot.lane.b32.xlu0 %v4483, 19
      %v5842 = vpop.permute.xlu0 %5841
      %5843 = vrot.lane.b32.xlu0 %v4466, 19
      %v5844 = vpop.permute.xlu0 %5843
      %5845 = vrot.lane.b32.xlu0 %v4472, 19
      %v5846 = vpop.permute.xlu0 %5845
      %5847 = vrot.lane.b32.xlu0 %v4478, 19
      %v5848 = vpop.permute.xlu0 %5847
      %5849 = vrot.lane.b32.xlu0 %v4484, 19
      %v5850 = vpop.permute.xlu0 %5849
      %5851 = vrot.lane.b32.xlu0 %v4467, 19
      %v5852 = vpop.permute.xlu0 %5851
      %5853 = vrot.lane.b32.xlu0 %v4473, 19
      %v5854 = vpop.permute.xlu0 %5853
      %5855 = vrot.lane.b32.xlu0 %v4479, 19
      %v5856 = vpop.permute.xlu0 %5855
      %5857 = vrot.lane.b32.xlu0 %v4485, 19
      %v5858 = vpop.permute.xlu0 %5857
      %5859 = vrot.lane.b32.xlu0 %v4468, 19
      %v5860 = vpop.permute.xlu0 %5859
      %5861 = vrot.lane.b32.xlu0 %v4474, 19
      %v5862 = vpop.permute.xlu0 %5861
      %5863 = vrot.lane.b32.xlu0 %v4480, 19
      %v5864 = vpop.permute.xlu0 %5863
      %5865 = vrot.lane.b32.xlu0 %v4486, 19
      %v5866 = vpop.permute.xlu0 %5865
      %v5867 = vsel %vm614, %v5852, %v5860
      %v5868 = vsel %vm614, %v5854, %v5862
      %v5869 = vsel %vm614, %v5856, %v5864
      %v5870 = vsel %vm614, %v5858, %v5866
      %v5871 = vsel %vm614, %v5844, %v5852
      %v5872 = vsel %vm614, %v5846, %v5854
      %v5873 = vsel %vm614, %v5848, %v5856
      %v5874 = vsel %vm614, %v5850, %v5858
      %v5875 = vsel %vm614, %v5836, %v5844
      %v5876 = vsel %vm614, %v5838, %v5846
      %v5877 = vsel %vm614, %v5840, %v5848
      %v5878 = vsel %vm614, %v5842, %v5850
      %v5879 = vsel %vm614, %v5828, %v5836
      %v5880 = vsel %vm614, %v5830, %v5838
      %v5881 = vsel %vm614, %v5832, %v5840
      %v5882 = vsel %vm614, %v5834, %v5842
      %v5883 = vsel %vm614, %v5820, %v5828
      %v5884 = vsel %vm614, %v5822, %v5830
      %v5885 = vsel %vm614, %v5824, %v5832
      %v5886 = vsel %vm614, %v5826, %v5834
      %v5887 = vsel %vm614, %v5860, %v5820
      %v5888 = vsel %vm614, %v5862, %v5822
      %v5889 = vsel %vm614, %v5864, %v5824
      %v5890 = vsel %vm614, %v5866, %v5826
      %v5891 = vpack.c.bf16 %v5888, %v5887
      %v5892 = vpack.c.bf16 %v5884, %v5883
      %v5893 = vpack.c.bf16 %v5880, %v5879
      %v5894 = vpack.c.bf16 %v5876, %v5875
      %v5895 = vpack.c.bf16 %v5872, %v5871
      %v5896 = vpack.c.bf16 %v5868, %v5867
      %v5897 = vpack.c.bf16 %v5890, %v5889
      %v5898 = vpack.c.bf16 %v5886, %v5885
      %v5899 = vpack.c.bf16 %v5882, %v5881
      %v5900 = vpack.c.bf16 %v5878, %v5877
      %v5901 = vpack.c.bf16 %v5874, %v5873
      %v5902 = vpack.c.bf16 %v5870, %v5869
      %v5915 = vunpack.c.l.b16 %v5891
      %v5916 = vunpack.c.l.b16 %v5892
      %v5917 = vunpack.c.l.b16 %v5893
      %v5918 = vunpack.c.l.b16 %v5894
      %v5919 = vunpack.c.l.b16 %v5895
      %v5920 = vunpack.c.l.b16 %v5896
      %v5921 = vunpack.c.h.b16 %v5891
      %v5922 = vunpack.c.h.b16 %v5892
      %v5923 = vunpack.c.h.b16 %v5893
      %v5924 = vunpack.c.h.b16 %v5894
      %v5925 = vunpack.c.h.b16 %v5895
      %v5926 = vunpack.c.h.b16 %v5896
      %v5927 = vunpack.c.l.b16 %v5897
      %v5928 = vunpack.c.l.b16 %v5898
      %v5929 = vunpack.c.l.b16 %v5899
      %v5930 = vunpack.c.l.b16 %v5900
      %v5931 = vunpack.c.l.b16 %v5901
      %v5932 = vunpack.c.l.b16 %v5902
      %v5933 = vunpack.c.h.b16 %v5897
      %v5934 = vunpack.c.h.b16 %v5898
      %v5935 = vunpack.c.h.b16 %v5899
      %v5936 = vunpack.c.h.b16 %v5900
      %v5937 = vunpack.c.h.b16 %v5901
      %v5938 = vunpack.c.h.b16 %v5902
      %v5939 = vpack.c.b16 %v5916, %v5915
      %v5940 = vpack.c.b16 %v5918, %v5917
      %v5941 = vpack.c.b16 %v5920, %v5919
      %v5942 = vpack.c.b16 %v5922, %v5921
      %v5943 = vpack.c.b16 %v5924, %v5923
      %v5944 = vpack.c.b16 %v5926, %v5925
      %v5945 = vpack.c.b16 %v5928, %v5927
      %v5946 = vpack.c.b16 %v5930, %v5929
      %v5947 = vpack.c.b16 %v5932, %v5931
      %v5948 = vpack.c.b16 %v5934, %v5933
      %v5949 = vpack.c.b16 %v5936, %v5935
      %v5950 = vpack.c.b16 %v5938, %v5937
      %5963 = vst [vmem:[#allocation2 + $0x360] sm:$0xff] %v5939
      %5964 = vst [vmem:[#allocation2 + $0x368] sm:$0xff] %v5940
      %5965 = vst [vmem:[#allocation2 + $0x370] sm:$0xff] %v5941
      %5966 = vst [vmem:[#allocation2 + $0x378] sm:$0xff] %v5942
      %5967 = vst [vmem:[#allocation2 + $0x380] sm:$0xff] %v5943
      %5968 = vst [vmem:[#allocation2 + $0x388] sm:$0xff] %v5944
      %5969 = vst [vmem:[#allocation2 + $0x390] sm:$0xff] %v5945
      %5970 = vst [vmem:[#allocation2 + $0x398] sm:$0xff] %v5946
      %5971 = vst [vmem:[#allocation2 + $0x3a0] sm:$0xff] %v5947
      %5972 = vst [vmem:[#allocation2 + $0x3a8] sm:$0xff] %v5948
      %5973 = vst [vmem:[#allocation2 + $0x3b0] sm:$0xff] %v5949
      %5974 = vst [vmem:[#allocation2 + $0x3b8] sm:$0xff] %v5950
      %5975 = vrot.lane.b32.xlu0 %v4463, 18
      %v5976 = vpop.permute.xlu0 %5975
      %5977 = vrot.lane.b32.xlu0 %v4469, 18
      %v5978 = vpop.permute.xlu0 %5977
      %5979 = vrot.lane.b32.xlu0 %v4475, 18
      %v5980 = vpop.permute.xlu0 %5979
      %5981 = vrot.lane.b32.xlu0 %v4481, 18
      %v5982 = vpop.permute.xlu0 %5981
      %5983 = vrot.lane.b32.xlu0 %v4464, 18
      %v5984 = vpop.permute.xlu0 %5983
      %5985 = vrot.lane.b32.xlu0 %v4470, 18
      %v5986 = vpop.permute.xlu0 %5985
      %5987 = vrot.lane.b32.xlu0 %v4476, 18
      %v5988 = vpop.permute.xlu0 %5987
      %5989 = vrot.lane.b32.xlu0 %v4482, 18
      %v5990 = vpop.permute.xlu0 %5989
      %5991 = vrot.lane.b32.xlu0 %v4465, 18
      %v5992 = vpop.permute.xlu0 %5991
      %5993 = vrot.lane.b32.xlu0 %v4471, 18
      %v5994 = vpop.permute.xlu0 %5993
      %5995 = vrot.lane.b32.xlu0 %v4477, 18
      %v5996 = vpop.permute.xlu0 %5995
      %5997 = vrot.lane.b32.xlu0 %v4483, 18
      %v5998 = vpop.permute.xlu0 %5997
      %5999 = vrot.lane.b32.xlu0 %v4466, 18
      %v6000 = vpop.permute.xlu0 %5999
      %6001 = vrot.lane.b32.xlu0 %v4472, 18
      %v6002 = vpop.permute.xlu0 %6001
      %6003 = vrot.lane.b32.xlu0 %v4478, 18
      %v6004 = vpop.permute.xlu0 %6003
      %6005 = vrot.lane.b32.xlu0 %v4484, 18
      %v6006 = vpop.permute.xlu0 %6005
      %6007 = vrot.lane.b32.xlu0 %v4467, 18
      %v6008 = vpop.permute.xlu0 %6007
      %6009 = vrot.lane.b32.xlu0 %v4473, 18
      %v6010 = vpop.permute.xlu0 %6009
      %6011 = vrot.lane.b32.xlu0 %v4479, 18
      %v6012 = vpop.permute.xlu0 %6011
      %6013 = vrot.lane.b32.xlu0 %v4485, 18
      %v6014 = vpop.permute.xlu0 %6013
      %6015 = vrot.lane.b32.xlu0 %v4468, 18
      %v6016 = vpop.permute.xlu0 %6015
      %6017 = vrot.lane.b32.xlu0 %v4474, 18
      %v6018 = vpop.permute.xlu0 %6017
      %6019 = vrot.lane.b32.xlu0 %v4480, 18
      %v6020 = vpop.permute.xlu0 %6019
      %6021 = vrot.lane.b32.xlu0 %v4486, 18
      %v6022 = vpop.permute.xlu0 %6021
      %v6023 = vsel %vm691, %v6008, %v6016
      %v6024 = vsel %vm691, %v6010, %v6018
      %v6025 = vsel %vm691, %v6012, %v6020
      %v6026 = vsel %vm691, %v6014, %v6022
      %v6027 = vsel %vm691, %v6000, %v6008
      %v6028 = vsel %vm691, %v6002, %v6010
      %v6029 = vsel %vm691, %v6004, %v6012
      %v6030 = vsel %vm691, %v6006, %v6014
      %v6031 = vsel %vm691, %v5992, %v6000
      %v6032 = vsel %vm691, %v5994, %v6002
      %v6033 = vsel %vm691, %v5996, %v6004
      %v6034 = vsel %vm691, %v5998, %v6006
      %v6035 = vsel %vm691, %v5984, %v5992
      %v6036 = vsel %vm691, %v5986, %v5994
      %v6037 = vsel %vm691, %v5988, %v5996
      %v6038 = vsel %vm691, %v5990, %v5998
      %v6039 = vsel %vm691, %v5976, %v5984
      %v6040 = vsel %vm691, %v5978, %v5986
      %v6041 = vsel %vm691, %v5980, %v5988
      %v6042 = vsel %vm691, %v5982, %v5990
      %v6043 = vsel %vm691, %v6016, %v5976
      %v6044 = vsel %vm691, %v6018, %v5978
      %v6045 = vsel %vm691, %v6020, %v5980
      %v6046 = vsel %vm691, %v6022, %v5982
      %v6047 = vpack.c.bf16 %v6044, %v6043
      %v6048 = vpack.c.bf16 %v6040, %v6039
      %v6049 = vpack.c.bf16 %v6036, %v6035
      %v6050 = vpack.c.bf16 %v6032, %v6031
      %v6051 = vpack.c.bf16 %v6028, %v6027
      %v6052 = vpack.c.bf16 %v6024, %v6023
      %v6053 = vpack.c.bf16 %v6046, %v6045
      %v6054 = vpack.c.bf16 %v6042, %v6041
      %v6055 = vpack.c.bf16 %v6038, %v6037
      %v6056 = vpack.c.bf16 %v6034, %v6033
      %v6057 = vpack.c.bf16 %v6030, %v6029
      %v6058 = vpack.c.bf16 %v6026, %v6025
      %v6071 = vunpack.c.l.b16 %v6047
      %v6072 = vunpack.c.l.b16 %v6048
      %v6073 = vunpack.c.l.b16 %v6049
      %v6074 = vunpack.c.l.b16 %v6050
      %v6075 = vunpack.c.l.b16 %v6051
      %v6076 = vunpack.c.l.b16 %v6052
      %v6077 = vunpack.c.h.b16 %v6047
      %v6078 = vunpack.c.h.b16 %v6048
      %v6079 = vunpack.c.h.b16 %v6049
      %v6080 = vunpack.c.h.b16 %v6050
      %v6081 = vunpack.c.h.b16 %v6051
      %v6082 = vunpack.c.h.b16 %v6052
      %v6083 = vunpack.c.l.b16 %v6053
      %v6084 = vunpack.c.l.b16 %v6054
      %v6085 = vunpack.c.l.b16 %v6055
      %v6086 = vunpack.c.l.b16 %v6056
      %v6087 = vunpack.c.l.b16 %v6057
      %v6088 = vunpack.c.l.b16 %v6058
      %v6089 = vunpack.c.h.b16 %v6053
      %v6090 = vunpack.c.h.b16 %v6054
      %v6091 = vunpack.c.h.b16 %v6055
      %v6092 = vunpack.c.h.b16 %v6056
      %v6093 = vunpack.c.h.b16 %v6057
      %v6094 = vunpack.c.h.b16 %v6058
      %v6095 = vpack.c.b16 %v6072, %v6071
      %v6096 = vpack.c.b16 %v6074, %v6073
      %v6097 = vpack.c.b16 %v6076, %v6075
      %v6098 = vpack.c.b16 %v6078, %v6077
      %v6099 = vpack.c.b16 %v6080, %v6079
      %v6100 = vpack.c.b16 %v6082, %v6081
      %v6101 = vpack.c.b16 %v6084, %v6083
      %v6102 = vpack.c.b16 %v6086, %v6085
      %v6103 = vpack.c.b16 %v6088, %v6087
      %v6104 = vpack.c.b16 %v6090, %v6089
      %v6105 = vpack.c.b16 %v6092, %v6091
      %v6106 = vpack.c.b16 %v6094, %v6093
      %6119 = vst [vmem:[#allocation2 + $0x3c0] sm:$0xff] %v6095
      %6120 = vst [vmem:[#allocation2 + $0x3c8] sm:$0xff] %v6096
      %6121 = vst [vmem:[#allocation2 + $0x3d0] sm:$0xff] %v6097
      %6122 = vst [vmem:[#allocation2 + $0x3d8] sm:$0xff] %v6098
      %6123 = vst [vmem:[#allocation2 + $0x3e0] sm:$0xff] %v6099
      %6124 = vst [vmem:[#allocation2 + $0x3e8] sm:$0xff] %v6100
      %6125 = vst [vmem:[#allocation2 + $0x3f0] sm:$0xff] %v6101
      %6126 = vst [vmem:[#allocation2 + $0x3f8] sm:$0xff] %v6102
      %6127 = vst [vmem:[#allocation2 + $0x400] sm:$0xff] %v6103
      %6128 = vst [vmem:[#allocation2 + $0x408] sm:$0xff] %v6104
      %6129 = vst [vmem:[#allocation2 + $0x410] sm:$0xff] %v6105
      %6130 = vst [vmem:[#allocation2 + $0x418] sm:$0xff] %v6106
      %6131 = vrot.lane.b32.xlu0 %v4463, 17
      %v6132 = vpop.permute.xlu0 %6131
      %6133 = vrot.lane.b32.xlu0 %v4469, 17
      %v6134 = vpop.permute.xlu0 %6133
      %6135 = vrot.lane.b32.xlu0 %v4475, 17
      %v6136 = vpop.permute.xlu0 %6135
      %6137 = vrot.lane.b32.xlu0 %v4481, 17
      %v6138 = vpop.permute.xlu0 %6137
      %6139 = vrot.lane.b32.xlu0 %v4464, 17
      %v6140 = vpop.permute.xlu0 %6139
      %6141 = vrot.lane.b32.xlu0 %v4470, 17
      %v6142 = vpop.permute.xlu0 %6141
      %6143 = vrot.lane.b32.xlu0 %v4476, 17
      %v6144 = vpop.permute.xlu0 %6143
      %6145 = vrot.lane.b32.xlu0 %v4482, 17
      %v6146 = vpop.permute.xlu0 %6145
      %6147 = vrot.lane.b32.xlu0 %v4465, 17
      %v6148 = vpop.permute.xlu0 %6147
      %6149 = vrot.lane.b32.xlu0 %v4471, 17
      %v6150 = vpop.permute.xlu0 %6149
      %6151 = vrot.lane.b32.xlu0 %v4477, 17
      %v6152 = vpop.permute.xlu0 %6151
      %6153 = vrot.lane.b32.xlu0 %v4483, 17
      %v6154 = vpop.permute.xlu0 %6153
      %6155 = vrot.lane.b32.xlu0 %v4466, 17
      %v6156 = vpop.permute.xlu0 %6155
      %6157 = vrot.lane.b32.xlu0 %v4472, 17
      %v6158 = vpop.permute.xlu0 %6157
      %6159 = vrot.lane.b32.xlu0 %v4478, 17
      %v6160 = vpop.permute.xlu0 %6159
      %6161 = vrot.lane.b32.xlu0 %v4484, 17
      %v6162 = vpop.permute.xlu0 %6161
      %6163 = vrot.lane.b32.xlu0 %v4467, 17
      %v6164 = vpop.permute.xlu0 %6163
      %6165 = vrot.lane.b32.xlu0 %v4473, 17
      %v6166 = vpop.permute.xlu0 %6165
      %6167 = vrot.lane.b32.xlu0 %v4479, 17
      %v6168 = vpop.permute.xlu0 %6167
      %6169 = vrot.lane.b32.xlu0 %v4485, 17
      %v6170 = vpop.permute.xlu0 %6169
      %6171 = vrot.lane.b32.xlu0 %v4468, 17
      %v6172 = vpop.permute.xlu0 %6171
      %6173 = vrot.lane.b32.xlu0 %v4474, 17
      %v6174 = vpop.permute.xlu0 %6173
      %6175 = vrot.lane.b32.xlu0 %v4480, 17
      %v6176 = vpop.permute.xlu0 %6175
      %6177 = vrot.lane.b32.xlu0 %v4486, 17
      %v6178 = vpop.permute.xlu0 %6177
      %v6179 = vsel %vm766, %v6164, %v6172
      %v6180 = vsel %vm766, %v6166, %v6174
      %v6181 = vsel %vm766, %v6168, %v6176
      %v6182 = vsel %vm766, %v6170, %v6178
      %v6183 = vsel %vm766, %v6156, %v6164
      %v6184 = vsel %vm766, %v6158, %v6166
      %v6185 = vsel %vm766, %v6160, %v6168
      %v6186 = vsel %vm766, %v6162, %v6170
      %v6187 = vsel %vm766, %v6148, %v6156
      %v6188 = vsel %vm766, %v6150, %v6158
      %v6189 = vsel %vm766, %v6152, %v6160
      %v6190 = vsel %vm766, %v6154, %v6162
      %v6191 = vsel %vm766, %v6140, %v6148
      %v6192 = vsel %vm766, %v6142, %v6150
      %v6193 = vsel %vm766, %v6144, %v6152
      %v6194 = vsel %vm766, %v6146, %v6154
      %v6195 = vsel %vm766, %v6132, %v6140
      %v6196 = vsel %vm766, %v6134, %v6142
      %v6197 = vsel %vm766, %v6136, %v6144
      %v6198 = vsel %vm766, %v6138, %v6146
      %v6199 = vsel %vm766, %v6172, %v6132
      %v6200 = vsel %vm766, %v6174, %v6134
      %v6201 = vsel %vm766, %v6176, %v6136
      %v6202 = vsel %vm766, %v6178, %v6138
      %v6203 = vpack.c.bf16 %v6200, %v6199
      %v6204 = vpack.c.bf16 %v6196, %v6195
      %v6205 = vpack.c.bf16 %v6192, %v6191
      %v6206 = vpack.c.bf16 %v6188, %v6187
      %v6207 = vpack.c.bf16 %v6184, %v6183
      %v6208 = vpack.c.bf16 %v6180, %v6179
      %v6209 = vpack.c.bf16 %v6202, %v6201
      %v6210 = vpack.c.bf16 %v6198, %v6197
      %v6211 = vpack.c.bf16 %v6194, %v6193
      %v6212 = vpack.c.bf16 %v6190, %v6189
      %v6213 = vpack.c.bf16 %v6186, %v6185
      %v6214 = vpack.c.bf16 %v6182, %v6181
      %v6227 = vunpack.c.l.b16 %v6203
      %v6228 = vunpack.c.l.b16 %v6204
      %v6229 = vunpack.c.l.b16 %v6205
      %v6230 = vunpack.c.l.b16 %v6206
      %v6231 = vunpack.c.l.b16 %v6207
      %v6232 = vunpack.c.l.b16 %v6208
      %v6233 = vunpack.c.h.b16 %v6203
      %v6234 = vunpack.c.h.b16 %v6204
      %v6235 = vunpack.c.h.b16 %v6205
      %v6236 = vunpack.c.h.b16 %v6206
      %v6237 = vunpack.c.h.b16 %v6207
      %v6238 = vunpack.c.h.b16 %v6208
      %v6239 = vunpack.c.l.b16 %v6209
      %v6240 = vunpack.c.l.b16 %v6210
      %v6241 = vunpack.c.l.b16 %v6211
      %v6242 = vunpack.c.l.b16 %v6212
      %v6243 = vunpack.c.l.b16 %v6213
      %v6244 = vunpack.c.l.b16 %v6214
      %v6245 = vunpack.c.h.b16 %v6209
      %v6246 = vunpack.c.h.b16 %v6210
      %v6247 = vunpack.c.h.b16 %v6211
      %v6248 = vunpack.c.h.b16 %v6212
      %v6249 = vunpack.c.h.b16 %v6213
      %v6250 = vunpack.c.h.b16 %v6214
      %v6251 = vpack.c.b16 %v6228, %v6227
      %v6252 = vpack.c.b16 %v6230, %v6229
      %v6253 = vpack.c.b16 %v6232, %v6231
      %v6254 = vpack.c.b16 %v6234, %v6233
      %v6255 = vpack.c.b16 %v6236, %v6235
      %v6256 = vpack.c.b16 %v6238, %v6237
      %v6257 = vpack.c.b16 %v6240, %v6239
      %v6258 = vpack.c.b16 %v6242, %v6241
      %v6259 = vpack.c.b16 %v6244, %v6243
      %v6260 = vpack.c.b16 %v6246, %v6245
      %v6261 = vpack.c.b16 %v6248, %v6247
      %v6262 = vpack.c.b16 %v6250, %v6249
      %6275 = vst [vmem:[#allocation2 + $0x420] sm:$0xff] %v6251
      %6276 = vst [vmem:[#allocation2 + $0x428] sm:$0xff] %v6252
      %6277 = vst [vmem:[#allocation2 + $0x430] sm:$0xff] %v6253
      %6278 = vst [vmem:[#allocation2 + $0x438] sm:$0xff] %v6254
      %6279 = vst [vmem:[#allocation2 + $0x440] sm:$0xff] %v6255
      %6280 = vst [vmem:[#allocation2 + $0x448] sm:$0xff] %v6256
      %6281 = vst [vmem:[#allocation2 + $0x450] sm:$0xff] %v6257
      %6282 = vst [vmem:[#allocation2 + $0x458] sm:$0xff] %v6258
      %6283 = vst [vmem:[#allocation2 + $0x460] sm:$0xff] %v6259
      %6284 = vst [vmem:[#allocation2 + $0x468] sm:$0xff] %v6260
      %6285 = vst [vmem:[#allocation2 + $0x470] sm:$0xff] %v6261
      %6286 = vst [vmem:[#allocation2 + $0x478] sm:$0xff] %v6262
      %6287 = vrot.lane.b32.xlu0 %v4463, 1
      %v6288 = vpop.permute.xlu0 %6287
      %6289 = vrot.lane.b32.xlu0 %v4469, 1
      %v6290 = vpop.permute.xlu0 %6289
      %6291 = vrot.lane.b32.xlu0 %v4475, 1
      %v6292 = vpop.permute.xlu0 %6291
      %6293 = vrot.lane.b32.xlu0 %v4481, 1
      %v6294 = vpop.permute.xlu0 %6293
      %6295 = vrot.lane.b32.xlu0 %v4464, 1
      %v6296 = vpop.permute.xlu0 %6295
      %6297 = vrot.lane.b32.xlu0 %v4470, 1
      %v6298 = vpop.permute.xlu0 %6297
      %6299 = vrot.lane.b32.xlu0 %v4476, 1
      %v6300 = vpop.permute.xlu0 %6299
      %6301 = vrot.lane.b32.xlu0 %v4482, 1
      %v6302 = vpop.permute.xlu0 %6301
      %6303 = vrot.lane.b32.xlu0 %v4465, 1
      %v6304 = vpop.permute.xlu0 %6303
      %6305 = vrot.lane.b32.xlu0 %v4471, 1
      %v6306 = vpop.permute.xlu0 %6305
      %6307 = vrot.lane.b32.xlu0 %v4477, 1
      %v6308 = vpop.permute.xlu0 %6307
      %6309 = vrot.lane.b32.xlu0 %v4483, 1
      %v6310 = vpop.permute.xlu0 %6309
      %6311 = vrot.lane.b32.xlu0 %v4466, 1
      %v6312 = vpop.permute.xlu0 %6311
      %6313 = vrot.lane.b32.xlu0 %v4472, 1
      %v6314 = vpop.permute.xlu0 %6313
      %6315 = vrot.lane.b32.xlu0 %v4478, 1
      %v6316 = vpop.permute.xlu0 %6315
      %6317 = vrot.lane.b32.xlu0 %v4484, 1
      %v6318 = vpop.permute.xlu0 %6317
      %6319 = vrot.lane.b32.xlu0 %v4467, 1
      %v6320 = vpop.permute.xlu0 %6319
      %6321 = vrot.lane.b32.xlu0 %v4473, 1
      %v6322 = vpop.permute.xlu0 %6321
      %6323 = vrot.lane.b32.xlu0 %v4479, 1
      %v6324 = vpop.permute.xlu0 %6323
      %6325 = vrot.lane.b32.xlu0 %v4485, 1
      %v6326 = vpop.permute.xlu0 %6325
      %6327 = vrot.lane.b32.xlu0 %v4468, 1
      %v6328 = vpop.permute.xlu0 %6327
      %6329 = vrot.lane.b32.xlu0 %v4474, 1
      %v6330 = vpop.permute.xlu0 %6329
      %6331 = vrot.lane.b32.xlu0 %v4480, 1
      %v6332 = vpop.permute.xlu0 %6331
      %6333 = vrot.lane.b32.xlu0 %v4486, 1
      %v6334 = vpop.permute.xlu0 %6333
      %v6335 = vsel %vm841, %v6320, %v6328
      %v6336 = vsel %vm841, %v6322, %v6330
      %v6337 = vsel %vm841, %v6324, %v6332
      %v6338 = vsel %vm841, %v6326, %v6334
      %v6339 = vsel %vm841, %v6312, %v6320
      %v6340 = vsel %vm841, %v6314, %v6322
      %v6341 = vsel %vm841, %v6316, %v6324
      %v6342 = vsel %vm841, %v6318, %v6326
      %v6343 = vsel %vm841, %v6304, %v6312
      %v6344 = vsel %vm841, %v6306, %v6314
      %v6345 = vsel %vm841, %v6308, %v6316
      %v6346 = vsel %vm841, %v6310, %v6318
      %v6347 = vsel %vm841, %v6296, %v6304
      %v6348 = vsel %vm841, %v6298, %v6306
      %v6349 = vsel %vm841, %v6300, %v6308
      %v6350 = vsel %vm841, %v6302, %v6310
      %v6351 = vsel %vm841, %v6288, %v6296
      %v6352 = vsel %vm841, %v6290, %v6298
      %v6353 = vsel %vm841, %v6292, %v6300
      %v6354 = vsel %vm841, %v6294, %v6302
      %v6355 = vsel %vm841, %v6328, %v6288
      %v6356 = vsel %vm841, %v6330, %v6290
      %v6357 = vsel %vm841, %v6332, %v6292
      %v6358 = vsel %vm841, %v6334, %v6294
      %v6359 = vpack.c.bf16 %v6356, %v6355
      %v6360 = vpack.c.bf16 %v6352, %v6351
      %v6361 = vpack.c.bf16 %v6348, %v6347
      %v6362 = vpack.c.bf16 %v6344, %v6343
      %v6363 = vpack.c.bf16 %v6340, %v6339
      %v6364 = vpack.c.bf16 %v6336, %v6335
      %v6365 = vpack.c.bf16 %v6358, %v6357
      %v6366 = vpack.c.bf16 %v6354, %v6353
      %v6367 = vpack.c.bf16 %v6350, %v6349
      %v6368 = vpack.c.bf16 %v6346, %v6345
      %v6369 = vpack.c.bf16 %v6342, %v6341
      %v6370 = vpack.c.bf16 %v6338, %v6337
      %v6383 = vunpack.c.l.b16 %v6359
      %v6384 = vunpack.c.l.b16 %v6360
      %v6385 = vunpack.c.l.b16 %v6361
      %v6386 = vunpack.c.l.b16 %v6362
      %v6387 = vunpack.c.l.b16 %v6363
      %v6388 = vunpack.c.l.b16 %v6364
      %v6389 = vunpack.c.h.b16 %v6359
      %v6390 = vunpack.c.h.b16 %v6360
      %v6391 = vunpack.c.h.b16 %v6361
      %v6392 = vunpack.c.h.b16 %v6362
      %v6393 = vunpack.c.h.b16 %v6363
      %v6394 = vunpack.c.h.b16 %v6364
      %v6395 = vunpack.c.l.b16 %v6365
      %v6396 = vunpack.c.l.b16 %v6366
      %v6397 = vunpack.c.l.b16 %v6367
      %v6398 = vunpack.c.l.b16 %v6368
      %v6399 = vunpack.c.l.b16 %v6369
      %v6400 = vunpack.c.l.b16 %v6370
      %v6401 = vunpack.c.h.b16 %v6365
      %v6402 = vunpack.c.h.b16 %v6366
      %v6403 = vunpack.c.h.b16 %v6367
      %v6404 = vunpack.c.h.b16 %v6368
      %v6405 = vunpack.c.h.b16 %v6369
      %v6406 = vunpack.c.h.b16 %v6370
      %v6407 = vpack.c.b16 %v6384, %v6383
      %v6408 = vpack.c.b16 %v6386, %v6385
      %v6409 = vpack.c.b16 %v6388, %v6387
      %v6410 = vpack.c.b16 %v6390, %v6389
      %v6411 = vpack.c.b16 %v6392, %v6391
      %v6412 = vpack.c.b16 %v6394, %v6393
      %v6413 = vpack.c.b16 %v6396, %v6395
      %v6414 = vpack.c.b16 %v6398, %v6397
      %v6415 = vpack.c.b16 %v6400, %v6399
      %v6416 = vpack.c.b16 %v6402, %v6401
      %v6417 = vpack.c.b16 %v6404, %v6403
      %v6418 = vpack.c.b16 %v6406, %v6405
      %6431 = vst [vmem:[#allocation2 + $0x480] sm:$0xff] %v6407
      %6432 = vst [vmem:[#allocation2 + $0x488] sm:$0xff] %v6408
      %6433 = vst [vmem:[#allocation2 + $0x490] sm:$0xff] %v6409
      %6434 = vst [vmem:[#allocation2 + $0x498] sm:$0xff] %v6410
      %6435 = vst [vmem:[#allocation2 + $0x4a0] sm:$0xff] %v6411
      %6436 = vst [vmem:[#allocation2 + $0x4a8] sm:$0xff] %v6412
      %6437 = vst [vmem:[#allocation2 + $0x4b0] sm:$0xff] %v6413
      %6438 = vst [vmem:[#allocation2 + $0x4b8] sm:$0xff] %v6414
      %6439 = vst [vmem:[#allocation2 + $0x4c0] sm:$0xff] %v6415
      %6440 = vst [vmem:[#allocation2 + $0x4c8] sm:$0xff] %v6416
      %6441 = vst [vmem:[#allocation2 + $0x4d0] sm:$0xff] %v6417
      %6442 = vst [vmem:[#allocation2 + $0x4d8] sm:$0xff] %v6418
      %v6443 = vpack.c.bf16 %v4469, %v4463
      %v6444 = vpack.c.bf16 %v4470, %v4464
      %v6445 = vpack.c.bf16 %v4471, %v4465
      %v6446 = vpack.c.bf16 %v4472, %v4466
      %v6447 = vpack.c.bf16 %v4473, %v4467
      %v6448 = vpack.c.bf16 %v4474, %v4468
      %v6449 = vpack.c.bf16 %v4481, %v4475
      %v6450 = vpack.c.bf16 %v4482, %v4476
      %v6451 = vpack.c.bf16 %v4483, %v4477
      %v6452 = vpack.c.bf16 %v4484, %v4478
      %v6453 = vpack.c.bf16 %v4485, %v4479
      %v6454 = vpack.c.bf16 %v4486, %v4480
      %v6467 = vunpack.c.l.b16 %v6443
      %v6468 = vunpack.c.l.b16 %v6444
      %v6469 = vunpack.c.l.b16 %v6445
      %v6470 = vunpack.c.l.b16 %v6446
      %v6471 = vunpack.c.l.b16 %v6447
      %v6472 = vunpack.c.l.b16 %v6448
      %v6473 = vunpack.c.h.b16 %v6443
      %v6474 = vunpack.c.h.b16 %v6444
      %v6475 = vunpack.c.h.b16 %v6445
      %v6476 = vunpack.c.h.b16 %v6446
      %v6477 = vunpack.c.h.b16 %v6447
      %v6478 = vunpack.c.h.b16 %v6448
      %v6479 = vunpack.c.l.b16 %v6449
      %v6480 = vunpack.c.l.b16 %v6450
      %v6481 = vunpack.c.l.b16 %v6451
      %v6482 = vunpack.c.l.b16 %v6452
      %v6483 = vunpack.c.l.b16 %v6453
      %v6484 = vunpack.c.l.b16 %v6454
      %v6485 = vunpack.c.h.b16 %v6449
      %v6486 = vunpack.c.h.b16 %v6450
      %v6487 = vunpack.c.h.b16 %v6451
      %v6488 = vunpack.c.h.b16 %v6452
      %v6489 = vunpack.c.h.b16 %v6453
      %v6490 = vunpack.c.h.b16 %v6454
      %v6491 = vpack.c.b16 %v6468, %v6467
      %v6492 = vpack.c.b16 %v6470, %v6469
      %v6493 = vpack.c.b16 %v6472, %v6471
      %v6494 = vpack.c.b16 %v6474, %v6473
      %v6495 = vpack.c.b16 %v6476, %v6475
      %v6496 = vpack.c.b16 %v6478, %v6477
      %v6497 = vpack.c.b16 %v6480, %v6479
      %v6498 = vpack.c.b16 %v6482, %v6481
      %v6499 = vpack.c.b16 %v6484, %v6483
      %v6500 = vpack.c.b16 %v6486, %v6485
      %v6501 = vpack.c.b16 %v6488, %v6487
      %v6502 = vpack.c.b16 %v6490, %v6489
      %6515 = vst [vmem:[#allocation2 + $0x4e0] sm:$0xff] %v6491
      %6516 = vst [vmem:[#allocation2 + $0x4e8] sm:$0xff] %v6492
      %6517 = vst [vmem:[#allocation2 + $0x4f0] sm:$0xff] %v6493
      %6518 = vst [vmem:[#allocation2 + $0x4f8] sm:$0xff] %v6494
      %6519 = vst [vmem:[#allocation2 + $0x500] sm:$0xff] %v6495
      %6520 = vst [vmem:[#allocation2 + $0x508] sm:$0xff] %v6496
      %6521 = vst [vmem:[#allocation2 + $0x510] sm:$0xff] %v6497
      %6522 = vst [vmem:[#allocation2 + $0x518] sm:$0xff] %v6498
      %6523 = vst [vmem:[#allocation2 + $0x520] sm:$0xff] %v6499
      %6524 = vst [vmem:[#allocation2 + $0x528] sm:$0xff] %v6500
      %6525 = vst [vmem:[#allocation2 + $0x530] sm:$0xff] %v6501
      %6526 = vst [vmem:[#allocation2 + $0x538] sm:$0xff] %v6502
      %6527 = vrot.lane.b32.xlu0 %v4463, 127
      %v6528 = vpop.permute.xlu0 %6527
      %6529 = vrot.lane.b32.xlu0 %v4469, 127
      %v6530 = vpop.permute.xlu0 %6529
      %6531 = vrot.lane.b32.xlu0 %v4475, 127
      %v6532 = vpop.permute.xlu0 %6531
      %6533 = vrot.lane.b32.xlu0 %v4481, 127
      %v6534 = vpop.permute.xlu0 %6533
      %6535 = vrot.lane.b32.xlu0 %v4464, 127
      %v6536 = vpop.permute.xlu0 %6535
      %6537 = vrot.lane.b32.xlu0 %v4470, 127
      %v6538 = vpop.permute.xlu0 %6537
      %6539 = vrot.lane.b32.xlu0 %v4476, 127
      %v6540 = vpop.permute.xlu0 %6539
      %6541 = vrot.lane.b32.xlu0 %v4482, 127
      %v6542 = vpop.permute.xlu0 %6541
      %6543 = vrot.lane.b32.xlu0 %v4465, 127
      %v6544 = vpop.permute.xlu0 %6543
      %6545 = vrot.lane.b32.xlu0 %v4471, 127
      %v6546 = vpop.permute.xlu0 %6545
      %6547 = vrot.lane.b32.xlu0 %v4477, 127
      %v6548 = vpop.permute.xlu0 %6547
      %6549 = vrot.lane.b32.xlu0 %v4483, 127
      %v6550 = vpop.permute.xlu0 %6549
      %6551 = vrot.lane.b32.xlu0 %v4466, 127
      %v6552 = vpop.permute.xlu0 %6551
      %6553 = vrot.lane.b32.xlu0 %v4472, 127
      %v6554 = vpop.permute.xlu0 %6553
      %6555 = vrot.lane.b32.xlu0 %v4478, 127
      %v6556 = vpop.permute.xlu0 %6555
      %6557 = vrot.lane.b32.xlu0 %v4484, 127
      %v6558 = vpop.permute.xlu0 %6557
      %6559 = vrot.lane.b32.xlu0 %v4467, 127
      %v6560 = vpop.permute.xlu0 %6559
      %6561 = vrot.lane.b32.xlu0 %v4473, 127
      %v6562 = vpop.permute.xlu0 %6561
      %6563 = vrot.lane.b32.xlu0 %v4479, 127
      %v6564 = vpop.permute.xlu0 %6563
      %6565 = vrot.lane.b32.xlu0 %v4485, 127
      %v6566 = vpop.permute.xlu0 %6565
      %6567 = vrot.lane.b32.xlu0 %v4468, 127
      %v6568 = vpop.permute.xlu0 %6567
      %6569 = vrot.lane.b32.xlu0 %v4474, 127
      %v6570 = vpop.permute.xlu0 %6569
      %6571 = vrot.lane.b32.xlu0 %v4480, 127
      %v6572 = vpop.permute.xlu0 %6571
      %6573 = vrot.lane.b32.xlu0 %v4486, 127
      %v6574 = vpop.permute.xlu0 %6573
      %v6575 = vsel %vm948, %v6560, %v6568
      %v6576 = vsel %vm948, %v6562, %v6570
      %v6577 = vsel %vm948, %v6564, %v6572
      %v6578 = vsel %vm948, %v6566, %v6574
      %v6579 = vsel %vm948, %v6552, %v6560
      %v6580 = vsel %vm948, %v6554, %v6562
      %v6581 = vsel %vm948, %v6556, %v6564
      %v6582 = vsel %vm948, %v6558, %v6566
      %v6583 = vsel %vm948, %v6544, %v6552
      %v6584 = vsel %vm948, %v6546, %v6554
      %v6585 = vsel %vm948, %v6548, %v6556
      %v6586 = vsel %vm948, %v6550, %v6558
      %v6587 = vsel %vm948, %v6536, %v6544
      %v6588 = vsel %vm948, %v6538, %v6546
      %v6589 = vsel %vm948, %v6540, %v6548
      %v6590 = vsel %vm948, %v6542, %v6550
      %v6591 = vsel %vm948, %v6528, %v6536
      %v6592 = vsel %vm948, %v6530, %v6538
      %v6593 = vsel %vm948, %v6532, %v6540
      %v6594 = vsel %vm948, %v6534, %v6542
      %v6595 = vsel %vm948, %v6568, %v6528
      %v6596 = vsel %vm948, %v6570, %v6530
      %v6597 = vsel %vm948, %v6572, %v6532
      %v6598 = vsel %vm948, %v6574, %v6534
      %v6599 = vpack.c.bf16 %v6592, %v6591
      %v6600 = vpack.c.bf16 %v6588, %v6587
      %v6601 = vpack.c.bf16 %v6584, %v6583
      %v6602 = vpack.c.bf16 %v6580, %v6579
      %v6603 = vpack.c.bf16 %v6576, %v6575
      %v6604 = vpack.c.bf16 %v6596, %v6595
      %v6605 = vpack.c.bf16 %v6594, %v6593
      %v6606 = vpack.c.bf16 %v6590, %v6589
      %v6607 = vpack.c.bf16 %v6586, %v6585
      %v6608 = vpack.c.bf16 %v6582, %v6581
      %v6609 = vpack.c.bf16 %v6578, %v6577
      %v6610 = vpack.c.bf16 %v6598, %v6597
      %v6623 = vunpack.c.l.b16 %v6599
      %v6624 = vunpack.c.l.b16 %v6600
      %v6625 = vunpack.c.l.b16 %v6601
      %v6626 = vunpack.c.l.b16 %v6602
      %v6627 = vunpack.c.l.b16 %v6603
      %v6628 = vunpack.c.l.b16 %v6604
      %v6629 = vunpack.c.h.b16 %v6599
      %v6630 = vunpack.c.h.b16 %v6600
      %v6631 = vunpack.c.h.b16 %v6601
      %v6632 = vunpack.c.h.b16 %v6602
      %v6633 = vunpack.c.h.b16 %v6603
      %v6634 = vunpack.c.h.b16 %v6604
      %v6635 = vunpack.c.l.b16 %v6605
      %v6636 = vunpack.c.l.b16 %v6606
      %v6637 = vunpack.c.l.b16 %v6607
      %v6638 = vunpack.c.l.b16 %v6608
      %v6639 = vunpack.c.l.b16 %v6609
      %v6640 = vunpack.c.l.b16 %v6610
      %v6641 = vunpack.c.h.b16 %v6605
      %v6642 = vunpack.c.h.b16 %v6606
      %v6643 = vunpack.c.h.b16 %v6607
      %v6644 = vunpack.c.h.b16 %v6608
      %v6645 = vunpack.c.h.b16 %v6609
      %v6646 = vunpack.c.h.b16 %v6610
      %v6647 = vpack.c.b16 %v6624, %v6623
      %v6648 = vpack.c.b16 %v6626, %v6625
      %v6649 = vpack.c.b16 %v6628, %v6627
      %v6650 = vpack.c.b16 %v6630, %v6629
      %v6651 = vpack.c.b16 %v6632, %v6631
      %v6652 = vpack.c.b16 %v6634, %v6633
      %v6653 = vpack.c.b16 %v6636, %v6635
      %v6654 = vpack.c.b16 %v6638, %v6637
      %v6655 = vpack.c.b16 %v6640, %v6639
      %v6656 = vpack.c.b16 %v6642, %v6641
      %v6657 = vpack.c.b16 %v6644, %v6643
      %v6658 = vpack.c.b16 %v6646, %v6645
      %6671 = vst [vmem:[#allocation2 + $0x540] sm:$0xff] %v6647
      %6672 = vst [vmem:[#allocation2 + $0x548] sm:$0xff] %v6648
      %6673 = vst [vmem:[#allocation2 + $0x550] sm:$0xff] %v6649
      %6674 = vst [vmem:[#allocation2 + $0x558] sm:$0xff] %v6650
      %6675 = vst [vmem:[#allocation2 + $0x560] sm:$0xff] %v6651
      %6676 = vst [vmem:[#allocation2 + $0x568] sm:$0xff] %v6652
      %6677 = vst [vmem:[#allocation2 + $0x570] sm:$0xff] %v6653
      %6678 = vst [vmem:[#allocation2 + $0x578] sm:$0xff] %v6654
      %6679 = vst [vmem:[#allocation2 + $0x580] sm:$0xff] %v6655
      %6680 = vst [vmem:[#allocation2 + $0x588] sm:$0xff] %v6656
      %6681 = vst [vmem:[#allocation2 + $0x590] sm:$0xff] %v6657
      %6682 = vst [vmem:[#allocation2 + $0x598] sm:$0xff] %v6658
      %6683 = vrot.lane.b32.xlu0 %v4463, 111
      %v6684 = vpop.permute.xlu0 %6683
      %6685 = vrot.lane.b32.xlu0 %v4469, 111
      %v6686 = vpop.permute.xlu0 %6685
      %6687 = vrot.lane.b32.xlu0 %v4475, 111
      %v6688 = vpop.permute.xlu0 %6687
      %6689 = vrot.lane.b32.xlu0 %v4481, 111
      %v6690 = vpop.permute.xlu0 %6689
      %6691 = vrot.lane.b32.xlu0 %v4464, 111
      %v6692 = vpop.permute.xlu0 %6691
      %6693 = vrot.lane.b32.xlu0 %v4470, 111
      %v6694 = vpop.permute.xlu0 %6693
      %6695 = vrot.lane.b32.xlu0 %v4476, 111
      %v6696 = vpop.permute.xlu0 %6695
      %6697 = vrot.lane.b32.xlu0 %v4482, 111
      %v6698 = vpop.permute.xlu0 %6697
      %6699 = vrot.lane.b32.xlu0 %v4465, 111
      %v6700 = vpop.permute.xlu0 %6699
      %6701 = vrot.lane.b32.xlu0 %v4471, 111
      %v6702 = vpop.permute.xlu0 %6701
      %6703 = vrot.lane.b32.xlu0 %v4477, 111
      %v6704 = vpop.permute.xlu0 %6703
      %6705 = vrot.lane.b32.xlu0 %v4483, 111
      %v6706 = vpop.permute.xlu0 %6705
      %6707 = vrot.lane.b32.xlu0 %v4466, 111
      %v6708 = vpop.permute.xlu0 %6707
      %6709 = vrot.lane.b32.xlu0 %v4472, 111
      %v6710 = vpop.permute.xlu0 %6709
      %6711 = vrot.lane.b32.xlu0 %v4478, 111
      %v6712 = vpop.permute.xlu0 %6711
      %6713 = vrot.lane.b32.xlu0 %v4484, 111
      %v6714 = vpop.permute.xlu0 %6713
      %6715 = vrot.lane.b32.xlu0 %v4467, 111
      %v6716 = vpop.permute.xlu0 %6715
      %6717 = vrot.lane.b32.xlu0 %v4473, 111
      %v6718 = vpop.permute.xlu0 %6717
      %6719 = vrot.lane.b32.xlu0 %v4479, 111
      %v6720 = vpop.permute.xlu0 %6719
      %6721 = vrot.lane.b32.xlu0 %v4485, 111
      %v6722 = vpop.permute.xlu0 %6721
      %6723 = vrot.lane.b32.xlu0 %v4468, 111
      %v6724 = vpop.permute.xlu0 %6723
      %6725 = vrot.lane.b32.xlu0 %v4474, 111
      %v6726 = vpop.permute.xlu0 %6725
      %6727 = vrot.lane.b32.xlu0 %v4480, 111
      %v6728 = vpop.permute.xlu0 %6727
      %6729 = vrot.lane.b32.xlu0 %v4486, 111
      %v6730 = vpop.permute.xlu0 %6729
      %v6731 = vsel %vm1023, %v6716, %v6724
      %v6732 = vsel %vm1023, %v6718, %v6726
      %v6733 = vsel %vm1023, %v6720, %v6728
      %v6734 = vsel %vm1023, %v6722, %v6730
      %v6735 = vsel %vm1023, %v6708, %v6716
      %v6736 = vsel %vm1023, %v6710, %v6718
      %v6737 = vsel %vm1023, %v6712, %v6720
      %v6738 = vsel %vm1023, %v6714, %v6722
      %v6739 = vsel %vm1023, %v6700, %v6708
      %v6740 = vsel %vm1023, %v6702, %v6710
      %v6741 = vsel %vm1023, %v6704, %v6712
      %v6742 = vsel %vm1023, %v6706, %v6714
      %v6743 = vsel %vm1023, %v6692, %v6700
      %v6744 = vsel %vm1023, %v6694, %v6702
      %v6745 = vsel %vm1023, %v6696, %v6704
      %v6746 = vsel %vm1023, %v6698, %v6706
      %v6747 = vsel %vm1023, %v6684, %v6692
      %v6748 = vsel %vm1023, %v6686, %v6694
      %v6749 = vsel %vm1023, %v6688, %v6696
      %v6750 = vsel %vm1023, %v6690, %v6698
      %v6751 = vsel %vm1023, %v6724, %v6684
      %v6752 = vsel %vm1023, %v6726, %v6686
      %v6753 = vsel %vm1023, %v6728, %v6688
      %v6754 = vsel %vm1023, %v6730, %v6690
      %v6755 = vpack.c.bf16 %v6748, %v6747
      %v6756 = vpack.c.bf16 %v6744, %v6743
      %v6757 = vpack.c.bf16 %v6740, %v6739
      %v6758 = vpack.c.bf16 %v6736, %v6735
      %v6759 = vpack.c.bf16 %v6732, %v6731
      %v6760 = vpack.c.bf16 %v6752, %v6751
      %v6761 = vpack.c.bf16 %v6750, %v6749
      %v6762 = vpack.c.bf16 %v6746, %v6745
      %v6763 = vpack.c.bf16 %v6742, %v6741
      %v6764 = vpack.c.bf16 %v6738, %v6737
      %v6765 = vpack.c.bf16 %v6734, %v6733
      %v6766 = vpack.c.bf16 %v6754, %v6753
      %v6779 = vunpack.c.l.b16 %v6755
      %v6780 = vunpack.c.l.b16 %v6756
      %v6781 = vunpack.c.l.b16 %v6757
      %v6782 = vunpack.c.l.b16 %v6758
      %v6783 = vunpack.c.l.b16 %v6759
      %v6784 = vunpack.c.l.b16 %v6760
      %v6785 = vunpack.c.h.b16 %v6755
      %v6786 = vunpack.c.h.b16 %v6756
      %v6787 = vunpack.c.h.b16 %v6757
      %v6788 = vunpack.c.h.b16 %v6758
      %v6789 = vunpack.c.h.b16 %v6759
      %v6790 = vunpack.c.h.b16 %v6760
      %v6791 = vunpack.c.l.b16 %v6761
      %v6792 = vunpack.c.l.b16 %v6762
      %v6793 = vunpack.c.l.b16 %v6763
      %v6794 = vunpack.c.l.b16 %v6764
      %v6795 = vunpack.c.l.b16 %v6765
      %v6796 = vunpack.c.l.b16 %v6766
      %v6797 = vunpack.c.h.b16 %v6761
      %v6798 = vunpack.c.h.b16 %v6762
      %v6799 = vunpack.c.h.b16 %v6763
      %v6800 = vunpack.c.h.b16 %v6764
      %v6801 = vunpack.c.h.b16 %v6765
      %v6802 = vunpack.c.h.b16 %v6766
      %v6803 = vpack.c.b16 %v6780, %v6779
      %v6804 = vpack.c.b16 %v6782, %v6781
      %v6805 = vpack.c.b16 %v6784, %v6783
      %v6806 = vpack.c.b16 %v6786, %v6785
      %v6807 = vpack.c.b16 %v6788, %v6787
      %v6808 = vpack.c.b16 %v6790, %v6789
      %v6809 = vpack.c.b16 %v6792, %v6791
      %v6810 = vpack.c.b16 %v6794, %v6793
      %v6811 = vpack.c.b16 %v6796, %v6795
      %v6812 = vpack.c.b16 %v6798, %v6797
      %v6813 = vpack.c.b16 %v6800, %v6799
      %v6814 = vpack.c.b16 %v6802, %v6801
      %6827 = vst [vmem:[#allocation2 + $0x5a0] sm:$0xff] %v6803
      %6828 = vst [vmem:[#allocation2 + $0x5a8] sm:$0xff] %v6804
      %6829 = vst [vmem:[#allocation2 + $0x5b0] sm:$0xff] %v6805
      %6830 = vst [vmem:[#allocation2 + $0x5b8] sm:$0xff] %v6806
      %6831 = vst [vmem:[#allocation2 + $0x5c0] sm:$0xff] %v6807
      %6832 = vst [vmem:[#allocation2 + $0x5c8] sm:$0xff] %v6808
      %6833 = vst [vmem:[#allocation2 + $0x5d0] sm:$0xff] %v6809
      %6834 = vst [vmem:[#allocation2 + $0x5d8] sm:$0xff] %v6810
      %6835 = vst [vmem:[#allocation2 + $0x5e0] sm:$0xff] %v6811
      %6836 = vst [vmem:[#allocation2 + $0x5e8] sm:$0xff] %v6812
      %6837 = vst [vmem:[#allocation2 + $0x5f0] sm:$0xff] %v6813
      %6838 = vst [vmem:[#allocation2 + $0x5f8] sm:$0xff] %v6814
      %6839 = vrot.lane.b32.xlu0 %v4463, 110
      %v6840 = vpop.permute.xlu0 %6839
      %6841 = vrot.lane.b32.xlu0 %v4469, 110
      %v6842 = vpop.permute.xlu0 %6841
      %6843 = vrot.lane.b32.xlu0 %v4475, 110
      %v6844 = vpop.permute.xlu0 %6843
      %6845 = vrot.lane.b32.xlu0 %v4481, 110
      %v6846 = vpop.permute.xlu0 %6845
      %6847 = vrot.lane.b32.xlu0 %v4464, 110
      %v6848 = vpop.permute.xlu0 %6847
      %6849 = vrot.lane.b32.xlu0 %v4470, 110
      %v6850 = vpop.permute.xlu0 %6849
      %6851 = vrot.lane.b32.xlu0 %v4476, 110
      %v6852 = vpop.permute.xlu0 %6851
      %6853 = vrot.lane.b32.xlu0 %v4482, 110
      %v6854 = vpop.permute.xlu0 %6853
      %6855 = vrot.lane.b32.xlu0 %v4465, 110
      %v6856 = vpop.permute.xlu0 %6855
      %6857 = vrot.lane.b32.xlu0 %v4471, 110
      %v6858 = vpop.permute.xlu0 %6857
      %6859 = vrot.lane.b32.xlu0 %v4477, 110
      %v6860 = vpop.permute.xlu0 %6859
      %6861 = vrot.lane.b32.xlu0 %v4483, 110
      %v6862 = vpop.permute.xlu0 %6861
      %6863 = vrot.lane.b32.xlu0 %v4466, 110
      %v6864 = vpop.permute.xlu0 %6863
      %6865 = vrot.lane.b32.xlu0 %v4472, 110
      %v6866 = vpop.permute.xlu0 %6865
      %6867 = vrot.lane.b32.xlu0 %v4478, 110
      %v6868 = vpop.permute.xlu0 %6867
      %6869 = vrot.lane.b32.xlu0 %v4484, 110
      %v6870 = vpop.permute.xlu0 %6869
      %6871 = vrot.lane.b32.xlu0 %v4467, 110
      %v6872 = vpop.permute.xlu0 %6871
      %6873 = vrot.lane.b32.xlu0 %v4473, 110
      %v6874 = vpop.permute.xlu0 %6873
      %6875 = vrot.lane.b32.xlu0 %v4479, 110
      %v6876 = vpop.permute.xlu0 %6875
      %6877 = vrot.lane.b32.xlu0 %v4485, 110
      %v6878 = vpop.permute.xlu0 %6877
      %6879 = vrot.lane.b32.xlu0 %v4468, 110
      %v6880 = vpop.permute.xlu0 %6879
      %6881 = vrot.lane.b32.xlu0 %v4474, 110
      %v6882 = vpop.permute.xlu0 %6881
      %6883 = vrot.lane.b32.xlu0 %v4480, 110
      %v6884 = vpop.permute.xlu0 %6883
      %6885 = vrot.lane.b32.xlu0 %v4486, 110
      %v6886 = vpop.permute.xlu0 %6885
      %v6887 = vsel %vm1098, %v6872, %v6880
      %v6888 = vsel %vm1098, %v6874, %v6882
      %v6889 = vsel %vm1098, %v6876, %v6884
      %v6890 = vsel %vm1098, %v6878, %v6886
      %v6891 = vsel %vm1098, %v6864, %v6872
      %v6892 = vsel %vm1098, %v6866, %v6874
      %v6893 = vsel %vm1098, %v6868, %v6876
      %v6894 = vsel %vm1098, %v6870, %v6878
      %v6895 = vsel %vm1098, %v6856, %v6864
      %v6896 = vsel %vm1098, %v6858, %v6866
      %v6897 = vsel %vm1098, %v6860, %v6868
      %v6898 = vsel %vm1098, %v6862, %v6870
      %v6899 = vsel %vm1098, %v6848, %v6856
      %v6900 = vsel %vm1098, %v6850, %v6858
      %v6901 = vsel %vm1098, %v6852, %v6860
      %v6902 = vsel %vm1098, %v6854, %v6862
      %v6903 = vsel %vm1098, %v6840, %v6848
      %v6904 = vsel %vm1098, %v6842, %v6850
      %v6905 = vsel %vm1098, %v6844, %v6852
      %v6906 = vsel %vm1098, %v6846, %v6854
      %v6907 = vsel %vm1098, %v6880, %v6840
      %v6908 = vsel %vm1098, %v6882, %v6842
      %v6909 = vsel %vm1098, %v6884, %v6844
      %v6910 = vsel %vm1098, %v6886, %v6846
      %v6911 = vpack.c.bf16 %v6904, %v6903
      %v6912 = vpack.c.bf16 %v6900, %v6899
      %v6913 = vpack.c.bf16 %v6896, %v6895
      %v6914 = vpack.c.bf16 %v6892, %v6891
      %v6915 = vpack.c.bf16 %v6888, %v6887
      %v6916 = vpack.c.bf16 %v6908, %v6907
      %v6917 = vpack.c.bf16 %v6906, %v6905
      %v6918 = vpack.c.bf16 %v6902, %v6901
      %v6919 = vpack.c.bf16 %v6898, %v6897
      %v6920 = vpack.c.bf16 %v6894, %v6893
      %v6921 = vpack.c.bf16 %v6890, %v6889
      %v6922 = vpack.c.bf16 %v6910, %v6909
      %v6935 = vunpack.c.l.b16 %v6911
      %v6936 = vunpack.c.l.b16 %v6912
      %v6937 = vunpack.c.l.b16 %v6913
      %v6938 = vunpack.c.l.b16 %v6914
      %v6939 = vunpack.c.l.b16 %v6915
      %v6940 = vunpack.c.l.b16 %v6916
      %v6941 = vunpack.c.h.b16 %v6911
      %v6942 = vunpack.c.h.b16 %v6912
      %v6943 = vunpack.c.h.b16 %v6913
      %v6944 = vunpack.c.h.b16 %v6914
      %v6945 = vunpack.c.h.b16 %v6915
      %v6946 = vunpack.c.h.b16 %v6916
      %v6947 = vunpack.c.l.b16 %v6917
      %v6948 = vunpack.c.l.b16 %v6918
      %v6949 = vunpack.c.l.b16 %v6919
      %v6950 = vunpack.c.l.b16 %v6920
      %v6951 = vunpack.c.l.b16 %v6921
      %v6952 = vunpack.c.l.b16 %v6922
      %v6953 = vunpack.c.h.b16 %v6917
      %v6954 = vunpack.c.h.b16 %v6918
      %v6955 = vunpack.c.h.b16 %v6919
      %v6956 = vunpack.c.h.b16 %v6920
      %v6957 = vunpack.c.h.b16 %v6921
      %v6958 = vunpack.c.h.b16 %v6922
      %v6959 = vpack.c.b16 %v6936, %v6935
      %v6960 = vpack.c.b16 %v6938, %v6937
      %v6961 = vpack.c.b16 %v6940, %v6939
      %v6962 = vpack.c.b16 %v6942, %v6941
      %v6963 = vpack.c.b16 %v6944, %v6943
      %v6964 = vpack.c.b16 %v6946, %v6945
      %v6965 = vpack.c.b16 %v6948, %v6947
      %v6966 = vpack.c.b16 %v6950, %v6949
      %v6967 = vpack.c.b16 %v6952, %v6951
      %v6968 = vpack.c.b16 %v6954, %v6953
      %v6969 = vpack.c.b16 %v6956, %v6955
      %v6970 = vpack.c.b16 %v6958, %v6957
      %6983 = vst [vmem:[#allocation2 + $0x600] sm:$0xff] %v6959
      %6984 = vst [vmem:[#allocation2 + $0x608] sm:$0xff] %v6960
      %6985 = vst [vmem:[#allocation2 + $0x610] sm:$0xff] %v6961
      %6986 = vst [vmem:[#allocation2 + $0x618] sm:$0xff] %v6962
      %6987 = vst [vmem:[#allocation2 + $0x620] sm:$0xff] %v6963
      %6988 = vst [vmem:[#allocation2 + $0x628] sm:$0xff] %v6964
      %6989 = vst [vmem:[#allocation2 + $0x630] sm:$0xff] %v6965
      %6990 = vst [vmem:[#allocation2 + $0x638] sm:$0xff] %v6966
      %6991 = vst [vmem:[#allocation2 + $0x640] sm:$0xff] %v6967
      %6992 = vst [vmem:[#allocation2 + $0x648] sm:$0xff] %v6968
      %6993 = vst [vmem:[#allocation2 + $0x650] sm:$0xff] %v6969
      %6994 = vst [vmem:[#allocation2 + $0x658] sm:$0xff] %v6970
      %6995 = vrot.lane.b32.xlu0 %v4463, 109
      %v6996 = vpop.permute.xlu0 %6995
      %6997 = vrot.lane.b32.xlu0 %v4469, 109
      %v6998 = vpop.permute.xlu0 %6997
      %6999 = vrot.lane.b32.xlu0 %v4475, 109
      %v7000 = vpop.permute.xlu0 %6999
      %7001 = vrot.lane.b32.xlu0 %v4481, 109
      %v7002 = vpop.permute.xlu0 %7001
      %7003 = vrot.lane.b32.xlu0 %v4464, 109
      %v7004 = vpop.permute.xlu0 %7003
      %7005 = vrot.lane.b32.xlu0 %v4470, 109
      %v7006 = vpop.permute.xlu0 %7005
      %7007 = vrot.lane.b32.xlu0 %v4476, 109
      %v7008 = vpop.permute.xlu0 %7007
      %7009 = vrot.lane.b32.xlu0 %v4482, 109
      %v7010 = vpop.permute.xlu0 %7009
      %7011 = vrot.lane.b32.xlu0 %v4465, 109
      %v7012 = vpop.permute.xlu0 %7011
      %7013 = vrot.lane.b32.xlu0 %v4471, 109
      %v7014 = vpop.permute.xlu0 %7013
      %7015 = vrot.lane.b32.xlu0 %v4477, 109
      %v7016 = vpop.permute.xlu0 %7015
      %7017 = vrot.lane.b32.xlu0 %v4483, 109
      %v7018 = vpop.permute.xlu0 %7017
      %7019 = vrot.lane.b32.xlu0 %v4466, 109
      %v7020 = vpop.permute.xlu0 %7019
      %7021 = vrot.lane.b32.xlu0 %v4472, 109
      %v7022 = vpop.permute.xlu0 %7021
      %7023 = vrot.lane.b32.xlu0 %v4478, 109
      %v7024 = vpop.permute.xlu0 %7023
      %7025 = vrot.lane.b32.xlu0 %v4484, 109
      %v7026 = vpop.permute.xlu0 %7025
      %7027 = vrot.lane.b32.xlu0 %v4467, 109
      %v7028 = vpop.permute.xlu0 %7027
      %7029 = vrot.lane.b32.xlu0 %v4473, 109
      %v7030 = vpop.permute.xlu0 %7029
      %7031 = vrot.lane.b32.xlu0 %v4479, 109
      %v7032 = vpop.permute.xlu0 %7031
      %7033 = vrot.lane.b32.xlu0 %v4485, 109
      %v7034 = vpop.permute.xlu0 %7033
      %7035 = vrot.lane.b32.xlu0 %v4468, 109
      %v7036 = vpop.permute.xlu0 %7035
      %7037 = vrot.lane.b32.xlu0 %v4474, 109
      %v7038 = vpop.permute.xlu0 %7037
      %7039 = vrot.lane.b32.xlu0 %v4480, 109
      %v7040 = vpop.permute.xlu0 %7039
      %7041 = vrot.lane.b32.xlu0 %v4486, 109
      %v7042 = vpop.permute.xlu0 %7041
      %v7043 = vsel %vm1173, %v7028, %v7036
      %v7044 = vsel %vm1173, %v7030, %v7038
      %v7045 = vsel %vm1173, %v7032, %v7040
      %v7046 = vsel %vm1173, %v7034, %v7042
      %v7047 = vsel %vm1173, %v7020, %v7028
      %v7048 = vsel %vm1173, %v7022, %v7030
      %v7049 = vsel %vm1173, %v7024, %v7032
      %v7050 = vsel %vm1173, %v7026, %v7034
      %v7051 = vsel %vm1173, %v7012, %v7020
      %v7052 = vsel %vm1173, %v7014, %v7022
      %v7053 = vsel %vm1173, %v7016, %v7024
      %v7054 = vsel %vm1173, %v7018, %v7026
      %v7055 = vsel %vm1173, %v7004, %v7012
      %v7056 = vsel %vm1173, %v7006, %v7014
      %v7057 = vsel %vm1173, %v7008, %v7016
      %v7058 = vsel %vm1173, %v7010, %v7018
      %v7059 = vsel %vm1173, %v6996, %v7004
      %v7060 = vsel %vm1173, %v6998, %v7006
      %v7061 = vsel %vm1173, %v7000, %v7008
      %v7062 = vsel %vm1173, %v7002, %v7010
      %v7063 = vsel %vm1173, %v7036, %v6996
      %v7064 = vsel %vm1173, %v7038, %v6998
      %v7065 = vsel %vm1173, %v7040, %v7000
      %v7066 = vsel %vm1173, %v7042, %v7002
      %v7067 = vpack.c.bf16 %v7060, %v7059
      %v7068 = vpack.c.bf16 %v7056, %v7055
      %v7069 = vpack.c.bf16 %v7052, %v7051
      %v7070 = vpack.c.bf16 %v7048, %v7047
      %v7071 = vpack.c.bf16 %v7044, %v7043
      %v7072 = vpack.c.bf16 %v7064, %v7063
      %v7073 = vpack.c.bf16 %v7062, %v7061
      %v7074 = vpack.c.bf16 %v7058, %v7057
      %v7075 = vpack.c.bf16 %v7054, %v7053
      %v7076 = vpack.c.bf16 %v7050, %v7049
      %v7077 = vpack.c.bf16 %v7046, %v7045
      %v7078 = vpack.c.bf16 %v7066, %v7065
      %v7091 = vunpack.c.l.b16 %v7067
      %v7092 = vunpack.c.l.b16 %v7068
      %v7093 = vunpack.c.l.b16 %v7069
      %v7094 = vunpack.c.l.b16 %v7070
      %v7095 = vunpack.c.l.b16 %v7071
      %v7096 = vunpack.c.l.b16 %v7072
      %v7097 = vunpack.c.h.b16 %v7067
      %v7098 = vunpack.c.h.b16 %v7068
      %v7099 = vunpack.c.h.b16 %v7069
      %v7100 = vunpack.c.h.b16 %v7070
      %v7101 = vunpack.c.h.b16 %v7071
      %v7102 = vunpack.c.h.b16 %v7072
      %v7103 = vunpack.c.l.b16 %v7073
      %v7104 = vunpack.c.l.b16 %v7074
      %v7105 = vunpack.c.l.b16 %v7075
      %v7106 = vunpack.c.l.b16 %v7076
      %v7107 = vunpack.c.l.b16 %v7077
      %v7108 = vunpack.c.l.b16 %v7078
      %v7109 = vunpack.c.h.b16 %v7073
      %v7110 = vunpack.c.h.b16 %v7074
      %v7111 = vunpack.c.h.b16 %v7075
      %v7112 = vunpack.c.h.b16 %v7076
      %v7113 = vunpack.c.h.b16 %v7077
      %v7114 = vunpack.c.h.b16 %v7078
      %v7115 = vpack.c.b16 %v7092, %v7091
      %v7116 = vpack.c.b16 %v7094, %v7093
      %v7117 = vpack.c.b16 %v7096, %v7095
      %v7118 = vpack.c.b16 %v7098, %v7097
      %v7119 = vpack.c.b16 %v7100, %v7099
      %v7120 = vpack.c.b16 %v7102, %v7101
      %v7121 = vpack.c.b16 %v7104, %v7103
      %v7122 = vpack.c.b16 %v7106, %v7105
      %v7123 = vpack.c.b16 %v7108, %v7107
      %v7124 = vpack.c.b16 %v7110, %v7109
      %v7125 = vpack.c.b16 %v7112, %v7111
      %v7126 = vpack.c.b16 %v7114, %v7113
      %7139 = vst [vmem:[#allocation2 + $0x660] sm:$0xff] %v7115
      %7140 = vst [vmem:[#allocation2 + $0x668] sm:$0xff] %v7116
      %7141 = vst [vmem:[#allocation2 + $0x670] sm:$0xff] %v7117
      %7142 = vst [vmem:[#allocation2 + $0x678] sm:$0xff] %v7118
      %7143 = vst [vmem:[#allocation2 + $0x680] sm:$0xff] %v7119
      %7144 = vst [vmem:[#allocation2 + $0x688] sm:$0xff] %v7120
      %7145 = vst [vmem:[#allocation2 + $0x690] sm:$0xff] %v7121
      %7146 = vst [vmem:[#allocation2 + $0x698] sm:$0xff] %v7122
      %7147 = vst [vmem:[#allocation2 + $0x6a0] sm:$0xff] %v7123
      %7148 = vst [vmem:[#allocation2 + $0x6a8] sm:$0xff] %v7124
      %7149 = vst [vmem:[#allocation2 + $0x6b0] sm:$0xff] %v7125
      %7150 = vst [vmem:[#allocation2 + $0x6b8] sm:$0xff] %v7126
      %v7151 = vld [vmem:[%s11] sm:$0xff]
      %v7152 = vld [vmem:[%s11 + $0x8] sm:$0xff]
      %v7153 = vld [vmem:[%s11 + $0x10] sm:$0xf]
      %v7154 = vld [vmem:[%s11 + $0x14] sm:$0xff]
      %v7155 = vld [vmem:[%s11 + $0x1c] sm:$0xff]
      %v7156 = vld [vmem:[%s11 + $0x24] sm:$0xf]
      %v7157 = vld [vmem:[%s11 + $0x28] sm:$0xff]
      %v7158 = vld [vmem:[%s11 + $0x30] sm:$0xff]
      %v7159 = vld [vmem:[%s11 + $0x38] sm:$0xf]
      %v7160 = vld [vmem:[%s11 + $0x3c] sm:$0xff]
      %v7161 = vld [vmem:[%s11 + $0x44] sm:$0xff]
      %v7162 = vld [vmem:[%s11 + $0x4c] sm:$0xf]
      %v7163 = vld [vmem:[#allocation2] sm:$0xff]
      %v7164 = vld [vmem:[#allocation2 + $0x8] sm:$0xff]
      %v7165 = vld [vmem:[#allocation2 + $0x10] sm:$0xff]
      %v7166 = vld [vmem:[#allocation2 + $0x18] sm:$0xff]
      %v7167 = vld [vmem:[#allocation2 + $0x20] sm:$0xff]
      %v7168 = vld [vmem:[#allocation2 + $0x28] sm:$0xff]
      %v7169 = vld [vmem:[#allocation2 + $0x30] sm:$0xff]
      %v7170 = vld [vmem:[#allocation2 + $0x38] sm:$0xff]
      %v7171 = vld [vmem:[#allocation2 + $0x40] sm:$0xff]
      %v7172 = vld [vmem:[#allocation2 + $0x48] sm:$0xff]
      %v7173 = vld [vmem:[#allocation2 + $0x50] sm:$0xff]
      %v7174 = vld [vmem:[#allocation2 + $0x58] sm:$0xff]
      %v7175 = vld [vmem:[#allocation2 + $0x60] sm:$0xff]
      %v7176 = vld [vmem:[#allocation2 + $0x68] sm:$0xff]
      %v7177 = vld [vmem:[#allocation2 + $0x70] sm:$0xff]
      %v7178 = vld [vmem:[#allocation2 + $0x78] sm:$0xff]
      %v7179 = vld [vmem:[#allocation2 + $0x80] sm:$0xff]
      %v7180 = vld [vmem:[#allocation2 + $0x88] sm:$0xff]
      %v7181 = vld [vmem:[#allocation2 + $0x90] sm:$0xff]
      %v7182 = vld [vmem:[#allocation2 + $0x98] sm:$0xff]
      %v7183 = vld [vmem:[#allocation2 + $0xa0] sm:$0xff]
      %v7184 = vld [vmem:[#allocation2 + $0xa8] sm:$0xff]
      %v7185 = vld [vmem:[#allocation2 + $0xb0] sm:$0xff]
      %v7186 = vld [vmem:[#allocation2 + $0xb8] sm:$0xff]
      %v7187 = vld [vmem:[#allocation2 + $0xc0] sm:$0xff]
      %v7188 = vld [vmem:[#allocation2 + $0xc8] sm:$0xff]
      %v7189 = vld [vmem:[#allocation2 + $0xd0] sm:$0xff]
      %v7190 = vld [vmem:[#allocation2 + $0xd8] sm:$0xff]
      %v7191 = vld [vmem:[#allocation2 + $0xe0] sm:$0xff]
      %v7192 = vld [vmem:[#allocation2 + $0xe8] sm:$0xff]
      %v7193 = vld [vmem:[#allocation2 + $0xf0] sm:$0xff]
      %v7194 = vld [vmem:[#allocation2 + $0xf8] sm:$0xff]
      %v7195 = vld [vmem:[#allocation2 + $0x100] sm:$0xff]
      %v7196 = vld [vmem:[#allocation2 + $0x108] sm:$0xff]
      %v7197 = vld [vmem:[#allocation2 + $0x110] sm:$0xff]
      %v7198 = vld [vmem:[#allocation2 + $0x118] sm:$0xff]
      %v7199 = vld [vmem:[#allocation2 + $0x120] sm:$0xff]
      %v7200 = vld [vmem:[#allocation2 + $0x128] sm:$0xff]
      %v7201 = vld [vmem:[#allocation2 + $0x130] sm:$0xff]
      %v7202 = vld [vmem:[#allocation2 + $0x138] sm:$0xff]
      %v7203 = vld [vmem:[#allocation2 + $0x140] sm:$0xff]
      %v7204 = vld [vmem:[#allocation2 + $0x148] sm:$0xff]
      %v7205 = vld [vmem:[#allocation2 + $0x150] sm:$0xff]
      %v7206 = vld [vmem:[#allocation2 + $0x158] sm:$0xff]
      %v7207 = vld [vmem:[#allocation2 + $0x160] sm:$0xff]
      %v7208 = vld [vmem:[#allocation2 + $0x168] sm:$0xff]
      %v7209 = vld [vmem:[#allocation2 + $0x170] sm:$0xff]
      %v7210 = vld [vmem:[#allocation2 + $0x178] sm:$0xff]
      %v7211 = vld [vmem:[#allocation2 + $0x180] sm:$0xff]
      %v7212 = vld [vmem:[#allocation2 + $0x188] sm:$0xff]
      %v7213 = vld [vmem:[#allocation2 + $0x190] sm:$0xff]
      %v7214 = vld [vmem:[#allocation2 + $0x198] sm:$0xff]
      %v7215 = vld [vmem:[#allocation2 + $0x1a0] sm:$0xff]
      %v7216 = vld [vmem:[#allocation2 + $0x1a8] sm:$0xff]
      %v7217 = vld [vmem:[#allocation2 + $0x1b0] sm:$0xff]
      %v7218 = vld [vmem:[#allocation2 + $0x1b8] sm:$0xff]
      %v7219 = vld [vmem:[#allocation2 + $0x1c0] sm:$0xff]
      %v7220 = vld [vmem:[#allocation2 + $0x1c8] sm:$0xff]
      %v7221 = vld [vmem:[#allocation2 + $0x1d0] sm:$0xff]
      %v7222 = vld [vmem:[#allocation2 + $0x1d8] sm:$0xff]
      %v7223 = vld [vmem:[#allocation2 + $0x1e0] sm:$0xff]
      %v7224 = vld [vmem:[#allocation2 + $0x1e8] sm:$0xff]
      %v7225 = vld [vmem:[#allocation2 + $0x1f0] sm:$0xff]
      %v7226 = vld [vmem:[#allocation2 + $0x1f8] sm:$0xff]
      %v7227 = vld [vmem:[#allocation2 + $0x200] sm:$0xff]
      %v7228 = vld [vmem:[#allocation2 + $0x208] sm:$0xff]
      %v7229 = vld [vmem:[#allocation2 + $0x210] sm:$0xff]
      %v7230 = vld [vmem:[#allocation2 + $0x218] sm:$0xff]
      %v7231 = vld [vmem:[#allocation2 + $0x220] sm:$0xff]
      %v7232 = vld [vmem:[#allocation2 + $0x228] sm:$0xff]
      %v7233 = vld [vmem:[#allocation2 + $0x230] sm:$0xff]
      %v7234 = vld [vmem:[#allocation2 + $0x238] sm:$0xff]
      %v7235 = vld [vmem:[#allocation2 + $0x240] sm:$0xff]
      %v7236 = vld [vmem:[#allocation2 + $0x248] sm:$0xff]
      %v7237 = vld [vmem:[#allocation2 + $0x250] sm:$0xff]
      %v7238 = vld [vmem:[#allocation2 + $0x258] sm:$0xff]
      %v7239 = vld [vmem:[#allocation2 + $0x260] sm:$0xff]
      %v7240 = vld [vmem:[#allocation2 + $0x268] sm:$0xff]
      %v7241 = vld [vmem:[#allocation2 + $0x270] sm:$0xff]
      %v7242 = vld [vmem:[#allocation2 + $0x278] sm:$0xff]
      %v7243 = vld [vmem:[#allocation2 + $0x280] sm:$0xff]
      %v7244 = vld [vmem:[#allocation2 + $0x288] sm:$0xff]
      %v7245 = vld [vmem:[#allocation2 + $0x290] sm:$0xff]
      %v7246 = vld [vmem:[#allocation2 + $0x298] sm:$0xff]
      %v7247 = vld [vmem:[#allocation2 + $0x2a0] sm:$0xff]
      %v7248 = vld [vmem:[#allocation2 + $0x2a8] sm:$0xff]
      %v7249 = vld [vmem:[#allocation2 + $0x2b0] sm:$0xff]
      %v7250 = vld [vmem:[#allocation2 + $0x2b8] sm:$0xff]
      %v7251 = vld [vmem:[#allocation2 + $0x2c0] sm:$0xff]
      %v7252 = vld [vmem:[#allocation2 + $0x2c8] sm:$0xff]
      %v7253 = vld [vmem:[#allocation2 + $0x2d0] sm:$0xff]
      %v7254 = vld [vmem:[#allocation2 + $0x2d8] sm:$0xff]
      %v7255 = vld [vmem:[#allocation2 + $0x2e0] sm:$0xff]
      %v7256 = vld [vmem:[#allocation2 + $0x2e8] sm:$0xff]
      %v7257 = vld [vmem:[#allocation2 + $0x2f0] sm:$0xff]
      %v7258 = vld [vmem:[#allocation2 + $0x2f8] sm:$0xff]
      %v7259 = vld [vmem:[#allocation2 + $0x300] sm:$0xff]
      %v7260 = vld [vmem:[#allocation2 + $0x308] sm:$0xff]
      %v7261 = vld [vmem:[#allocation2 + $0x310] sm:$0xff]
      %v7262 = vld [vmem:[#allocation2 + $0x318] sm:$0xff]
      %v7263 = vld [vmem:[#allocation2 + $0x320] sm:$0xff]
      %v7264 = vld [vmem:[#allocation2 + $0x328] sm:$0xff]
      %v7265 = vld [vmem:[#allocation2 + $0x330] sm:$0xff]
      %v7266 = vld [vmem:[#allocation2 + $0x338] sm:$0xff]
      %v7267 = vld [vmem:[#allocation2 + $0x340] sm:$0xff]
      %v7268 = vld [vmem:[#allocation2 + $0x348] sm:$0xff]
      %v7269 = vld [vmem:[#allocation2 + $0x350] sm:$0xff]
      %v7270 = vld [vmem:[#allocation2 + $0x358] sm:$0xff]
      %v7271 = vld [vmem:[#allocation2 + $0x360] sm:$0xff]
      %v7272 = vld [vmem:[#allocation2 + $0x368] sm:$0xff]
      %v7273 = vld [vmem:[#allocation2 + $0x370] sm:$0xff]
      %v7274 = vld [vmem:[#allocation2 + $0x378] sm:$0xff]
      %v7275 = vld [vmem:[#allocation2 + $0x380] sm:$0xff]
      %v7276 = vld [vmem:[#allocation2 + $0x388] sm:$0xff]
      %v7277 = vld [vmem:[#allocation2 + $0x390] sm:$0xff]
      %v7278 = vld [vmem:[#allocation2 + $0x398] sm:$0xff]
      %v7279 = vld [vmem:[#allocation2 + $0x3a0] sm:$0xff]
      %v7280 = vld [vmem:[#allocation2 + $0x3a8] sm:$0xff]
      %v7281 = vld [vmem:[#allocation2 + $0x3b0] sm:$0xff]
      %v7282 = vld [vmem:[#allocation2 + $0x3b8] sm:$0xff]
      %v7283 = vld [vmem:[#allocation2 + $0x3c0] sm:$0xff]
      %v7284 = vld [vmem:[#allocation2 + $0x3c8] sm:$0xff]
      %v7285 = vld [vmem:[#allocation2 + $0x3d0] sm:$0xff]
      %v7286 = vld [vmem:[#allocation2 + $0x3d8] sm:$0xff]
      %v7287 = vld [vmem:[#allocation2 + $0x3e0] sm:$0xff]
      %v7288 = vld [vmem:[#allocation2 + $0x3e8] sm:$0xff]
      %v7289 = vld [vmem:[#allocation2 + $0x3f0] sm:$0xff]
      %v7290 = vld [vmem:[#allocation2 + $0x3f8] sm:$0xff]
      %v7291 = vld [vmem:[#allocation2 + $0x400] sm:$0xff]
      %v7292 = vld [vmem:[#allocation2 + $0x408] sm:$0xff]
      %v7293 = vld [vmem:[#allocation2 + $0x410] sm:$0xff]
      %v7294 = vld [vmem:[#allocation2 + $0x418] sm:$0xff]
      %v7295 = vld [vmem:[#allocation2 + $0x420] sm:$0xff]
      %v7296 = vld [vmem:[#allocation2 + $0x428] sm:$0xff]
      %v7297 = vld [vmem:[#allocation2 + $0x430] sm:$0xff]
      %v7298 = vld [vmem:[#allocation2 + $0x438] sm:$0xff]
      %v7299 = vld [vmem:[#allocation2 + $0x440] sm:$0xff]
      %v7300 = vld [vmem:[#allocation2 + $0x448] sm:$0xff]
      %v7301 = vld [vmem:[#allocation2 + $0x450] sm:$0xff]
      %v7302 = vld [vmem:[#allocation2 + $0x458] sm:$0xff]
      %v7303 = vld [vmem:[#allocation2 + $0x460] sm:$0xff]
      %v7304 = vld [vmem:[#allocation2 + $0x468] sm:$0xff]
      %v7305 = vld [vmem:[#allocation2 + $0x470] sm:$0xff]
      %v7306 = vld [vmem:[#allocation2 + $0x478] sm:$0xff]
      %v7307 = vld [vmem:[#allocation2 + $0x480] sm:$0xff]
      %v7308 = vld [vmem:[#allocation2 + $0x488] sm:$0xff]
      %v7309 = vld [vmem:[#allocation2 + $0x490] sm:$0xff]
      %v7310 = vld [vmem:[#allocation2 + $0x498] sm:$0xff]
      %v7311 = vld [vmem:[#allocation2 + $0x4a0] sm:$0xff]
      %v7312 = vld [vmem:[#allocation2 + $0x4a8] sm:$0xff]
      %v7313 = vld [vmem:[#allocation2 + $0x4b0] sm:$0xff]
      %v7314 = vld [vmem:[#allocation2 + $0x4b8] sm:$0xff]
      %v7315 = vld [vmem:[#allocation2 + $0x4c0] sm:$0xff]
      %v7316 = vld [vmem:[#allocation2 + $0x4c8] sm:$0xff]
      %v7317 = vld [vmem:[#allocation2 + $0x4d0] sm:$0xff]
      %v7318 = vld [vmem:[#allocation2 + $0x4d8] sm:$0xff]
      %v7319 = vld [vmem:[#allocation2 + $0x4e0] sm:$0xff]
      %v7320 = vld [vmem:[#allocation2 + $0x4e8] sm:$0xff]
      %v7321 = vld [vmem:[#allocation2 + $0x4f0] sm:$0xff]
      %v7322 = vld [vmem:[#allocation2 + $0x4f8] sm:$0xff]
      %v7323 = vld [vmem:[#allocation2 + $0x500] sm:$0xff]
      %v7324 = vld [vmem:[#allocation2 + $0x508] sm:$0xff]
      %v7325 = vld [vmem:[#allocation2 + $0x510] sm:$0xff]
      %v7326 = vld [vmem:[#allocation2 + $0x518] sm:$0xff]
      %v7327 = vld [vmem:[#allocation2 + $0x520] sm:$0xff]
      %v7328 = vld [vmem:[#allocation2 + $0x528] sm:$0xff]
      %v7329 = vld [vmem:[#allocation2 + $0x530] sm:$0xff]
      %v7330 = vld [vmem:[#allocation2 + $0x538] sm:$0xff]
      %v7331 = vld [vmem:[#allocation2 + $0x540] sm:$0xff]
      %v7332 = vld [vmem:[#allocation2 + $0x548] sm:$0xff]
      %v7333 = vld [vmem:[#allocation2 + $0x550] sm:$0xff]
      %v7334 = vld [vmem:[#allocation2 + $0x558] sm:$0xff]
      %v7335 = vld [vmem:[#allocation2 + $0x560] sm:$0xff]
      %v7336 = vld [vmem:[#allocation2 + $0x568] sm:$0xff]
      %v7337 = vld [vmem:[#allocation2 + $0x570] sm:$0xff]
      %v7338 = vld [vmem:[#allocation2 + $0x578] sm:$0xff]
      %v7339 = vld [vmem:[#allocation2 + $0x580] sm:$0xff]
      %v7340 = vld [vmem:[#allocation2 + $0x588] sm:$0xff]
      %v7341 = vld [vmem:[#allocation2 + $0x590] sm:$0xff]
      %v7342 = vld [vmem:[#allocation2 + $0x598] sm:$0xff]
      %v7343 = vld [vmem:[#allocation2 + $0x5a0] sm:$0xff]
      %v7344 = vld [vmem:[#allocation2 + $0x5a8] sm:$0xff]
      %v7345 = vld [vmem:[#allocation2 + $0x5b0] sm:$0xff]
      %v7346 = vld [vmem:[#allocation2 + $0x5b8] sm:$0xff]
      %v7347 = vld [vmem:[#allocation2 + $0x5c0] sm:$0xff]
      %v7348 = vld [vmem:[#allocation2 + $0x5c8] sm:$0xff]
      %v7349 = vld [vmem:[#allocation2 + $0x5d0] sm:$0xff]
      %v7350 = vld [vmem:[#allocation2 + $0x5d8] sm:$0xff]
      %v7351 = vld [vmem:[#allocation2 + $0x5e0] sm:$0xff]
      %v7352 = vld [vmem:[#allocation2 + $0x5e8] sm:$0xff]
      %v7353 = vld [vmem:[#allocation2 + $0x5f0] sm:$0xff]
      %v7354 = vld [vmem:[#allocation2 + $0x5f8] sm:$0xff]
      %v7355 = vld [vmem:[#allocation2 + $0x600] sm:$0xff]
      %v7356 = vld [vmem:[#allocation2 + $0x608] sm:$0xff]
      %v7357 = vld [vmem:[#allocation2 + $0x610] sm:$0xff]
      %v7358 = vld [vmem:[#allocation2 + $0x618] sm:$0xff]
      %v7359 = vld [vmem:[#allocation2 + $0x620] sm:$0xff]
      %v7360 = vld [vmem:[#allocation2 + $0x628] sm:$0xff]
      %v7361 = vld [vmem:[#allocation2 + $0x630] sm:$0xff]
      %v7362 = vld [vmem:[#allocation2 + $0x638] sm:$0xff]
      %v7363 = vld [vmem:[#allocation2 + $0x640] sm:$0xff]
      %v7364 = vld [vmem:[#allocation2 + $0x648] sm:$0xff]
      %v7365 = vld [vmem:[#allocation2 + $0x650] sm:$0xff]
      %v7366 = vld [vmem:[#allocation2 + $0x658] sm:$0xff]
      %v7367 = vld [vmem:[#allocation2 + $0x660] sm:$0xff]
      %v7368 = vld [vmem:[#allocation2 + $0x668] sm:$0xff]
      %v7369 = vld [vmem:[#allocation2 + $0x670] sm:$0xff]
      %v7370 = vld [vmem:[#allocation2 + $0x678] sm:$0xff]
      %v7371 = vld [vmem:[#allocation2 + $0x680] sm:$0xff]
      %v7372 = vld [vmem:[#allocation2 + $0x688] sm:$0xff]
      %v7373 = vld [vmem:[#allocation2 + $0x690] sm:$0xff]
      %v7374 = vld [vmem:[#allocation2 + $0x698] sm:$0xff]
      %v7375 = vld [vmem:[#allocation2 + $0x6a0] sm:$0xff]
      %v7376 = vld [vmem:[#allocation2 + $0x6a8] sm:$0xff]
      %v7377 = vld [vmem:[#allocation2 + $0x6b0] sm:$0xff]
      %v7378 = vld [vmem:[#allocation2 + $0x6b8] sm:$0xff]
      %v7379 = vld [vmem:[%s12] sm:$0xff]
      %v7380 = vld [vmem:[%s12 + $0x8] sm:$0xff]
      %v7381 = vld [vmem:[%s12 + $0x10] sm:$0xff]
      %v7382 = vld [vmem:[%s12 + $0x18] sm:$0xff]
      %7384 = vset.pattern.permute.xlu0 0
      %7385 = vperm.xlu0 %7384, %v7379
      %v7386 = vpop.permute.xlu0 %7385
      %7389 = vset.pattern.permute.xlu0 0
      %7390 = vperm.xlu0 %7389, %v7380
      %v7391 = vpop.permute.xlu0 %7390
      %7394 = vset.pattern.permute.xlu0 0
      %7395 = vperm.xlu0 %7394, %v7381
      %v7396 = vpop.permute.xlu0 %7395
      %7399 = vset.pattern.permute.xlu0 0
      %7400 = vperm.xlu0 %7399, %v7382
      %v7401 = vpop.permute.xlu0 %7400
      %v7415 = vunpack.c.l.b16 %v7151
      %v7416 = vunpack.c.h.b16 %v7151
      %v7417 = vunpack.c.l.b16 %v7152
      %v7418 = vunpack.c.h.b16 %v7152
      %v7419 = vunpack.c.l.b16 %v7153
      %v7420 = vunpack.c.l.b16 %v7154
      %v7421 = vunpack.c.h.b16 %v7154
      %v7422 = vunpack.c.l.b16 %v7155
      %v7423 = vunpack.c.h.b16 %v7155
      %v7424 = vunpack.c.l.b16 %v7156
      %v7425 = vunpack.c.l.b16 %v7157
      %v7426 = vunpack.c.h.b16 %v7157
      %v7427 = vunpack.c.l.b16 %v7158
      %v7428 = vunpack.c.h.b16 %v7158
      %v7429 = vunpack.c.l.b16 %v7159
      %v7430 = vunpack.c.l.b16 %v7160
      %v7431 = vunpack.c.h.b16 %v7160
      %v7432 = vunpack.c.l.b16 %v7161
      %v7433 = vunpack.c.h.b16 %v7161
      %v7434 = vunpack.c.l.b16 %v7162
      %v7435 = vpack.c.b16 %v7420, %v7415
      %v7436 = vpack.c.b16 %v7421, %v7416
      %v7437 = vpack.c.b16 %v7422, %v7417
      %v7438 = vpack.c.b16 %v7423, %v7418
      %v7439 = vpack.c.b16 %v7424, %v7419
      %v7440 = vpack.c.b16 %v7430, %v7425
      %v7441 = vpack.c.b16 %v7431, %v7426
      %v7442 = vpack.c.b16 %v7432, %v7427
      %v7443 = vpack.c.b16 %v7433, %v7428
      %v7444 = vpack.c.b16 %v7434, %v7429
      %v7669 = vunpack.c.l.b16 %v7163
      %v7670 = vunpack.c.h.b16 %v7163
      %v7671 = vunpack.c.l.b16 %v7164
      %v7672 = vunpack.c.h.b16 %v7164
      %v7673 = vunpack.c.l.b16 %v7165
      %v7674 = vunpack.c.h.b16 %v7165
      %v7675 = vunpack.c.l.b16 %v7166
      %v7676 = vunpack.c.h.b16 %v7166
      %v7677 = vunpack.c.l.b16 %v7167
      %v7678 = vunpack.c.h.b16 %v7167
      %v7679 = vunpack.c.l.b16 %v7168
      %v7680 = vunpack.c.h.b16 %v7168
      %v7681 = vunpack.c.l.b16 %v7169
      %v7682 = vunpack.c.h.b16 %v7169
      %v7683 = vunpack.c.l.b16 %v7170
      %v7684 = vunpack.c.h.b16 %v7170
      %v7685 = vunpack.c.l.b16 %v7171
      %v7686 = vunpack.c.h.b16 %v7171
      %v7687 = vunpack.c.l.b16 %v7172
      %v7688 = vunpack.c.h.b16 %v7172
      %v7689 = vunpack.c.l.b16 %v7173
      %v7690 = vunpack.c.h.b16 %v7173
      %v7691 = vunpack.c.l.b16 %v7174
      %v7692 = vunpack.c.h.b16 %v7174
      %v7693 = vunpack.c.l.b16 %v7175
      %v7694 = vunpack.c.h.b16 %v7175
      %v7695 = vunpack.c.l.b16 %v7176
      %v7696 = vunpack.c.h.b16 %v7176
      %v7697 = vunpack.c.l.b16 %v7177
      %v7698 = vunpack.c.h.b16 %v7177
      %v7699 = vunpack.c.l.b16 %v7178
      %v7700 = vunpack.c.h.b16 %v7178
      %v7701 = vunpack.c.l.b16 %v7179
      %v7702 = vunpack.c.h.b16 %v7179
      %v7703 = vunpack.c.l.b16 %v7180
      %v7704 = vunpack.c.h.b16 %v7180
      %v7705 = vunpack.c.l.b16 %v7181
      %v7706 = vunpack.c.h.b16 %v7181
      %v7707 = vunpack.c.l.b16 %v7182
      %v7708 = vunpack.c.h.b16 %v7182
      %v7709 = vunpack.c.l.b16 %v7183
      %v7710 = vunpack.c.h.b16 %v7183
      %v7711 = vunpack.c.l.b16 %v7184
      %v7712 = vunpack.c.h.b16 %v7184
      %v7713 = vunpack.c.l.b16 %v7185
      %v7714 = vunpack.c.h.b16 %v7185
      %v7715 = vunpack.c.l.b16 %v7186
      %v7716 = vunpack.c.h.b16 %v7186
      %v7717 = vunpack.c.l.b16 %v7187
      %v7718 = vunpack.c.h.b16 %v7187
      %v7719 = vunpack.c.l.b16 %v7188
      %v7720 = vunpack.c.h.b16 %v7188
      %v7721 = vunpack.c.l.b16 %v7189
      %v7722 = vunpack.c.h.b16 %v7189
      %v7723 = vunpack.c.l.b16 %v7190
      %v7724 = vunpack.c.h.b16 %v7190
      %v7725 = vunpack.c.l.b16 %v7191
      %v7726 = vunpack.c.h.b16 %v7191
      %v7727 = vunpack.c.l.b16 %v7192
      %v7728 = vunpack.c.h.b16 %v7192
      %v7729 = vunpack.c.l.b16 %v7193
      %v7730 = vunpack.c.h.b16 %v7193
      %v7731 = vunpack.c.l.b16 %v7194
      %v7732 = vunpack.c.h.b16 %v7194
      %v7733 = vunpack.c.l.b16 %v7195
      %v7734 = vunpack.c.h.b16 %v7195
      %v7735 = vunpack.c.l.b16 %v7196
      %v7736 = vunpack.c.h.b16 %v7196
      %v7737 = vunpack.c.l.b16 %v7197
      %v7738 = vunpack.c.h.b16 %v7197
      %v7739 = vunpack.c.l.b16 %v7198
      %v7740 = vunpack.c.h.b16 %v7198
      %v7741 = vunpack.c.l.b16 %v7199
      %v7742 = vunpack.c.h.b16 %v7199
      %v7743 = vunpack.c.l.b16 %v7200
      %v7744 = vunpack.c.h.b16 %v7200
      %v7745 = vunpack.c.l.b16 %v7201
      %v7746 = vunpack.c.h.b16 %v7201
      %v7747 = vunpack.c.l.b16 %v7202
      %v7748 = vunpack.c.h.b16 %v7202
      %v7749 = vunpack.c.l.b16 %v7203
      %v7750 = vunpack.c.h.b16 %v7203
      %v7751 = vunpack.c.l.b16 %v7204
      %v7752 = vunpack.c.h.b16 %v7204
      %v7753 = vunpack.c.l.b16 %v7205
      %v7754 = vunpack.c.h.b16 %v7205
      %v7755 = vunpack.c.l.b16 %v7206
      %v7756 = vunpack.c.h.b16 %v7206
      %v7757 = vunpack.c.l.b16 %v7207
      %v7758 = vunpack.c.h.b16 %v7207
      %v7759 = vunpack.c.l.b16 %v7208
      %v7760 = vunpack.c.h.b16 %v7208
      %v7761 = vunpack.c.l.b16 %v7209
      %v7762 = vunpack.c.h.b16 %v7209
      %v7763 = vunpack.c.l.b16 %v7210
      %v7764 = vunpack.c.h.b16 %v7210
      %v7765 = vunpack.c.l.b16 %v7211
      %v7766 = vunpack.c.h.b16 %v7211
      %v7767 = vunpack.c.l.b16 %v7212
      %v7768 = vunpack.c.h.b16 %v7212
      %v7769 = vunpack.c.l.b16 %v7213
      %v7770 = vunpack.c.h.b16 %v7213
      %v7771 = vunpack.c.l.b16 %v7214
      %v7772 = vunpack.c.h.b16 %v7214
      %v7773 = vunpack.c.l.b16 %v7215
      %v7774 = vunpack.c.h.b16 %v7215
      %v7775 = vunpack.c.l.b16 %v7216
      %v7776 = vunpack.c.h.b16 %v7216
      %v7777 = vunpack.c.l.b16 %v7217
      %v7778 = vunpack.c.h.b16 %v7217
      %v7779 = vunpack.c.l.b16 %v7218
      %v7780 = vunpack.c.h.b16 %v7218
      %v7781 = vunpack.c.l.b16 %v7219
      %v7782 = vunpack.c.h.b16 %v7219
      %v7783 = vunpack.c.l.b16 %v7220
      %v7784 = vunpack.c.h.b16 %v7220
      %v7785 = vunpack.c.l.b16 %v7221
      %v7786 = vunpack.c.h.b16 %v7221
      %v7787 = vunpack.c.l.b16 %v7222
      %v7788 = vunpack.c.h.b16 %v7222
      %v7789 = vunpack.c.l.b16 %v7223
      %v7790 = vunpack.c.h.b16 %v7223
      %v7791 = vunpack.c.l.b16 %v7224
      %v7792 = vunpack.c.h.b16 %v7224
      %v7793 = vunpack.c.l.b16 %v7225
      %v7794 = vunpack.c.h.b16 %v7225
      %v7795 = vunpack.c.l.b16 %v7226
      %v7796 = vunpack.c.h.b16 %v7226
      %v7797 = vunpack.c.l.b16 %v7227
      %v7798 = vunpack.c.h.b16 %v7227
      %v7799 = vunpack.c.l.b16 %v7228
      %v7800 = vunpack.c.h.b16 %v7228
      %v7801 = vunpack.c.l.b16 %v7229
      %v7802 = vunpack.c.h.b16 %v7229
      %v7803 = vunpack.c.l.b16 %v7230
      %v7804 = vunpack.c.h.b16 %v7230
      %v7805 = vunpack.c.l.b16 %v7231
      %v7806 = vunpack.c.h.b16 %v7231
      %v7807 = vunpack.c.l.b16 %v7232
      %v7808 = vunpack.c.h.b16 %v7232
      %v7809 = vunpack.c.l.b16 %v7233
      %v7810 = vunpack.c.h.b16 %v7233
      %v7811 = vunpack.c.l.b16 %v7234
      %v7812 = vunpack.c.h.b16 %v7234
      %v7813 = vunpack.c.l.b16 %v7235
      %v7814 = vunpack.c.h.b16 %v7235
      %v7815 = vunpack.c.l.b16 %v7236
      %v7816 = vunpack.c.h.b16 %v7236
      %v7817 = vunpack.c.l.b16 %v7237
      %v7818 = vunpack.c.h.b16 %v7237
      %v7819 = vunpack.c.l.b16 %v7238
      %v7820 = vunpack.c.h.b16 %v7238
      %v7821 = vunpack.c.l.b16 %v7239
      %v7822 = vunpack.c.h.b16 %v7239
      %v7823 = vunpack.c.l.b16 %v7240
      %v7824 = vunpack.c.h.b16 %v7240
      %v7825 = vunpack.c.l.b16 %v7241
      %v7826 = vunpack.c.h.b16 %v7241
      %v7827 = vunpack.c.l.b16 %v7242
      %v7828 = vunpack.c.h.b16 %v7242
      %v7829 = vunpack.c.l.b16 %v7243
      %v7830 = vunpack.c.h.b16 %v7243
      %v7831 = vunpack.c.l.b16 %v7244
      %v7832 = vunpack.c.h.b16 %v7244
      %v7833 = vunpack.c.l.b16 %v7245
      %v7834 = vunpack.c.h.b16 %v7245
      %v7835 = vunpack.c.l.b16 %v7246
      %v7836 = vunpack.c.h.b16 %v7246
      %v7837 = vunpack.c.l.b16 %v7247
      %v7838 = vunpack.c.h.b16 %v7247
      %v7839 = vunpack.c.l.b16 %v7248
      %v7840 = vunpack.c.h.b16 %v7248
      %v7841 = vunpack.c.l.b16 %v7249
      %v7842 = vunpack.c.h.b16 %v7249
      %v7843 = vunpack.c.l.b16 %v7250
      %v7844 = vunpack.c.h.b16 %v7250
      %v7845 = vunpack.c.l.b16 %v7251
      %v7846 = vunpack.c.h.b16 %v7251
      %v7847 = vunpack.c.l.b16 %v7252
      %v7848 = vunpack.c.h.b16 %v7252
      %v7849 = vunpack.c.l.b16 %v7253
      %v7850 = vunpack.c.h.b16 %v7253
      %v7851 = vunpack.c.l.b16 %v7254
      %v7852 = vunpack.c.h.b16 %v7254
      %v7853 = vunpack.c.l.b16 %v7255
      %v7854 = vunpack.c.h.b16 %v7255
      %v7855 = vunpack.c.l.b16 %v7256
      %v7856 = vunpack.c.h.b16 %v7256
      %v7857 = vunpack.c.l.b16 %v7257
      %v7858 = vunpack.c.h.b16 %v7257
      %v7859 = vunpack.c.l.b16 %v7258
      %v7860 = vunpack.c.h.b16 %v7258
      %v7861 = vunpack.c.l.b16 %v7259
      %v7862 = vunpack.c.h.b16 %v7259
      %v7863 = vunpack.c.l.b16 %v7260
      %v7864 = vunpack.c.h.b16 %v7260
      %v7865 = vunpack.c.l.b16 %v7261
      %v7866 = vunpack.c.h.b16 %v7261
      %v7867 = vunpack.c.l.b16 %v7262
      %v7868 = vunpack.c.h.b16 %v7262
      %v7869 = vunpack.c.l.b16 %v7263
      %v7870 = vunpack.c.h.b16 %v7263
      %v7871 = vunpack.c.l.b16 %v7264
      %v7872 = vunpack.c.h.b16 %v7264
      %v7873 = vunpack.c.l.b16 %v7265
      %v7874 = vunpack.c.h.b16 %v7265
      %v7875 = vunpack.c.l.b16 %v7266
      %v7876 = vunpack.c.h.b16 %v7266
      %v7877 = vunpack.c.l.b16 %v7267
      %v7878 = vunpack.c.h.b16 %v7267
      %v7879 = vunpack.c.l.b16 %v7268
      %v7880 = vunpack.c.h.b16 %v7268
      %v7881 = vunpack.c.l.b16 %v7269
      %v7882 = vunpack.c.h.b16 %v7269
      %v7883 = vunpack.c.l.b16 %v7270
      %v7884 = vunpack.c.h.b16 %v7270
      %v7885 = vunpack.c.l.b16 %v7271
      %v7886 = vunpack.c.h.b16 %v7271
      %v7887 = vunpack.c.l.b16 %v7272
      %v7888 = vunpack.c.h.b16 %v7272
      %v7889 = vunpack.c.l.b16 %v7273
      %v7890 = vunpack.c.h.b16 %v7273
      %v7891 = vunpack.c.l.b16 %v7274
      %v7892 = vunpack.c.h.b16 %v7274
      %v7893 = vunpack.c.l.b16 %v7275
      %v7894 = vunpack.c.h.b16 %v7275
      %v7895 = vunpack.c.l.b16 %v7276
      %v7896 = vunpack.c.h.b16 %v7276
      %v7897 = vunpack.c.l.b16 %v7277
      %v7898 = vunpack.c.h.b16 %v7277
      %v7899 = vunpack.c.l.b16 %v7278
      %v7900 = vunpack.c.h.b16 %v7278
      %v7901 = vunpack.c.l.b16 %v7279
      %v7902 = vunpack.c.h.b16 %v7279
      %v7903 = vunpack.c.l.b16 %v7280
      %v7904 = vunpack.c.h.b16 %v7280
      %v7905 = vunpack.c.l.b16 %v7281
      %v7906 = vunpack.c.h.b16 %v7281
      %v7907 = vunpack.c.l.b16 %v7282
      %v7908 = vunpack.c.h.b16 %v7282
      %v7909 = vunpack.c.l.b16 %v7283
      %v7910 = vunpack.c.h.b16 %v7283
      %v7911 = vunpack.c.l.b16 %v7284
      %v7912 = vunpack.c.h.b16 %v7284
      %v7913 = vunpack.c.l.b16 %v7285
      %v7914 = vunpack.c.h.b16 %v7285
      %v7915 = vunpack.c.l.b16 %v7286
      %v7916 = vunpack.c.h.b16 %v7286
      %v7917 = vunpack.c.l.b16 %v7287
      %v7918 = vunpack.c.h.b16 %v7287
      %v7919 = vunpack.c.l.b16 %v7288
      %v7920 = vunpack.c.h.b16 %v7288
      %v7921 = vunpack.c.l.b16 %v7289
      %v7922 = vunpack.c.h.b16 %v7289
      %v7923 = vunpack.c.l.b16 %v7290
      %v7924 = vunpack.c.h.b16 %v7290
      %v7925 = vunpack.c.l.b16 %v7291
      %v7926 = vunpack.c.h.b16 %v7291
      %v7927 = vunpack.c.l.b16 %v7292
      %v7928 = vunpack.c.h.b16 %v7292
      %v7929 = vunpack.c.l.b16 %v7293
      %v7930 = vunpack.c.h.b16 %v7293
      %v7931 = vunpack.c.l.b16 %v7294
      %v7932 = vunpack.c.h.b16 %v7294
      %v7933 = vunpack.c.l.b16 %v7295
      %v7934 = vunpack.c.h.b16 %v7295
      %v7935 = vunpack.c.l.b16 %v7296
      %v7936 = vunpack.c.h.b16 %v7296
      %v7937 = vunpack.c.l.b16 %v7297
      %v7938 = vunpack.c.h.b16 %v7297
      %v7939 = vunpack.c.l.b16 %v7298
      %v7940 = vunpack.c.h.b16 %v7298
      %v7941 = vunpack.c.l.b16 %v7299
      %v7942 = vunpack.c.h.b16 %v7299
      %v7943 = vunpack.c.l.b16 %v7300
      %v7944 = vunpack.c.h.b16 %v7300
      %v7945 = vunpack.c.l.b16 %v7301
      %v7946 = vunpack.c.h.b16 %v7301
      %v7947 = vunpack.c.l.b16 %v7302
      %v7948 = vunpack.c.h.b16 %v7302
      %v7949 = vunpack.c.l.b16 %v7303
      %v7950 = vunpack.c.h.b16 %v7303
      %v7951 = vunpack.c.l.b16 %v7304
      %v7952 = vunpack.c.h.b16 %v7304
      %v7953 = vunpack.c.l.b16 %v7305
      %v7954 = vunpack.c.h.b16 %v7305
      %v7955 = vunpack.c.l.b16 %v7306
      %v7956 = vunpack.c.h.b16 %v7306
      %v7957 = vunpack.c.l.b16 %v7307
      %v7958 = vunpack.c.h.b16 %v7307
      %v7959 = vunpack.c.l.b16 %v7308
      %v7960 = vunpack.c.h.b16 %v7308
      %v7961 = vunpack.c.l.b16 %v7309
      %v7962 = vunpack.c.h.b16 %v7309
      %v7963 = vunpack.c.l.b16 %v7310
      %v7964 = vunpack.c.h.b16 %v7310
      %v7965 = vunpack.c.l.b16 %v7311
      %v7966 = vunpack.c.h.b16 %v7311
      %v7967 = vunpack.c.l.b16 %v7312
      %v7968 = vunpack.c.h.b16 %v7312
      %v7969 = vunpack.c.l.b16 %v7313
      %v7970 = vunpack.c.h.b16 %v7313
      %v7971 = vunpack.c.l.b16 %v7314
      %v7972 = vunpack.c.h.b16 %v7314
      %v7973 = vunpack.c.l.b16 %v7315
      %v7974 = vunpack.c.h.b16 %v7315
      %v7975 = vunpack.c.l.b16 %v7316
      %v7976 = vunpack.c.h.b16 %v7316
      %v7977 = vunpack.c.l.b16 %v7317
      %v7978 = vunpack.c.h.b16 %v7317
      %v7979 = vunpack.c.l.b16 %v7318
      %v7980 = vunpack.c.h.b16 %v7318
      %v7981 = vunpack.c.l.b16 %v7319
      %v7982 = vunpack.c.h.b16 %v7319
      %v7983 = vunpack.c.l.b16 %v7320
      %v7984 = vunpack.c.h.b16 %v7320
      %v7985 = vunpack.c.l.b16 %v7321
      %v7986 = vunpack.c.h.b16 %v7321
      %v7987 = vunpack.c.l.b16 %v7322
      %v7988 = vunpack.c.h.b16 %v7322
      %v7989 = vunpack.c.l.b16 %v7323
      %v7990 = vunpack.c.h.b16 %v7323
      %v7991 = vunpack.c.l.b16 %v7324
      %v7992 = vunpack.c.h.b16 %v7324
      %v7993 = vunpack.c.l.b16 %v7325
      %v7994 = vunpack.c.h.b16 %v7325
      %v7995 = vunpack.c.l.b16 %v7326
      %v7996 = vunpack.c.h.b16 %v7326
      %v7997 = vunpack.c.l.b16 %v7327
      %v7998 = vunpack.c.h.b16 %v7327
      %v7999 = vunpack.c.l.b16 %v7328
      %v8000 = vunpack.c.h.b16 %v7328
      %v8001 = vunpack.c.l.b16 %v7329
      %v8002 = vunpack.c.h.b16 %v7329
      %v8003 = vunpack.c.l.b16 %v7330
      %v8004 = vunpack.c.h.b16 %v7330
      %v8005 = vunpack.c.l.b16 %v7331
      %v8006 = vunpack.c.h.b16 %v7331
      %v8007 = vunpack.c.l.b16 %v7332
      %v8008 = vunpack.c.h.b16 %v7332
      %v8009 = vunpack.c.l.b16 %v7333
      %v8010 = vunpack.c.h.b16 %v7333
      %v8011 = vunpack.c.l.b16 %v7334
      %v8012 = vunpack.c.h.b16 %v7334
      %v8013 = vunpack.c.l.b16 %v7335
      %v8014 = vunpack.c.h.b16 %v7335
      %v8015 = vunpack.c.l.b16 %v7336
      %v8016 = vunpack.c.h.b16 %v7336
      %v8017 = vunpack.c.l.b16 %v7337
      %v8018 = vunpack.c.h.b16 %v7337
      %v8019 = vunpack.c.l.b16 %v7338
      %v8020 = vunpack.c.h.b16 %v7338
      %v8021 = vunpack.c.l.b16 %v7339
      %v8022 = vunpack.c.h.b16 %v7339
      %v8023 = vunpack.c.l.b16 %v7340
      %v8024 = vunpack.c.h.b16 %v7340
      %v8025 = vunpack.c.l.b16 %v7341
      %v8026 = vunpack.c.h.b16 %v7341
      %v8027 = vunpack.c.l.b16 %v7342
      %v8028 = vunpack.c.h.b16 %v7342
      %v8029 = vunpack.c.l.b16 %v7343
      %v8030 = vunpack.c.h.b16 %v7343
      %v8031 = vunpack.c.l.b16 %v7344
      %v8032 = vunpack.c.h.b16 %v7344
      %v8033 = vunpack.c.l.b16 %v7345
      %v8034 = vunpack.c.h.b16 %v7345
      %v8035 = vunpack.c.l.b16 %v7346
      %v8036 = vunpack.c.h.b16 %v7346
      %v8037 = vunpack.c.l.b16 %v7347
      %v8038 = vunpack.c.h.b16 %v7347
      %v8039 = vunpack.c.l.b16 %v7348
      %v8040 = vunpack.c.h.b16 %v7348
      %v8041 = vunpack.c.l.b16 %v7349
      %v8042 = vunpack.c.h.b16 %v7349
      %v8043 = vunpack.c.l.b16 %v7350
      %v8044 = vunpack.c.h.b16 %v7350
      %v8045 = vunpack.c.l.b16 %v7351
      %v8046 = vunpack.c.h.b16 %v7351
      %v8047 = vunpack.c.l.b16 %v7352
      %v8048 = vunpack.c.h.b16 %v7352
      %v8049 = vunpack.c.l.b16 %v7353
      %v8050 = vunpack.c.h.b16 %v7353
      %v8051 = vunpack.c.l.b16 %v7354
      %v8052 = vunpack.c.h.b16 %v7354
      %v8053 = vunpack.c.l.b16 %v7355
      %v8054 = vunpack.c.h.b16 %v7355
      %v8055 = vunpack.c.l.b16 %v7356
      %v8056 = vunpack.c.h.b16 %v7356
      %v8057 = vunpack.c.l.b16 %v7357
      %v8058 = vunpack.c.h.b16 %v7357
      %v8059 = vunpack.c.l.b16 %v7358
      %v8060 = vunpack.c.h.b16 %v7358
      %v8061 = vunpack.c.l.b16 %v7359
      %v8062 = vunpack.c.h.b16 %v7359
      %v8063 = vunpack.c.l.b16 %v7360
      %v8064 = vunpack.c.h.b16 %v7360
      %v8065 = vunpack.c.l.b16 %v7361
      %v8066 = vunpack.c.h.b16 %v7361
      %v8067 = vunpack.c.l.b16 %v7362
      %v8068 = vunpack.c.h.b16 %v7362
      %v8069 = vunpack.c.l.b16 %v7363
      %v8070 = vunpack.c.h.b16 %v7363
      %v8071 = vunpack.c.l.b16 %v7364
      %v8072 = vunpack.c.h.b16 %v7364
      %v8073 = vunpack.c.l.b16 %v7365
      %v8074 = vunpack.c.h.b16 %v7365
      %v8075 = vunpack.c.l.b16 %v7366
      %v8076 = vunpack.c.h.b16 %v7366
      %v8077 = vunpack.c.l.b16 %v7367
      %v8078 = vunpack.c.h.b16 %v7367
      %v8079 = vunpack.c.l.b16 %v7368
      %v8080 = vunpack.c.h.b16 %v7368
      %v8081 = vunpack.c.l.b16 %v7369
      %v8082 = vunpack.c.h.b16 %v7369
      %v8083 = vunpack.c.l.b16 %v7370
      %v8084 = vunpack.c.h.b16 %v7370
      %v8085 = vunpack.c.l.b16 %v7371
      %v8086 = vunpack.c.h.b16 %v7371
      %v8087 = vunpack.c.l.b16 %v7372
      %v8088 = vunpack.c.h.b16 %v7372
      %v8089 = vunpack.c.l.b16 %v7373
      %v8090 = vunpack.c.h.b16 %v7373
      %v8091 = vunpack.c.l.b16 %v7374
      %v8092 = vunpack.c.h.b16 %v7374
      %v8093 = vunpack.c.l.b16 %v7375
      %v8094 = vunpack.c.h.b16 %v7375
      %v8095 = vunpack.c.l.b16 %v7376
      %v8096 = vunpack.c.h.b16 %v7376
      %v8097 = vunpack.c.l.b16 %v7377
      %v8098 = vunpack.c.h.b16 %v7377
      %v8099 = vunpack.c.l.b16 %v7378
      %v8100 = vunpack.c.h.b16 %v7378
      %v8101 = vpack.c.b16 %v7675, %v7669
      %v8102 = vpack.c.b16 %v7676, %v7670
      %v8103 = vpack.c.b16 %v7677, %v7671
      %v8104 = vpack.c.b16 %v7678, %v7672
      %v8105 = vpack.c.b16 %v7679, %v7673
      %v8106 = vpack.c.b16 %v7680, %v7674
      %v8107 = vpack.c.b16 %v7687, %v7681
      %v8108 = vpack.c.b16 %v7688, %v7682
      %v8109 = vpack.c.b16 %v7689, %v7683
      %v8110 = vpack.c.b16 %v7690, %v7684
      %v8111 = vpack.c.b16 %v7691, %v7685
      %v8112 = vpack.c.b16 %v7692, %v7686
      %v8113 = vpack.c.b16 %v7699, %v7693
      %v8114 = vpack.c.b16 %v7700, %v7694
      %v8115 = vpack.c.b16 %v7701, %v7695
      %v8116 = vpack.c.b16 %v7702, %v7696
      %v8117 = vpack.c.b16 %v7703, %v7697
      %v8118 = vpack.c.b16 %v7704, %v7698
      %v8119 = vpack.c.b16 %v7711, %v7705
      %v8120 = vpack.c.b16 %v7712, %v7706
      %v8121 = vpack.c.b16 %v7713, %v7707
      %v8122 = vpack.c.b16 %v7714, %v7708
      %v8123 = vpack.c.b16 %v7715, %v7709
      %v8124 = vpack.c.b16 %v7716, %v7710
      %v8125 = vpack.c.b16 %v7723, %v7717
      %v8126 = vpack.c.b16 %v7724, %v7718
      %v8127 = vpack.c.b16 %v7725, %v7719
      %v8128 = vpack.c.b16 %v7726, %v7720
      %v8129 = vpack.c.b16 %v7727, %v7721
      %v8130 = vpack.c.b16 %v7728, %v7722
      %v8131 = vpack.c.b16 %v7735, %v7729
      %v8132 = vpack.c.b16 %v7736, %v7730
      %v8133 = vpack.c.b16 %v7737, %v7731
      %v8134 = vpack.c.b16 %v7738, %v7732
      %v8135 = vpack.c.b16 %v7739, %v7733
      %v8136 = vpack.c.b16 %v7740, %v7734
      %v8137 = vpack.c.b16 %v7747, %v7741
      %v8138 = vpack.c.b16 %v7748, %v7742
      %v8139 = vpack.c.b16 %v7749, %v7743
      %v8140 = vpack.c.b16 %v7750, %v7744
      %v8141 = vpack.c.b16 %v7751, %v7745
      %v8142 = vpack.c.b16 %v7752, %v7746
      %v8143 = vpack.c.b16 %v7759, %v7753
      %v8144 = vpack.c.b16 %v7760, %v7754
      %v8145 = vpack.c.b16 %v7761, %v7755
      %v8146 = vpack.c.b16 %v7762, %v7756
      %v8147 = vpack.c.b16 %v7763, %v7757
      %v8148 = vpack.c.b16 %v7764, %v7758
      %v8149 = vpack.c.b16 %v7771, %v7765
      %v8150 = vpack.c.b16 %v7772, %v7766
      %v8151 = vpack.c.b16 %v7773, %v7767
      %v8152 = vpack.c.b16 %v7774, %v7768
      %v8153 = vpack.c.b16 %v7775, %v7769
      %v8154 = vpack.c.b16 %v7776, %v7770
      %v8155 = vpack.c.b16 %v7783, %v7777
      %v8156 = vpack.c.b16 %v7784, %v7778
      %v8157 = vpack.c.b16 %v7785, %v7779
      %v8158 = vpack.c.b16 %v7786, %v7780
      %v8159 = vpack.c.b16 %v7787, %v7781
      %v8160 = vpack.c.b16 %v7788, %v7782
      %v8161 = vpack.c.b16 %v7795, %v7789
      %v8162 = vpack.c.b16 %v7796, %v7790
      %v8163 = vpack.c.b16 %v7797, %v7791
      %v8164 = vpack.c.b16 %v7798, %v7792
      %v8165 = vpack.c.b16 %v7799, %v7793
      %v8166 = vpack.c.b16 %v7800, %v7794
      %v8167 = vpack.c.b16 %v7807, %v7801
      %v8168 = vpack.c.b16 %v7808, %v7802
      %v8169 = vpack.c.b16 %v7809, %v7803
      %v8170 = vpack.c.b16 %v7810, %v7804
      %v8171 = vpack.c.b16 %v7811, %v7805
      %v8172 = vpack.c.b16 %v7812, %v7806
      %v8173 = vpack.c.b16 %v7819, %v7813
      %v8174 = vpack.c.b16 %v7820, %v7814
      %v8175 = vpack.c.b16 %v7821, %v7815
      %v8176 = vpack.c.b16 %v7822, %v7816
      %v8177 = vpack.c.b16 %v7823, %v7817
      %v8178 = vpack.c.b16 %v7824, %v7818
      %v8179 = vpack.c.b16 %v7831, %v7825
      %v8180 = vpack.c.b16 %v7832, %v7826
      %v8181 = vpack.c.b16 %v7833, %v7827
      %v8182 = vpack.c.b16 %v7834, %v7828
      %v8183 = vpack.c.b16 %v7835, %v7829
      %v8184 = vpack.c.b16 %v7836, %v7830
      %v8185 = vpack.c.b16 %v7843, %v7837
      %v8186 = vpack.c.b16 %v7844, %v7838
      %v8187 = vpack.c.b16 %v7845, %v7839
      %v8188 = vpack.c.b16 %v7846, %v7840
      %v8189 = vpack.c.b16 %v7847, %v7841
      %v8190 = vpack.c.b16 %v7848, %v7842
      %v8191 = vpack.c.b16 %v7855, %v7849
      %v8192 = vpack.c.b16 %v7856, %v7850
      %v8193 = vpack.c.b16 %v7857, %v7851
      %v8194 = vpack.c.b16 %v7858, %v7852
      %v8195 = vpack.c.b16 %v7859, %v7853
      %v8196 = vpack.c.b16 %v7860, %v7854
      %v8197 = vpack.c.b16 %v7867, %v7861
      %v8198 = vpack.c.b16 %v7868, %v7862
      %v8199 = vpack.c.b16 %v7869, %v7863
      %v8200 = vpack.c.b16 %v7870, %v7864
      %v8201 = vpack.c.b16 %v7871, %v7865
      %v8202 = vpack.c.b16 %v7872, %v7866
      %v8203 = vpack.c.b16 %v7879, %v7873
      %v8204 = vpack.c.b16 %v7880, %v7874
      %v8205 = vpack.c.b16 %v7881, %v7875
      %v8206 = vpack.c.b16 %v7882, %v7876
      %v8207 = vpack.c.b16 %v7883, %v7877
      %v8208 = vpack.c.b16 %v7884, %v7878
      %v8209 = vpack.c.b16 %v7891, %v7885
      %v8210 = vpack.c.b16 %v7892, %v7886
      %v8211 = vpack.c.b16 %v7893, %v7887
      %v8212 = vpack.c.b16 %v7894, %v7888
      %v8213 = vpack.c.b16 %v7895, %v7889
      %v8214 = vpack.c.b16 %v7896, %v7890
      %v8215 = vpack.c.b16 %v7903, %v7897
      %v8216 = vpack.c.b16 %v7904, %v7898
      %v8217 = vpack.c.b16 %v7905, %v7899
      %v8218 = vpack.c.b16 %v7906, %v7900
      %v8219 = vpack.c.b16 %v7907, %v7901
      %v8220 = vpack.c.b16 %v7908, %v7902
      %v8221 = vpack.c.b16 %v7915, %v7909
      %v8222 = vpack.c.b16 %v7916, %v7910
      %v8223 = vpack.c.b16 %v7917, %v7911
      %v8224 = vpack.c.b16 %v7918, %v7912
      %v8225 = vpack.c.b16 %v7919, %v7913
      %v8226 = vpack.c.b16 %v7920, %v7914
      %v8227 = vpack.c.b16 %v7927, %v7921
      %v8228 = vpack.c.b16 %v7928, %v7922
      %v8229 = vpack.c.b16 %v7929, %v7923
      %v8230 = vpack.c.b16 %v7930, %v7924
      %v8231 = vpack.c.b16 %v7931, %v7925
      %v8232 = vpack.c.b16 %v7932, %v7926
      %v8233 = vpack.c.b16 %v7939, %v7933
      %v8234 = vpack.c.b16 %v7940, %v7934
      %v8235 = vpack.c.b16 %v7941, %v7935
      %v8236 = vpack.c.b16 %v7942, %v7936
      %v8237 = vpack.c.b16 %v7943, %v7937
      %v8238 = vpack.c.b16 %v7944, %v7938
      %v8239 = vpack.c.b16 %v7951, %v7945
      %v8240 = vpack.c.b16 %v7952, %v7946
      %v8241 = vpack.c.b16 %v7953, %v7947
      %v8242 = vpack.c.b16 %v7954, %v7948
      %v8243 = vpack.c.b16 %v7955, %v7949
      %v8244 = vpack.c.b16 %v7956, %v7950
      %v8245 = vpack.c.b16 %v7963, %v7957
      %v8246 = vpack.c.b16 %v7964, %v7958
      %v8247 = vpack.c.b16 %v7965, %v7959
      %v8248 = vpack.c.b16 %v7966, %v7960
      %v8249 = vpack.c.b16 %v7967, %v7961
      %v8250 = vpack.c.b16 %v7968, %v7962
      %v8251 = vpack.c.b16 %v7975, %v7969
      %v8252 = vpack.c.b16 %v7976, %v7970
      %v8253 = vpack.c.b16 %v7977, %v7971
      %v8254 = vpack.c.b16 %v7978, %v7972
      %v8255 = vpack.c.b16 %v7979, %v7973
      %v8256 = vpack.c.b16 %v7980, %v7974
      %v8257 = vpack.c.b16 %v7987, %v7981
      %v8258 = vpack.c.b16 %v7988, %v7982
      %v8259 = vpack.c.b16 %v7989, %v7983
      %v8260 = vpack.c.b16 %v7990, %v7984
      %v8261 = vpack.c.b16 %v7991, %v7985
      %v8262 = vpack.c.b16 %v7992, %v7986
      %v8263 = vpack.c.b16 %v7999, %v7993
      %v8264 = vpack.c.b16 %v8000, %v7994
      %v8265 = vpack.c.b16 %v8001, %v7995
      %v8266 = vpack.c.b16 %v8002, %v7996
      %v8267 = vpack.c.b16 %v8003, %v7997
      %v8268 = vpack.c.b16 %v8004, %v7998
      %v8269 = vpack.c.b16 %v8011, %v8005
      %v8270 = vpack.c.b16 %v8012, %v8006
      %v8271 = vpack.c.b16 %v8013, %v8007
      %v8272 = vpack.c.b16 %v8014, %v8008
      %v8273 = vpack.c.b16 %v8015, %v8009
      %v8274 = vpack.c.b16 %v8016, %v8010
      %v8275 = vpack.c.b16 %v8023, %v8017
      %v8276 = vpack.c.b16 %v8024, %v8018
      %v8277 = vpack.c.b16 %v8025, %v8019
      %v8278 = vpack.c.b16 %v8026, %v8020
      %v8279 = vpack.c.b16 %v8027, %v8021
      %v8280 = vpack.c.b16 %v8028, %v8022
      %v8281 = vpack.c.b16 %v8035, %v8029
      %v8282 = vpack.c.b16 %v8036, %v8030
      %v8283 = vpack.c.b16 %v8037, %v8031
      %v8284 = vpack.c.b16 %v8038, %v8032
      %v8285 = vpack.c.b16 %v8039, %v8033
      %v8286 = vpack.c.b16 %v8040, %v8034
      %v8287 = vpack.c.b16 %v8047, %v8041
      %v8288 = vpack.c.b16 %v8048, %v8042
      %v8289 = vpack.c.b16 %v8049, %v8043
      %v8290 = vpack.c.b16 %v8050, %v8044
      %v8291 = vpack.c.b16 %v8051, %v8045
      %v8292 = vpack.c.b16 %v8052, %v8046
      %v8293 = vpack.c.b16 %v8059, %v8053
      %v8294 = vpack.c.b16 %v8060, %v8054
      %v8295 = vpack.c.b16 %v8061, %v8055
      %v8296 = vpack.c.b16 %v8062, %v8056
      %v8297 = vpack.c.b16 %v8063, %v8057
      %v8298 = vpack.c.b16 %v8064, %v8058
      %v8299 = vpack.c.b16 %v8071, %v8065
      %v8300 = vpack.c.b16 %v8072, %v8066
      %v8301 = vpack.c.b16 %v8073, %v8067
      %v8302 = vpack.c.b16 %v8074, %v8068
      %v8303 = vpack.c.b16 %v8075, %v8069
      %v8304 = vpack.c.b16 %v8076, %v8070
      %v8305 = vpack.c.b16 %v8083, %v8077
      %v8306 = vpack.c.b16 %v8084, %v8078
      %v8307 = vpack.c.b16 %v8085, %v8079
      %v8308 = vpack.c.b16 %v8086, %v8080
      %v8309 = vpack.c.b16 %v8087, %v8081
      %v8310 = vpack.c.b16 %v8088, %v8082
      %v8311 = vpack.c.b16 %v8095, %v8089
      %v8312 = vpack.c.b16 %v8096, %v8090
      %v8313 = vpack.c.b16 %v8097, %v8091
      %v8314 = vpack.c.b16 %v8098, %v8092
      %v8315 = vpack.c.b16 %v8099, %v8093
      %v8316 = vpack.c.b16 %v8100, %v8094
      %vm8533 = vcmask 523264
      %v8535 = vsel %vm8533, %v7439, 0
      %v8538 = vsel %vm8533, %v7444, 0
      %8540 = vmatprep.subr.bf16.mxu0 %v8144
      %8541 = vmatpush1.bf16.msra.mxu0 %v8143
      %8542 = vmatprep.subr.bf16.mxu0 %v8138
      %8543 = vmatpush1.bf16.msra.mxu0 %v8137
      %8544 = vmatprep.subr.bf16.mxu0 %v8132
      %8545 = vmatpush1.bf16.msra.mxu0 %v8131
      %8546 = vmatprep.subr.bf16.mxu0 %v8126
      %8547 = vmatpush1.bf16.msra.mxu0 %v8125
      %8548 = vmatprep.subr.bf16.mxu0 %v8120
      %8549 = vmatpush1.bf16.msra.mxu0 %v8119
      %8550 = vmatprep.subr.bf16.mxu0 %v8114
      %8551 = vmatpush1.bf16.msra.mxu0 %v8113
      %8552 = vmatprep.subr.bf16.mxu0 %v8108
      %8553 = vmatpush1.bf16.msra.mxu0 %v8107
      %8554 = vmatprep.subr.bf16.mxu0 %v8102
      %8555 = vmatpush1.bf16.msra.mxu0 %v8101
      %8556 = vmatprep.subr.bf16.mxu0 %v8192
      %8557 = vmatpush2.bf16.msra.mxu0 %v8191
      %8558 = vmatprep.subr.bf16.mxu0 %v8186
      %8559 = vmatpush2.bf16.msra.mxu0 %v8185
      %8560 = vmatprep.subr.bf16.mxu0 %v8180
      %8561 = vmatpush2.bf16.msra.mxu0 %v8179
      %8562 = vmatprep.subr.bf16.mxu0 %v8174
      %8563 = vmatpush2.bf16.msra.mxu0 %v8173
      %8564 = vmatprep.subr.bf16.mxu0 %v8168
      %8565 = vmatpush2.bf16.msra.mxu0 %v8167
      %8566 = vmatprep.subr.bf16.mxu0 %v8162
      %8567 = vmatpush2.bf16.msra.mxu0 %v8161
      %8568 = vmatprep.subr.bf16.mxu0 %v8156
      %8569 = vmatpush2.bf16.msra.mxu0 %v8155
      %8570 = vmatprep.subr.bf16.mxu0 %v8150
      %8571 = vmatpush2.bf16.msra.mxu0 %v8149
      %8572 = vmatprep.mubr.bf16.mxu0 %v7436
      %8573 = vmatmul.mubr.bf16.gmra.mxu0 %v7435
      %v8574 = vpop.f32.mrf.mxu0
      %v8575 = vadd.f32 %v7386, %v8574
      %v8576 = vpop.f32.mrf.mxu0
      %v8577 = vadd.f32 %v7386, %v8576
      %v8578 = vpop.f32.mrf.mxu0
      %v8579 = vadd.f32 %v7391, %v8578
      %v8580 = vpop.f32.mrf.mxu0
      %v8581 = vadd.f32 %v7391, %v8580
      %8582 = vmatprep.mubr.bf16.mxu0 %v7441
      %8583 = vmatmul.mubr.bf16.gmra.mxu0 %v7440
      %v8584 = vpop.f32.mrf.mxu0
      %v8585 = vadd.f32 %v7396, %v8584
      %v8586 = vpop.f32.mrf.mxu0
      %v8587 = vadd.f32 %v7396, %v8586
      %v8588 = vpop.f32.mrf.mxu0
      %v8589 = vadd.f32 %v7401, %v8588
      %v8590 = vpop.f32.mrf.mxu0
      %v8591 = vadd.f32 %v7401, %v8590
      %8592 = vdwg.mxu0
      %8593 = vmatprep.subr.bf16.mxu0 %v8240
      %8594 = vmatpush1.bf16.msra.mxu0 %v8239
      %8595 = vmatprep.subr.bf16.mxu0 %v8234
      %8596 = vmatpush1.bf16.msra.mxu0 %v8233
      %8597 = vmatprep.subr.bf16.mxu0 %v8228
      %8598 = vmatpush1.bf16.msra.mxu0 %v8227
      %8599 = vmatprep.subr.bf16.mxu0 %v8222
      %8600 = vmatpush1.bf16.msra.mxu0 %v8221
      %8601 = vmatprep.subr.bf16.mxu0 %v8216
      %8602 = vmatpush1.bf16.msra.mxu0 %v8215
      %8603 = vmatprep.subr.bf16.mxu0 %v8210
      %8604 = vmatpush1.bf16.msra.mxu0 %v8209
      %8605 = vmatprep.subr.bf16.mxu0 %v8204
      %8606 = vmatpush1.bf16.msra.mxu0 %v8203
      %8607 = vmatprep.subr.bf16.mxu0 %v8198
      %8608 = vmatpush1.bf16.msra.mxu0 %v8197
      %8609 = vmatprep.subr.bf16.mxu0 %v8288
      %8610 = vmatpush2.bf16.msra.mxu0 %v8287
      %8611 = vmatprep.subr.bf16.mxu0 %v8282
      %8612 = vmatpush2.bf16.msra.mxu0 %v8281
      %8613 = vmatprep.subr.bf16.mxu0 %v8276
      %8614 = vmatpush2.bf16.msra.mxu0 %v8275
      %8615 = vmatprep.subr.bf16.mxu0 %v8270
      %8616 = vmatpush2.bf16.msra.mxu0 %v8269
      %8617 = vmatprep.subr.bf16.mxu0 %v8264
      %8618 = vmatpush2.bf16.msra.mxu0 %v8263
      %8619 = vmatprep.subr.bf16.mxu0 %v8258
      %8620 = vmatpush2.bf16.msra.mxu0 %v8257
      %8621 = vmatprep.subr.bf16.mxu0 %v8252
      %8622 = vmatpush2.bf16.msra.mxu0 %v8251
      %8623 = vmatprep.subr.bf16.mxu0 %v8246
      %8624 = vmatpush2.bf16.msra.mxu0 %v8245
      %8625 = vmatprep.mubr.bf16.mxu0 %v7438
      %8626 = vmatmul.mubr.bf16.gmra.mxu0 %v7437
      %v8627 = vpop.f32.mrf.mxu0
      %v8628 = vadd.f32 %v8575, %v8627
      %v8629 = vpop.f32.mrf.mxu0
      %v8630 = vadd.f32 %v8577, %v8629
      %v8631 = vpop.f32.mrf.mxu0
      %v8632 = vadd.f32 %v8579, %v8631
      %v8633 = vpop.f32.mrf.mxu0
      %v8634 = vadd.f32 %v8581, %v8633
      %8635 = vmatprep.mubr.bf16.mxu0 %v7443
      %8636 = vmatmul.mubr.bf16.gmra.mxu0 %v7442
      %v8637 = vpop.f32.mrf.mxu0
      %v8638 = vadd.f32 %v8585, %v8637
      %v8639 = vpop.f32.mrf.mxu0
      %v8640 = vadd.f32 %v8587, %v8639
      %v8641 = vpop.f32.mrf.mxu0
      %v8642 = vadd.f32 %v8589, %v8641
      %v8643 = vpop.f32.mrf.mxu0
      %v8644 = vadd.f32 %v8591, %v8643
      %8645 = vdwg.mxu0
      %8646 = vmatprep.subr.bf16.mxu0 0
      %8647 = vmatpush1.bf16.msra.mxu0 0
      %8648 = vmatprep.subr.bf16.mxu0 0
      %8649 = vmatpush1.bf16.msra.mxu0 0
      %8650 = vmatprep.subr.bf16.mxu0 0
      %8651 = vmatpush1.bf16.msra.mxu0 0
      %8652 = vmatprep.subr.bf16.mxu0 0
      %8653 = vmatpush1.bf16.msra.mxu0 0
      %8654 = vmatprep.subr.bf16.mxu0 %v8312
      %8655 = vmatpush1.bf16.msra.mxu0 %v8311
      %8656 = vmatprep.subr.bf16.mxu0 %v8306
      %8657 = vmatpush1.bf16.msra.mxu0 %v8305
      %8658 = vmatprep.subr.bf16.mxu0 %v8300
      %8659 = vmatpush1.bf16.msra.mxu0 %v8299
      %8660 = vmatprep.subr.bf16.mxu0 %v8294
      %8661 = vmatpush1.bf16.msra.mxu0 %v8293
      %8662 = vmatprep.subr.bf16.mxu0 0
      %8663 = vmatpush2.bf16.msra.mxu0 0
      %8664 = vmatprep.subr.bf16.mxu0 0
      %8665 = vmatpush2.bf16.msra.mxu0 0
      %8666 = vmatprep.subr.bf16.mxu0 0
      %8667 = vmatpush2.bf16.msra.mxu0 0
      %8668 = vmatprep.subr.bf16.mxu0 0
      %8669 = vmatpush2.bf16.msra.mxu0 0
      %8670 = vmatprep.subr.bf16.mxu0 0
      %8671 = vmatpush2.bf16.msra.mxu0 0
      %8672 = vmatprep.subr.bf16.mxu0 0
      %8673 = vmatpush2.bf16.msra.mxu0 0
      %8674 = vmatprep.subr.bf16.mxu0 0
      %8675 = vmatpush2.bf16.msra.mxu0 0
      %8676 = vmatprep.subr.bf16.mxu0 0
      %8677 = vmatpush2.bf16.msra.mxu0 0
      %8678 = vmatprep.mubr.bf16.mxu0 0
      %8679 = vmatmul.mubr.bf16.gmra.mxu0 %v8535
      %v8680 = vpop.f32.mrf.mxu0
      %v8681 = vadd.f32 %v8628, %v8680
      %v8682 = vpop.f32.mrf.mxu0
      %v8683 = vadd.f32 %v8630, %v8682
      %v8684 = vpop.f32.mrf.mxu0
      %v8685 = vadd.f32 %v8632, %v8684
      %v8686 = vpop.f32.mrf.mxu0
      %v8687 = vadd.f32 %v8634, %v8686
      %8688 = vmatprep.mubr.bf16.mxu0 0
      %8689 = vmatmul.mubr.bf16.gmra.mxu0 %v8538
      %v8690 = vpop.f32.mrf.mxu0
      %v8691 = vadd.f32 %v8638, %v8690
      %v8692 = vpop.f32.mrf.mxu0
      %v8693 = vadd.f32 %v8640, %v8692
      %v8694 = vpop.f32.mrf.mxu0
      %v8695 = vadd.f32 %v8642, %v8694
      %v8696 = vpop.f32.mrf.mxu0
      %v8697 = vadd.f32 %v8644, %v8696
      %8698 = vdwg.mxu0
      %8699 = vmatprep.subr.bf16.mxu0 %v8146
      %8700 = vmatpush1.bf16.msra.mxu0 %v8145
      %8701 = vmatprep.subr.bf16.mxu0 %v8140
      %8702 = vmatpush1.bf16.msra.mxu0 %v8139
      %8703 = vmatprep.subr.bf16.mxu0 %v8134
      %8704 = vmatpush1.bf16.msra.mxu0 %v8133
      %8705 = vmatprep.subr.bf16.mxu0 %v8128
      %8706 = vmatpush1.bf16.msra.mxu0 %v8127
      %8707 = vmatprep.subr.bf16.mxu0 %v8122
      %8708 = vmatpush1.bf16.msra.mxu0 %v8121
      %8709 = vmatprep.subr.bf16.mxu0 %v8116
      %8710 = vmatpush1.bf16.msra.mxu0 %v8115
      %8711 = vmatprep.subr.bf16.mxu0 %v8110
      %8712 = vmatpush1.bf16.msra.mxu0 %v8109
      %8713 = vmatprep.subr.bf16.mxu0 %v8104
      %8714 = vmatpush1.bf16.msra.mxu0 %v8103
      %8715 = vmatprep.subr.bf16.mxu0 %v8194
      %8716 = vmatpush2.bf16.msra.mxu0 %v8193
      %8717 = vmatprep.subr.bf16.mxu0 %v8188
      %8718 = vmatpush2.bf16.msra.mxu0 %v8187
      %8719 = vmatprep.subr.bf16.mxu0 %v8182
      %8720 = vmatpush2.bf16.msra.mxu0 %v8181
      %8721 = vmatprep.subr.bf16.mxu0 %v8176
      %8722 = vmatpush2.bf16.msra.mxu0 %v8175
      %8723 = vmatprep.subr.bf16.mxu0 %v8170
      %8724 = vmatpush2.bf16.msra.mxu0 %v8169
      %8725 = vmatprep.subr.bf16.mxu0 %v8164
      %8726 = vmatpush2.bf16.msra.mxu0 %v8163
      %8727 = vmatprep.subr.bf16.mxu0 %v8158
      %8728 = vmatpush2.bf16.msra.mxu0 %v8157
      %8729 = vmatprep.subr.bf16.mxu0 %v8152
      %8730 = vmatpush2.bf16.msra.mxu0 %v8151
      %8731 = vmatprep.mubr.bf16.mxu0 %v7436
      %8732 = vmatmul.mubr.bf16.gmra.mxu0 %v7435
      %v8733 = vpop.f32.mrf.mxu0
      %v8734 = vadd.f32 %v7386, %v8733
      %v8735 = vpop.f32.mrf.mxu0
      %v8736 = vadd.f32 %v7386, %v8735
      %v8737 = vpop.f32.mrf.mxu0
      %v8738 = vadd.f32 %v7391, %v8737
      %v8739 = vpop.f32.mrf.mxu0
      %v8740 = vadd.f32 %v7391, %v8739
      %8741 = vmatprep.mubr.bf16.mxu0 %v7441
      %8742 = vmatmul.mubr.bf16.gmra.mxu0 %v7440
      %v8743 = vpop.f32.mrf.mxu0
      %v8744 = vadd.f32 %v7396, %v8743
      %v8745 = vpop.f32.mrf.mxu0
      %v8746 = vadd.f32 %v7396, %v8745
      %v8747 = vpop.f32.mrf.mxu0
      %v8748 = vadd.f32 %v7401, %v8747
      %v8749 = vpop.f32.mrf.mxu0
      %v8750 = vadd.f32 %v7401, %v8749
      %8751 = vdwg.mxu0
      %8752 = vmatprep.subr.bf16.mxu0 %v8242
      %8753 = vmatpush1.bf16.msra.mxu0 %v8241
      %8754 = vmatprep.subr.bf16.mxu0 %v8236
      %8755 = vmatpush1.bf16.msra.mxu0 %v8235
      %8756 = vmatprep.subr.bf16.mxu0 %v8230
      %8757 = vmatpush1.bf16.msra.mxu0 %v8229
      %8758 = vmatprep.subr.bf16.mxu0 %v8224
      %8759 = vmatpush1.bf16.msra.mxu0 %v8223
      %8760 = vmatprep.subr.bf16.mxu0 %v8218
      %8761 = vmatpush1.bf16.msra.mxu0 %v8217
      %8762 = vmatprep.subr.bf16.mxu0 %v8212
      %8763 = vmatpush1.bf16.msra.mxu0 %v8211
      %8764 = vmatprep.subr.bf16.mxu0 %v8206
      %8765 = vmatpush1.bf16.msra.mxu0 %v8205
      %8766 = vmatprep.subr.bf16.mxu0 %v8200
      %8767 = vmatpush1.bf16.msra.mxu0 %v8199
      %8768 = vmatprep.subr.bf16.mxu0 %v8290
      %8769 = vmatpush2.bf16.msra.mxu0 %v8289
      %8770 = vmatprep.subr.bf16.mxu0 %v8284
      %8771 = vmatpush2.bf16.msra.mxu0 %v8283
      %8772 = vmatprep.subr.bf16.mxu0 %v8278
      %8773 = vmatpush2.bf16.msra.mxu0 %v8277
      %8774 = vmatprep.subr.bf16.mxu0 %v8272
      %8775 = vmatpush2.bf16.msra.mxu0 %v8271
      %8776 = vmatprep.subr.bf16.mxu0 %v8266
      %8777 = vmatpush2.bf16.msra.mxu0 %v8265
      %8778 = vmatprep.subr.bf16.mxu0 %v8260
      %8779 = vmatpush2.bf16.msra.mxu0 %v8259
      %8780 = vmatprep.subr.bf16.mxu0 %v8254
      %8781 = vmatpush2.bf16.msra.mxu0 %v8253
      %8782 = vmatprep.subr.bf16.mxu0 %v8248
      %8783 = vmatpush2.bf16.msra.mxu0 %v8247
      %8784 = vmatprep.mubr.bf16.mxu0 %v7438
      %8785 = vmatmul.mubr.bf16.gmra.mxu0 %v7437
      %v8786 = vpop.f32.mrf.mxu0
      %v8787 = vadd.f32 %v8734, %v8786
      %v8788 = vpop.f32.mrf.mxu0
      %v8789 = vadd.f32 %v8736, %v8788
      %v8790 = vpop.f32.mrf.mxu0
      %v8791 = vadd.f32 %v8738, %v8790
      %v8792 = vpop.f32.mrf.mxu0
      %v8793 = vadd.f32 %v8740, %v8792
      %8794 = vmatprep.mubr.bf16.mxu0 %v7443
      %8795 = vmatmul.mubr.bf16.gmra.mxu0 %v7442
      %v8796 = vpop.f32.mrf.mxu0
      %v8797 = vadd.f32 %v8744, %v8796
      %v8798 = vpop.f32.mrf.mxu0
      %v8799 = vadd.f32 %v8746, %v8798
      %v8800 = vpop.f32.mrf.mxu0
      %v8801 = vadd.f32 %v8748, %v8800
      %v8802 = vpop.f32.mrf.mxu0
      %v8803 = vadd.f32 %v8750, %v8802
      %8804 = vdwg.mxu0
      %8805 = vmatprep.subr.bf16.mxu0 0
      %8806 = vmatpush1.bf16.msra.mxu0 0
      %8807 = vmatprep.subr.bf16.mxu0 0
      %8808 = vmatpush1.bf16.msra.mxu0 0
      %8809 = vmatprep.subr.bf16.mxu0 0
      %8810 = vmatpush1.bf16.msra.mxu0 0
      %8811 = vmatprep.subr.bf16.mxu0 0
      %8812 = vmatpush1.bf16.msra.mxu0 0
      %8813 = vmatprep.subr.bf16.mxu0 %v8314
      %8814 = vmatpush1.bf16.msra.mxu0 %v8313
      %8815 = vmatprep.subr.bf16.mxu0 %v8308
      %8816 = vmatpush1.bf16.msra.mxu0 %v8307
      %8817 = vmatprep.subr.bf16.mxu0 %v8302
      %8818 = vmatpush1.bf16.msra.mxu0 %v8301
      %8819 = vmatprep.subr.bf16.mxu0 %v8296
      %8820 = vmatpush1.bf16.msra.mxu0 %v8295
      %8821 = vmatprep.subr.bf16.mxu0 0
      %8822 = vmatpush2.bf16.msra.mxu0 0
      %8823 = vmatprep.subr.bf16.mxu0 0
      %8824 = vmatpush2.bf16.msra.mxu0 0
      %8825 = vmatprep.subr.bf16.mxu0 0
      %8826 = vmatpush2.bf16.msra.mxu0 0
      %8827 = vmatprep.subr.bf16.mxu0 0
      %8828 = vmatpush2.bf16.msra.mxu0 0
      %8829 = vmatprep.subr.bf16.mxu0 0
      %8830 = vmatpush2.bf16.msra.mxu0 0
      %8831 = vmatprep.subr.bf16.mxu0 0
      %8832 = vmatpush2.bf16.msra.mxu0 0
      %8833 = vmatprep.subr.bf16.mxu0 0
      %8834 = vmatpush2.bf16.msra.mxu0 0
      %8835 = vmatprep.subr.bf16.mxu0 0
      %8836 = vmatpush2.bf16.msra.mxu0 0
      %8837 = vmatprep.mubr.bf16.mxu0 0
      %8838 = vmatmul.mubr.bf16.gmra.mxu0 %v8535
      %v8839 = vpop.f32.mrf.mxu0
      %v8840 = vadd.f32 %v8787, %v8839
      %v8841 = vpop.f32.mrf.mxu0
      %v8842 = vadd.f32 %v8789, %v8841
      %v8843 = vpop.f32.mrf.mxu0
      %v8844 = vadd.f32 %v8791, %v8843
      %v8845 = vpop.f32.mrf.mxu0
      %v8846 = vadd.f32 %v8793, %v8845
      %8847 = vmatprep.mubr.bf16.mxu0 0
      %8848 = vmatmul.mubr.bf16.gmra.mxu0 %v8538
      %v8849 = vpop.f32.mrf.mxu0
      %v8850 = vadd.f32 %v8797, %v8849
      %v8851 = vpop.f32.mrf.mxu0
      %v8852 = vadd.f32 %v8799, %v8851
      %v8853 = vpop.f32.mrf.mxu0
      %v8854 = vadd.f32 %v8801, %v8853
      %v8855 = vpop.f32.mrf.mxu0
      %v8856 = vadd.f32 %v8803, %v8855
      %8857 = vdwg.mxu0
      %8858 = vmatprep.subr.bf16.mxu0 %v8148
      %8859 = vmatpush1.bf16.msra.mxu0 %v8147
      %8860 = vmatprep.subr.bf16.mxu0 %v8142
      %8861 = vmatpush1.bf16.msra.mxu0 %v8141
      %8862 = vmatprep.subr.bf16.mxu0 %v8136
      %8863 = vmatpush1.bf16.msra.mxu0 %v8135
      %8864 = vmatprep.subr.bf16.mxu0 %v8130
      %8865 = vmatpush1.bf16.msra.mxu0 %v8129
      %8866 = vmatprep.subr.bf16.mxu0 %v8124
      %8867 = vmatpush1.bf16.msra.mxu0 %v8123
      %8868 = vmatprep.subr.bf16.mxu0 %v8118
      %8869 = vmatpush1.bf16.msra.mxu0 %v8117
      %8870 = vmatprep.subr.bf16.mxu0 %v8112
      %8871 = vmatpush1.bf16.msra.mxu0 %v8111
      %8872 = vmatprep.subr.bf16.mxu0 %v8106
      %8873 = vmatpush1.bf16.msra.mxu0 %v8105
      %8874 = vmatprep.subr.bf16.mxu0 %v8196
      %8875 = vmatpush2.bf16.msra.mxu0 %v8195
      %8876 = vmatprep.subr.bf16.mxu0 %v8190
      %8877 = vmatpush2.bf16.msra.mxu0 %v8189
      %8878 = vmatprep.subr.bf16.mxu0 %v8184
      %8879 = vmatpush2.bf16.msra.mxu0 %v8183
      %8880 = vmatprep.subr.bf16.mxu0 %v8178
      %8881 = vmatpush2.bf16.msra.mxu0 %v8177
      %8882 = vmatprep.subr.bf16.mxu0 %v8172
      %8883 = vmatpush2.bf16.msra.mxu0 %v8171
      %8884 = vmatprep.subr.bf16.mxu0 %v8166
      %8885 = vmatpush2.bf16.msra.mxu0 %v8165
      %8886 = vmatprep.subr.bf16.mxu0 %v8160
      %8887 = vmatpush2.bf16.msra.mxu0 %v8159
      %8888 = vmatprep.subr.bf16.mxu0 %v8154
      %8889 = vmatpush2.bf16.msra.mxu0 %v8153
      %8890 = vmatprep.mubr.bf16.mxu0 %v7436
      %8891 = vmatmul.mubr.bf16.gmra.mxu0 %v7435
      %v8892 = vpop.f32.mrf.mxu0
      %v8893 = vadd.f32 %v7386, %v8892
      %v8894 = vpop.f32.mrf.mxu0
      %v8895 = vadd.f32 %v7386, %v8894
      %v8896 = vpop.f32.mrf.mxu0
      %v8897 = vadd.f32 %v7391, %v8896
      %v8898 = vpop.f32.mrf.mxu0
      %v8899 = vadd.f32 %v7391, %v8898
      %8900 = vmatprep.mubr.bf16.mxu0 %v7441
      %8901 = vmatmul.mubr.bf16.gmra.mxu0 %v7440
      %v8902 = vpop.f32.mrf.mxu0
      %v8903 = vadd.f32 %v7396, %v8902
      %v8904 = vpop.f32.mrf.mxu0
      %v8905 = vadd.f32 %v7396, %v8904
      %v8906 = vpop.f32.mrf.mxu0
      %v8907 = vadd.f32 %v7401, %v8906
      %v8908 = vpop.f32.mrf.mxu0
      %v8909 = vadd.f32 %v7401, %v8908
      %8910 = vdwg.mxu0
      %8911 = vmatprep.subr.bf16.mxu0 %v8244
      %8912 = vmatpush1.bf16.msra.mxu0 %v8243
      %8913 = vmatprep.subr.bf16.mxu0 %v8238
      %8914 = vmatpush1.bf16.msra.mxu0 %v8237
      %8915 = vmatprep.subr.bf16.mxu0 %v8232
      %8916 = vmatpush1.bf16.msra.mxu0 %v8231
      %8917 = vmatprep.subr.bf16.mxu0 %v8226
      %8918 = vmatpush1.bf16.msra.mxu0 %v8225
      %8919 = vmatprep.subr.bf16.mxu0 %v8220
      %8920 = vmatpush1.bf16.msra.mxu0 %v8219
      %8921 = vmatprep.subr.bf16.mxu0 %v8214
      %8922 = vmatpush1.bf16.msra.mxu0 %v8213
      %8923 = vmatprep.subr.bf16.mxu0 %v8208
      %8924 = vmatpush1.bf16.msra.mxu0 %v8207
      %8925 = vmatprep.subr.bf16.mxu0 %v8202
      %8926 = vmatpush1.bf16.msra.mxu0 %v8201
      %8927 = vmatprep.subr.bf16.mxu0 %v8292
      %8928 = vmatpush2.bf16.msra.mxu0 %v8291
      %8929 = vmatprep.subr.bf16.mxu0 %v8286
      %8930 = vmatpush2.bf16.msra.mxu0 %v8285
      %8931 = vmatprep.subr.bf16.mxu0 %v8280
      %8932 = vmatpush2.bf16.msra.mxu0 %v8279
      %8933 = vmatprep.subr.bf16.mxu0 %v8274
      %8934 = vmatpush2.bf16.msra.mxu0 %v8273
      %8935 = vmatprep.subr.bf16.mxu0 %v8268
      %8936 = vmatpush2.bf16.msra.mxu0 %v8267
      %8937 = vmatprep.subr.bf16.mxu0 %v8262
      %8938 = vmatpush2.bf16.msra.mxu0 %v8261
      %8939 = vmatprep.subr.bf16.mxu0 %v8256
      %8940 = vmatpush2.bf16.msra.mxu0 %v8255
      %8941 = vmatprep.subr.bf16.mxu0 %v8250
      %8942 = vmatpush2.bf16.msra.mxu0 %v8249
      %8943 = vmatprep.mubr.bf16.mxu0 %v7438
      %8944 = vmatmul.mubr.bf16.gmra.mxu0 %v7437
      %v8945 = vpop.f32.mrf.mxu0
      %v8946 = vadd.f32 %v8893, %v8945
      %v8947 = vpop.f32.mrf.mxu0
      %v8948 = vadd.f32 %v8895, %v8947
      %v8949 = vpop.f32.mrf.mxu0
      %v8950 = vadd.f32 %v8897, %v8949
      %v8951 = vpop.f32.mrf.mxu0
      %v8952 = vadd.f32 %v8899, %v8951
      %8953 = vmatprep.mubr.bf16.mxu0 %v7443
      %8954 = vmatmul.mubr.bf16.gmra.mxu0 %v7442
      %v8955 = vpop.f32.mrf.mxu0
      %v8956 = vadd.f32 %v8903, %v8955
      %v8957 = vpop.f32.mrf.mxu0
      %v8958 = vadd.f32 %v8905, %v8957
      %v8959 = vpop.f32.mrf.mxu0
      %v8960 = vadd.f32 %v8907, %v8959
      %v8961 = vpop.f32.mrf.mxu0
      %v8962 = vadd.f32 %v8909, %v8961
      %8963 = vdwg.mxu0
      %8964 = vmatprep.subr.bf16.mxu0 0
      %8965 = vmatpush1.bf16.msra.mxu0 0
      %8966 = vmatprep.subr.bf16.mxu0 0
      %8967 = vmatpush1.bf16.msra.mxu0 0
      %8968 = vmatprep.subr.bf16.mxu0 0
      %8969 = vmatpush1.bf16.msra.mxu0 0
      %8970 = vmatprep.subr.bf16.mxu0 0
      %8971 = vmatpush1.bf16.msra.mxu0 0
      %8972 = vmatprep.subr.bf16.mxu0 %v8316
      %8973 = vmatpush1.bf16.msra.mxu0 %v8315
      %8974 = vmatprep.subr.bf16.mxu0 %v8310
      %8975 = vmatpush1.bf16.msra.mxu0 %v8309
      %8976 = vmatprep.subr.bf16.mxu0 %v8304
      %8977 = vmatpush1.bf16.msra.mxu0 %v8303
      %8978 = vmatprep.subr.bf16.mxu0 %v8298
      %8979 = vmatpush1.bf16.msra.mxu0 %v8297
      %8980 = vmatprep.subr.bf16.mxu0 0
      %8981 = vmatpush2.bf16.msra.mxu0 0
      %8982 = vmatprep.subr.bf16.mxu0 0
      %8983 = vmatpush2.bf16.msra.mxu0 0
      %8984 = vmatprep.subr.bf16.mxu0 0
      %8985 = vmatpush2.bf16.msra.mxu0 0
      %8986 = vmatprep.subr.bf16.mxu0 0
      %8987 = vmatpush2.bf16.msra.mxu0 0
      %8988 = vmatprep.subr.bf16.mxu0 0
      %8989 = vmatpush2.bf16.msra.mxu0 0
      %8990 = vmatprep.subr.bf16.mxu0 0
      %8991 = vmatpush2.bf16.msra.mxu0 0
      %8992 = vmatprep.subr.bf16.mxu0 0
      %8993 = vmatpush2.bf16.msra.mxu0 0
      %8994 = vmatprep.subr.bf16.mxu0 0
      %8995 = vmatpush2.bf16.msra.mxu0 0
      %8996 = vmatprep.mubr.bf16.mxu0 0
      %8997 = vmatmul.mubr.bf16.gmra.mxu0 %v8535
      %v8998 = vpop.f32.mrf.mxu0
      %v8999 = vadd.f32 %v8946, %v8998
      %v9000 = vpop.f32.mrf.mxu0
      %v9001 = vadd.f32 %v8948, %v9000
      %v9002 = vpop.f32.mrf.mxu0
      %v9003 = vadd.f32 %v8950, %v9002
      %v9004 = vpop.f32.mrf.mxu0
      %v9005 = vadd.f32 %v8952, %v9004
      %9006 = vmatprep.mubr.bf16.mxu0 0
      %9007 = vmatmul.mubr.bf16.gmra.mxu0 %v8538
      %v9008 = vpop.f32.mrf.mxu0
      %v9009 = vadd.f32 %v8956, %v9008
      %v9010 = vpop.f32.mrf.mxu0
      %v9011 = vadd.f32 %v8958, %v9010
      %v9012 = vpop.f32.mrf.mxu0
      %v9013 = vadd.f32 %v8960, %v9012
      %v9014 = vpop.f32.mrf.mxu0
      %v9015 = vadd.f32 %v8962, %v9014
      %9016 = vdwg.mxu0
      %v9017 = vmax.f32 %v8681, 0.0
      %v9018 = vmax.f32 %v8683, 0.0
      %v9019 = vmax.f32 %v8840, 0.0
      %v9020 = vmax.f32 %v8842, 0.0
      %v9021 = vmax.f32 %v8999, 0.0
      %v9022 = vmax.f32 %v9001, 0.0
      %v9023 = vmax.f32 %v8685, 0.0
      %v9024 = vmax.f32 %v8687, 0.0
      %v9025 = vmax.f32 %v8844, 0.0
      %v9026 = vmax.f32 %v8846, 0.0
      %v9027 = vmax.f32 %v9003, 0.0
      %v9028 = vmax.f32 %v9005, 0.0
      %v9029 = vmax.f32 %v8691, 0.0
      %v9030 = vmax.f32 %v8693, 0.0
      %v9031 = vmax.f32 %v8850, 0.0
      %v9032 = vmax.f32 %v8852, 0.0
      %v9033 = vmax.f32 %v9009, 0.0
      %v9034 = vmax.f32 %v9011, 0.0
      %v9035 = vmax.f32 %v8695, 0.0
      %v9036 = vmax.f32 %v8697, 0.0
      %v9037 = vmax.f32 %v8854, 0.0
      %v9038 = vmax.f32 %v8856, 0.0
      %v9039 = vmax.f32 %v9013, 0.0
      %v9040 = vmax.f32 %v9015, 0.0
      %v9041 = vld [vmem:[%s13] sm:$0x3]
      %v9042 = vld [vmem:[%s14] sm:$0x3]
      %9044 = vset.pattern.permute.xlu0 0
      %9045 = vperm.xlu0 %9044, %v9042
      %v9046 = vpop.permute.xlu0 %9045
      %vm9048 = vcmask 261120
      %v9050 = vsel %vm9048, %v9041, 0
      %9052 = vmatprep.subr.mxu0 0.0
      %9053 = vmatpush1.msra.mxu0 0.0
      %9054 = vmatprep.subr.mxu0 0.0
      %9055 = vmatpush1.msra.mxu0 0.0
      %9056 = vmatprep.subr.mxu0 0.0
      %9057 = vmatpush1.msra.mxu0 0.0
      %9058 = vmatprep.subr.mxu0 0.0
      %9059 = vmatpush1.msra.mxu0 0.0
      %9060 = vmatprep.subr.mxu0 0.0
      %9061 = vmatpush1.msra.mxu0 0.0
      %9062 = vmatprep.subr.mxu0 0.0
      %9063 = vmatpush1.msra.mxu0 0.0
      %9064 = vmatprep.subr.mxu0 0.0
      %9065 = vmatpush1.msra.mxu0 0.0
      %9066 = vmatprep.subr.mxu0 0.0
      %9067 = vmatpush1.msra.mxu0 0.0
      %9068 = vmatprep.subr.mxu0 0.0
      %9069 = vmatpush1.msra.mxu0 0.0
      %9070 = vmatprep.subr.mxu0 0.0
      %9071 = vmatpush1.msra.mxu0 0.0
      %9072 = vmatprep.subr.mxu0 0.0
      %9073 = vmatpush1.msra.mxu0 0.0
      %9074 = vmatprep.subr.mxu0 0.0
      %9075 = vmatpush1.msra.mxu0 0.0
      %9076 = vmatprep.subr.mxu0 %v9036
      %9077 = vmatpush1.msra.mxu0 %v9035
      %9078 = vmatprep.subr.mxu0 %v9030
      %9079 = vmatpush1.msra.mxu0 %v9029
      %9080 = vmatprep.subr.mxu0 %v9024
      %9081 = vmatpush1.msra.mxu0 %v9023
      %9082 = vmatprep.subr.mxu0 %v9018
      %9083 = vmatpush1.msra.mxu0 %v9017
      %9084 = vmatprep.subr.mxu0 0.0
      %9085 = vmatpush2.msra.mxu0 0.0
      %9086 = vmatprep.subr.mxu0 0.0
      %9087 = vmatpush2.msra.mxu0 0.0
      %9088 = vmatprep.subr.mxu0 0.0
      %9089 = vmatpush2.msra.mxu0 0.0
      %9090 = vmatprep.subr.mxu0 0.0
      %9091 = vmatpush2.msra.mxu0 0.0
      %9092 = vmatprep.subr.mxu0 0.0
      %9093 = vmatpush2.msra.mxu0 0.0
      %9094 = vmatprep.subr.mxu0 0.0
      %9095 = vmatpush2.msra.mxu0 0.0
      %9096 = vmatprep.subr.mxu0 0.0
      %9097 = vmatpush2.msra.mxu0 0.0
      %9098 = vmatprep.subr.mxu0 0.0
      %9099 = vmatpush2.msra.mxu0 0.0
      %9100 = vmatprep.subr.mxu0 0.0
      %9101 = vmatpush2.msra.mxu0 0.0
      %9102 = vmatprep.subr.mxu0 0.0
      %9103 = vmatpush2.msra.mxu0 0.0
      %9104 = vmatprep.subr.mxu0 0.0
      %9105 = vmatpush2.msra.mxu0 0.0
      %9106 = vmatprep.subr.mxu0 0.0
      %9107 = vmatpush2.msra.mxu0 0.0
      %9108 = vmatprep.subr.mxu0 0.0
      %9109 = vmatpush2.msra.mxu0 0.0
      %9110 = vmatprep.subr.mxu0 0.0
      %9111 = vmatpush2.msra.mxu0 0.0
      %9112 = vmatprep.subr.mxu0 0.0
      %9113 = vmatpush2.msra.mxu0 0.0
      %9114 = vmatprep.subr.mxu0 0.0
      %9115 = vmatpush2.msra.mxu0 0.0
      %9116 = vmatprep.mubr.f32.mxu0 0.0
      %9117 = vmatmul.mubr.f32.gmra.mxu0 %v9050
      %v9118 = vpop.f32.mrf.mxu0
      %v9119 = vadd.f32 %v9046, %v9118
      %v9120 = vpop.f32.mrf.mxu0
      %v9121 = vadd.f32 %v9046, %v9120
      %9122 = vdwg.mxu0
      %9123 = vmatprep.subr.mxu0 0.0
      %9124 = vmatpush1.msra.mxu0 0.0
      %9125 = vmatprep.subr.mxu0 0.0
      %9126 = vmatpush1.msra.mxu0 0.0
      %9127 = vmatprep.subr.mxu0 0.0
      %9128 = vmatpush1.msra.mxu0 0.0
      %9129 = vmatprep.subr.mxu0 0.0
      %9130 = vmatpush1.msra.mxu0 0.0
      %9131 = vmatprep.subr.mxu0 0.0
      %9132 = vmatpush1.msra.mxu0 0.0
      %9133 = vmatprep.subr.mxu0 0.0
      %9134 = vmatpush1.msra.mxu0 0.0
      %9135 = vmatprep.subr.mxu0 0.0
      %9136 = vmatpush1.msra.mxu0 0.0
      %9137 = vmatprep.subr.mxu0 0.0
      %9138 = vmatpush1.msra.mxu0 0.0
      %9139 = vmatprep.subr.mxu0 0.0
      %9140 = vmatpush1.msra.mxu0 0.0
      %9141 = vmatprep.subr.mxu0 0.0
      %9142 = vmatpush1.msra.mxu0 0.0
      %9143 = vmatprep.subr.mxu0 0.0
      %9144 = vmatpush1.msra.mxu0 0.0
      %9145 = vmatprep.subr.mxu0 0.0
      %9146 = vmatpush1.msra.mxu0 0.0
      %9147 = vmatprep.subr.mxu0 %v9038
      %9148 = vmatpush1.msra.mxu0 %v9037
      %9149 = vmatprep.subr.mxu0 %v9032
      %9150 = vmatpush1.msra.mxu0 %v9031
      %9151 = vmatprep.subr.mxu0 %v9026
      %9152 = vmatpush1.msra.mxu0 %v9025
      %9153 = vmatprep.subr.mxu0 %v9020
      %9154 = vmatpush1.msra.mxu0 %v9019
      %9155 = vmatprep.subr.mxu0 0.0
      %9156 = vmatpush2.msra.mxu0 0.0
      %9157 = vmatprep.subr.mxu0 0.0
      %9158 = vmatpush2.msra.mxu0 0.0
      %9159 = vmatprep.subr.mxu0 0.0
      %9160 = vmatpush2.msra.mxu0 0.0
      %9161 = vmatprep.subr.mxu0 0.0
      %9162 = vmatpush2.msra.mxu0 0.0
      %9163 = vmatprep.subr.mxu0 0.0
      %9164 = vmatpush2.msra.mxu0 0.0
      %9165 = vmatprep.subr.mxu0 0.0
      %9166 = vmatpush2.msra.mxu0 0.0
      %9167 = vmatprep.subr.mxu0 0.0
      %9168 = vmatpush2.msra.mxu0 0.0
      %9169 = vmatprep.subr.mxu0 0.0
      %9170 = vmatpush2.msra.mxu0 0.0
      %9171 = vmatprep.subr.mxu0 0.0
      %9172 = vmatpush2.msra.mxu0 0.0
      %9173 = vmatprep.subr.mxu0 0.0
      %9174 = vmatpush2.msra.mxu0 0.0
      %9175 = vmatprep.subr.mxu0 0.0
      %9176 = vmatpush2.msra.mxu0 0.0
      %9177 = vmatprep.subr.mxu0 0.0
      %9178 = vmatpush2.msra.mxu0 0.0
      %9179 = vmatprep.subr.mxu0 0.0
      %9180 = vmatpush2.msra.mxu0 0.0
      %9181 = vmatprep.subr.mxu0 0.0
      %9182 = vmatpush2.msra.mxu0 0.0
      %9183 = vmatprep.subr.mxu0 0.0
      %9184 = vmatpush2.msra.mxu0 0.0
      %9185 = vmatprep.subr.mxu0 0.0
      %9186 = vmatpush2.msra.mxu0 0.0
      %9187 = vmatprep.mubr.f32.mxu0 0.0
      %9188 = vmatmul.mubr.f32.gmra.mxu0 %v9050
      %v9189 = vpop.f32.mrf.mxu0
      %v9190 = vadd.f32 %v9046, %v9189
      %v9191 = vpop.f32.mrf.mxu0
      %v9192 = vadd.f32 %v9046, %v9191
      %9193 = vdwg.mxu0
      %9194 = vmatprep.subr.mxu0 0.0
      %9195 = vmatpush1.msra.mxu0 0.0
      %9196 = vmatprep.subr.mxu0 0.0
      %9197 = vmatpush1.msra.mxu0 0.0
      %9198 = vmatprep.subr.mxu0 0.0
      %9199 = vmatpush1.msra.mxu0 0.0
      %9200 = vmatprep.subr.mxu0 0.0
      %9201 = vmatpush1.msra.mxu0 0.0
      %9202 = vmatprep.subr.mxu0 0.0
      %9203 = vmatpush1.msra.mxu0 0.0
      %9204 = vmatprep.subr.mxu0 0.0
      %9205 = vmatpush1.msra.mxu0 0.0
      %9206 = vmatprep.subr.mxu0 0.0
      %9207 = vmatpush1.msra.mxu0 0.0
      %9208 = vmatprep.subr.mxu0 0.0
      %9209 = vmatpush1.msra.mxu0 0.0
      %9210 = vmatprep.subr.mxu0 0.0
      %9211 = vmatpush1.msra.mxu0 0.0
      %9212 = vmatprep.subr.mxu0 0.0
      %9213 = vmatpush1.msra.mxu0 0.0
      %9214 = vmatprep.subr.mxu0 0.0
      %9215 = vmatpush1.msra.mxu0 0.0
      %9216 = vmatprep.subr.mxu0 0.0
      %9217 = vmatpush1.msra.mxu0 0.0
      %9218 = vmatprep.subr.mxu0 %v9040
      %9219 = vmatpush1.msra.mxu0 %v9039
      %9220 = vmatprep.subr.mxu0 %v9034
      %9221 = vmatpush1.msra.mxu0 %v9033
      %9222 = vmatprep.subr.mxu0 %v9028
      %9223 = vmatpush1.msra.mxu0 %v9027
      %9224 = vmatprep.subr.mxu0 %v9022
      %9225 = vmatpush1.msra.mxu0 %v9021
      %9226 = vmatprep.subr.mxu0 0.0
      %9227 = vmatpush2.msra.mxu0 0.0
      %9228 = vmatprep.subr.mxu0 0.0
      %9229 = vmatpush2.msra.mxu0 0.0
      %9230 = vmatprep.subr.mxu0 0.0
      %9231 = vmatpush2.msra.mxu0 0.0
      %9232 = vmatprep.subr.mxu0 0.0
      %9233 = vmatpush2.msra.mxu0 0.0
      %9234 = vmatprep.subr.mxu0 0.0
      %9235 = vmatpush2.msra.mxu0 0.0
      %9236 = vmatprep.subr.mxu0 0.0
      %9237 = vmatpush2.msra.mxu0 0.0
      %9238 = vmatprep.subr.mxu0 0.0
      %9239 = vmatpush2.msra.mxu0 0.0
      %9240 = vmatprep.subr.mxu0 0.0
      %9241 = vmatpush2.msra.mxu0 0.0
      %9242 = vmatprep.subr.mxu0 0.0
      %9243 = vmatpush2.msra.mxu0 0.0
      %9244 = vmatprep.subr.mxu0 0.0
      %9245 = vmatpush2.msra.mxu0 0.0
      %9246 = vmatprep.subr.mxu0 0.0
      %9247 = vmatpush2.msra.mxu0 0.0
      %9248 = vmatprep.subr.mxu0 0.0
      %9249 = vmatpush2.msra.mxu0 0.0
      %9250 = vmatprep.subr.mxu0 0.0
      %9251 = vmatpush2.msra.mxu0 0.0
      %9252 = vmatprep.subr.mxu0 0.0
      %9253 = vmatpush2.msra.mxu0 0.0
      %9254 = vmatprep.subr.mxu0 0.0
      %9255 = vmatpush2.msra.mxu0 0.0
      %9256 = vmatprep.subr.mxu0 0.0
      %9257 = vmatpush2.msra.mxu0 0.0
      %9258 = vmatprep.mubr.f32.mxu0 0.0
      %9259 = vmatmul.mubr.f32.gmra.mxu0 %v9050
      %v9260 = vpop.f32.mrf.mxu0
      %v9261 = vadd.f32 %v9046, %v9260
      %v9262 = vpop.f32.mrf.mxu0
      %v9263 = vadd.f32 %v9046, %v9262
      %9264 = vdwg.mxu0
      %v9271 = vrot.slane %v9119, 7
      %v9272 = vrot.slane %v9121, 7
      %v9273 = vrot.slane %v9190, 7
      %v9274 = vrot.slane %v9192, 7
      %v9275 = vrot.slane %v9261, 7
      %v9276 = vrot.slane %v9263, 7
      %v9283 = vsub.f32 %v9119, %v9271
      %v9284 = vsub.f32 %v9121, %v9272
      %v9285 = vsub.f32 %v9190, %v9273
      %v9286 = vsub.f32 %v9192, %v9274
      %v9287 = vsub.f32 %v9261, %v9275
      %v9288 = vsub.f32 %v9263, %v9276
      %v9289 = vmul.f32 %v9283, 1.442695
      %v9290 = vpow.pop %v9289
      %v9291 = vmul.f32 %v9284, 1.442695
      %v9292 = vpow.pop %v9291
      %v9293 = vmul.f32 %v9285, 1.442695
      %v9294 = vpow.pop %v9293
      %v9295 = vmul.f32 %v9286, 1.442695
      %v9296 = vpow.pop %v9295
      %v9297 = vmul.f32 %v9287, 1.442695
      %v9298 = vpow.pop %v9297
      %v9299 = vmul.f32 %v9288, 1.442695
      %v9300 = vpow.pop %v9299
      %v9301 = vadd.f32 %v9290, 1.0
      %v9302 = vadd.f32 %v9292, 1.0
      %v9303 = vadd.f32 %v9294, 1.0
      %v9304 = vadd.f32 %v9296, 1.0
      %v9305 = vadd.f32 %v9298, 1.0
      %v9306 = vadd.f32 %v9300, 1.0
      %v9307 = vrcp.pop %v9301
      %v9308 = vmul.f32 1.0, %v9307
      %v9309 = vrcp.pop %v9302
      %v9310 = vmul.f32 1.0, %v9309
      %v9311 = vrcp.pop %v9303
      %v9312 = vmul.f32 1.0, %v9311
      %v9313 = vrcp.pop %v9304
      %v9314 = vmul.f32 1.0, %v9313
      %v9315 = vrcp.pop %v9305
      %v9316 = vmul.f32 1.0, %v9315
      %v9317 = vrcp.pop %v9306
      %v9318 = vmul.f32 1.0, %v9317
      %v9319 = vrot.slane %v9119, 1
      %v9320 = vrot.slane %v9121, 1
      %v9321 = vrot.slane %v9190, 1
      %v9322 = vrot.slane %v9192, 1
      %v9323 = vrot.slane %v9261, 1
      %v9324 = vrot.slane %v9263, 1
      %v9331 = vsub.f32 %v9119, %v9319
      %v9332 = vsub.f32 %v9121, %v9320
      %v9333 = vsub.f32 %v9190, %v9321
      %v9334 = vsub.f32 %v9192, %v9322
      %v9335 = vsub.f32 %v9261, %v9323
      %v9336 = vsub.f32 %v9263, %v9324
      %v9337 = vmul.f32 %v9331, 1.442695
      %v9338 = vpow.pop %v9337
      %v9339 = vmul.f32 %v9332, 1.442695
      %v9340 = vpow.pop %v9339
      %v9341 = vmul.f32 %v9333, 1.442695
      %v9342 = vpow.pop %v9341
      %v9343 = vmul.f32 %v9334, 1.442695
      %v9344 = vpow.pop %v9343
      %v9345 = vmul.f32 %v9335, 1.442695
      %v9346 = vpow.pop %v9345
      %v9347 = vmul.f32 %v9336, 1.442695
      %v9348 = vpow.pop %v9347
      %v9349 = vadd.f32 %v9338, 1.0
      %v9350 = vadd.f32 %v9340, 1.0
      %v9351 = vadd.f32 %v9342, 1.0
      %v9352 = vadd.f32 %v9344, 1.0
      %v9353 = vadd.f32 %v9346, 1.0
      %v9354 = vadd.f32 %v9348, 1.0
      %v9355 = vrcp.pop %v9349
      %v9356 = vmul.f32 1.0, %v9355
      %v9357 = vrcp.pop %v9350
      %v9358 = vmul.f32 1.0, %v9357
      %v9359 = vrcp.pop %v9351
      %v9360 = vmul.f32 1.0, %v9359
      %v9361 = vrcp.pop %v9352
      %v9362 = vmul.f32 1.0, %v9361
      %v9363 = vrcp.pop %v9353
      %v9364 = vmul.f32 1.0, %v9363
      %v9365 = vrcp.pop %v9354
      %v9366 = vmul.f32 1.0, %v9365
      %v9367 = vcombine.low %v9119, %v9121
      %v9368 = vcombine.low %v9190, %v9192
      %v9370 = vunpack.c.l.s4 1983009808
      %v9371 = vunpack.c.0.s8 %v9370
      %v9372 = vlaneseq
      %v9373 = vshrl.u32 %v9372, 7
      %v9374 = vsub.s32 %v9371, %v9373
      %v9375 = vrot.slane %v9367, %v9374
      %v9377 = vunpack.c.l.s4 1983009808
      %v9378 = vunpack.c.0.s8 %v9377
      %v9379 = vlaneseq
      %v9380 = vshrl.u32 %v9379, 7
      %v9381 = vsub.s32 %v9378, %v9380
      %v9382 = vrot.slane %v9368, %v9381
      %v9383 = vcombine.low %v9375, %v9382
      %v9384 = vcombine.low %v9261, %v9263
      %v9386 = vunpack.c.l.s4 1983009808
      %v9387 = vunpack.c.0.s8 %v9386
      %v9388 = vlaneseq
      %v9389 = vshrl.u32 %v9388, 7
      %v9390 = vsub.s32 %v9387, %v9389
      %v9391 = vrot.slane %v9384, %v9390
      %9394 = vst [vmem:[%s543] sm:$0xff] %v9383
      %9395 = vst [vmem:[%s543 + $0x8] sm:$0xf] %v9391
      %v9402 = vrot.slane %v9308, 1
      %v9403 = vrot.slane %v9310, 1
      %v9404 = vrot.slane %v9312, 1
      %v9405 = vrot.slane %v9314, 1
      %v9406 = vrot.slane %v9316, 1
      %v9407 = vrot.slane %v9318, 1
      %v9420 = vrot.slane %v9356, 7
      %v9421 = vrot.slane %v9358, 7
      %v9422 = vrot.slane %v9360, 7
      %v9423 = vrot.slane %v9362, 7
      %v9424 = vrot.slane %v9364, 7
      %v9425 = vrot.slane %v9366, 7
      %vm9432 = vcmask 1040384
      %v9433 = vsel %vm9432, %v9402, %v9420
      %v9434 = vsel %vm9432, %v9403, %v9421
      %v9435 = vsel %vm9432, %v9404, %v9422
      %v9436 = vsel %vm9432, %v9405, %v9423
      %v9437 = vsel %vm9432, %v9406, %v9424
      %v9438 = vsel %vm9432, %v9407, %v9425
      %v9445 = vcombine.low %v9433, %v9434
      %v9446 = vcombine.low %v9435, %v9436
      %v9448 = vunpack.c.l.s4 1983009808
      %v9449 = vunpack.c.0.s8 %v9448
      %v9450 = vlaneseq
      %v9451 = vshrl.u32 %v9450, 7
      %v9452 = vsub.s32 %v9449, %v9451
      %v9453 = vrot.slane %v9445, %v9452
      %v9455 = vunpack.c.l.s4 1983009808
      %v9456 = vunpack.c.0.s8 %v9455
      %v9457 = vlaneseq
      %v9458 = vshrl.u32 %v9457, 7
      %v9459 = vsub.s32 %v9456, %v9458
      %v9460 = vrot.slane %v9446, %v9459
      %v9461 = vcombine.low %v9453, %v9460
      %v9462 = vcombine.low %v9437, %v9438
      %v9464 = vunpack.c.l.s4 1983009808
      %v9465 = vunpack.c.0.s8 %v9464
      %v9466 = vlaneseq
      %v9467 = vshrl.u32 %v9466, 7
      %v9468 = vsub.s32 %v9465, %v9467
      %v9469 = vrot.slane %v9462, %v9468
      %9472 = vst [vmem:[%s548] sm:$0xff] %v9461
      %9473 = vst [vmem:[%s548 + $0x8] sm:$0xf] %v9469
      %p9474 = scmp.lt.s32.totalorder %s28, 1
      %s9475 = scalar_select %p9474, %s28, 1
      %s9476 = smul.addr %s9475, 6
      %s9477 = smul.addr %s9476, 2
      %s9478 = scalar_lea.vmem %s15, %s9477
      %p9479 = scmp.lt.s32.totalorder %s28, 1
      %s9480 = scalar_select %p9479, %s28, 1
      %s9481 = smul.addr %s9480, 6
      %s9482 = smul.addr %s9481, 2
      %s9483 = scalar_lea.vmem %s16, %s9482
      // Predicated region
      $region81: #{coseg_forward_pallas.1} parent=79 // pred_check
        %p9484 = pneg %p371
      $region82: #{coseg_forward_pallas.1} parent=79 // pred_check_branch
        %9486 = sbr.rel (%p9484) target = $region84
      $region83: #{coseg_forward_pallas.1} parent=79 // pred_region
        _
      $region84: #{coseg_forward_pallas.1} parent=79 // pred_fallthru
        _
      // Predicated region
      $region85: #{coseg_forward_pallas.1} parent=79 // pred_check
        %p9487 = pneg %p397
      $region86: #{coseg_forward_pallas.1} parent=79 // pred_check_branch
        %9489 = sbr.rel (%p9487) target = $region88
      $region87: #{coseg_forward_pallas.1} parent=79 // pred_region
        _
      $region88: #{coseg_forward_pallas.1} parent=79 // pred_fallthru
        _
    $region80: #{coseg_forward_pallas.1} parent=5 // pred_fallthru
      _
    %p9490 = scmp.le.s32.totalorder 2, %s23
    // Predicated region
    $region89: #{coseg_forward_pallas.1} parent=5 // pred_check
      %p9491 = pneg %p9490
    $region90: #{coseg_forward_pallas.1} parent=5 // pred_check_branch
      %9493 = sbr.rel (%p9491) target = $region92
    $region91: #{coseg_forward_pallas.1} parent=5 // pred_region
      %s9494 = ssub.s32 %s23, 2
      // Predicated region
      $region93: #{coseg_forward_pallas.1} parent=91 // pred_check
        %p9495 = pneg %p377
      $region94: #{coseg_forward_pallas.1} parent=91 // pred_check_branch
        %9497 = sbr.rel (%p9495) target = $region96
      $region95: #{coseg_forward_pallas.1} parent=91 // pred_region
        %p9498 = scmp.lt.s32.totalorder %s29, 1
        %s9499 = scalar_select %p9498, %s29, 1
        %s9500 = smul.addr %s9499, 6
        %s9501 = smul.addr %s9500, 2
        %s9502 = scalar_lea.vmem %s15, %s9501
      $region96: #{coseg_forward_pallas.1} parent=91 // pred_fallthru
        _
      // Predicated region
      $region97: #{coseg_forward_pallas.1} parent=91 // pred_check
        %p9503 = pneg %p403
      $region98: #{coseg_forward_pallas.1} parent=91 // pred_check_branch
        %9505 = sbr.rel (%p9503) target = $region100
      $region99: #{coseg_forward_pallas.1} parent=91 // pred_region
        %p9506 = scmp.lt.s32.totalorder %s29, 1
        %s9507 = scalar_select %p9506, %s29, 1
        %s9508 = smul.addr %s9507, 6
        %s9509 = smul.addr %s9508, 2
        %s9510 = scalar_lea.vmem %s16, %s9509
      $region100: #{coseg_forward_pallas.1} parent=91 // pred_fallthru
        _
    $region92: #{coseg_forward_pallas.1} parent=5 // pred_fallthru
      _
  $region6: #{coseg_forward_pallas.1} parent=0 // loop_footer
    %s27 = sadd.s32 1, %s23
  $region7: #{coseg_forward_pallas.1} parent=0 // loop_footer_branch
    %22 = sbr.rel target = $region3
  $region8: #{coseg_forward_pallas.1} parent=0 // loop_exit
    _

</llo_original>
